<compile_context>
chip_gen: v6e
topology: v6e:2x2x1
jax: 0.10.0
libtpu: 0.0.40
codegen_flags: <defaults>
</compile_context>

<pallas_src>
import jax
import jax.numpy as jnp
from jax.experimental import pallas as pl
from jax.experimental.pallas import tpu as pltpu

EPS = 1e-5


def _round_up(x, m):
    return (x + m - 1) // m * m


def _pick_row_tile(m, cap=1024):
    # Prefer the largest tile that still yields >= 2 grid steps (pipelining/megacore).
    cands = (1024, 512, 256, 128, 64, 32, 16, 8)
    for t in cands:
        if t <= cap and m % t == 0 and m // t >= 2:
            return t
    for t in cands:
        if t <= cap and m % t == 0:
            return t
    return m  # full-M block fallback (always legal; see TODO above)


def _vmem_limit_bytes():
    cap = 128 * 1024 * 1024
    try:
        cap = int(pltpu.get_tpu_info().vmem_capacity_bytes)
    except Exception:
        pass
    # ~75% of physical: 96 MiB on v5e/v6e (128 MiB), 48 MiB on v7x (64 MiB).
    return max(32 * 1024 * 1024, min(96 * 1024 * 1024, (cap * 3) // 4))


# ---------------------------------------------------------------------------
# Kernels
# ---------------------------------------------------------------------------
def _conv1_stats_kernel(x_ref, w_ref, y_ref, st_ref):
    # conv1 (1x1) as a row-tiled matmul (bf16 in, f32 acc); emit per-tile BN1 stats
    # in f32 and store the activation in bf16.
    y = jnp.dot(x_ref[...], w_ref[...], preferred_element_type=jnp.float32)
    y_ref[...] = y.astype(jnp.bfloat16)
    st_ref[0, 0:1, :] = jnp.sum(y, axis=0, keepdims=True)
    st_ref[0, 1:2, :] = jnp.sum(y * y, axis=0, keepdims=True)


def _bnrelu_conv3x3_stats_kernel(y1_ref, sc_ref, sh_ref, w2_ref,
                                 y2_ref, st_ref, zpad_ref, col_ref):
    # bn1+relu folded into the load (f32 math, cast once to bf16), explicit im2col
    # into a bf16 VMEM buffer, ONE large-K matmul, per-image partial BN2 stats.
    H, W, C = y1_ref.shape[1], y1_ref.shape[2], y1_ref.shape[3]

    z = jnp.maximum(y1_ref[0].astype(jnp.float32) * sc_ref[...] + sh_ref[...], 0.0)

    # Zero only the 1-wide halo border (interior is fully overwritten below).
    zpad_ref[0:1, :, :] = jnp.zeros((1, W + 2, C), jnp.bfloat16)
    zpad_ref[H + 1:H + 2, :, :] = jnp.zeros((1, W + 2, C), jnp.bfloat16)
    zpad_ref[:, 0:1, :] = jnp.zeros((H + 2, 1, C), jnp.bfloat16)
    zpad_ref[:, W + 1:W + 2, :] = jnp.zeros((H + 2, 1, C), jnp.bfloat16)
    zpad_ref[1:H + 1, 1:W + 1, :] = z.astype(jnp.bfloat16)

    # Explicit im2col: col[:, t*C:(t+1)*C] = tap (dh, dw), t = dh*3 + dw.
    for dh in range(3):
        for dw in range(3):
            t = dh * 3 + dw
            tap = zpad_ref[dh:dh + H, dw:dw + W, :].reshape(H * W, C)
            col_ref[:, t * C:(t + 1) * C] = tap

    # Single matmul with K = 9*C (keeps the 256-wide MXU fed), f32 accumulation.
    y2 = jnp.dot(col_ref[...], w2_ref[...], preferred_element_type=jnp.float32)
    y2_ref[0] = y2.astype(jnp.bfloat16)
    st_ref[0, 0:1, :] = jnp.sum(y2, axis=0, keepdims=True)
    st_ref[0, 1:2, :] = jnp.sum(y2 * y2, axis=0, keepdims=True)


def _bnrelu_conv1x1_stats_kernel(y_ref, sc_ref, sh_ref, w_ref, o_ref, st_ref):
    # bn2+relu folded into the load, conv3 (1x1) matmul, partial BN3 stats.
    z = jnp.maximum(y_ref[...].astype(jnp.float32) * sc_ref[...] + sh_ref[...], 0.0)
    y = jnp.dot(z.astype(jnp.bfloat16), w_ref[...], preferred_element_type=jnp.float32)
    o_ref[...] = y.astype(jnp.bfloat16)
    st_ref[0, 0:1, :] = jnp.sum(y, axis=0, keepdims=True)
    st_ref[0, 1:2, :] = jnp.sum(y * y, axis=0, keepdims=True)


def _bn_add_relu_kernel(y_ref, sc_ref, sh_ref, r_ref, o_ref):
    # Finalize: bn3 (folded scale/shift) + residual + ReLU (f32 math, f32 out).
    o_ref[...] = jnp.maximum(
        y_ref[...].astype(jnp.float32) * sc_ref[...] + sh_ref[...]
        + r_ref[...].astype(jnp.float32), 0.0)


# ---------------------------------------------------------------------------
# Glue: fold per-channel BN stats into a single scale/shift (tiny (C,)-sized math)
# ---------------------------------------------------------------------------
def _fold_bn(partial_stats, m, gamma, beta):
    s = jnp.sum(partial_stats, axis=0)           # (2, C) : [sum, sum_sq]
    mean = s[0] / m
    var = jnp.maximum(s[1] / m - mean * mean, 0.0)   # clamp: cancellation guard
    scale = gamma * jax.lax.rsqrt(var + EPS)
    shift = beta - mean * scale
    return (scale.reshape(1, -1).astype(jnp.float32),
            shift.reshape(1, -1).astype(jnp.float32))


# ---------------------------------------------------------------------------
# Bottleneck forward
# ---------------------------------------------------------------------------
def bottleneck_forward(x_nchw, params):
    N, Cin, H, W = x_nchw.shape
    P = params["w1"].shape[0]                                   # planes
    assert Cin == 2 * P, "residual add requires inplanes == planes * expansion"

    f32, bf16 = jnp.float32, jnp.bfloat16
    Cp = _round_up(P, 128)                                      # lane-dense hidden width
    C2p = _round_up(Cin, 128)                                   # lane-dense in/out width
    M = N * H * W
    TM = _pick_row_tile(M)
    nt = M // TM

    # Layout glue (API boundary is NCHW): NHWC, flatten to (M, C), pad channels to
    # a multiple of 128 only if needed, store residual/input in bf16.
    x2d = jnp.transpose(x_nchw, (0, 2, 3, 1)).reshape(M, Cin)
    if C2p != Cin:
        x2d = jnp.pad(x2d, ((0, 0), (0, C2p - Cin)))
    x2d = x2d.astype(bf16)

    # Weights in (Cin, Cout) layout, zero-padded, bf16 for the MXU.
    w1 = jnp.pad(params["w1"][:, :, 0, 0].T,
                 ((0, C2p - Cin), (0, Cp - P))).astype(bf16)                  # (C2p, Cp)
    w2 = jnp.pad(jnp.transpose(params["w2"], (2, 3, 1, 0)),
                 ((0, 0), (0, 0), (0, Cp - P), (0, Cp - P))).astype(bf16)     # (3,3,Cp,Cp)
    w2 = w2.reshape(9 * Cp, Cp)                                               # im2col layout
    w3 = jnp.pad(params["w3"][:, :, 0, 0].T,
                 ((0, Cp - P), (0, C2p - 2 * P))).astype(bf16)                # (Cp, C2p)
    g1 = jnp.pad(params["g1"], (0, Cp - P));      be1 = jnp.pad(params["b1"], (0, Cp - P))
    g2 = jnp.pad(params["g2"], (0, Cp - P));      be2 = jnp.pad(params["b2"], (0, Cp - P))
    g3 = jnp.pad(params["g3"], (0, C2p - 2 * P)); be3 = jnp.pad(params["b3"], (0, C2p - 2 * P))

    cparams = pltpu.CompilerParams(dimension_semantics=("parallel",),
                                   vmem_limit_bytes=_vmem_limit_bytes())

    # ---- stage 1: conv1 (1x1) + partial bn1 stats, tiled over M rows ----
    y1, st1 = pl.pallas_call(
        _conv1_stats_kernel,
        grid=(nt,),
        in_specs=[pl.BlockSpec((TM, C2p), lambda i: (i, 0)),
                  pl.BlockSpec((C2p, Cp), lambda i: (0, 0))],        # weights stay resident
        out_specs=(pl.BlockSpec((TM, Cp), lambda i: (i, 0)),
                   pl.BlockSpec((1, 2, Cp), lambda i: (i, 0, 0))),
        out_shape=(jax.ShapeDtypeStruct((M, Cp), bf16),
                   jax.ShapeDtypeStruct((nt, 2, Cp), f32)),
        compiler_params=cparams,
    )(x2d, w1)
    sc1, sh1 = _fold_bn(st1, M, g1, be1)

    # ---- stage 2: bn1+relu folded into load, 3x3 conv via in-VMEM im2col + bn2 stats ----
    y2, st2 = pl.pallas_call(
        _bnrelu_conv3x3_stats_kernel,
        grid=(N,),
        in_specs=[pl.BlockSpec((1, H, W, Cp), lambda n: (n, 0, 0, 0)),
                  pl.BlockSpec((1, Cp), lambda n: (0, 0)),
                  pl.BlockSpec((1, Cp), lambda n: (0, 0)),
                  pl.BlockSpec((9 * Cp, Cp), lambda n: (0, 0))],
        out_specs=(pl.BlockSpec((1, H * W, Cp), lambda n: (n, 0, 0)),
                   pl.BlockSpec((1, 2, Cp), lambda n: (n, 0, 0))),
        out_shape=(jax.ShapeDtypeStruct((N, H * W, Cp), bf16),
                   jax.ShapeDtypeStruct((N, 2, Cp), f32)),
        scratch_shapes=[pltpu.VMEM((H + 2, W + 2, Cp), bf16),    # zero-halo activation
                        pltpu.VMEM((H * W, 9 * Cp), bf16)],      # im2col buffer
        compiler_params=cparams,
    )(y1.reshape(N, H, W, Cp), sc1, sh1, w2)
    sc2, sh2 = _fold_bn(st2, M, g2, be2)

    # ---- stage 3: bn2+relu folded into load, conv3 (1x1) + partial bn3 stats ----
    y3, st3 = pl.pallas_call(
        _bnrelu_conv1x1_stats_kernel,
        grid=(nt,),
        in_specs=[pl.BlockSpec((TM, Cp), lambda i: (i, 0)),
                  pl.BlockSpec((1, Cp), lambda i: (0, 0)),
                  pl.BlockSpec((1, Cp), lambda i: (0, 0)),
                  pl.BlockSpec((Cp, C2p), lambda i: (0, 0))],
        out_specs=(pl.BlockSpec((TM, C2p), lambda i: (i, 0)),
                   pl.BlockSpec((1, 2, C2p), lambda i: (i, 0, 0))),
        out_shape=(jax.ShapeDtypeStruct((M, C2p), bf16),
                   jax.ShapeDtypeStruct((nt, 2, C2p), f32)),
        compiler_params=cparams,
    )(y2.reshape(M, Cp), sc2, sh2, w3)
    sc3, sh3 = _fold_bn(st3, M, g3, be3)

    # ---- stage 4: bn3 + residual + relu (elementwise finalize) ----
    out = pl.pallas_call(
        _bn_add_relu_kernel,
        grid=(nt,),
        in_specs=[pl.BlockSpec((TM, C2p), lambda i: (i, 0)),
                  pl.BlockSpec((1, C2p), lambda i: (0, 0)),
                  pl.BlockSpec((1, C2p), lambda i: (0, 0)),
                  pl.BlockSpec((TM, C2p), lambda i: (i, 0))],
        out_specs=pl.BlockSpec((TM, C2p), lambda i: (i, 0)),
        out_shape=jax.ShapeDtypeStruct((M, C2p), f32),
        compiler_params=cparams,
    )(y3, sc3, sh3, x2d)

    if C2p != Cin:
        out = out[:, :Cin]
    out = out.reshape(N, H, W, Cin)
    return jnp.transpose(out, (0, 3, 1, 2))                     # back to NCHW


# ---------------------------------------------------------------------------
# Pure-JAX reference (NCHW, lax.conv).  Conv operands are cast to bf16 so the
# reference matches the kernel's MXU input precision; BN (training-mode batch
# stats), residual and ReLU semantics are exactly those of the PyTorch module.
# ---------------------------------------------------------------------------
def bottleneck_reference(x, params):
    def bn(y, g, b):
        mean = y.mean(axis=(0, 2, 3), keepdims=True)
        var = ((y - mean) ** 2).mean(axis=(0, 2, 3), keepdims=True)
        return (y - mean) * jax.lax.rsqrt(var + EPS) * g.reshape(1, -1, 1, 1) + b.reshape(1, -1, 1, 1)

    def conv(x, w, pad):
        return jax.lax.conv_general_dilated(
            x.astype(jnp.bfloat16), w.astype(jnp.bfloat16), (1, 1), pad,
            dimension_numbers=("NCHW", "OIHW", "NCHW"),
            preferred_element_type=jnp.float32)

    out = jnp.maximum(bn(conv(x, params["w1"], "VALID"), params["g1"], params["b1"]), 0.0)
    out = jnp.maximum(bn(conv(out, params["w2"], ((1, 1), (1, 1))), params["g2"], params["b2"]), 0.0)
    out = bn(conv(out, params["w3"], "VALID"), params["g3"], params["b3"])
    return jnp.maximum(out + x, 0.0)


def init_params(key, inplanes, planes):
    ks = jax.random.split(key, 6)
    return {
        "w1": 0.1 * jax.random.normal(ks[0], (planes, inplanes, 1, 1), jnp.float32),
        "w2": 0.1 * jax.random.normal(ks[1], (planes, planes, 3, 3), jnp.float32),
        "w3": 0.1 * jax.random.normal(ks[2], (planes * 2, planes, 1, 1), jnp.float32),
        "g1": jax.random.uniform(ks[3], (planes,), jnp.float32, 0.8, 1.2),
        "b1": 0.05 * jax.random.normal(ks[3], (planes,), jnp.float32),
        "g2": jax.random.uniform(ks[4], (planes,), jnp.float32, 0.8, 1.2),
        "b2": 0.05 * jax.random.normal(ks[4], (planes,), jnp.float32),
        "g3": jax.random.uniform(ks[5], (planes * 2,), jnp.float32, 0.8, 1.2),
        "b3": 0.05 * jax.random.normal(ks[5], (planes * 2,), jnp.float32),
    }


if __name__ == "__main__":
    key = jax.random.PRNGKey(0)
    k_x, k_p = jax.random.split(key)

    N, planes, H, W = 2, 4, 16, 16
    inplanes = planes * 2                       # expansion=2 so the residual add is valid
    x = jax.random.normal(k_x, (N, inplanes, H, W), jnp.float32)
    params = init_params(k_p, inplanes, planes)

    fwd = jax.jit(bottleneck_forward)
    out = jax.block_until_ready(fwd(x, params))
    ref = jax.block_until_ready(bottleneck_reference(x, params))

    assert out.shape == (N, inplanes, H, W)
    err = float(jnp.max(jnp.abs(out - ref)))
    assert err < 5e-2, f"mismatch vs. JAX reference (max abs err={err})"
    print("KERNEL_OK")
</pallas_src>

<mosaic_0001>
module attributes {stable_mosaic.version = 11 : i64} {
  func.func @_conv1_stats_kernel(%arg0: i32, %arg1: memref<256x128xbf16, #tpu.memory_space<vmem>>, %arg2: memref<128x128xbf16, #tpu.memory_space<vmem>>, %arg3: memref<256x128xbf16, #tpu.memory_space<vmem>>, %arg4: memref<1x2x128xf32, #tpu.memory_space<vmem>>) attributes {dimension_semantics = [#tpu.dimension_semantics<parallel>], iteration_bounds = array<i64: 2>, scalar_prefetch = 0 : i64, scratch_operands = 0 : i64, tpu.core_type = #tpu.core_type<tc>, window_params = [{transform_indices = @transform_0, window_bounds = array<i64: 256, 128>}, {pipeline_mode = #tpu.pipeline_mode<synchronous>, transform_indices = @transform_1, window_bounds = array<i64: 128, 128>}, {transform_indices = @transform_2, window_bounds = array<i64: 256, 128>}, {transform_indices = @transform_3, window_bounds = array<i64: 1, 2, 128>}]} {
    %c0 = arith.constant 0 : index
    %c0_0 = arith.constant 0 : index
    %0 = vector.load %arg1[%c0, %c0_0] : memref<256x128xbf16, #tpu.memory_space<vmem>>, vector<256x128xbf16>
    %c0_1 = arith.constant 0 : index
    %c0_2 = arith.constant 0 : index
    %1 = vector.load %arg2[%c0_1, %c0_2] : memref<128x128xbf16, #tpu.memory_space<vmem>>, vector<128x128xbf16>
    %cst = arith.constant dense<0.000000e+00> : vector<256x128xf32>
    %2 = tpu.matmul %0, %1, %cst {dimension_numbers = #tpu.dot_dimension_numbers<[1], [0], [0], [1], [0, 0, 1, 1], [], []>} : vector<256x128xbf16>, vector<128x128xbf16>, vector<256x128xf32> -> vector<256x128xf32>
    %3 = arith.truncf %2 : vector<256x128xf32> to vector<256x128xbf16>
    %c0_3 = arith.constant 0 : index
    %c0_4 = arith.constant 0 : index
    %4 = vector.load %arg3[%c0_3, %c0_4] : memref<256x128xbf16, #tpu.memory_space<vmem>>, vector<256x128xbf16>
    tpu.vector_store %arg3[%c0_3, %c0_4], %3 {strides = array<i32>} : memref<256x128xbf16, #tpu.memory_space<vmem>>, vector<256x128xbf16>,
    %cst_5 = arith.constant dense<0.000000e+00> : vector<128xf32>
    %5 = vector.multi_reduction <add>, %2, %cst_5 [0] : vector<256x128xf32> to vector<128xf32>
    %6 = vector.shape_cast %5 : vector<128xf32> to vector<1x128xf32>
    %c0_6 = arith.constant 0 : index
    %c0_7 = arith.constant 0 : index
    %c0_8 = arith.constant 0 : index
    %7 = vector.load %arg4[%c0_6, %c0_7, %c0_8] : memref<1x2x128xf32, #tpu.memory_space<vmem>>, vector<1x1x128xf32>
    %8 = vector.shape_cast %7 : vector<1x1x128xf32> to vector<1x128xf32>
    %9 = vector.shape_cast %6 : vector<1x128xf32> to vector<1x1x128xf32>
    tpu.vector_store %arg4[%c0_6, %c0_7, %c0_8], %9 {strides = array<i32>} : memref<1x2x128xf32, #tpu.memory_space<vmem>>, vector<1x1x128xf32>,
    %10 = arith.mulf %2, %2 : vector<256x128xf32>
    %cst_9 = arith.constant dense<0.000000e+00> : vector<128xf32>
    %11 = vector.multi_reduction <add>, %10, %cst_9 [0] : vector<256x128xf32> to vector<128xf32>
    %12 = vector.shape_cast %11 : vector<128xf32> to vector<1x128xf32>
    %c0_10 = arith.constant 0 : index
    %c1 = arith.constant 1 : index
    %c0_11 = arith.constant 0 : index
    %13 = vector.load %arg4[%c0_10, %c1, %c0_11] : memref<1x2x128xf32, #tpu.memory_space<vmem>>, vector<1x1x128xf32>
    %14 = vector.shape_cast %13 : vector<1x1x128xf32> to vector<1x128xf32>
    %15 = vector.shape_cast %12 : vector<1x128xf32> to vector<1x1x128xf32>
    tpu.vector_store %arg4[%c0_10, %c1, %c0_11], %15 {strides = array<i32>} : memref<1x2x128xf32, #tpu.memory_space<vmem>>, vector<1x1x128xf32>,
    return
  }
  func.func @transform_0(%arg0: i32) -> (i32, i32) {
    %c0_i32 = arith.constant 0 : i32
    %c0_i32_0 = arith.constant 0 : i32
    return %arg0, %c0_i32 : i32, i32
  }
  func.func @transform_1(%arg0: i32) -> (i32, i32) {
    %c0_i32 = arith.constant 0 : i32
    %c0_i32_0 = arith.constant 0 : i32
    %c0_i32_1 = arith.constant 0 : i32
    return %c0_i32, %c0_i32_0 : i32, i32
  }
  func.func @transform_2(%arg0: i32) -> (i32, i32) {
    %c0_i32 = arith.constant 0 : i32
    %c0_i32_0 = arith.constant 0 : i32
    return %arg0, %c0_i32 : i32, i32
  }
  func.func @transform_3(%arg0: i32) -> (i32, i32, i32) {
    %c0_i32 = arith.constant 0 : i32
    %c0_i32_0 = arith.constant 0 : i32
    %c0_i32_1 = arith.constant 0 : i32
    return %arg0, %c0_i32, %c0_i32_0 : i32, i32, i32
  }
}

module attributes {stable_mosaic.version = 11 : i64} {
  func.func @_bnrelu_conv1x1_stats_kernel(%arg0: i32, %arg1: memref<256x128xbf16, #tpu.memory_space<vmem>>, %arg2: memref<1x128xf32, #tpu.memory_space<vmem>>, %arg3: memref<1x128xf32, #tpu.memory_space<vmem>>, %arg4: memref<128x128xbf16, #tpu.memory_space<vmem>>, %arg5: memref<256x128xbf16, #tpu.memory_space<vmem>>, %arg6: memref<1x2x128xf32, #tpu.memory_space<vmem>>) attributes {dimension_semantics = [#tpu.dimension_semantics<parallel>], iteration_bounds = array<i64: 2>, scalar_prefetch = 0 : i64, scratch_operands = 0 : i64, tpu.core_type = #tpu.core_type<tc>, window_params = [{transform_indices = @transform_0, window_bounds = array<i64: 256, 128>}, {pipeline_mode = #tpu.pipeline_mode<synchronous>, transform_indices = @transform_1, window_bounds = array<i64: 1, 128>}, {pipeline_mode = #tpu.pipeline_mode<synchronous>, transform_indices = @transform_2, window_bounds = array<i64: 1, 128>}, {pipeline_mode = #tpu.pipeline_mode<synchronous>, transform_indices = @transform_3, window_bounds = array<i64: 128, 128>}, {transform_indices = @transform_4, window_bounds = array<i64: 256, 128>}, {transform_indices = @transform_5, window_bounds = array<i64: 1, 2, 128>}]} {
    %c0 = arith.constant 0 : index
    %c0_0 = arith.constant 0 : index
    %0 = vector.load %arg1[%c0, %c0_0] : memref<256x128xbf16, #tpu.memory_space<vmem>>, vector<256x128xbf16>
    %1 = arith.extf %0 : vector<256x128xbf16> to vector<256x128xf32>
    %c0_1 = arith.constant 0 : index
    %c0_2 = arith.constant 0 : index
    %2 = vector.load %arg2[%c0_1, %c0_2] : memref<1x128xf32, #tpu.memory_space<vmem>>, vector<1x128xf32>
    %3 = vector.broadcast %2 : vector<1x128xf32> to vector<256x128xf32>
    %4 = arith.mulf %1, %3 : vector<256x128xf32>
    %c0_3 = arith.constant 0 : index
    %c0_4 = arith.constant 0 : index
    %5 = vector.load %arg3[%c0_3, %c0_4] : memref<1x128xf32, #tpu.memory_space<vmem>>, vector<1x128xf32>
    %6 = vector.broadcast %5 : vector<1x128xf32> to vector<256x128xf32>
    %7 = arith.addf %4, %6 : vector<256x128xf32>
    %cst = arith.constant 0.000000e+00 : f32
    %8 = vector.broadcast %cst : f32 to vector<256x128xf32>
    %9 = arith.maximumf %7, %8 : vector<256x128xf32>
    %10 = arith.truncf %9 : vector<256x128xf32> to vector<256x128xbf16>
    %c0_5 = arith.constant 0 : index
    %c0_6 = arith.constant 0 : index
    %11 = vector.load %arg4[%c0_5, %c0_6] : memref<128x128xbf16, #tpu.memory_space<vmem>>, vector<128x128xbf16>
    %cst_7 = arith.constant dense<0.000000e+00> : vector<256x128xf32>
    %12 = tpu.matmul %10, %11, %cst_7 {dimension_numbers = #tpu.dot_dimension_numbers<[1], [0], [0], [1], [0, 0, 1, 1], [], []>} : vector<256x128xbf16>, vector<128x128xbf16>, vector<256x128xf32> -> vector<256x128xf32>
    %13 = arith.truncf %12 : vector<256x128xf32> to vector<256x128xbf16>
    %c0_8 = arith.constant 0 : index
    %c0_9 = arith.constant 0 : index
    %14 = vector.load %arg5[%c0_8, %c0_9] : memref<256x128xbf16, #tpu.memory_space<vmem>>, vector<256x128xbf16>
    tpu.vector_store %arg5[%c0_8, %c0_9], %13 {strides = array<i32>} : memref<256x128xbf16, #tpu.memory_space<vmem>>, vector<256x128xbf16>,
    %cst_10 = arith.constant dense<0.000000e+00> : vector<128xf32>
    %15 = vector.multi_reduction <add>, %12, %cst_10 [0] : vector<256x128xf32> to vector<128xf32>
    %16 = vector.shape_cast %15 : vector<128xf32> to vector<1x128xf32>
    %c0_11 = arith.constant 0 : index
    %c0_12 = arith.constant 0 : index
    %c0_13 = arith.constant 0 : index
    %17 = vector.load %arg6[%c0_11, %c0_12, %c0_13] : memref<1x2x128xf32, #tpu.memory_space<vmem>>, vector<1x1x128xf32>
    %18 = vector.shape_cast %17 : vector<1x1x128xf32> to vector<1x128xf32>
    %19 = vector.shape_cast %16 : vector<1x128xf32> to vector<1x1x128xf32>
    tpu.vector_store %arg6[%c0_11, %c0_12, %c0_13], %19 {strides = array<i32>} : memref<1x2x128xf32, #tpu.memory_space<vmem>>, vector<1x1x128xf32>,
    %20 = arith.mulf %12, %12 : vector<256x128xf32>
    %cst_14 = arith.constant dense<0.000000e+00> : vector<128xf32>
    %21 = vector.multi_reduction <add>, %20, %cst_14 [0] : vector<256x128xf32> to vector<128xf32>
    %22 = vector.shape_cast %21 : vector<128xf32> to vector<1x128xf32>
    %c0_15 = arith.constant 0 : index
    %c1 = arith.constant 1 : index
    %c0_16 = arith.constant 0 : index
    %23 = vector.load %arg6[%c0_15, %c1, %c0_16] : memref<1x2x128xf32, #tpu.memory_space<vmem>>, vector<1x1x128xf32>
    %24 = vector.shape_cast %23 : vector<1x1x128xf32> to vector<1x128xf32>
    %25 = vector.shape_cast %22 : vector<1x128xf32> to vector<1x1x128xf32>
    tpu.vector_store %arg6[%c0_15, %c1, %c0_16], %25 {strides = array<i32>} : memref<1x2x128xf32, #tpu.memory_space<vmem>>, vector<1x1x128xf32>,
    return
  }
  func.func @transform_0(%arg0: i32) -> (i32, i32) {
    %c0_i32 = arith.constant 0 : i32
    %c0_i32_0 = arith.constant 0 : i32
    return %arg0, %c0_i32 : i32, i32
  }
  func.func @transform_1(%arg0: i32) -> (i32, i32) {
    %c0_i32 = arith.constant 0 : i32
    %c0_i32_0 = arith.constant 0 : i32
    %c0_i32_1 = arith.constant 0 : i32
    return %c0_i32, %c0_i32_0 : i32, i32
  }
  func.func @transform_2(%arg0: i32) -> (i32, i32) {
    %c0_i32 = arith.constant 0 : i32
    %c0_i32_0 = arith.constant 0 : i32
    %c0_i32_1 = arith.constant 0 : i32
    return %c0_i32, %c0_i32_0 : i32, i32
  }
  func.func @transform_3(%arg0: i32) -> (i32, i32) {
    %c0_i32 = arith.constant 0 : i32
    %c0_i32_0 = arith.constant 0 : i32
    %c0_i32_1 = arith.constant 0 : i32
    return %c0_i32, %c0_i32_0 : i32, i32
  }
  func.func @transform_4(%arg0: i32) -> (i32, i32) {
    %c0_i32 = arith.constant 0 : i32
    %c0_i32_0 = arith.constant 0 : i32
    return %arg0, %c0_i32 : i32, i32
  }
  func.func @transform_5(%arg0: i32) -> (i32, i32, i32) {
    %c0_i32 = arith.constant 0 : i32
    %c0_i32_0 = arith.constant 0 : i32
    %c0_i32_1 = arith.constant 0 : i32
    return %arg0, %c0_i32, %c0_i32_0 : i32, i32, i32
  }
}

module attributes {stable_mosaic.version = 11 : i64} {
  func.func @_bnrelu_conv3x3_stats_kernel(%arg0: i32, %arg1: memref<1x16x16x128xbf16, #tpu.memory_space<vmem>>, %arg2: memref<1x128xf32, #tpu.memory_space<vmem>>, %arg3: memref<1x128xf32, #tpu.memory_space<vmem>>, %arg4: memref<1152x128xbf16, #tpu.memory_space<vmem>>, %arg5: memref<1x256x128xbf16, #tpu.memory_space<vmem>>, %arg6: memref<1x2x128xf32, #tpu.memory_space<vmem>>, %arg7: memref<18x18x128xbf16, #tpu.memory_space<vmem>>, %arg8: memref<256x1152xbf16, #tpu.memory_space<vmem>>) attributes {dimension_semantics = [#tpu.dimension_semantics<parallel>], iteration_bounds = array<i64: 2>, scalar_prefetch = 0 : i64, scratch_operands = 2 : i64, tpu.core_type = #tpu.core_type<tc>, window_params = [{transform_indices = @transform_0, window_bounds = array<i64: 1, 16, 16, 128>}, {pipeline_mode = #tpu.pipeline_mode<synchronous>, transform_indices = @transform_1, window_bounds = array<i64: 1, 128>}, {pipeline_mode = #tpu.pipeline_mode<synchronous>, transform_indices = @transform_2, window_bounds = array<i64: 1, 128>}, {pipeline_mode = #tpu.pipeline_mode<synchronous>, transform_indices = @transform_3, window_bounds = array<i64: 1152, 128>}, {transform_indices = @transform_4, window_bounds = array<i64: 1, 256, 128>}, {transform_indices = @transform_5, window_bounds = array<i64: 1, 2, 128>}]} {
    %c0 = arith.constant 0 : index
    %c0_0 = arith.constant 0 : index
    %c0_1 = arith.constant 0 : index
    %c0_2 = arith.constant 0 : index
    %0 = vector.load %arg1[%c0, %c0_0, %c0_1, %c0_2] : memref<1x16x16x128xbf16, #tpu.memory_space<vmem>>, vector<1x16x16x128xbf16>
    %1 = vector.shape_cast %0 : vector<1x16x16x128xbf16> to vector<16x16x128xbf16>
    %2 = arith.extf %1 : vector<16x16x128xbf16> to vector<16x16x128xf32>
    %c0_3 = arith.constant 0 : index
    %c0_4 = arith.constant 0 : index
    %3 = vector.load %arg2[%c0_3, %c0_4] : memref<1x128xf32, #tpu.memory_space<vmem>>, vector<1x128xf32>
    %4 = vector.shape_cast %3 : vector<1x128xf32> to vector<1x1x128xf32>
    %5 = vector.broadcast %4 : vector<1x1x128xf32> to vector<16x16x128xf32>
    %6 = arith.mulf %2, %5 : vector<16x16x128xf32>
    %c0_5 = arith.constant 0 : index
    %c0_6 = arith.constant 0 : index
    %7 = vector.load %arg3[%c0_5, %c0_6] : memref<1x128xf32, #tpu.memory_space<vmem>>, vector<1x128xf32>
    %8 = vector.shape_cast %7 : vector<1x128xf32> to vector<1x1x128xf32>
    %9 = vector.broadcast %8 : vector<1x1x128xf32> to vector<16x16x128xf32>
    %10 = arith.addf %6, %9 : vector<16x16x128xf32>
    %cst = arith.constant 0.000000e+00 : f32
    %11 = vector.broadcast %cst : f32 to vector<16x16x128xf32>
    %12 = arith.maximumf %10, %11 : vector<16x16x128xf32>
    %cst_7 = arith.constant 0.000000e+00 : bf16
    %13 = vector.broadcast %cst_7 : bf16 to vector<1x18x128xbf16>
    %c0_8 = arith.constant 0 : index
    %c0_9 = arith.constant 0 : index
    %c0_10 = arith.constant 0 : index
    %14 = vector.load %arg7[%c0_8, %c0_9, %c0_10] : memref<18x18x128xbf16, #tpu.memory_space<vmem>>, vector<1x18x128xbf16>
    tpu.vector_store %arg7[%c0_8, %c0_9, %c0_10], %13 {strides = array<i32>} : memref<18x18x128xbf16, #tpu.memory_space<vmem>>, vector<1x18x128xbf16>,
    %cst_11 = arith.constant 0.000000e+00 : bf16
    %15 = vector.broadcast %cst_11 : bf16 to vector<1x18x128xbf16>
    %c17 = arith.constant 17 : index
    %c0_12 = arith.constant 0 : index
    %c0_13 = arith.constant 0 : index
    %16 = vector.load %arg7[%c17, %c0_12, %c0_13] : memref<18x18x128xbf16, #tpu.memory_space<vmem>>, vector<1x18x128xbf16>
    tpu.vector_store %arg7[%c17, %c0_12, %c0_13], %15 {strides = array<i32>} : memref<18x18x128xbf16, #tpu.memory_space<vmem>>, vector<1x18x128xbf16>,
    %cst_14 = arith.constant 0.000000e+00 : bf16
    %17 = vector.broadcast %cst_14 : bf16 to vector<18x1x128xbf16>
    %c0_15 = arith.constant 0 : index
    %c0_16 = arith.constant 0 : index
    %c0_17 = arith.constant 0 : index
    %18 = vector.load %arg7[%c0_15, %c0_16, %c0_17] : memref<18x18x128xbf16, #tpu.memory_space<vmem>>, vector<18x1x128xbf16>
    tpu.vector_store %arg7[%c0_15, %c0_16, %c0_17], %17 {strides = array<i32>} : memref<18x18x128xbf16, #tpu.memory_space<vmem>>, vector<18x1x128xbf16>,
    %cst_18 = arith.constant 0.000000e+00 : bf16
    %19 = vector.broadcast %cst_18 : bf16 to vector<18x1x128xbf16>
    %c0_19 = arith.constant 0 : index
    %c17_20 = arith.constant 17 : index
    %c0_21 = arith.constant 0 : index
    %20 = vector.load %arg7[%c0_19, %c17_20, %c0_21] : memref<18x18x128xbf16, #tpu.memory_space<vmem>>, vector<18x1x128xbf16>
    tpu.vector_store %arg7[%c0_19, %c17_20, %c0_21], %19 {strides = array<i32>} : memref<18x18x128xbf16, #tpu.memory_space<vmem>>, vector<18x1x128xbf16>,
    %21 = arith.truncf %12 : vector<16x16x128xf32> to vector<16x16x128xbf16>
    %c1 = arith.constant 1 : index
    %c1_22 = arith.constant 1 : index
    %c0_23 = arith.constant 0 : index
    %22 = vector.load %arg7[%c1, %c1_22, %c0_23] : memref<18x18x128xbf16, #tpu.memory_space<vmem>>, vector<16x16x128xbf16>
    tpu.vector_store %arg7[%c1, %c1_22, %c0_23], %21 {strides = array<i32>} : memref<18x18x128xbf16, #tpu.memory_space<vmem>>, vector<16x16x128xbf16>,
    %c0_24 = arith.constant 0 : index
    %c0_25 = arith.constant 0 : index
    %c0_26 = arith.constant 0 : index
    %23 = vector.load %arg7[%c0_24, %c0_25, %c0_26] : memref<18x18x128xbf16, #tpu.memory_space<vmem>>, vector<16x16x128xbf16>
    %24 = vector.shape_cast %23 : vector<16x16x128xbf16> to vector<256x128xbf16>
    %c0_27 = arith.constant 0 : index
    %c0_28 = arith.constant 0 : index
    %25 = vector.load %arg8[%c0_27, %c0_28] : memref<256x1152xbf16, #tpu.memory_space<vmem>>, vector<256x128xbf16>
    tpu.vector_store %arg8[%c0_27, %c0_28], %24 {strides = array<i32>} : memref<256x1152xbf16, #tpu.memory_space<vmem>>, vector<256x128xbf16>,
    %c0_29 = arith.constant 0 : index
    %c1_30 = arith.constant 1 : index
    %c0_31 = arith.constant 0 : index
    %26 = vector.load %arg7[%c0_29, %c1_30, %c0_31] : memref<18x18x128xbf16, #tpu.memory_space<vmem>>, vector<16x16x128xbf16>
    %27 = vector.shape_cast %26 : vector<16x16x128xbf16> to vector<256x128xbf16>
    %c0_32 = arith.constant 0 : index
    %c128 = arith.constant 128 : index
    %28 = vector.load %arg8[%c0_32, %c128] : memref<256x1152xbf16, #tpu.memory_space<vmem>>, vector<256x128xbf16>
    tpu.vector_store %arg8[%c0_32, %c128], %27 {strides = array<i32>} : memref<256x1152xbf16, #tpu.memory_space<vmem>>, vector<256x128xbf16>,
    %c0_33 = arith.constant 0 : index
    %c2 = arith.constant 2 : index
    %c0_34 = arith.constant 0 : index
    %29 = vector.load %arg7[%c0_33, %c2, %c0_34] : memref<18x18x128xbf16, #tpu.memory_space<vmem>>, vector<16x16x128xbf16>
    %30 = vector.shape_cast %29 : vector<16x16x128xbf16> to vector<256x128xbf16>
    %c0_35 = arith.constant 0 : index
    %c256 = arith.constant 256 : index
    %31 = vector.load %arg8[%c0_35, %c256] : memref<256x1152xbf16, #tpu.memory_space<vmem>>, vector<256x128xbf16>
    tpu.vector_store %arg8[%c0_35, %c256], %30 {strides = array<i32>} : memref<256x1152xbf16, #tpu.memory_space<vmem>>, vector<256x128xbf16>,
    %c1_36 = arith.constant 1 : index
    %c0_37 = arith.constant 0 : index
    %c0_38 = arith.constant 0 : index
    %32 = vector.load %arg7[%c1_36, %c0_37, %c0_38] : memref<18x18x128xbf16, #tpu.memory_space<vmem>>, vector<16x16x128xbf16>
    %33 = vector.shape_cast %32 : vector<16x16x128xbf16> to vector<256x128xbf16>
    %c0_39 = arith.constant 0 : index
    %c384 = arith.constant 384 : index
    %34 = vector.load %arg8[%c0_39, %c384] : memref<256x1152xbf16, #tpu.memory_space<vmem>>, vector<256x128xbf16>
    tpu.vector_store %arg8[%c0_39, %c384], %33 {strides = array<i32>} : memref<256x1152xbf16, #tpu.memory_space<vmem>>, vector<256x128xbf16>,
    %c1_40 = arith.constant 1 : index
    %c1_41 = arith.constant 1 : index
    %c0_42 = arith.constant 0 : index
    %35 = vector.load %arg7[%c1_40, %c1_41, %c0_42] : memref<18x18x128xbf16, #tpu.memory_space<vmem>>, vector<16x16x128xbf16>
    %36 = vector.shape_cast %35 : vector<16x16x128xbf16> to vector<256x128xbf16>
    %c0_43 = arith.constant 0 : index
    %c512 = arith.constant 512 : index
    %37 = vector.load %arg8[%c0_43, %c512] : memref<256x1152xbf16, #tpu.memory_space<vmem>>, vector<256x128xbf16>
    tpu.vector_store %arg8[%c0_43, %c512], %36 {strides = array<i32>} : memref<256x1152xbf16, #tpu.memory_space<vmem>>, vector<256x128xbf16>,
    %c1_44 = arith.constant 1 : index
    %c2_45 = arith.constant 2 : index
    %c0_46 = arith.constant 0 : index
    %38 = vector.load %arg7[%c1_44, %c2_45, %c0_46] : memref<18x18x128xbf16, #tpu.memory_space<vmem>>, vector<16x16x128xbf16>
    %39 = vector.shape_cast %38 : vector<16x16x128xbf16> to vector<256x128xbf16>
    %c0_47 = arith.constant 0 : index
    %c640 = arith.constant 640 : index
    %40 = vector.load %arg8[%c0_47, %c640] : memref<256x1152xbf16, #tpu.memory_space<vmem>>, vector<256x128xbf16>
    tpu.vector_store %arg8[%c0_47, %c640], %39 {strides = array<i32>} : memref<256x1152xbf16, #tpu.memory_space<vmem>>, vector<256x128xbf16>,
    %c2_48 = arith.constant 2 : index
    %c0_49 = arith.constant 0 : index
    %c0_50 = arith.constant 0 : index
    %41 = vector.load %arg7[%c2_48, %c0_49, %c0_50] : memref<18x18x128xbf16, #tpu.memory_space<vmem>>, vector<16x16x128xbf16>
    %42 = vector.shape_cast %41 : vector<16x16x128xbf16> to vector<256x128xbf16>
    %c0_51 = arith.constant 0 : index
    %c768 = arith.constant 768 : index
    %43 = vector.load %arg8[%c0_51, %c768] : memref<256x1152xbf16, #tpu.memory_space<vmem>>, vector<256x128xbf16>
    tpu.vector_store %arg8[%c0_51, %c768], %42 {strides = array<i32>} : memref<256x1152xbf16, #tpu.memory_space<vmem>>, vector<256x128xbf16>,
    %c2_52 = arith.constant 2 : index
    %c1_53 = arith.constant 1 : index
    %c0_54 = arith.constant 0 : index
    %44 = vector.load %arg7[%c2_52, %c1_53, %c0_54] : memref<18x18x128xbf16, #tpu.memory_space<vmem>>, vector<16x16x128xbf16>
    %45 = vector.shape_cast %44 : vector<16x16x128xbf16> to vector<256x128xbf16>
    %c0_55 = arith.constant 0 : index
    %c896 = arith.constant 896 : index
    %46 = vector.load %arg8[%c0_55, %c896] : memref<256x1152xbf16, #tpu.memory_space<vmem>>, vector<256x128xbf16>
    tpu.vector_store %arg8[%c0_55, %c896], %45 {strides = array<i32>} : memref<256x1152xbf16, #tpu.memory_space<vmem>>, vector<256x128xbf16>,
    %c2_56 = arith.constant 2 : index
    %c2_57 = arith.constant 2 : index
    %c0_58 = arith.constant 0 : index
    %47 = vector.load %arg7[%c2_56, %c2_57, %c0_58] : memref<18x18x128xbf16, #tpu.memory_space<vmem>>, vector<16x16x128xbf16>
    %48 = vector.shape_cast %47 : vector<16x16x128xbf16> to vector<256x128xbf16>
    %c0_59 = arith.constant 0 : index
    %c1024 = arith.constant 1024 : index
    %49 = vector.load %arg8[%c0_59, %c1024] : memref<256x1152xbf16, #tpu.memory_space<vmem>>, vector<256x128xbf16>
    tpu.vector_store %arg8[%c0_59, %c1024], %48 {strides = array<i32>} : memref<256x1152xbf16, #tpu.memory_space<vmem>>, vector<256x128xbf16>,
    %c0_60 = arith.constant 0 : index
    %c0_61 = arith.constant 0 : index
    %50 = vector.load %arg8[%c0_60, %c0_61] : memref<256x1152xbf16, #tpu.memory_space<vmem>>, vector<256x1152xbf16>
    %c0_62 = arith.constant 0 : index
    %c0_63 = arith.constant 0 : index
    %51 = vector.load %arg4[%c0_62, %c0_63] : memref<1152x128xbf16, #tpu.memory_space<vmem>>, vector<1152x128xbf16>
    %cst_64 = arith.constant dense<0.000000e+00> : vector<256x128xf32>
    %52 = tpu.matmul %50, %51, %cst_64 {dimension_numbers = #tpu.dot_dimension_numbers<[1], [0], [0], [1], [0, 0, 1, 1], [], []>} : vector<256x1152xbf16>, vector<1152x128xbf16>, vector<256x128xf32> -> vector<256x128xf32>
    %53 = arith.truncf %52 : vector<256x128xf32> to vector<256x128xbf16>
    %c0_65 = arith.constant 0 : index
    %c0_66 = arith.constant 0 : index
    %c0_67 = arith.constant 0 : index
    %54 = vector.load %arg5[%c0_65, %c0_66, %c0_67] : memref<1x256x128xbf16, #tpu.memory_space<vmem>>, vector<1x256x128xbf16>
    %55 = vector.shape_cast %54 : vector<1x256x128xbf16> to vector<256x128xbf16>
    %56 = vector.shape_cast %53 : vector<256x128xbf16> to vector<1x256x128xbf16>
    tpu.vector_store %arg5[%c0_65, %c0_66, %c0_67], %56 {strides = array<i32>} : memref<1x256x128xbf16, #tpu.memory_space<vmem>>, vector<1x256x128xbf16>,
    %cst_68 = arith.constant dense<0.000000e+00> : vector<128xf32>
    %57 = vector.multi_reduction <add>, %52, %cst_68 [0] : vector<256x128xf32> to vector<128xf32>
    %58 = vector.shape_cast %57 : vector<128xf32> to vector<1x128xf32>
    %c0_69 = arith.constant 0 : index
    %c0_70 = arith.constant 0 : index
    %c0_71 = arith.constant 0 : index
    %59 = vector.load %arg6[%c0_69, %c0_70, %c0_71] : memref<1x2x128xf32, #tpu.memory_space<vmem>>, vector<1x1x128xf32>
    %60 = vector.shape_cast %59 : vector<1x1x128xf32> to vector<1x128xf32>
    %61 = vector.shape_cast %58 : vector<1x128xf32> to vector<1x1x128xf32>
    tpu.vector_store %arg6[%c0_69, %c0_70, %c0_71], %61 {strides = array<i32>} : memref<1x2x128xf32, #tpu.memory_space<vmem>>, vector<1x1x128xf32>,
    %62 = arith.mulf %52, %52 : vector<256x128xf32>
    %cst_72 = arith.constant dense<0.000000e+00> : vector<128xf32>
    %63 = vector.multi_reduction <add>, %62, %cst_72 [0] : vector<256x128xf32> to vector<128xf32>
    %64 = vector.shape_cast %63 : vector<128xf32> to vector<1x128xf32>
    %c0_73 = arith.constant 0 : index
    %c1_74 = arith.constant 1 : index
    %c0_75 = arith.constant 0 : index
    %65 = vector.load %arg6[%c0_73, %c1_74, %c0_75] : memref<1x2x128xf32, #tpu.memory_space<vmem>>, vector<1x1x128xf32>
    %66 = vector.shape_cast %65 : vector<1x1x128xf32> to vector<1x128xf32>
    %67 = vector.shape_cast %64 : vector<1x128xf32> to vector<1x1x128xf32>
    tpu.vector_store %arg6[%c0_73, %c1_74, %c0_75], %67 {strides = array<i32>} : memref<1x2x128xf32, #tpu.memory_space<vmem>>, vector<1x1x128xf32>,
    return
  }
  func.func @transform_0(%arg0: i32) -> (i32, i32, i32, i32) {
    %c0_i32 = arith.constant 0 : i32
    %c0_i32_0 = arith.constant 0 : i32
    %c0_i32_1 = arith.constant 0 : i32
    %c0_i32_2 = arith.constant 0 : i32
    return %arg0, %c0_i32, %c0_i32_0, %c0_i32_1 : i32, i32, i32, i32
  }
  func.func @transform_1(%arg0: i32) -> (i32, i32) {
    %c0_i32 = arith.constant 0 : i32
    %c0_i32_0 = arith.constant 0 : i32
    %c0_i32_1 = arith.constant 0 : i32
    return %c0_i32, %c0_i32_0 : i32, i32
  }
  func.func @transform_2(%arg0: i32) -> (i32, i32) {
    %c0_i32 = arith.constant 0 : i32
    %c0_i32_0 = arith.constant 0 : i32
    %c0_i32_1 = arith.constant 0 : i32
    return %c0_i32, %c0_i32_0 : i32, i32
  }
  func.func @transform_3(%arg0: i32) -> (i32, i32) {
    %c0_i32 = arith.constant 0 : i32
    %c0_i32_0 = arith.constant 0 : i32
    %c0_i32_1 = arith.constant 0 : i32
    return %c0_i32, %c0_i32_0 : i32, i32
  }
  func.func @transform_4(%arg0: i32) -> (i32, i32, i32) {
    %c0_i32 = arith.constant 0 : i32
    %c0_i32_0 = arith.constant 0 : i32
    %c0_i32_1 = arith.constant 0 : i32
    return %arg0, %c0_i32, %c0_i32_0 : i32, i32, i32
  }
  func.func @transform_5(%arg0: i32) -> (i32, i32, i32) {
    %c0_i32 = arith.constant 0 : i32
    %c0_i32_0 = arith.constant 0 : i32
    %c0_i32_1 = arith.constant 0 : i32
    return %arg0, %c0_i32, %c0_i32_0 : i32, i32, i32
  }
}

module attributes {stable_mosaic.version = 11 : i64} {
  func.func @_bn_add_relu_kernel(%arg0: i32, %arg1: memref<256x128xbf16, #tpu.memory_space<vmem>>, %arg2: memref<1x128xf32, #tpu.memory_space<vmem>>, %arg3: memref<1x128xf32, #tpu.memory_space<vmem>>, %arg4: memref<256x128xbf16, #tpu.memory_space<vmem>>, %arg5: memref<256x128xf32, #tpu.memory_space<vmem>>) attributes {dimension_semantics = [#tpu.dimension_semantics<parallel>], iteration_bounds = array<i64: 2>, scalar_prefetch = 0 : i64, scratch_operands = 0 : i64, tpu.core_type = #tpu.core_type<tc>, window_params = [{transform_indices = @transform_0, window_bounds = array<i64: 256, 128>}, {pipeline_mode = #tpu.pipeline_mode<synchronous>, transform_indices = @transform_1, window_bounds = array<i64: 1, 128>}, {pipeline_mode = #tpu.pipeline_mode<synchronous>, transform_indices = @transform_2, window_bounds = array<i64: 1, 128>}, {transform_indices = @transform_3, window_bounds = array<i64: 256, 128>}, {transform_indices = @transform_4, window_bounds = array<i64: 256, 128>}]} {
    %c0 = arith.constant 0 : index
    %c0_0 = arith.constant 0 : index
    %0 = vector.load %arg1[%c0, %c0_0] : memref<256x128xbf16, #tpu.memory_space<vmem>>, vector<256x128xbf16>
    %1 = arith.extf %0 : vector<256x128xbf16> to vector<256x128xf32>
    %c0_1 = arith.constant 0 : index
    %c0_2 = arith.constant 0 : index
    %2 = vector.load %arg2[%c0_1, %c0_2] : memref<1x128xf32, #tpu.memory_space<vmem>>, vector<1x128xf32>
    %3 = vector.broadcast %2 : vector<1x128xf32> to vector<256x128xf32>
    %4 = arith.mulf %1, %3 : vector<256x128xf32>
    %c0_3 = arith.constant 0 : index
    %c0_4 = arith.constant 0 : index
    %5 = vector.load %arg3[%c0_3, %c0_4] : memref<1x128xf32, #tpu.memory_space<vmem>>, vector<1x128xf32>
    %6 = vector.broadcast %5 : vector<1x128xf32> to vector<256x128xf32>
    %7 = arith.addf %4, %6 : vector<256x128xf32>
    %c0_5 = arith.constant 0 : index
    %c0_6 = arith.constant 0 : index
    %8 = vector.load %arg4[%c0_5, %c0_6] : memref<256x128xbf16, #tpu.memory_space<vmem>>, vector<256x128xbf16>
    %9 = arith.extf %8 : vector<256x128xbf16> to vector<256x128xf32>
    %10 = arith.addf %7, %9 : vector<256x128xf32>
    %cst = arith.constant 0.000000e+00 : f32
    %11 = vector.broadcast %cst : f32 to vector<256x128xf32>
    %12 = arith.maximumf %10, %11 : vector<256x128xf32>
    %c0_7 = arith.constant 0 : index
    %c0_8 = arith.constant 0 : index
    %13 = vector.load %arg5[%c0_7, %c0_8] : memref<256x128xf32, #tpu.memory_space<vmem>>, vector<256x128xf32>
    tpu.vector_store %arg5[%c0_7, %c0_8], %12 {strides = array<i32>} : memref<256x128xf32, #tpu.memory_space<vmem>>, vector<256x128xf32>,
    return
  }
  func.func @transform_0(%arg0: i32) -> (i32, i32) {
    %c0_i32 = arith.constant 0 : i32
    %c0_i32_0 = arith.constant 0 : i32
    return %arg0, %c0_i32 : i32, i32
  }
  func.func @transform_1(%arg0: i32) -> (i32, i32) {
    %c0_i32 = arith.constant 0 : i32
    %c0_i32_0 = arith.constant 0 : i32
    %c0_i32_1 = arith.constant 0 : i32
    return %c0_i32, %c0_i32_0 : i32, i32
  }
  func.func @transform_2(%arg0: i32) -> (i32, i32) {
    %c0_i32 = arith.constant 0 : i32
    %c0_i32_0 = arith.constant 0 : i32
    %c0_i32_1 = arith.constant 0 : i32
    return %c0_i32, %c0_i32_0 : i32, i32
  }
  func.func @transform_3(%arg0: i32) -> (i32, i32) {
    %c0_i32 = arith.constant 0 : i32
    %c0_i32_0 = arith.constant 0 : i32
    return %arg0, %c0_i32 : i32, i32
  }
  func.func @transform_4(%arg0: i32) -> (i32, i32) {
    %c0_i32 = arith.constant 0 : i32
    %c0_i32_0 = arith.constant 0 : i32
    return %arg0, %c0_i32 : i32, i32
  }
}

</mosaic_0001>

<llo_original>
// kernel: bottleneck_forward.4
$region0: #{bottleneck_forward.4}
  #allocation0 [shape = 'u32[]', space=smem, size = 0x4, offset = 0x4, fixed_abs, tag = 'smem constant byte address 0x4 - core index']
  #allocation1 [shape = 'u32[144,128]{1,0:T(1,128)}', space=vmem, size = 0x12000, scoped, tag = 'internal scratch']
  %s0 = inlined_call_operand.vmem [shape: bf16[512,128], index: 0, kind: input, shape index: {}]
  %s1 = inlined_call_operand.vmem [shape: bf16[128,128], index: 1, kind: input, shape index: {}]
  %s2 = inlined_call_operand.vmem [shape: bf16[512,128], index: 2, kind: output, shape index: {0}]
  %s3 = inlined_call_operand.vmem [shape: f32[2,2,128], index: 3, kind: output, shape index: {1}]
  %4 = xla_tuple %s2, %s3
  %s5 = sld [smem:[#allocation0]]
  $region49: #{bottleneck_forward.4} parent=0
    _
  %s7 = ssub.s32 1, %s5
  %s8 = scalar_select 0, %s7, %s5
  loop: start=0, step=1, limit=4
  $region2: #{bottleneck_forward.4} parent=0 // loop_pre_header
    _
  $region3: #{bottleneck_forward.4} parent=0 // loop_header
    %s10 = sphi 0, %s14
    %p11 = scmp.ge.s32.totalorder %s10, 4
    %s20 = sphi 0, %s22
    %s23 = sphi 0, %s20
    %s24 = sphi 0, %s23
    %s40 = sphi 0, %s24
    %s44 = sphi 0, %s44
    %s46 = sphi 0, %s44
    %s47 = sphi 0, %s46
    %s61 = sphi 0, %s47
    %s67 = sphi 0, %s69
    %s70 = sphi 0, %s67
    %s71 = sphi 0, %s70
    %s87 = sphi 0, %s71
    %s93 = sphi 0, %s95
    %s96 = sphi 0, %s93
    %s97 = sphi 0, %s96
    %s113 = sphi 0, %s97
  $region4: #{bottleneck_forward.4} parent=0 // loop_header_branch
    %13 = sbr.rel (%p11) target = $region8
  $region5: #{bottleneck_forward.4} parent=0 // loop_body
    %s15 = ssub.s32 %s10, 1
    %s16 = ssub.s32 %s10, 2
    %s17 = sadd.s32 %s10, 1
    %s18 = ssub.s32 %s10, %s17
    %p19 = scmp.eq.s32.totalorder %s18, 0
    %s21 = sadd.s32 %s20, 1
    %s22 = scalar_select %p19, %s20, %s21
    %p25 = pneg %p19
    %p26 = scmp.eq.s32.totalorder %s10, 1
    %p27 = por %p25, %p26
    %p28 = scmp.ne.s32.totalorder %s20, %s23
    %p29 = scmp.eq.s32.totalorder %s10, 0
    %p30 = por %p28, %p29
    %p31 = scmp.ne.s32.totalorder %s20, %s23
    %p32 = scmp.eq.s32.totalorder %s15, 1
    %p33 = por %p31, %p32
    %p34 = scmp.ne.s32.totalorder %s23, %s24
    %p35 = scmp.eq.s32.totalorder %s15, 0
    %p36 = por %p34, %p35
    %p37 = scmp.ne.s32.totalorder %s23, %s24
    %p38 = scmp.eq.s32.totalorder %s16, 1
    %p39 = por %p37, %p38
    %p41 = scmp.ne.s32.totalorder %s24, %s40
    %p42 = scmp.eq.s32.totalorder %s16, 0
    %p43 = por %p41, %p42
    %s45 = sadd.s32 %s44, 1
    %p48 = scmp.eq.s32.totalorder %s10, 1
    %p49 = scmp.ne.s32.totalorder %s44, %s46
    %p50 = scmp.eq.s32.totalorder %s10, 0
    %p51 = por %p49, %p50
    %p52 = scmp.ne.s32.totalorder %s44, %s46
    %p53 = scmp.eq.s32.totalorder %s15, 1
    %p54 = por %p52, %p53
    %p55 = scmp.ne.s32.totalorder %s46, %s47
    %p56 = scmp.eq.s32.totalorder %s15, 0
    %p57 = por %p55, %p56
    %p58 = scmp.ne.s32.totalorder %s46, %s47
    %p59 = scmp.eq.s32.totalorder %s16, 1
    %p60 = por %p58, %p59
    %p62 = scmp.ne.s32.totalorder %s47, %s61
    %p63 = scmp.eq.s32.totalorder %s16, 0
    %p64 = por %p62, %p63
    %s65 = ssub.s32 %s10, %s17
    %p66 = scmp.eq.s32.totalorder %s65, 0
    %s68 = sadd.s32 %s67, 1
    %s69 = scalar_select %p66, %s67, %s68
    %p72 = pneg %p66
    %p73 = scmp.eq.s32.totalorder %s10, 1
    %p74 = por %p72, %p73
    %p75 = scmp.ne.s32.totalorder %s67, %s70
    %p76 = scmp.eq.s32.totalorder %s10, 0
    %p77 = por %p75, %p76
    %p78 = scmp.ne.s32.totalorder %s67, %s70
    %p79 = scmp.eq.s32.totalorder %s15, 1
    %p80 = por %p78, %p79
    %p81 = scmp.ne.s32.totalorder %s70, %s71
    %p82 = scmp.eq.s32.totalorder %s15, 0
    %p83 = por %p81, %p82
    %p84 = scmp.ne.s32.totalorder %s70, %s71
    %p85 = scmp.eq.s32.totalorder %s16, 1
    %p86 = por %p84, %p85
    %p88 = scmp.ne.s32.totalorder %s71, %s87
    %p89 = scmp.eq.s32.totalorder %s16, 0
    %p90 = por %p88, %p89
    %s91 = ssub.s32 %s10, %s17
    %p92 = scmp.eq.s32.totalorder %s91, 0
    %s94 = sadd.s32 %s93, 1
    %s95 = scalar_select %p92, %s93, %s94
    %p98 = pneg %p92
    %p99 = scmp.eq.s32.totalorder %s10, 1
    %p100 = por %p98, %p99
    %p101 = scmp.ne.s32.totalorder %s93, %s96
    %p102 = scmp.eq.s32.totalorder %s10, 0
    %p103 = por %p101, %p102
    %p104 = scmp.ne.s32.totalorder %s93, %s96
    %p105 = scmp.eq.s32.totalorder %s15, 1
    %p106 = por %p104, %p105
    %p107 = scmp.ne.s32.totalorder %s96, %s97
    %p108 = scmp.eq.s32.totalorder %s15, 0
    %p109 = por %p107, %p108
    %p110 = scmp.ne.s32.totalorder %s96, %s97
    %p111 = scmp.eq.s32.totalorder %s16, 1
    %p112 = por %p110, %p111
    %p114 = scmp.ne.s32.totalorder %s97, %s113
    %p115 = scmp.eq.s32.totalorder %s16, 0
    %p116 = por %p114, %p115
    %p117 = scmp.le.s32.totalorder 1, %s10
    %p118 = scmp.lt.s32.totalorder %s10, 3
    %p119 = pnand %p117, %p118
    %p120 = pneg %p119
    // Predicated region
    $region9: #{bottleneck_forward.4} parent=5 // pred_check
      _
    $region10: #{bottleneck_forward.4} parent=5 // pred_check_branch
      %122 = sbr.rel (%p119) target = $region12
    $region11: #{bottleneck_forward.4} parent=5 // pred_region
      %s123 = ssub.s32 %s10, 1
      // Predicated region
      $region13: #{bottleneck_forward.4} parent=11 // pred_check
        %p124 = pneg %p57
      $region14: #{bottleneck_forward.4} parent=11 // pred_check_branch
        %126 = sbr.rel (%p124) target = $region16
      $region15: #{bottleneck_forward.4} parent=11 // pred_region
        _
      $region16: #{bottleneck_forward.4} parent=11 // pred_fallthru
        _
    $region12: #{bottleneck_forward.4} parent=5 // pred_fallthru
      _
    %p127 = scmp.lt.s32.totalorder %s10, 2
    // Predicated region
    $region17: #{bottleneck_forward.4} parent=5 // pred_check
      %p128 = pneg %p127
    $region18: #{bottleneck_forward.4} parent=5 // pred_check_branch
      %130 = sbr.rel (%p128) target = $region20
    $region19: #{bottleneck_forward.4} parent=5 // pred_region
      // Predicated region
      $region21: #{bottleneck_forward.4} parent=19 // pred_check
        %p131 = pneg %p30
      $region22: #{bottleneck_forward.4} parent=19 // pred_check_branch
        %133 = sbr.rel (%p131) target = $region24
      $region23: #{bottleneck_forward.4} parent=19 // pred_region
        %s134 = smul.u32 32, %s10
        %p135 = scmp.lt.s32.totalorder %s134, 63
        %s136 = scalar_select %p135, %s134, 63
        %s137 = smul.addr %s136, 4
        %s138 = scalar_lea.vmem %s0, %s137
        %s139 = smul.u32 32, %s10
      $region24: #{bottleneck_forward.4} parent=19 // pred_fallthru
        _
    $region20: #{bottleneck_forward.4} parent=5 // pred_fallthru
      _
    %p140 = scmp.le.s32.totalorder 1, %s10
    %p141 = scmp.lt.s32.totalorder %s10, 3
    %p142 = pnand %p140, %p141
    %p143 = pneg %p142
    // Predicated region
    $region25: #{bottleneck_forward.4} parent=5 // pred_check
      _
    $region26: #{bottleneck_forward.4} parent=5 // pred_check_branch
      %145 = sbr.rel (%p142) target = $region28
    $region27: #{bottleneck_forward.4} parent=5 // pred_region
      %s146 = ssub.s32 %s10, 1
      %s147 = smul.u32 32, %s15
      %p148 = scmp.lt.s32.totalorder %s147, 63
      %s149 = scalar_select %p148, %s147, 63
      %s150 = smul.addr %s149, 4
      %s151 = scalar_lea.vmem %s0, %s150
      %p152 = pneg %p36
      %p153 = pneg %p33
      %p154 = pneg %p57
      %p155 = pneg %p54
      %p156 = pneg %p83
      %p157 = pneg %p80
      %s158 = smul.u32 32, %s15
      %p159 = scmp.lt.s32.totalorder %s158, 63
      %s160 = scalar_select %p159, %s158, 63
      %s161 = smul.addr %s160, 4
      %s162 = scalar_lea.vmem %s2, %s161
      %p163 = pneg %p109
      %p164 = pneg %p106
      %p165 = scmp.lt.s32.totalorder %s15, 1
      %s166 = scalar_select %p165, %s15, 1
      %s167 = smul.addr %s166, 2
      %s168 = scalar_lea.vmem %s3, %s167
      %s169 = smul.u32 32, %s15
      %p170 = scmp.lt.s32.totalorder %s169, 63
      %s171 = scalar_select %p170, %s169, 63
      %s172 = smul.addr %s171, 4
      %s173 = scalar_lea.vmem %s0, %s172
      %s174 = smul.u32 32, %s15
      %s175 = smul.u32 32, %s15
      %p176 = scmp.lt.s32.totalorder %s175, 63
      %s177 = scalar_select %p176, %s175, 63
      %s178 = smul.addr %s177, 4
      %s179 = scalar_lea.vmem %s2, %s178
      %s180 = smul.u32 32, %s15
      %p181 = scmp.lt.s32.totalorder %s15, 1
      %s182 = scalar_select %p181, %s15, 1
      %s183 = smul.addr %s182, 2
      %s184 = scalar_lea.vmem %s3, %s183
      %v186 = vld [vmem:[%s173] sm:$0xf]
      %v187 = vld [vmem:[%s173 + $0x4] sm:$0xf]
      %v188 = vld [vmem:[%s173 + $0x8] sm:$0xf]
      %v189 = vld [vmem:[%s173 + $0xc] sm:$0xf]
      %v190 = vld [vmem:[%s173 + $0x10] sm:$0xf]
      %v191 = vld [vmem:[%s173 + $0x14] sm:$0xf]
      %v192 = vld [vmem:[%s173 + $0x18] sm:$0xf]
      %v193 = vld [vmem:[%s173 + $0x1c] sm:$0xf]
      %v194 = vld [vmem:[%s173 + $0x20] sm:$0xf]
      %v195 = vld [vmem:[%s173 + $0x24] sm:$0xf]
      %v196 = vld [vmem:[%s173 + $0x28] sm:$0xf]
      %v197 = vld [vmem:[%s173 + $0x2c] sm:$0xf]
      %v198 = vld [vmem:[%s173 + $0x30] sm:$0xf]
      %v199 = vld [vmem:[%s173 + $0x34] sm:$0xf]
      %v200 = vld [vmem:[%s173 + $0x38] sm:$0xf]
      %v201 = vld [vmem:[%s173 + $0x3c] sm:$0xf]
      %v202 = vld [vmem:[%s173 + $0x40] sm:$0xf]
      %v203 = vld [vmem:[%s173 + $0x44] sm:$0xf]
      %v204 = vld [vmem:[%s173 + $0x48] sm:$0xf]
      %v205 = vld [vmem:[%s173 + $0x4c] sm:$0xf]
      %v206 = vld [vmem:[%s173 + $0x50] sm:$0xf]
      %v207 = vld [vmem:[%s173 + $0x54] sm:$0xf]
      %v208 = vld [vmem:[%s173 + $0x58] sm:$0xf]
      %v209 = vld [vmem:[%s173 + $0x5c] sm:$0xf]
      %v210 = vld [vmem:[%s173 + $0x60] sm:$0xf]
      %v211 = vld [vmem:[%s173 + $0x64] sm:$0xf]
      %v212 = vld [vmem:[%s173 + $0x68] sm:$0xf]
      %v213 = vld [vmem:[%s173 + $0x6c] sm:$0xf]
      %v214 = vld [vmem:[%s173 + $0x70] sm:$0xf]
      %v215 = vld [vmem:[%s173 + $0x74] sm:$0xf]
      %v216 = vld [vmem:[%s173 + $0x78] sm:$0xf]
      %v217 = vld [vmem:[%s173 + $0x7c] sm:$0xf]
      %v218 = vld [vmem:[%s1] sm:$0xf]
      %v219 = vld [vmem:[%s1 + $0x4] sm:$0xf]
      %v220 = vld [vmem:[%s1 + $0x8] sm:$0xf]
      %v221 = vld [vmem:[%s1 + $0xc] sm:$0xf]
      %v222 = vld [vmem:[%s1 + $0x10] sm:$0xf]
      %v223 = vld [vmem:[%s1 + $0x14] sm:$0xf]
      %v224 = vld [vmem:[%s1 + $0x18] sm:$0xf]
      %v225 = vld [vmem:[%s1 + $0x1c] sm:$0xf]
      %v226 = vld [vmem:[%s1 + $0x20] sm:$0xf]
      %v227 = vld [vmem:[%s1 + $0x24] sm:$0xf]
      %v228 = vld [vmem:[%s1 + $0x28] sm:$0xf]
      %v229 = vld [vmem:[%s1 + $0x2c] sm:$0xf]
      %v230 = vld [vmem:[%s1 + $0x30] sm:$0xf]
      %v231 = vld [vmem:[%s1 + $0x34] sm:$0xf]
      %v232 = vld [vmem:[%s1 + $0x38] sm:$0xf]
      %v233 = vld [vmem:[%s1 + $0x3c] sm:$0xf]
      %v266 = vunpack.c.l.b16 %v186
      %v267 = vunpack.c.l.b16 %v187
      %v268 = vunpack.c.l.b16 %v188
      %v269 = vunpack.c.l.b16 %v189
      %v270 = vunpack.c.l.b16 %v190
      %v271 = vunpack.c.l.b16 %v191
      %v272 = vunpack.c.l.b16 %v192
      %v273 = vunpack.c.l.b16 %v193
      %v274 = vunpack.c.l.b16 %v194
      %v275 = vunpack.c.l.b16 %v195
      %v276 = vunpack.c.l.b16 %v196
      %v277 = vunpack.c.l.b16 %v197
      %v278 = vunpack.c.l.b16 %v198
      %v279 = vunpack.c.l.b16 %v199
      %v280 = vunpack.c.l.b16 %v200
      %v281 = vunpack.c.l.b16 %v201
      %v282 = vunpack.c.l.b16 %v202
      %v283 = vunpack.c.l.b16 %v203
      %v284 = vunpack.c.l.b16 %v204
      %v285 = vunpack.c.l.b16 %v205
      %v286 = vunpack.c.l.b16 %v206
      %v287 = vunpack.c.l.b16 %v207
      %v288 = vunpack.c.l.b16 %v208
      %v289 = vunpack.c.l.b16 %v209
      %v290 = vunpack.c.l.b16 %v210
      %v291 = vunpack.c.l.b16 %v211
      %v292 = vunpack.c.l.b16 %v212
      %v293 = vunpack.c.l.b16 %v213
      %v294 = vunpack.c.l.b16 %v214
      %v295 = vunpack.c.l.b16 %v215
      %v296 = vunpack.c.l.b16 %v216
      %v297 = vunpack.c.l.b16 %v217
      %v298 = vpack.c.b16 %v267, %v266
      %v299 = vpack.c.b16 %v269, %v268
      %v300 = vpack.c.b16 %v271, %v270
      %v301 = vpack.c.b16 %v273, %v272
      %v302 = vpack.c.b16 %v275, %v274
      %v303 = vpack.c.b16 %v277, %v276
      %v304 = vpack.c.b16 %v279, %v278
      %v305 = vpack.c.b16 %v281, %v280
      %v306 = vpack.c.b16 %v283, %v282
      %v307 = vpack.c.b16 %v285, %v284
      %v308 = vpack.c.b16 %v287, %v286
      %v309 = vpack.c.b16 %v289, %v288
      %v310 = vpack.c.b16 %v291, %v290
      %v311 = vpack.c.b16 %v293, %v292
      %v312 = vpack.c.b16 %v295, %v294
      %v313 = vpack.c.b16 %v297, %v296
      %v346 = vunpack.c.l.b16 %v218
      %v347 = vunpack.c.l.b16 %v219
      %v348 = vunpack.c.l.b16 %v220
      %v349 = vunpack.c.l.b16 %v221
      %v350 = vunpack.c.l.b16 %v222
      %v351 = vunpack.c.l.b16 %v223
      %v352 = vunpack.c.l.b16 %v224
      %v353 = vunpack.c.l.b16 %v225
      %v354 = vunpack.c.l.b16 %v226
      %v355 = vunpack.c.l.b16 %v227
      %v356 = vunpack.c.l.b16 %v228
      %v357 = vunpack.c.l.b16 %v229
      %v358 = vunpack.c.l.b16 %v230
      %v359 = vunpack.c.l.b16 %v231
      %v360 = vunpack.c.l.b16 %v232
      %v361 = vunpack.c.l.b16 %v233
      %v362 = vpack.c.b16 %v347, %v346
      %v363 = vpack.c.b16 %v349, %v348
      %v364 = vpack.c.b16 %v351, %v350
      %v365 = vpack.c.b16 %v353, %v352
      %v366 = vpack.c.b16 %v355, %v354
      %v367 = vpack.c.b16 %v357, %v356
      %v368 = vpack.c.b16 %v359, %v358
      %v369 = vpack.c.b16 %v361, %v360
      %378 = vmatprep.subr.bf16.mxu0 0
      %379 = vmatpush1.bf16.msra.mxu0 %v369
      %380 = vmatprep.subr.bf16.mxu0 0
      %381 = vmatpush1.bf16.msra.mxu0 %v368
      %382 = vmatprep.subr.bf16.mxu0 0
      %383 = vmatpush1.bf16.msra.mxu0 %v367
      %384 = vmatprep.subr.bf16.mxu0 0
      %385 = vmatpush1.bf16.msra.mxu0 %v366
      %386 = vmatprep.subr.bf16.mxu0 0
      %387 = vmatpush1.bf16.msra.mxu0 %v365
      %388 = vmatprep.subr.bf16.mxu0 0
      %389 = vmatpush1.bf16.msra.mxu0 %v364
      %390 = vmatprep.subr.bf16.mxu0 0
      %391 = vmatpush1.bf16.msra.mxu0 %v363
      %392 = vmatprep.subr.bf16.mxu0 0
      %393 = vmatpush1.bf16.msra.mxu0 %v362
      %394 = vmatprep.subr.bf16.mxu0 0
      %395 = vmatpush2.bf16.msra.mxu0 0
      %396 = vmatprep.subr.bf16.mxu0 0
      %397 = vmatpush2.bf16.msra.mxu0 0
      %398 = vmatprep.subr.bf16.mxu0 0
      %399 = vmatpush2.bf16.msra.mxu0 0
      %400 = vmatprep.subr.bf16.mxu0 0
      %401 = vmatpush2.bf16.msra.mxu0 0
      %402 = vmatprep.subr.bf16.mxu0 0
      %403 = vmatpush2.bf16.msra.mxu0 0
      %404 = vmatprep.subr.bf16.mxu0 0
      %405 = vmatpush2.bf16.msra.mxu0 0
      %406 = vmatprep.subr.bf16.mxu0 0
      %407 = vmatpush2.bf16.msra.mxu0 0
      %408 = vmatprep.subr.bf16.mxu0 0
      %409 = vmatpush2.bf16.msra.mxu0 0
      %410 = vmatprep.mubr.bf16.mxu0 0
      %411 = vmatmul.mubr.bf16.gmra.mxu0 %v298
      %v412 = vpop.f32.mrf.mxu0
      %v413 = vadd.f32 0.0, %v412
      %v414 = vpop.f32.mrf.mxu0
      %v415 = vpop.f32.mrf.mxu0
      %v416 = vadd.f32 0.0, %v415
      %v417 = vpop.f32.mrf.mxu0
      %418 = vmatprep.mubr.bf16.mxu0 0
      %419 = vmatmul.mubr.bf16.gmra.mxu0 %v299
      %v420 = vpop.f32.mrf.mxu0
      %v421 = vadd.f32 0.0, %v420
      %v422 = vpop.f32.mrf.mxu0
      %v423 = vpop.f32.mrf.mxu0
      %v424 = vadd.f32 0.0, %v423
      %v425 = vpop.f32.mrf.mxu0
      %426 = vmatprep.mubr.bf16.mxu0 0
      %427 = vmatmul.mubr.bf16.gmra.mxu0 %v300
      %v428 = vpop.f32.mrf.mxu0
      %v429 = vadd.f32 0.0, %v428
      %v430 = vpop.f32.mrf.mxu0
      %v431 = vpop.f32.mrf.mxu0
      %v432 = vadd.f32 0.0, %v431
      %v433 = vpop.f32.mrf.mxu0
      %434 = vmatprep.mubr.bf16.mxu0 0
      %435 = vmatmul.mubr.bf16.gmra.mxu0 %v301
      %v436 = vpop.f32.mrf.mxu0
      %v437 = vadd.f32 0.0, %v436
      %v438 = vpop.f32.mrf.mxu0
      %v439 = vpop.f32.mrf.mxu0
      %v440 = vadd.f32 0.0, %v439
      %v441 = vpop.f32.mrf.mxu0
      %442 = vmatprep.mubr.bf16.mxu0 0
      %443 = vmatmul.mubr.bf16.gmra.mxu0 %v302
      %v444 = vpop.f32.mrf.mxu0
      %v445 = vadd.f32 0.0, %v444
      %v446 = vpop.f32.mrf.mxu0
      %v447 = vpop.f32.mrf.mxu0
      %v448 = vadd.f32 0.0, %v447
      %v449 = vpop.f32.mrf.mxu0
      %450 = vmatprep.mubr.bf16.mxu0 0
      %451 = vmatmul.mubr.bf16.gmra.mxu0 %v303
      %v452 = vpop.f32.mrf.mxu0
      %v453 = vadd.f32 0.0, %v452
      %v454 = vpop.f32.mrf.mxu0
      %v455 = vpop.f32.mrf.mxu0
      %v456 = vadd.f32 0.0, %v455
      %v457 = vpop.f32.mrf.mxu0
      %458 = vmatprep.mubr.bf16.mxu0 0
      %459 = vmatmul.mubr.bf16.gmra.mxu0 %v304
      %v460 = vpop.f32.mrf.mxu0
      %v461 = vadd.f32 0.0, %v460
      %v462 = vpop.f32.mrf.mxu0
      %v463 = vpop.f32.mrf.mxu0
      %v464 = vadd.f32 0.0, %v463
      %v465 = vpop.f32.mrf.mxu0
      %466 = vmatprep.mubr.bf16.mxu0 0
      %467 = vmatmul.mubr.bf16.gmra.mxu0 %v305
      %v468 = vpop.f32.mrf.mxu0
      %v469 = vadd.f32 0.0, %v468
      %v470 = vpop.f32.mrf.mxu0
      %v471 = vpop.f32.mrf.mxu0
      %v472 = vadd.f32 0.0, %v471
      %v473 = vpop.f32.mrf.mxu0
      %474 = vmatprep.mubr.bf16.mxu0 0
      %475 = vmatmul.mubr.bf16.gmra.mxu0 %v306
      %v476 = vpop.f32.mrf.mxu0
      %v477 = vadd.f32 0.0, %v476
      %v478 = vpop.f32.mrf.mxu0
      %v479 = vpop.f32.mrf.mxu0
      %v480 = vadd.f32 0.0, %v479
      %v481 = vpop.f32.mrf.mxu0
      %482 = vmatprep.mubr.bf16.mxu0 0
      %483 = vmatmul.mubr.bf16.gmra.mxu0 %v307
      %v484 = vpop.f32.mrf.mxu0
      %v485 = vadd.f32 0.0, %v484
      %v486 = vpop.f32.mrf.mxu0
      %v487 = vpop.f32.mrf.mxu0
      %v488 = vadd.f32 0.0, %v487
      %v489 = vpop.f32.mrf.mxu0
      %490 = vmatprep.mubr.bf16.mxu0 0
      %491 = vmatmul.mubr.bf16.gmra.mxu0 %v308
      %v492 = vpop.f32.mrf.mxu0
      %v493 = vadd.f32 0.0, %v492
      %v494 = vpop.f32.mrf.mxu0
      %v495 = vpop.f32.mrf.mxu0
      %v496 = vadd.f32 0.0, %v495
      %v497 = vpop.f32.mrf.mxu0
      %498 = vmatprep.mubr.bf16.mxu0 0
      %499 = vmatmul.mubr.bf16.gmra.mxu0 %v309
      %v500 = vpop.f32.mrf.mxu0
      %v501 = vadd.f32 0.0, %v500
      %v502 = vpop.f32.mrf.mxu0
      %v503 = vpop.f32.mrf.mxu0
      %v504 = vadd.f32 0.0, %v503
      %v505 = vpop.f32.mrf.mxu0
      %506 = vmatprep.mubr.bf16.mxu0 0
      %507 = vmatmul.mubr.bf16.gmra.mxu0 %v310
      %v508 = vpop.f32.mrf.mxu0
      %v509 = vadd.f32 0.0, %v508
      %v510 = vpop.f32.mrf.mxu0
      %v511 = vpop.f32.mrf.mxu0
      %v512 = vadd.f32 0.0, %v511
      %v513 = vpop.f32.mrf.mxu0
      %514 = vmatprep.mubr.bf16.mxu0 0
      %515 = vmatmul.mubr.bf16.gmra.mxu0 %v311
      %v516 = vpop.f32.mrf.mxu0
      %v517 = vadd.f32 0.0, %v516
      %v518 = vpop.f32.mrf.mxu0
      %v519 = vpop.f32.mrf.mxu0
      %v520 = vadd.f32 0.0, %v519
      %v521 = vpop.f32.mrf.mxu0
      %522 = vmatprep.mubr.bf16.mxu0 0
      %523 = vmatmul.mubr.bf16.gmra.mxu0 %v312
      %v524 = vpop.f32.mrf.mxu0
      %v525 = vadd.f32 0.0, %v524
      %v526 = vpop.f32.mrf.mxu0
      %v527 = vpop.f32.mrf.mxu0
      %v528 = vadd.f32 0.0, %v527
      %v529 = vpop.f32.mrf.mxu0
      %530 = vmatprep.mubr.bf16.mxu0 0
      %531 = vmatmul.mubr.bf16.gmra.mxu0 %v313
      %v532 = vpop.f32.mrf.mxu0
      %v533 = vadd.f32 0.0, %v532
      %v534 = vpop.f32.mrf.mxu0
      %v535 = vpop.f32.mrf.mxu0
      %v536 = vadd.f32 0.0, %v535
      %v537 = vpop.f32.mrf.mxu0
      %538 = vdwg.mxu0
      %v539 = vpack.c.bf16 %v416, %v413
      %v540 = vpack.c.bf16 %v424, %v421
      %v541 = vpack.c.bf16 %v432, %v429
      %v542 = vpack.c.bf16 %v440, %v437
      %v543 = vpack.c.bf16 %v448, %v445
      %v544 = vpack.c.bf16 %v456, %v453
      %v545 = vpack.c.bf16 %v464, %v461
      %v546 = vpack.c.bf16 %v472, %v469
      %v547 = vpack.c.bf16 %v480, %v477
      %v548 = vpack.c.bf16 %v488, %v485
      %v549 = vpack.c.bf16 %v496, %v493
      %v550 = vpack.c.bf16 %v504, %v501
      %v551 = vpack.c.bf16 %v512, %v509
      %v552 = vpack.c.bf16 %v520, %v517
      %v553 = vpack.c.bf16 %v528, %v525
      %v554 = vpack.c.bf16 %v536, %v533
      %v571 = vunpack.c.l.b16 %v539
      %v572 = vunpack.c.h.b16 %v539
      %v573 = vunpack.c.l.b16 %v540
      %v574 = vunpack.c.h.b16 %v540
      %v575 = vunpack.c.l.b16 %v541
      %v576 = vunpack.c.h.b16 %v541
      %v577 = vunpack.c.l.b16 %v542
      %v578 = vunpack.c.h.b16 %v542
      %v579 = vunpack.c.l.b16 %v543
      %v580 = vunpack.c.h.b16 %v543
      %v581 = vunpack.c.l.b16 %v544
      %v582 = vunpack.c.h.b16 %v544
      %v583 = vunpack.c.l.b16 %v545
      %v584 = vunpack.c.h.b16 %v545
      %v585 = vunpack.c.l.b16 %v546
      %v586 = vunpack.c.h.b16 %v546
      %v587 = vunpack.c.l.b16 %v547
      %v588 = vunpack.c.h.b16 %v547
      %v589 = vunpack.c.l.b16 %v548
      %v590 = vunpack.c.h.b16 %v548
      %v591 = vunpack.c.l.b16 %v549
      %v592 = vunpack.c.h.b16 %v549
      %v593 = vunpack.c.l.b16 %v550
      %v594 = vunpack.c.h.b16 %v550
      %v595 = vunpack.c.l.b16 %v551
      %v596 = vunpack.c.h.b16 %v551
      %v597 = vunpack.c.l.b16 %v552
      %v598 = vunpack.c.h.b16 %v552
      %v599 = vunpack.c.l.b16 %v553
      %v600 = vunpack.c.h.b16 %v553
      %v601 = vunpack.c.l.b16 %v554
      %v602 = vunpack.c.h.b16 %v554
      %v603 = vpack.c.b16 %v571, %v571
      %v604 = vpack.c.b16 %v572, %v572
      %v605 = vpack.c.b16 %v573, %v573
      %v606 = vpack.c.b16 %v574, %v574
      %v607 = vpack.c.b16 %v575, %v575
      %v608 = vpack.c.b16 %v576, %v576
      %v609 = vpack.c.b16 %v577, %v577
      %v610 = vpack.c.b16 %v578, %v578
      %v611 = vpack.c.b16 %v579, %v579
      %v612 = vpack.c.b16 %v580, %v580
      %v613 = vpack.c.b16 %v581, %v581
      %v614 = vpack.c.b16 %v582, %v582
      %v615 = vpack.c.b16 %v583, %v583
      %v616 = vpack.c.b16 %v584, %v584
      %v617 = vpack.c.b16 %v585, %v585
      %v618 = vpack.c.b16 %v586, %v586
      %v619 = vpack.c.b16 %v587, %v587
      %v620 = vpack.c.b16 %v588, %v588
      %v621 = vpack.c.b16 %v589, %v589
      %v622 = vpack.c.b16 %v590, %v590
      %v623 = vpack.c.b16 %v591, %v591
      %v624 = vpack.c.b16 %v592, %v592
      %v625 = vpack.c.b16 %v593, %v593
      %v626 = vpack.c.b16 %v594, %v594
      %v627 = vpack.c.b16 %v595, %v595
      %v628 = vpack.c.b16 %v596, %v596
      %v629 = vpack.c.b16 %v597, %v597
      %v630 = vpack.c.b16 %v598, %v598
      %v631 = vpack.c.b16 %v599, %v599
      %v632 = vpack.c.b16 %v600, %v600
      %v633 = vpack.c.b16 %v601, %v601
      %v634 = vpack.c.b16 %v602, %v602
      %667 = vst [vmem:[%s179] sm:$0xf] %v603
      %668 = vst [vmem:[%s179 + $0x4] sm:$0xf] %v604
      %669 = vst [vmem:[%s179 + $0x8] sm:$0xf] %v605
      %670 = vst [vmem:[%s179 + $0xc] sm:$0xf] %v606
      %671 = vst [vmem:[%s179 + $0x10] sm:$0xf] %v607
      %672 = vst [vmem:[%s179 + $0x14] sm:$0xf] %v608
      %673 = vst [vmem:[%s179 + $0x18] sm:$0xf] %v609
      %674 = vst [vmem:[%s179 + $0x1c] sm:$0xf] %v610
      %675 = vst [vmem:[%s179 + $0x20] sm:$0xf] %v611
      %676 = vst [vmem:[%s179 + $0x24] sm:$0xf] %v612
      %677 = vst [vmem:[%s179 + $0x28] sm:$0xf] %v613
      %678 = vst [vmem:[%s179 + $0x2c] sm:$0xf] %v614
      %679 = vst [vmem:[%s179 + $0x30] sm:$0xf] %v615
      %680 = vst [vmem:[%s179 + $0x34] sm:$0xf] %v616
      %681 = vst [vmem:[%s179 + $0x38] sm:$0xf] %v617
      %682 = vst [vmem:[%s179 + $0x3c] sm:$0xf] %v618
      %683 = vst [vmem:[%s179 + $0x40] sm:$0xf] %v619
      %684 = vst [vmem:[%s179 + $0x44] sm:$0xf] %v620
      %685 = vst [vmem:[%s179 + $0x48] sm:$0xf] %v621
      %686 = vst [vmem:[%s179 + $0x4c] sm:$0xf] %v622
      %687 = vst [vmem:[%s179 + $0x50] sm:$0xf] %v623
      %688 = vst [vmem:[%s179 + $0x54] sm:$0xf] %v624
      %689 = vst [vmem:[%s179 + $0x58] sm:$0xf] %v625
      %690 = vst [vmem:[%s179 + $0x5c] sm:$0xf] %v626
      %691 = vst [vmem:[%s179 + $0x60] sm:$0xf] %v627
      %692 = vst [vmem:[%s179 + $0x64] sm:$0xf] %v628
      %693 = vst [vmem:[%s179 + $0x68] sm:$0xf] %v629
      %694 = vst [vmem:[%s179 + $0x6c] sm:$0xf] %v630
      %695 = vst [vmem:[%s179 + $0x70] sm:$0xf] %v631
      %696 = vst [vmem:[%s179 + $0x74] sm:$0xf] %v632
      %697 = vst [vmem:[%s179 + $0x78] sm:$0xf] %v633
      %698 = vst [vmem:[%s179 + $0x7c] sm:$0xf] %v634
      %v699 = vadd.f32 %v413, %v416
      %v700 = vadd.f32 %v699, %v421
      %v701 = vadd.f32 %v700, %v424
      %v702 = vadd.f32 %v701, %v429
      %v703 = vadd.f32 %v702, %v432
      %v704 = vadd.f32 %v703, %v437
      %v705 = vadd.f32 %v704, %v440
      %v706 = vadd.f32 %v705, %v445
      %v707 = vadd.f32 %v706, %v448
      %v708 = vadd.f32 %v707, %v453
      %v709 = vadd.f32 %v708, %v456
      %v710 = vadd.f32 %v709, %v461
      %v711 = vadd.f32 %v710, %v464
      %v712 = vadd.f32 %v711, %v469
      %v713 = vadd.f32 %v712, %v472
      %v714 = vadd.f32 %v713, %v477
      %v715 = vadd.f32 %v714, %v480
      %v716 = vadd.f32 %v715, %v485
      %v717 = vadd.f32 %v716, %v488
      %v718 = vadd.f32 %v717, %v493
      %v719 = vadd.f32 %v718, %v496
      %v720 = vadd.f32 %v719, %v501
      %v721 = vadd.f32 %v720, %v504
      %v722 = vadd.f32 %v721, %v509
      %v723 = vadd.f32 %v722, %v512
      %v724 = vadd.f32 %v723, %v517
      %v725 = vadd.f32 %v724, %v520
      %v726 = vadd.f32 %v725, %v525
      %v727 = vadd.f32 %v726, %v528
      %v728 = vadd.f32 %v727, %v533
      %v729 = vadd.f32 %v728, %v536
      %v730 = vrot.slane %v729, 4
      %v731 = vadd.f32 %v729, %v730
      %v732 = vrot.slane %v731, 2
      %v733 = vadd.f32 %v731, %v732
      %v734 = vrot.slane %v733, 1
      %v735 = vadd.f32 %v733, %v734
      %736 = vst [vmem:[%s184] sm:$0x1] %v735
      %v737 = vmul.f32 %v413, %v413
      %v738 = vmul.f32 %v416, %v416
      %v739 = vmul.f32 %v421, %v421
      %v740 = vmul.f32 %v424, %v424
      %v741 = vmul.f32 %v429, %v429
      %v742 = vmul.f32 %v432, %v432
      %v743 = vmul.f32 %v437, %v437
      %v744 = vmul.f32 %v440, %v440
      %v745 = vmul.f32 %v445, %v445
      %v746 = vmul.f32 %v448, %v448
      %v747 = vmul.f32 %v453, %v453
      %v748 = vmul.f32 %v456, %v456
      %v749 = vmul.f32 %v461, %v461
      %v750 = vmul.f32 %v464, %v464
      %v751 = vmul.f32 %v469, %v469
      %v752 = vmul.f32 %v472, %v472
      %v753 = vmul.f32 %v477, %v477
      %v754 = vmul.f32 %v480, %v480
      %v755 = vmul.f32 %v485, %v485
      %v756 = vmul.f32 %v488, %v488
      %v757 = vmul.f32 %v493, %v493
      %v758 = vmul.f32 %v496, %v496
      %v759 = vmul.f32 %v501, %v501
      %v760 = vmul.f32 %v504, %v504
      %v761 = vmul.f32 %v509, %v509
      %v762 = vmul.f32 %v512, %v512
      %v763 = vmul.f32 %v517, %v517
      %v764 = vmul.f32 %v520, %v520
      %v765 = vmul.f32 %v525, %v525
      %v766 = vmul.f32 %v528, %v528
      %v767 = vmul.f32 %v533, %v533
      %v768 = vmul.f32 %v536, %v536
      %v769 = vadd.f32 %v737, %v738
      %v770 = vadd.f32 %v769, %v739
      %v771 = vadd.f32 %v770, %v740
      %v772 = vadd.f32 %v771, %v741
      %v773 = vadd.f32 %v772, %v742
      %v774 = vadd.f32 %v773, %v743
      %v775 = vadd.f32 %v774, %v744
      %v776 = vadd.f32 %v775, %v745
      %v777 = vadd.f32 %v776, %v746
      %v778 = vadd.f32 %v777, %v747
      %v779 = vadd.f32 %v778, %v748
      %v780 = vadd.f32 %v779, %v749
      %v781 = vadd.f32 %v780, %v750
      %v782 = vadd.f32 %v781, %v751
      %v783 = vadd.f32 %v782, %v752
      %v784 = vadd.f32 %v783, %v753
      %v785 = vadd.f32 %v784, %v754
      %v786 = vadd.f32 %v785, %v755
      %v787 = vadd.f32 %v786, %v756
      %v788 = vadd.f32 %v787, %v757
      %v789 = vadd.f32 %v788, %v758
      %v790 = vadd.f32 %v789, %v759
      %v791 = vadd.f32 %v790, %v760
      %v792 = vadd.f32 %v791, %v761
      %v793 = vadd.f32 %v792, %v762
      %v794 = vadd.f32 %v793, %v763
      %v795 = vadd.f32 %v794, %v764
      %v796 = vadd.f32 %v795, %v765
      %v797 = vadd.f32 %v796, %v766
      %v798 = vadd.f32 %v797, %v767
      %v799 = vadd.f32 %v798, %v768
      %v800 = vrot.slane %v799, 4
      %v801 = vadd.f32 %v799, %v800
      %v802 = vrot.slane %v801, 2
      %v803 = vadd.f32 %v801, %v802
      %v804 = vrot.slane %v803, 1
      %v805 = vadd.f32 %v803, %v804
      %806 = vst [vmem:[%s184 + $0x1] sm:$0x1] %v805
      %s807 = smul.u32 32, %s15
      %p808 = scmp.lt.s32.totalorder %s807, 63
      %s809 = scalar_select %p808, %s807, 63
      %s810 = smul.addr %s809, 4
      %s811 = scalar_lea.vmem %s2, %s810
      %p812 = scmp.lt.s32.totalorder %s15, 1
      %s813 = scalar_select %p812, %s15, 1
      %s814 = smul.addr %s813, 2
      %s815 = scalar_lea.vmem %s3, %s814
      // Predicated region
      $region29: #{bottleneck_forward.4} parent=27 // pred_check
        %p816 = pneg %p80
      $region30: #{bottleneck_forward.4} parent=27 // pred_check_branch
        %818 = sbr.rel (%p816) target = $region32
      $region31: #{bottleneck_forward.4} parent=27 // pred_region
        %s819 = smul.u32 32, %s15
      $region32: #{bottleneck_forward.4} parent=27 // pred_fallthru
        _
      // Predicated region
      $region33: #{bottleneck_forward.4} parent=27 // pred_check
        %p820 = pneg %p106
      $region34: #{bottleneck_forward.4} parent=27 // pred_check_branch
        %822 = sbr.rel (%p820) target = $region36
      $region35: #{bottleneck_forward.4} parent=27 // pred_region
        _
      $region36: #{bottleneck_forward.4} parent=27 // pred_fallthru
        _
    $region28: #{bottleneck_forward.4} parent=5 // pred_fallthru
      _
    %p823 = scmp.le.s32.totalorder 2, %s10
    // Predicated region
    $region37: #{bottleneck_forward.4} parent=5 // pred_check
      %p824 = pneg %p823
    $region38: #{bottleneck_forward.4} parent=5 // pred_check_branch
      %826 = sbr.rel (%p824) target = $region40
    $region39: #{bottleneck_forward.4} parent=5 // pred_region
      %s827 = ssub.s32 %s10, 2
      // Predicated region
      $region41: #{bottleneck_forward.4} parent=39 // pred_check
        %p828 = pneg %p86
      $region42: #{bottleneck_forward.4} parent=39 // pred_check_branch
        %830 = sbr.rel (%p828) target = $region44
      $region43: #{bottleneck_forward.4} parent=39 // pred_region
        %s831 = smul.u32 32, %s16
        %p832 = scmp.lt.s32.totalorder %s831, 63
        %s833 = scalar_select %p832, %s831, 63
        %s834 = smul.addr %s833, 4
        %s835 = scalar_lea.vmem %s2, %s834
      $region44: #{bottleneck_forward.4} parent=39 // pred_fallthru
        _
      // Predicated region
      $region45: #{bottleneck_forward.4} parent=39 // pred_check
        %p836 = pneg %p112
      $region46: #{bottleneck_forward.4} parent=39 // pred_check_branch
        %838 = sbr.rel (%p836) target = $region48
      $region47: #{bottleneck_forward.4} parent=39 // pred_region
        %p839 = scmp.lt.s32.totalorder %s16, 1
        %s840 = scalar_select %p839, %s16, 1
        %s841 = smul.addr %s840, 2
        %s842 = scalar_lea.vmem %s3, %s841
      $region48: #{bottleneck_forward.4} parent=39 // pred_fallthru
        _
    $region40: #{bottleneck_forward.4} parent=5 // pred_fallthru
      _
  $region6: #{bottleneck_forward.4} parent=0 // loop_footer
    %s14 = sadd.s32 1, %s10
  $region7: #{bottleneck_forward.4} parent=0 // loop_footer_branch
    %9 = sbr.rel target = $region3
  $region8: #{bottleneck_forward.4} parent=0 // loop_exit
    _

// kernel: bottleneck_forward.6
$region0: #{bottleneck_forward.6}
  #allocation0 [shape = 'u32[]', space=smem, size = 0x4, offset = 0x4, fixed_abs, tag = 'smem constant byte address 0x4 - core index']
  #allocation1 [shape = 'u32[144,128]{1,0:T(1,128)}', space=vmem, size = 0x12000, scoped, tag = 'internal scratch']
  %s0 = inlined_call_operand.vmem [shape: bf16[512,128], index: 0, kind: input, shape index: {}]
  %s1 = inlined_call_operand.vmem [shape: f32[1,128], index: 1, kind: input, shape index: {}]
  %s2 = inlined_call_operand.vmem [shape: f32[1,128], index: 2, kind: input, shape index: {}]
  %s3 = inlined_call_operand.vmem [shape: bf16[128,128], index: 3, kind: input, shape index: {}]
  %s4 = inlined_call_operand.vmem [shape: bf16[512,128], index: 4, kind: output, shape index: {0}]
  %s5 = inlined_call_operand.vmem [shape: f32[2,2,128], index: 5, kind: output, shape index: {1}]
  %6 = xla_tuple %s4, %s5
  %s7 = sld [smem:[#allocation0]]
  $region57: #{bottleneck_forward.6} parent=0
    _
  %s9 = ssub.s32 1, %s7
  %s10 = scalar_select 0, %s9, %s7
  loop: start=0, step=1, limit=4
  $region2: #{bottleneck_forward.6} parent=0 // loop_pre_header
    _
  $region3: #{bottleneck_forward.6} parent=0 // loop_header
    %s12 = sphi 0, %s16
    %p13 = scmp.ge.s32.totalorder %s12, 4
    %s22 = sphi 0, %s24
    %s25 = sphi 0, %s22
    %s26 = sphi 0, %s25
    %s42 = sphi 0, %s26
    %s46 = sphi 0, %s46
    %s48 = sphi 0, %s46
    %s49 = sphi 0, %s48
    %s63 = sphi 0, %s49
    %s67 = sphi 0, %s67
    %s69 = sphi 0, %s67
    %s70 = sphi 0, %s69
    %s84 = sphi 0, %s70
    %s88 = sphi 0, %s88
    %s90 = sphi 0, %s88
    %s91 = sphi 0, %s90
    %s105 = sphi 0, %s91
    %s111 = sphi 0, %s113
    %s114 = sphi 0, %s111
    %s115 = sphi 0, %s114
    %s131 = sphi 0, %s115
    %s137 = sphi 0, %s139
    %s140 = sphi 0, %s137
    %s141 = sphi 0, %s140
    %s157 = sphi 0, %s141
  $region4: #{bottleneck_forward.6} parent=0 // loop_header_branch
    %15 = sbr.rel (%p13) target = $region8
  $region5: #{bottleneck_forward.6} parent=0 // loop_body
    %s17 = ssub.s32 %s12, 1
    %s18 = ssub.s32 %s12, 2
    %s19 = sadd.s32 %s12, 1
    %s20 = ssub.s32 %s12, %s19
    %p21 = scmp.eq.s32.totalorder %s20, 0
    %s23 = sadd.s32 %s22, 1
    %s24 = scalar_select %p21, %s22, %s23
    %p27 = pneg %p21
    %p28 = scmp.eq.s32.totalorder %s12, 1
    %p29 = por %p27, %p28
    %p30 = scmp.ne.s32.totalorder %s22, %s25
    %p31 = scmp.eq.s32.totalorder %s12, 0
    %p32 = por %p30, %p31
    %p33 = scmp.ne.s32.totalorder %s22, %s25
    %p34 = scmp.eq.s32.totalorder %s17, 1
    %p35 = por %p33, %p34
    %p36 = scmp.ne.s32.totalorder %s25, %s26
    %p37 = scmp.eq.s32.totalorder %s17, 0
    %p38 = por %p36, %p37
    %p39 = scmp.ne.s32.totalorder %s25, %s26
    %p40 = scmp.eq.s32.totalorder %s18, 1
    %p41 = por %p39, %p40
    %p43 = scmp.ne.s32.totalorder %s26, %s42
    %p44 = scmp.eq.s32.totalorder %s18, 0
    %p45 = por %p43, %p44
    %s47 = sadd.s32 %s46, 1
    %p50 = scmp.eq.s32.totalorder %s12, 1
    %p51 = scmp.ne.s32.totalorder %s46, %s48
    %p52 = scmp.eq.s32.totalorder %s12, 0
    %p53 = por %p51, %p52
    %p54 = scmp.ne.s32.totalorder %s46, %s48
    %p55 = scmp.eq.s32.totalorder %s17, 1
    %p56 = por %p54, %p55
    %p57 = scmp.ne.s32.totalorder %s48, %s49
    %p58 = scmp.eq.s32.totalorder %s17, 0
    %p59 = por %p57, %p58
    %p60 = scmp.ne.s32.totalorder %s48, %s49
    %p61 = scmp.eq.s32.totalorder %s18, 1
    %p62 = por %p60, %p61
    %p64 = scmp.ne.s32.totalorder %s49, %s63
    %p65 = scmp.eq.s32.totalorder %s18, 0
    %p66 = por %p64, %p65
    %s68 = sadd.s32 %s67, 1
    %p71 = scmp.eq.s32.totalorder %s12, 1
    %p72 = scmp.ne.s32.totalorder %s67, %s69
    %p73 = scmp.eq.s32.totalorder %s12, 0
    %p74 = por %p72, %p73
    %p75 = scmp.ne.s32.totalorder %s67, %s69
    %p76 = scmp.eq.s32.totalorder %s17, 1
    %p77 = por %p75, %p76
    %p78 = scmp.ne.s32.totalorder %s69, %s70
    %p79 = scmp.eq.s32.totalorder %s17, 0
    %p80 = por %p78, %p79
    %p81 = scmp.ne.s32.totalorder %s69, %s70
    %p82 = scmp.eq.s32.totalorder %s18, 1
    %p83 = por %p81, %p82
    %p85 = scmp.ne.s32.totalorder %s70, %s84
    %p86 = scmp.eq.s32.totalorder %s18, 0
    %p87 = por %p85, %p86
    %s89 = sadd.s32 %s88, 1
    %p92 = scmp.eq.s32.totalorder %s12, 1
    %p93 = scmp.ne.s32.totalorder %s88, %s90
    %p94 = scmp.eq.s32.totalorder %s12, 0
    %p95 = por %p93, %p94
    %p96 = scmp.ne.s32.totalorder %s88, %s90
    %p97 = scmp.eq.s32.totalorder %s17, 1
    %p98 = por %p96, %p97
    %p99 = scmp.ne.s32.totalorder %s90, %s91
    %p100 = scmp.eq.s32.totalorder %s17, 0
    %p101 = por %p99, %p100
    %p102 = scmp.ne.s32.totalorder %s90, %s91
    %p103 = scmp.eq.s32.totalorder %s18, 1
    %p104 = por %p102, %p103
    %p106 = scmp.ne.s32.totalorder %s91, %s105
    %p107 = scmp.eq.s32.totalorder %s18, 0
    %p108 = por %p106, %p107
    %s109 = ssub.s32 %s12, %s19
    %p110 = scmp.eq.s32.totalorder %s109, 0
    %s112 = sadd.s32 %s111, 1
    %s113 = scalar_select %p110, %s111, %s112
    %p116 = pneg %p110
    %p117 = scmp.eq.s32.totalorder %s12, 1
    %p118 = por %p116, %p117
    %p119 = scmp.ne.s32.totalorder %s111, %s114
    %p120 = scmp.eq.s32.totalorder %s12, 0
    %p121 = por %p119, %p120
    %p122 = scmp.ne.s32.totalorder %s111, %s114
    %p123 = scmp.eq.s32.totalorder %s17, 1
    %p124 = por %p122, %p123
    %p125 = scmp.ne.s32.totalorder %s114, %s115
    %p126 = scmp.eq.s32.totalorder %s17, 0
    %p127 = por %p125, %p126
    %p128 = scmp.ne.s32.totalorder %s114, %s115
    %p129 = scmp.eq.s32.totalorder %s18, 1
    %p130 = por %p128, %p129
    %p132 = scmp.ne.s32.totalorder %s115, %s131
    %p133 = scmp.eq.s32.totalorder %s18, 0
    %p134 = por %p132, %p133
    %s135 = ssub.s32 %s12, %s19
    %p136 = scmp.eq.s32.totalorder %s135, 0
    %s138 = sadd.s32 %s137, 1
    %s139 = scalar_select %p136, %s137, %s138
    %p142 = pneg %p136
    %p143 = scmp.eq.s32.totalorder %s12, 1
    %p144 = por %p142, %p143
    %p145 = scmp.ne.s32.totalorder %s137, %s140
    %p146 = scmp.eq.s32.totalorder %s12, 0
    %p147 = por %p145, %p146
    %p148 = scmp.ne.s32.totalorder %s137, %s140
    %p149 = scmp.eq.s32.totalorder %s17, 1
    %p150 = por %p148, %p149
    %p151 = scmp.ne.s32.totalorder %s140, %s141
    %p152 = scmp.eq.s32.totalorder %s17, 0
    %p153 = por %p151, %p152
    %p154 = scmp.ne.s32.totalorder %s140, %s141
    %p155 = scmp.eq.s32.totalorder %s18, 1
    %p156 = por %p154, %p155
    %p158 = scmp.ne.s32.totalorder %s141, %s157
    %p159 = scmp.eq.s32.totalorder %s18, 0
    %p160 = por %p158, %p159
    %p161 = scmp.le.s32.totalorder 1, %s12
    %p162 = scmp.lt.s32.totalorder %s12, 3
    %p163 = pnand %p161, %p162
    %p164 = pneg %p163
    // Predicated region
    $region9: #{bottleneck_forward.6} parent=5 // pred_check
      _
    $region10: #{bottleneck_forward.6} parent=5 // pred_check_branch
      %166 = sbr.rel (%p163) target = $region12
    $region11: #{bottleneck_forward.6} parent=5 // pred_region
      %s167 = ssub.s32 %s12, 1
      // Predicated region
      $region13: #{bottleneck_forward.6} parent=11 // pred_check
        %p168 = pneg %p59
      $region14: #{bottleneck_forward.6} parent=11 // pred_check_branch
        %170 = sbr.rel (%p168) target = $region16
      $region15: #{bottleneck_forward.6} parent=11 // pred_region
        _
      $region16: #{bottleneck_forward.6} parent=11 // pred_fallthru
        _
      // Predicated region
      $region17: #{bottleneck_forward.6} parent=11 // pred_check
        %p171 = pneg %p80
      $region18: #{bottleneck_forward.6} parent=11 // pred_check_branch
        %173 = sbr.rel (%p171) target = $region20
      $region19: #{bottleneck_forward.6} parent=11 // pred_region
        _
      $region20: #{bottleneck_forward.6} parent=11 // pred_fallthru
        _
      // Predicated region
      $region21: #{bottleneck_forward.6} parent=11 // pred_check
        %p174 = pneg %p101
      $region22: #{bottleneck_forward.6} parent=11 // pred_check_branch
        %176 = sbr.rel (%p174) target = $region24
      $region23: #{bottleneck_forward.6} parent=11 // pred_region
        _
      $region24: #{bottleneck_forward.6} parent=11 // pred_fallthru
        _
    $region12: #{bottleneck_forward.6} parent=5 // pred_fallthru
      _
    %p177 = scmp.lt.s32.totalorder %s12, 2
    // Predicated region
    $region25: #{bottleneck_forward.6} parent=5 // pred_check
      %p178 = pneg %p177
    $region26: #{bottleneck_forward.6} parent=5 // pred_check_branch
      %180 = sbr.rel (%p178) target = $region28
    $region27: #{bottleneck_forward.6} parent=5 // pred_region
      // Predicated region
      $region29: #{bottleneck_forward.6} parent=27 // pred_check
        %p181 = pneg %p32
      $region30: #{bottleneck_forward.6} parent=27 // pred_check_branch
        %183 = sbr.rel (%p181) target = $region32
      $region31: #{bottleneck_forward.6} parent=27 // pred_region
        %s184 = smul.u32 32, %s12
        %p185 = scmp.lt.s32.totalorder %s184, 63
        %s186 = scalar_select %p185, %s184, 63
        %s187 = smul.addr %s186, 4
        %s188 = scalar_lea.vmem %s0, %s187
        %s189 = smul.u32 32, %s12
      $region32: #{bottleneck_forward.6} parent=27 // pred_fallthru
        _
    $region28: #{bottleneck_forward.6} parent=5 // pred_fallthru
      _
    %p190 = scmp.le.s32.totalorder 1, %s12
    %p191 = scmp.lt.s32.totalorder %s12, 3
    %p192 = pnand %p190, %p191
    %p193 = pneg %p192
    // Predicated region
    $region33: #{bottleneck_forward.6} parent=5 // pred_check
      _
    $region34: #{bottleneck_forward.6} parent=5 // pred_check_branch
      %195 = sbr.rel (%p192) target = $region36
    $region35: #{bottleneck_forward.6} parent=5 // pred_region
      %s196 = ssub.s32 %s12, 1
      %s197 = smul.u32 32, %s17
      %p198 = scmp.lt.s32.totalorder %s197, 63
      %s199 = scalar_select %p198, %s197, 63
      %s200 = smul.addr %s199, 4
      %s201 = scalar_lea.vmem %s0, %s200
      %p202 = pneg %p38
      %p203 = pneg %p35
      %p204 = pneg %p59
      %p205 = pneg %p56
      %p206 = pneg %p80
      %p207 = pneg %p77
      %p208 = pneg %p101
      %p209 = pneg %p98
      %p210 = pneg %p127
      %p211 = pneg %p124
      %s212 = smul.u32 32, %s17
      %p213 = scmp.lt.s32.totalorder %s212, 63
      %s214 = scalar_select %p213, %s212, 63
      %s215 = smul.addr %s214, 4
      %s216 = scalar_lea.vmem %s4, %s215
      %p217 = pneg %p153
      %p218 = pneg %p150
      %p219 = scmp.lt.s32.totalorder %s17, 1
      %s220 = scalar_select %p219, %s17, 1
      %s221 = smul.addr %s220, 2
      %s222 = scalar_lea.vmem %s5, %s221
      %s223 = smul.u32 32, %s17
      %p224 = scmp.lt.s32.totalorder %s223, 63
      %s225 = scalar_select %p224, %s223, 63
      %s226 = smul.addr %s225, 4
      %s227 = scalar_lea.vmem %s0, %s226
      %s228 = smul.u32 32, %s17
      %s229 = smul.u32 32, %s17
      %p230 = scmp.lt.s32.totalorder %s229, 63
      %s231 = scalar_select %p230, %s229, 63
      %s232 = smul.addr %s231, 4
      %s233 = scalar_lea.vmem %s4, %s232
      %s234 = smul.u32 32, %s17
      %p235 = scmp.lt.s32.totalorder %s17, 1
      %s236 = scalar_select %p235, %s17, 1
      %s237 = smul.addr %s236, 2
      %s238 = scalar_lea.vmem %s5, %s237
      %v240 = vld [vmem:[%s227] sm:$0xf]
      %v241 = vld [vmem:[%s227 + $0x4] sm:$0xf]
      %v242 = vld [vmem:[%s227 + $0x8] sm:$0xf]
      %v243 = vld [vmem:[%s227 + $0xc] sm:$0xf]
      %v244 = vld [vmem:[%s227 + $0x10] sm:$0xf]
      %v245 = vld [vmem:[%s227 + $0x14] sm:$0xf]
      %v246 = vld [vmem:[%s227 + $0x18] sm:$0xf]
      %v247 = vld [vmem:[%s227 + $0x1c] sm:$0xf]
      %v248 = vld [vmem:[%s227 + $0x20] sm:$0xf]
      %v249 = vld [vmem:[%s227 + $0x24] sm:$0xf]
      %v250 = vld [vmem:[%s227 + $0x28] sm:$0xf]
      %v251 = vld [vmem:[%s227 + $0x2c] sm:$0xf]
      %v252 = vld [vmem:[%s227 + $0x30] sm:$0xf]
      %v253 = vld [vmem:[%s227 + $0x34] sm:$0xf]
      %v254 = vld [vmem:[%s227 + $0x38] sm:$0xf]
      %v255 = vld [vmem:[%s227 + $0x3c] sm:$0xf]
      %v256 = vld [vmem:[%s227 + $0x40] sm:$0xf]
      %v257 = vld [vmem:[%s227 + $0x44] sm:$0xf]
      %v258 = vld [vmem:[%s227 + $0x48] sm:$0xf]
      %v259 = vld [vmem:[%s227 + $0x4c] sm:$0xf]
      %v260 = vld [vmem:[%s227 + $0x50] sm:$0xf]
      %v261 = vld [vmem:[%s227 + $0x54] sm:$0xf]
      %v262 = vld [vmem:[%s227 + $0x58] sm:$0xf]
      %v263 = vld [vmem:[%s227 + $0x5c] sm:$0xf]
      %v264 = vld [vmem:[%s227 + $0x60] sm:$0xf]
      %v265 = vld [vmem:[%s227 + $0x64] sm:$0xf]
      %v266 = vld [vmem:[%s227 + $0x68] sm:$0xf]
      %v267 = vld [vmem:[%s227 + $0x6c] sm:$0xf]
      %v268 = vld [vmem:[%s227 + $0x70] sm:$0xf]
      %v269 = vld [vmem:[%s227 + $0x74] sm:$0xf]
      %v270 = vld [vmem:[%s227 + $0x78] sm:$0xf]
      %v271 = vld [vmem:[%s227 + $0x7c] sm:$0xf]
      %v272 = vunpack.c.l.bf16 %v240
      %v273 = vunpack.c.l.bf16 %v241
      %v274 = vunpack.c.l.bf16 %v242
      %v275 = vunpack.c.l.bf16 %v243
      %v276 = vunpack.c.l.bf16 %v244
      %v277 = vunpack.c.l.bf16 %v245
      %v278 = vunpack.c.l.bf16 %v246
      %v279 = vunpack.c.l.bf16 %v247
      %v280 = vunpack.c.l.bf16 %v248
      %v281 = vunpack.c.l.bf16 %v249
      %v282 = vunpack.c.l.bf16 %v250
      %v283 = vunpack.c.l.bf16 %v251
      %v284 = vunpack.c.l.bf16 %v252
      %v285 = vunpack.c.l.bf16 %v253
      %v286 = vunpack.c.l.bf16 %v254
      %v287 = vunpack.c.l.bf16 %v255
      %v288 = vunpack.c.l.bf16 %v256
      %v289 = vunpack.c.l.bf16 %v257
      %v290 = vunpack.c.l.bf16 %v258
      %v291 = vunpack.c.l.bf16 %v259
      %v292 = vunpack.c.l.bf16 %v260
      %v293 = vunpack.c.l.bf16 %v261
      %v294 = vunpack.c.l.bf16 %v262
      %v295 = vunpack.c.l.bf16 %v263
      %v296 = vunpack.c.l.bf16 %v264
      %v297 = vunpack.c.l.bf16 %v265
      %v298 = vunpack.c.l.bf16 %v266
      %v299 = vunpack.c.l.bf16 %v267
      %v300 = vunpack.c.l.bf16 %v268
      %v301 = vunpack.c.l.bf16 %v269
      %v302 = vunpack.c.l.bf16 %v270
      %v303 = vunpack.c.l.bf16 %v271
      %v304 = vld [vmem:[%s1] sm:$0x1]
      %v306 = vlaneseq
      %v307 = vshrl.u32 %v306, 7
      %v308 = vsub.s32 0, %v307
      %v309 = vrot.slane %v304, %v308
      %v311 = vmul.f32 %v272, %v309
      %v312 = vmul.f32 %v273, %v309
      %v313 = vmul.f32 %v274, %v309
      %v314 = vmul.f32 %v275, %v309
      %v315 = vmul.f32 %v276, %v309
      %v316 = vmul.f32 %v277, %v309
      %v317 = vmul.f32 %v278, %v309
      %v318 = vmul.f32 %v279, %v309
      %v319 = vmul.f32 %v280, %v309
      %v320 = vmul.f32 %v281, %v309
      %v321 = vmul.f32 %v282, %v309
      %v322 = vmul.f32 %v283, %v309
      %v323 = vmul.f32 %v284, %v309
      %v324 = vmul.f32 %v285, %v309
      %v325 = vmul.f32 %v286, %v309
      %v326 = vmul.f32 %v287, %v309
      %v327 = vmul.f32 %v288, %v309
      %v328 = vmul.f32 %v289, %v309
      %v329 = vmul.f32 %v290, %v309
      %v330 = vmul.f32 %v291, %v309
      %v331 = vmul.f32 %v292, %v309
      %v332 = vmul.f32 %v293, %v309
      %v333 = vmul.f32 %v294, %v309
      %v334 = vmul.f32 %v295, %v309
      %v335 = vmul.f32 %v296, %v309
      %v336 = vmul.f32 %v297, %v309
      %v337 = vmul.f32 %v298, %v309
      %v338 = vmul.f32 %v299, %v309
      %v339 = vmul.f32 %v300, %v309
      %v340 = vmul.f32 %v301, %v309
      %v341 = vmul.f32 %v302, %v309
      %v342 = vmul.f32 %v303, %v309
      %v343 = vld [vmem:[%s2] sm:$0x1]
      %v345 = vlaneseq
      %v346 = vshrl.u32 %v345, 7
      %v347 = vsub.s32 0, %v346
      %v348 = vrot.slane %v343, %v347
      %v350 = vadd.f32 %v311, %v348
      %v351 = vadd.f32 %v312, %v348
      %v352 = vadd.f32 %v313, %v348
      %v353 = vadd.f32 %v314, %v348
      %v354 = vadd.f32 %v315, %v348
      %v355 = vadd.f32 %v316, %v348
      %v356 = vadd.f32 %v317, %v348
      %v357 = vadd.f32 %v318, %v348
      %v358 = vadd.f32 %v319, %v348
      %v359 = vadd.f32 %v320, %v348
      %v360 = vadd.f32 %v321, %v348
      %v361 = vadd.f32 %v322, %v348
      %v362 = vadd.f32 %v323, %v348
      %v363 = vadd.f32 %v324, %v348
      %v364 = vadd.f32 %v325, %v348
      %v365 = vadd.f32 %v326, %v348
      %v366 = vadd.f32 %v327, %v348
      %v367 = vadd.f32 %v328, %v348
      %v368 = vadd.f32 %v329, %v348
      %v369 = vadd.f32 %v330, %v348
      %v370 = vadd.f32 %v331, %v348
      %v371 = vadd.f32 %v332, %v348
      %v372 = vadd.f32 %v333, %v348
      %v373 = vadd.f32 %v334, %v348
      %v374 = vadd.f32 %v335, %v348
      %v375 = vadd.f32 %v336, %v348
      %v376 = vadd.f32 %v337, %v348
      %v377 = vadd.f32 %v338, %v348
      %v378 = vadd.f32 %v339, %v348
      %v379 = vadd.f32 %v340, %v348
      %v380 = vadd.f32 %v341, %v348
      %v381 = vadd.f32 %v342, %v348
      %v382 = vmax.f32 %v350, 0.0
      %v383 = vmax.f32 %v351, 0.0
      %v384 = vmax.f32 %v352, 0.0
      %v385 = vmax.f32 %v353, 0.0
      %v386 = vmax.f32 %v354, 0.0
      %v387 = vmax.f32 %v355, 0.0
      %v388 = vmax.f32 %v356, 0.0
      %v389 = vmax.f32 %v357, 0.0
      %v390 = vmax.f32 %v358, 0.0
      %v391 = vmax.f32 %v359, 0.0
      %v392 = vmax.f32 %v360, 0.0
      %v393 = vmax.f32 %v361, 0.0
      %v394 = vmax.f32 %v362, 0.0
      %v395 = vmax.f32 %v363, 0.0
      %v396 = vmax.f32 %v364, 0.0
      %v397 = vmax.f32 %v365, 0.0
      %v398 = vmax.f32 %v366, 0.0
      %v399 = vmax.f32 %v367, 0.0
      %v400 = vmax.f32 %v368, 0.0
      %v401 = vmax.f32 %v369, 0.0
      %v402 = vmax.f32 %v370, 0.0
      %v403 = vmax.f32 %v371, 0.0
      %v404 = vmax.f32 %v372, 0.0
      %v405 = vmax.f32 %v373, 0.0
      %v406 = vmax.f32 %v374, 0.0
      %v407 = vmax.f32 %v375, 0.0
      %v408 = vmax.f32 %v376, 0.0
      %v409 = vmax.f32 %v377, 0.0
      %v410 = vmax.f32 %v378, 0.0
      %v411 = vmax.f32 %v379, 0.0
      %v412 = vmax.f32 %v380, 0.0
      %v413 = vmax.f32 %v381, 0.0
      %v414 = vpack.c.bf16 %v383, %v382
      %v415 = vpack.c.bf16 %v385, %v384
      %v416 = vpack.c.bf16 %v387, %v386
      %v417 = vpack.c.bf16 %v389, %v388
      %v418 = vpack.c.bf16 %v391, %v390
      %v419 = vpack.c.bf16 %v393, %v392
      %v420 = vpack.c.bf16 %v395, %v394
      %v421 = vpack.c.bf16 %v397, %v396
      %v422 = vpack.c.bf16 %v399, %v398
      %v423 = vpack.c.bf16 %v401, %v400
      %v424 = vpack.c.bf16 %v403, %v402
      %v425 = vpack.c.bf16 %v405, %v404
      %v426 = vpack.c.bf16 %v407, %v406
      %v427 = vpack.c.bf16 %v409, %v408
      %v428 = vpack.c.bf16 %v411, %v410
      %v429 = vpack.c.bf16 %v413, %v412
      %v430 = vld [vmem:[%s3] sm:$0xf]
      %v431 = vld [vmem:[%s3 + $0x4] sm:$0xf]
      %v432 = vld [vmem:[%s3 + $0x8] sm:$0xf]
      %v433 = vld [vmem:[%s3 + $0xc] sm:$0xf]
      %v434 = vld [vmem:[%s3 + $0x10] sm:$0xf]
      %v435 = vld [vmem:[%s3 + $0x14] sm:$0xf]
      %v436 = vld [vmem:[%s3 + $0x18] sm:$0xf]
      %v437 = vld [vmem:[%s3 + $0x1c] sm:$0xf]
      %v438 = vld [vmem:[%s3 + $0x20] sm:$0xf]
      %v439 = vld [vmem:[%s3 + $0x24] sm:$0xf]
      %v440 = vld [vmem:[%s3 + $0x28] sm:$0xf]
      %v441 = vld [vmem:[%s3 + $0x2c] sm:$0xf]
      %v442 = vld [vmem:[%s3 + $0x30] sm:$0xf]
      %v443 = vld [vmem:[%s3 + $0x34] sm:$0xf]
      %v444 = vld [vmem:[%s3 + $0x38] sm:$0xf]
      %v445 = vld [vmem:[%s3 + $0x3c] sm:$0xf]
      %v462 = vunpack.c.l.b16 %v430
      %v463 = vunpack.c.l.b16 %v431
      %v464 = vunpack.c.l.b16 %v432
      %v465 = vunpack.c.l.b16 %v433
      %v466 = vunpack.c.l.b16 %v434
      %v467 = vunpack.c.l.b16 %v435
      %v468 = vunpack.c.l.b16 %v436
      %v469 = vunpack.c.l.b16 %v437
      %v470 = vunpack.c.l.b16 %v438
      %v471 = vunpack.c.l.b16 %v439
      %v472 = vunpack.c.l.b16 %v440
      %v473 = vunpack.c.l.b16 %v441
      %v474 = vunpack.c.l.b16 %v442
      %v475 = vunpack.c.l.b16 %v443
      %v476 = vunpack.c.l.b16 %v444
      %v477 = vunpack.c.l.b16 %v445
      %v478 = vpack.c.b16 %v463, %v462
      %v479 = vpack.c.b16 %v465, %v464
      %v480 = vpack.c.b16 %v467, %v466
      %v481 = vpack.c.b16 %v469, %v468
      %v482 = vpack.c.b16 %v471, %v470
      %v483 = vpack.c.b16 %v473, %v472
      %v484 = vpack.c.b16 %v475, %v474
      %v485 = vpack.c.b16 %v477, %v476
      %494 = vmatprep.subr.bf16.mxu0 0
      %495 = vmatpush1.bf16.msra.mxu0 %v485
      %496 = vmatprep.subr.bf16.mxu0 0
      %497 = vmatpush1.bf16.msra.mxu0 %v484
      %498 = vmatprep.subr.bf16.mxu0 0
      %499 = vmatpush1.bf16.msra.mxu0 %v483
      %500 = vmatprep.subr.bf16.mxu0 0
      %501 = vmatpush1.bf16.msra.mxu0 %v482
      %502 = vmatprep.subr.bf16.mxu0 0
      %503 = vmatpush1.bf16.msra.mxu0 %v481
      %504 = vmatprep.subr.bf16.mxu0 0
      %505 = vmatpush1.bf16.msra.mxu0 %v480
      %506 = vmatprep.subr.bf16.mxu0 0
      %507 = vmatpush1.bf16.msra.mxu0 %v479
      %508 = vmatprep.subr.bf16.mxu0 0
      %509 = vmatpush1.bf16.msra.mxu0 %v478
      %510 = vmatprep.subr.bf16.mxu0 0
      %511 = vmatpush2.bf16.msra.mxu0 0
      %512 = vmatprep.subr.bf16.mxu0 0
      %513 = vmatpush2.bf16.msra.mxu0 0
      %514 = vmatprep.subr.bf16.mxu0 0
      %515 = vmatpush2.bf16.msra.mxu0 0
      %516 = vmatprep.subr.bf16.mxu0 0
      %517 = vmatpush2.bf16.msra.mxu0 0
      %518 = vmatprep.subr.bf16.mxu0 0
      %519 = vmatpush2.bf16.msra.mxu0 0
      %520 = vmatprep.subr.bf16.mxu0 0
      %521 = vmatpush2.bf16.msra.mxu0 0
      %522 = vmatprep.subr.bf16.mxu0 0
      %523 = vmatpush2.bf16.msra.mxu0 0
      %524 = vmatprep.subr.bf16.mxu0 0
      %525 = vmatpush2.bf16.msra.mxu0 0
      %526 = vmatprep.mubr.bf16.mxu0 0
      %527 = vmatmul.mubr.bf16.gmra.mxu0 %v414
      %v528 = vpop.f32.mrf.mxu0
      %v529 = vadd.f32 0.0, %v528
      %v530 = vpop.f32.mrf.mxu0
      %v531 = vpop.f32.mrf.mxu0
      %v532 = vadd.f32 0.0, %v531
      %v533 = vpop.f32.mrf.mxu0
      %534 = vmatprep.mubr.bf16.mxu0 0
      %535 = vmatmul.mubr.bf16.gmra.mxu0 %v415
      %v536 = vpop.f32.mrf.mxu0
      %v537 = vadd.f32 0.0, %v536
      %v538 = vpop.f32.mrf.mxu0
      %v539 = vpop.f32.mrf.mxu0
      %v540 = vadd.f32 0.0, %v539
      %v541 = vpop.f32.mrf.mxu0
      %542 = vmatprep.mubr.bf16.mxu0 0
      %543 = vmatmul.mubr.bf16.gmra.mxu0 %v416
      %v544 = vpop.f32.mrf.mxu0
      %v545 = vadd.f32 0.0, %v544
      %v546 = vpop.f32.mrf.mxu0
      %v547 = vpop.f32.mrf.mxu0
      %v548 = vadd.f32 0.0, %v547
      %v549 = vpop.f32.mrf.mxu0
      %550 = vmatprep.mubr.bf16.mxu0 0
      %551 = vmatmul.mubr.bf16.gmra.mxu0 %v417
      %v552 = vpop.f32.mrf.mxu0
      %v553 = vadd.f32 0.0, %v552
      %v554 = vpop.f32.mrf.mxu0
      %v555 = vpop.f32.mrf.mxu0
      %v556 = vadd.f32 0.0, %v555
      %v557 = vpop.f32.mrf.mxu0
      %558 = vmatprep.mubr.bf16.mxu0 0
      %559 = vmatmul.mubr.bf16.gmra.mxu0 %v418
      %v560 = vpop.f32.mrf.mxu0
      %v561 = vadd.f32 0.0, %v560
      %v562 = vpop.f32.mrf.mxu0
      %v563 = vpop.f32.mrf.mxu0
      %v564 = vadd.f32 0.0, %v563
      %v565 = vpop.f32.mrf.mxu0
      %566 = vmatprep.mubr.bf16.mxu0 0
      %567 = vmatmul.mubr.bf16.gmra.mxu0 %v419
      %v568 = vpop.f32.mrf.mxu0
      %v569 = vadd.f32 0.0, %v568
      %v570 = vpop.f32.mrf.mxu0
      %v571 = vpop.f32.mrf.mxu0
      %v572 = vadd.f32 0.0, %v571
      %v573 = vpop.f32.mrf.mxu0
      %574 = vmatprep.mubr.bf16.mxu0 0
      %575 = vmatmul.mubr.bf16.gmra.mxu0 %v420
      %v576 = vpop.f32.mrf.mxu0
      %v577 = vadd.f32 0.0, %v576
      %v578 = vpop.f32.mrf.mxu0
      %v579 = vpop.f32.mrf.mxu0
      %v580 = vadd.f32 0.0, %v579
      %v581 = vpop.f32.mrf.mxu0
      %582 = vmatprep.mubr.bf16.mxu0 0
      %583 = vmatmul.mubr.bf16.gmra.mxu0 %v421
      %v584 = vpop.f32.mrf.mxu0
      %v585 = vadd.f32 0.0, %v584
      %v586 = vpop.f32.mrf.mxu0
      %v587 = vpop.f32.mrf.mxu0
      %v588 = vadd.f32 0.0, %v587
      %v589 = vpop.f32.mrf.mxu0
      %590 = vmatprep.mubr.bf16.mxu0 0
      %591 = vmatmul.mubr.bf16.gmra.mxu0 %v422
      %v592 = vpop.f32.mrf.mxu0
      %v593 = vadd.f32 0.0, %v592
      %v594 = vpop.f32.mrf.mxu0
      %v595 = vpop.f32.mrf.mxu0
      %v596 = vadd.f32 0.0, %v595
      %v597 = vpop.f32.mrf.mxu0
      %598 = vmatprep.mubr.bf16.mxu0 0
      %599 = vmatmul.mubr.bf16.gmra.mxu0 %v423
      %v600 = vpop.f32.mrf.mxu0
      %v601 = vadd.f32 0.0, %v600
      %v602 = vpop.f32.mrf.mxu0
      %v603 = vpop.f32.mrf.mxu0
      %v604 = vadd.f32 0.0, %v603
      %v605 = vpop.f32.mrf.mxu0
      %606 = vmatprep.mubr.bf16.mxu0 0
      %607 = vmatmul.mubr.bf16.gmra.mxu0 %v424
      %v608 = vpop.f32.mrf.mxu0
      %v609 = vadd.f32 0.0, %v608
      %v610 = vpop.f32.mrf.mxu0
      %v611 = vpop.f32.mrf.mxu0
      %v612 = vadd.f32 0.0, %v611
      %v613 = vpop.f32.mrf.mxu0
      %614 = vmatprep.mubr.bf16.mxu0 0
      %615 = vmatmul.mubr.bf16.gmra.mxu0 %v425
      %v616 = vpop.f32.mrf.mxu0
      %v617 = vadd.f32 0.0, %v616
      %v618 = vpop.f32.mrf.mxu0
      %v619 = vpop.f32.mrf.mxu0
      %v620 = vadd.f32 0.0, %v619
      %v621 = vpop.f32.mrf.mxu0
      %622 = vmatprep.mubr.bf16.mxu0 0
      %623 = vmatmul.mubr.bf16.gmra.mxu0 %v426
      %v624 = vpop.f32.mrf.mxu0
      %v625 = vadd.f32 0.0, %v624
      %v626 = vpop.f32.mrf.mxu0
      %v627 = vpop.f32.mrf.mxu0
      %v628 = vadd.f32 0.0, %v627
      %v629 = vpop.f32.mrf.mxu0
      %630 = vmatprep.mubr.bf16.mxu0 0
      %631 = vmatmul.mubr.bf16.gmra.mxu0 %v427
      %v632 = vpop.f32.mrf.mxu0
      %v633 = vadd.f32 0.0, %v632
      %v634 = vpop.f32.mrf.mxu0
      %v635 = vpop.f32.mrf.mxu0
      %v636 = vadd.f32 0.0, %v635
      %v637 = vpop.f32.mrf.mxu0
      %638 = vmatprep.mubr.bf16.mxu0 0
      %639 = vmatmul.mubr.bf16.gmra.mxu0 %v428
      %v640 = vpop.f32.mrf.mxu0
      %v641 = vadd.f32 0.0, %v640
      %v642 = vpop.f32.mrf.mxu0
      %v643 = vpop.f32.mrf.mxu0
      %v644 = vadd.f32 0.0, %v643
      %v645 = vpop.f32.mrf.mxu0
      %646 = vmatprep.mubr.bf16.mxu0 0
      %647 = vmatmul.mubr.bf16.gmra.mxu0 %v429
      %v648 = vpop.f32.mrf.mxu0
      %v649 = vadd.f32 0.0, %v648
      %v650 = vpop.f32.mrf.mxu0
      %v651 = vpop.f32.mrf.mxu0
      %v652 = vadd.f32 0.0, %v651
      %v653 = vpop.f32.mrf.mxu0
      %654 = vdwg.mxu0
      %v655 = vpack.c.bf16 %v532, %v529
      %v656 = vpack.c.bf16 %v540, %v537
      %v657 = vpack.c.bf16 %v548, %v545
      %v658 = vpack.c.bf16 %v556, %v553
      %v659 = vpack.c.bf16 %v564, %v561
      %v660 = vpack.c.bf16 %v572, %v569
      %v661 = vpack.c.bf16 %v580, %v577
      %v662 = vpack.c.bf16 %v588, %v585
      %v663 = vpack.c.bf16 %v596, %v593
      %v664 = vpack.c.bf16 %v604, %v601
      %v665 = vpack.c.bf16 %v612, %v609
      %v666 = vpack.c.bf16 %v620, %v617
      %v667 = vpack.c.bf16 %v628, %v625
      %v668 = vpack.c.bf16 %v636, %v633
      %v669 = vpack.c.bf16 %v644, %v641
      %v670 = vpack.c.bf16 %v652, %v649
      %v687 = vunpack.c.l.b16 %v655
      %v688 = vunpack.c.h.b16 %v655
      %v689 = vunpack.c.l.b16 %v656
      %v690 = vunpack.c.h.b16 %v656
      %v691 = vunpack.c.l.b16 %v657
      %v692 = vunpack.c.h.b16 %v657
      %v693 = vunpack.c.l.b16 %v658
      %v694 = vunpack.c.h.b16 %v658
      %v695 = vunpack.c.l.b16 %v659
      %v696 = vunpack.c.h.b16 %v659
      %v697 = vunpack.c.l.b16 %v660
      %v698 = vunpack.c.h.b16 %v660
      %v699 = vunpack.c.l.b16 %v661
      %v700 = vunpack.c.h.b16 %v661
      %v701 = vunpack.c.l.b16 %v662
      %v702 = vunpack.c.h.b16 %v662
      %v703 = vunpack.c.l.b16 %v663
      %v704 = vunpack.c.h.b16 %v663
      %v705 = vunpack.c.l.b16 %v664
      %v706 = vunpack.c.h.b16 %v664
      %v707 = vunpack.c.l.b16 %v665
      %v708 = vunpack.c.h.b16 %v665
      %v709 = vunpack.c.l.b16 %v666
      %v710 = vunpack.c.h.b16 %v666
      %v711 = vunpack.c.l.b16 %v667
      %v712 = vunpack.c.h.b16 %v667
      %v713 = vunpack.c.l.b16 %v668
      %v714 = vunpack.c.h.b16 %v668
      %v715 = vunpack.c.l.b16 %v669
      %v716 = vunpack.c.h.b16 %v669
      %v717 = vunpack.c.l.b16 %v670
      %v718 = vunpack.c.h.b16 %v670
      %v719 = vpack.c.b16 %v687, %v687
      %v720 = vpack.c.b16 %v688, %v688
      %v721 = vpack.c.b16 %v689, %v689
      %v722 = vpack.c.b16 %v690, %v690
      %v723 = vpack.c.b16 %v691, %v691
      %v724 = vpack.c.b16 %v692, %v692
      %v725 = vpack.c.b16 %v693, %v693
      %v726 = vpack.c.b16 %v694, %v694
      %v727 = vpack.c.b16 %v695, %v695
      %v728 = vpack.c.b16 %v696, %v696
      %v729 = vpack.c.b16 %v697, %v697
      %v730 = vpack.c.b16 %v698, %v698
      %v731 = vpack.c.b16 %v699, %v699
      %v732 = vpack.c.b16 %v700, %v700
      %v733 = vpack.c.b16 %v701, %v701
      %v734 = vpack.c.b16 %v702, %v702
      %v735 = vpack.c.b16 %v703, %v703
      %v736 = vpack.c.b16 %v704, %v704
      %v737 = vpack.c.b16 %v705, %v705
      %v738 = vpack.c.b16 %v706, %v706
      %v739 = vpack.c.b16 %v707, %v707
      %v740 = vpack.c.b16 %v708, %v708
      %v741 = vpack.c.b16 %v709, %v709
      %v742 = vpack.c.b16 %v710, %v710
      %v743 = vpack.c.b16 %v711, %v711
      %v744 = vpack.c.b16 %v712, %v712
      %v745 = vpack.c.b16 %v713, %v713
      %v746 = vpack.c.b16 %v714, %v714
      %v747 = vpack.c.b16 %v715, %v715
      %v748 = vpack.c.b16 %v716, %v716
      %v749 = vpack.c.b16 %v717, %v717
      %v750 = vpack.c.b16 %v718, %v718
      %783 = vst [vmem:[%s233] sm:$0xf] %v719
      %784 = vst [vmem:[%s233 + $0x4] sm:$0xf] %v720
      %785 = vst [vmem:[%s233 + $0x8] sm:$0xf] %v721
      %786 = vst [vmem:[%s233 + $0xc] sm:$0xf] %v722
      %787 = vst [vmem:[%s233 + $0x10] sm:$0xf] %v723
      %788 = vst [vmem:[%s233 + $0x14] sm:$0xf] %v724
      %789 = vst [vmem:[%s233 + $0x18] sm:$0xf] %v725
      %790 = vst [vmem:[%s233 + $0x1c] sm:$0xf] %v726
      %791 = vst [vmem:[%s233 + $0x20] sm:$0xf] %v727
      %792 = vst [vmem:[%s233 + $0x24] sm:$0xf] %v728
      %793 = vst [vmem:[%s233 + $0x28] sm:$0xf] %v729
      %794 = vst [vmem:[%s233 + $0x2c] sm:$0xf] %v730
      %795 = vst [vmem:[%s233 + $0x30] sm:$0xf] %v731
      %796 = vst [vmem:[%s233 + $0x34] sm:$0xf] %v732
      %797 = vst [vmem:[%s233 + $0x38] sm:$0xf] %v733
      %798 = vst [vmem:[%s233 + $0x3c] sm:$0xf] %v734
      %799 = vst [vmem:[%s233 + $0x40] sm:$0xf] %v735
      %800 = vst [vmem:[%s233 + $0x44] sm:$0xf] %v736
      %801 = vst [vmem:[%s233 + $0x48] sm:$0xf] %v737
      %802 = vst [vmem:[%s233 + $0x4c] sm:$0xf] %v738
      %803 = vst [vmem:[%s233 + $0x50] sm:$0xf] %v739
      %804 = vst [vmem:[%s233 + $0x54] sm:$0xf] %v740
      %805 = vst [vmem:[%s233 + $0x58] sm:$0xf] %v741
      %806 = vst [vmem:[%s233 + $0x5c] sm:$0xf] %v742
      %807 = vst [vmem:[%s233 + $0x60] sm:$0xf] %v743
      %808 = vst [vmem:[%s233 + $0x64] sm:$0xf] %v744
      %809 = vst [vmem:[%s233 + $0x68] sm:$0xf] %v745
      %810 = vst [vmem:[%s233 + $0x6c] sm:$0xf] %v746
      %811 = vst [vmem:[%s233 + $0x70] sm:$0xf] %v747
      %812 = vst [vmem:[%s233 + $0x74] sm:$0xf] %v748
      %813 = vst [vmem:[%s233 + $0x78] sm:$0xf] %v749
      %814 = vst [vmem:[%s233 + $0x7c] sm:$0xf] %v750
      %v815 = vadd.f32 %v529, %v532
      %v816 = vadd.f32 %v815, %v537
      %v817 = vadd.f32 %v816, %v540
      %v818 = vadd.f32 %v817, %v545
      %v819 = vadd.f32 %v818, %v548
      %v820 = vadd.f32 %v819, %v553
      %v821 = vadd.f32 %v820, %v556
      %v822 = vadd.f32 %v821, %v561
      %v823 = vadd.f32 %v822, %v564
      %v824 = vadd.f32 %v823, %v569
      %v825 = vadd.f32 %v824, %v572
      %v826 = vadd.f32 %v825, %v577
      %v827 = vadd.f32 %v826, %v580
      %v828 = vadd.f32 %v827, %v585
      %v829 = vadd.f32 %v828, %v588
      %v830 = vadd.f32 %v829, %v593
      %v831 = vadd.f32 %v830, %v596
      %v832 = vadd.f32 %v831, %v601
      %v833 = vadd.f32 %v832, %v604
      %v834 = vadd.f32 %v833, %v609
      %v835 = vadd.f32 %v834, %v612
      %v836 = vadd.f32 %v835, %v617
      %v837 = vadd.f32 %v836, %v620
      %v838 = vadd.f32 %v837, %v625
      %v839 = vadd.f32 %v838, %v628
      %v840 = vadd.f32 %v839, %v633
      %v841 = vadd.f32 %v840, %v636
      %v842 = vadd.f32 %v841, %v641
      %v843 = vadd.f32 %v842, %v644
      %v844 = vadd.f32 %v843, %v649
      %v845 = vadd.f32 %v844, %v652
      %v846 = vrot.slane %v845, 4
      %v847 = vadd.f32 %v845, %v846
      %v848 = vrot.slane %v847, 2
      %v849 = vadd.f32 %v847, %v848
      %v850 = vrot.slane %v849, 1
      %v851 = vadd.f32 %v849, %v850
      %852 = vst [vmem:[%s238] sm:$0x1] %v851
      %v853 = vmul.f32 %v529, %v529
      %v854 = vmul.f32 %v532, %v532
      %v855 = vmul.f32 %v537, %v537
      %v856 = vmul.f32 %v540, %v540
      %v857 = vmul.f32 %v545, %v545
      %v858 = vmul.f32 %v548, %v548
      %v859 = vmul.f32 %v553, %v553
      %v860 = vmul.f32 %v556, %v556
      %v861 = vmul.f32 %v561, %v561
      %v862 = vmul.f32 %v564, %v564
      %v863 = vmul.f32 %v569, %v569
      %v864 = vmul.f32 %v572, %v572
      %v865 = vmul.f32 %v577, %v577
      %v866 = vmul.f32 %v580, %v580
      %v867 = vmul.f32 %v585, %v585
      %v868 = vmul.f32 %v588, %v588
      %v869 = vmul.f32 %v593, %v593
      %v870 = vmul.f32 %v596, %v596
      %v871 = vmul.f32 %v601, %v601
      %v872 = vmul.f32 %v604, %v604
      %v873 = vmul.f32 %v609, %v609
      %v874 = vmul.f32 %v612, %v612
      %v875 = vmul.f32 %v617, %v617
      %v876 = vmul.f32 %v620, %v620
      %v877 = vmul.f32 %v625, %v625
      %v878 = vmul.f32 %v628, %v628
      %v879 = vmul.f32 %v633, %v633
      %v880 = vmul.f32 %v636, %v636
      %v881 = vmul.f32 %v641, %v641
      %v882 = vmul.f32 %v644, %v644
      %v883 = vmul.f32 %v649, %v649
      %v884 = vmul.f32 %v652, %v652
      %v885 = vadd.f32 %v853, %v854
      %v886 = vadd.f32 %v885, %v855
      %v887 = vadd.f32 %v886, %v856
      %v888 = vadd.f32 %v887, %v857
      %v889 = vadd.f32 %v888, %v858
      %v890 = vadd.f32 %v889, %v859
      %v891 = vadd.f32 %v890, %v860
      %v892 = vadd.f32 %v891, %v861
      %v893 = vadd.f32 %v892, %v862
      %v894 = vadd.f32 %v893, %v863
      %v895 = vadd.f32 %v894, %v864
      %v896 = vadd.f32 %v895, %v865
      %v897 = vadd.f32 %v896, %v866
      %v898 = vadd.f32 %v897, %v867
      %v899 = vadd.f32 %v898, %v868
      %v900 = vadd.f32 %v899, %v869
      %v901 = vadd.f32 %v900, %v870
      %v902 = vadd.f32 %v901, %v871
      %v903 = vadd.f32 %v902, %v872
      %v904 = vadd.f32 %v903, %v873
      %v905 = vadd.f32 %v904, %v874
      %v906 = vadd.f32 %v905, %v875
      %v907 = vadd.f32 %v906, %v876
      %v908 = vadd.f32 %v907, %v877
      %v909 = vadd.f32 %v908, %v878
      %v910 = vadd.f32 %v909, %v879
      %v911 = vadd.f32 %v910, %v880
      %v912 = vadd.f32 %v911, %v881
      %v913 = vadd.f32 %v912, %v882
      %v914 = vadd.f32 %v913, %v883
      %v915 = vadd.f32 %v914, %v884
      %v916 = vrot.slane %v915, 4
      %v917 = vadd.f32 %v915, %v916
      %v918 = vrot.slane %v917, 2
      %v919 = vadd.f32 %v917, %v918
      %v920 = vrot.slane %v919, 1
      %v921 = vadd.f32 %v919, %v920
      %922 = vst [vmem:[%s238 + $0x1] sm:$0x1] %v921
      %s923 = smul.u32 32, %s17
      %p924 = scmp.lt.s32.totalorder %s923, 63
      %s925 = scalar_select %p924, %s923, 63
      %s926 = smul.addr %s925, 4
      %s927 = scalar_lea.vmem %s4, %s926
      %p928 = scmp.lt.s32.totalorder %s17, 1
      %s929 = scalar_select %p928, %s17, 1
      %s930 = smul.addr %s929, 2
      %s931 = scalar_lea.vmem %s5, %s930
      // Predicated region
      $region37: #{bottleneck_forward.6} parent=35 // pred_check
        %p932 = pneg %p124
      $region38: #{bottleneck_forward.6} parent=35 // pred_check_branch
        %934 = sbr.rel (%p932) target = $region40
      $region39: #{bottleneck_forward.6} parent=35 // pred_region
        %s935 = smul.u32 32, %s17
      $region40: #{bottleneck_forward.6} parent=35 // pred_fallthru
        _
      // Predicated region
      $region41: #{bottleneck_forward.6} parent=35 // pred_check
        %p936 = pneg %p150
      $region42: #{bottleneck_forward.6} parent=35 // pred_check_branch
        %938 = sbr.rel (%p936) target = $region44
      $region43: #{bottleneck_forward.6} parent=35 // pred_region
        _
      $region44: #{bottleneck_forward.6} parent=35 // pred_fallthru
        _
    $region36: #{bottleneck_forward.6} parent=5 // pred_fallthru
      _
    %p939 = scmp.le.s32.totalorder 2, %s12
    // Predicated region
    $region45: #{bottleneck_forward.6} parent=5 // pred_check
      %p940 = pneg %p939
    $region46: #{bottleneck_forward.6} parent=5 // pred_check_branch
      %942 = sbr.rel (%p940) target = $region48
    $region47: #{bottleneck_forward.6} parent=5 // pred_region
      %s943 = ssub.s32 %s12, 2
      // Predicated region
      $region49: #{bottleneck_forward.6} parent=47 // pred_check
        %p944 = pneg %p130
      $region50: #{bottleneck_forward.6} parent=47 // pred_check_branch
        %946 = sbr.rel (%p944) target = $region52
      $region51: #{bottleneck_forward.6} parent=47 // pred_region
        %s947 = smul.u32 32, %s18
        %p948 = scmp.lt.s32.totalorder %s947, 63
        %s949 = scalar_select %p948, %s947, 63
        %s950 = smul.addr %s949, 4
        %s951 = scalar_lea.vmem %s4, %s950
      $region52: #{bottleneck_forward.6} parent=47 // pred_fallthru
        _
      // Predicated region
      $region53: #{bottleneck_forward.6} parent=47 // pred_check
        %p952 = pneg %p156
      $region54: #{bottleneck_forward.6} parent=47 // pred_check_branch
        %954 = sbr.rel (%p952) target = $region56
      $region55: #{bottleneck_forward.6} parent=47 // pred_region
        %p955 = scmp.lt.s32.totalorder %s18, 1
        %s956 = scalar_select %p955, %s18, 1
        %s957 = smul.addr %s956, 2
        %s958 = scalar_lea.vmem %s5, %s957
      $region56: #{bottleneck_forward.6} parent=47 // pred_fallthru
        _
    $region48: #{bottleneck_forward.6} parent=5 // pred_fallthru
      _
  $region6: #{bottleneck_forward.6} parent=0 // loop_footer
    %s16 = sadd.s32 1, %s12
  $region7: #{bottleneck_forward.6} parent=0 // loop_footer_branch
    %11 = sbr.rel target = $region3
  $region8: #{bottleneck_forward.6} parent=0 // loop_exit
    _

// kernel: bottleneck_forward.7
$region0: #{bottleneck_forward.7}
  #allocation0 [shape = 'u32[]', space=smem, size = 0x4, offset = 0x4, fixed_abs, tag = 'smem constant byte address 0x4 - core index']
  #allocation1 [shape = 'u32[144,128]{1,0:T(1,128)}', space=vmem, size = 0x12000, scoped, tag = 'internal scratch']
  %s0 = inlined_call_operand.vmem [shape: bf16[512,128], index: 0, kind: input, shape index: {}]
  %s1 = inlined_call_operand.vmem [shape: f32[1,128], index: 1, kind: input, shape index: {}]
  %s2 = inlined_call_operand.vmem [shape: f32[1,128], index: 2, kind: input, shape index: {}]
  %s3 = inlined_call_operand.vmem [shape: bf16[512,128], index: 3, kind: input, shape index: {}]
  %s4 = inlined_call_operand.vmem [shape: f32[512,128], index: 4, kind: output, shape index: {}]
  %s5 = sld [smem:[#allocation0]]
  $region49: #{bottleneck_forward.7} parent=0
    _
  %s7 = ssub.s32 1, %s5
  %s8 = scalar_select 0, %s7, %s5
  loop: start=0, step=1, limit=4
  $region2: #{bottleneck_forward.7} parent=0 // loop_pre_header
    _
  $region3: #{bottleneck_forward.7} parent=0 // loop_header
    %s10 = sphi 0, %s14
    %p11 = scmp.ge.s32.totalorder %s10, 4
    %s20 = sphi 0, %s22
    %s23 = sphi 0, %s20
    %s24 = sphi 0, %s23
    %s40 = sphi 0, %s24
    %s44 = sphi 0, %s44
    %s46 = sphi 0, %s44
    %s47 = sphi 0, %s46
    %s61 = sphi 0, %s47
    %s65 = sphi 0, %s65
    %s67 = sphi 0, %s65
    %s68 = sphi 0, %s67
    %s82 = sphi 0, %s68
    %s88 = sphi 0, %s90
    %s91 = sphi 0, %s88
    %s92 = sphi 0, %s91
    %s108 = sphi 0, %s92
    %s114 = sphi 0, %s116
    %s117 = sphi 0, %s114
    %s118 = sphi 0, %s117
    %s134 = sphi 0, %s118
  $region4: #{bottleneck_forward.7} parent=0 // loop_header_branch
    %13 = sbr.rel (%p11) target = $region8
  $region5: #{bottleneck_forward.7} parent=0 // loop_body
    %s15 = ssub.s32 %s10, 1
    %s16 = ssub.s32 %s10, 2
    %s17 = sadd.s32 %s10, 1
    %s18 = ssub.s32 %s10, %s17
    %p19 = scmp.eq.s32.totalorder %s18, 0
    %s21 = sadd.s32 %s20, 1
    %s22 = scalar_select %p19, %s20, %s21
    %p25 = pneg %p19
    %p26 = scmp.eq.s32.totalorder %s10, 1
    %p27 = por %p25, %p26
    %p28 = scmp.ne.s32.totalorder %s20, %s23
    %p29 = scmp.eq.s32.totalorder %s10, 0
    %p30 = por %p28, %p29
    %p31 = scmp.ne.s32.totalorder %s20, %s23
    %p32 = scmp.eq.s32.totalorder %s15, 1
    %p33 = por %p31, %p32
    %p34 = scmp.ne.s32.totalorder %s23, %s24
    %p35 = scmp.eq.s32.totalorder %s15, 0
    %p36 = por %p34, %p35
    %p37 = scmp.ne.s32.totalorder %s23, %s24
    %p38 = scmp.eq.s32.totalorder %s16, 1
    %p39 = por %p37, %p38
    %p41 = scmp.ne.s32.totalorder %s24, %s40
    %p42 = scmp.eq.s32.totalorder %s16, 0
    %p43 = por %p41, %p42
    %s45 = sadd.s32 %s44, 1
    %p48 = scmp.eq.s32.totalorder %s10, 1
    %p49 = scmp.ne.s32.totalorder %s44, %s46
    %p50 = scmp.eq.s32.totalorder %s10, 0
    %p51 = por %p49, %p50
    %p52 = scmp.ne.s32.totalorder %s44, %s46
    %p53 = scmp.eq.s32.totalorder %s15, 1
    %p54 = por %p52, %p53
    %p55 = scmp.ne.s32.totalorder %s46, %s47
    %p56 = scmp.eq.s32.totalorder %s15, 0
    %p57 = por %p55, %p56
    %p58 = scmp.ne.s32.totalorder %s46, %s47
    %p59 = scmp.eq.s32.totalorder %s16, 1
    %p60 = por %p58, %p59
    %p62 = scmp.ne.s32.totalorder %s47, %s61
    %p63 = scmp.eq.s32.totalorder %s16, 0
    %p64 = por %p62, %p63
    %s66 = sadd.s32 %s65, 1
    %p69 = scmp.eq.s32.totalorder %s10, 1
    %p70 = scmp.ne.s32.totalorder %s65, %s67
    %p71 = scmp.eq.s32.totalorder %s10, 0
    %p72 = por %p70, %p71
    %p73 = scmp.ne.s32.totalorder %s65, %s67
    %p74 = scmp.eq.s32.totalorder %s15, 1
    %p75 = por %p73, %p74
    %p76 = scmp.ne.s32.totalorder %s67, %s68
    %p77 = scmp.eq.s32.totalorder %s15, 0
    %p78 = por %p76, %p77
    %p79 = scmp.ne.s32.totalorder %s67, %s68
    %p80 = scmp.eq.s32.totalorder %s16, 1
    %p81 = por %p79, %p80
    %p83 = scmp.ne.s32.totalorder %s68, %s82
    %p84 = scmp.eq.s32.totalorder %s16, 0
    %p85 = por %p83, %p84
    %s86 = ssub.s32 %s10, %s17
    %p87 = scmp.eq.s32.totalorder %s86, 0
    %s89 = sadd.s32 %s88, 1
    %s90 = scalar_select %p87, %s88, %s89
    %p93 = pneg %p87
    %p94 = scmp.eq.s32.totalorder %s10, 1
    %p95 = por %p93, %p94
    %p96 = scmp.ne.s32.totalorder %s88, %s91
    %p97 = scmp.eq.s32.totalorder %s10, 0
    %p98 = por %p96, %p97
    %p99 = scmp.ne.s32.totalorder %s88, %s91
    %p100 = scmp.eq.s32.totalorder %s15, 1
    %p101 = por %p99, %p100
    %p102 = scmp.ne.s32.totalorder %s91, %s92
    %p103 = scmp.eq.s32.totalorder %s15, 0
    %p104 = por %p102, %p103
    %p105 = scmp.ne.s32.totalorder %s91, %s92
    %p106 = scmp.eq.s32.totalorder %s16, 1
    %p107 = por %p105, %p106
    %p109 = scmp.ne.s32.totalorder %s92, %s108
    %p110 = scmp.eq.s32.totalorder %s16, 0
    %p111 = por %p109, %p110
    %s112 = ssub.s32 %s10, %s17
    %p113 = scmp.eq.s32.totalorder %s112, 0
    %s115 = sadd.s32 %s114, 1
    %s116 = scalar_select %p113, %s114, %s115
    %p119 = pneg %p113
    %p120 = scmp.eq.s32.totalorder %s10, 1
    %p121 = por %p119, %p120
    %p122 = scmp.ne.s32.totalorder %s114, %s117
    %p123 = scmp.eq.s32.totalorder %s10, 0
    %p124 = por %p122, %p123
    %p125 = scmp.ne.s32.totalorder %s114, %s117
    %p126 = scmp.eq.s32.totalorder %s15, 1
    %p127 = por %p125, %p126
    %p128 = scmp.ne.s32.totalorder %s117, %s118
    %p129 = scmp.eq.s32.totalorder %s15, 0
    %p130 = por %p128, %p129
    %p131 = scmp.ne.s32.totalorder %s117, %s118
    %p132 = scmp.eq.s32.totalorder %s16, 1
    %p133 = por %p131, %p132
    %p135 = scmp.ne.s32.totalorder %s118, %s134
    %p136 = scmp.eq.s32.totalorder %s16, 0
    %p137 = por %p135, %p136
    %p138 = scmp.le.s32.totalorder 1, %s10
    %p139 = scmp.lt.s32.totalorder %s10, 3
    %p140 = pnand %p138, %p139
    %p141 = pneg %p140
    // Predicated region
    $region9: #{bottleneck_forward.7} parent=5 // pred_check
      _
    $region10: #{bottleneck_forward.7} parent=5 // pred_check_branch
      %143 = sbr.rel (%p140) target = $region12
    $region11: #{bottleneck_forward.7} parent=5 // pred_region
      %s144 = ssub.s32 %s10, 1
      // Predicated region
      $region13: #{bottleneck_forward.7} parent=11 // pred_check
        %p145 = pneg %p57
      $region14: #{bottleneck_forward.7} parent=11 // pred_check_branch
        %147 = sbr.rel (%p145) target = $region16
      $region15: #{bottleneck_forward.7} parent=11 // pred_region
        _
      $region16: #{bottleneck_forward.7} parent=11 // pred_fallthru
        _
      // Predicated region
      $region17: #{bottleneck_forward.7} parent=11 // pred_check
        %p148 = pneg %p78
      $region18: #{bottleneck_forward.7} parent=11 // pred_check_branch
        %150 = sbr.rel (%p148) target = $region20
      $region19: #{bottleneck_forward.7} parent=11 // pred_region
        _
      $region20: #{bottleneck_forward.7} parent=11 // pred_fallthru
        _
    $region12: #{bottleneck_forward.7} parent=5 // pred_fallthru
      _
    %p151 = scmp.lt.s32.totalorder %s10, 2
    // Predicated region
    $region21: #{bottleneck_forward.7} parent=5 // pred_check
      %p152 = pneg %p151
    $region22: #{bottleneck_forward.7} parent=5 // pred_check_branch
      %154 = sbr.rel (%p152) target = $region24
    $region23: #{bottleneck_forward.7} parent=5 // pred_region
      // Predicated region
      $region25: #{bottleneck_forward.7} parent=23 // pred_check
        %p155 = pneg %p30
      $region26: #{bottleneck_forward.7} parent=23 // pred_check_branch
        %157 = sbr.rel (%p155) target = $region28
      $region27: #{bottleneck_forward.7} parent=23 // pred_region
        %s158 = smul.u32 32, %s10
        %p159 = scmp.lt.s32.totalorder %s158, 63
        %s160 = scalar_select %p159, %s158, 63
        %s161 = smul.addr %s160, 4
        %s162 = scalar_lea.vmem %s0, %s161
        %s163 = smul.u32 32, %s10
      $region28: #{bottleneck_forward.7} parent=23 // pred_fallthru
        _
      // Predicated region
      $region29: #{bottleneck_forward.7} parent=23 // pred_check
        %p164 = pneg %p98
      $region30: #{bottleneck_forward.7} parent=23 // pred_check_branch
        %166 = sbr.rel (%p164) target = $region32
      $region31: #{bottleneck_forward.7} parent=23 // pred_region
        %s167 = smul.u32 32, %s10
        %p168 = scmp.lt.s32.totalorder %s167, 63
        %s169 = scalar_select %p168, %s167, 63
        %s170 = smul.addr %s169, 4
        %s171 = scalar_lea.vmem %s3, %s170
        %s172 = smul.u32 32, %s10
      $region32: #{bottleneck_forward.7} parent=23 // pred_fallthru
        _
    $region24: #{bottleneck_forward.7} parent=5 // pred_fallthru
      _
    %p173 = scmp.le.s32.totalorder 1, %s10
    %p174 = scmp.lt.s32.totalorder %s10, 3
    %p175 = pnand %p173, %p174
    %p176 = pneg %p175
    // Predicated region
    $region33: #{bottleneck_forward.7} parent=5 // pred_check
      _
    $region34: #{bottleneck_forward.7} parent=5 // pred_check_branch
      %178 = sbr.rel (%p175) target = $region36
    $region35: #{bottleneck_forward.7} parent=5 // pred_region
      %s179 = ssub.s32 %s10, 1
      %s180 = smul.u32 32, %s15
      %p181 = scmp.lt.s32.totalorder %s180, 63
      %s182 = scalar_select %p181, %s180, 63
      %s183 = smul.addr %s182, 4
      %s184 = scalar_lea.vmem %s0, %s183
      %p185 = pneg %p36
      %p186 = pneg %p33
      %p187 = pneg %p57
      %p188 = pneg %p54
      %p189 = pneg %p78
      %p190 = pneg %p75
      %s191 = smul.u32 32, %s15
      %p192 = scmp.lt.s32.totalorder %s191, 63
      %s193 = scalar_select %p192, %s191, 63
      %s194 = smul.addr %s193, 4
      %s195 = scalar_lea.vmem %s3, %s194
      %p196 = pneg %p104
      %p197 = pneg %p101
      %p198 = pneg %p130
      %p199 = pneg %p127
      %s200 = smul.u32 32, %s15
      %p201 = scmp.lt.s32.totalorder %s200, 63
      %s202 = scalar_select %p201, %s200, 63
      %s203 = smul.addr %s202, 8
      %s204 = scalar_lea.vmem %s4, %s203
      %s205 = smul.u32 32, %s15
      %p206 = scmp.lt.s32.totalorder %s205, 63
      %s207 = scalar_select %p206, %s205, 63
      %s208 = smul.addr %s207, 4
      %s209 = scalar_lea.vmem %s0, %s208
      %s210 = smul.u32 32, %s15
      %s211 = smul.u32 32, %s15
      %p212 = scmp.lt.s32.totalorder %s211, 63
      %s213 = scalar_select %p212, %s211, 63
      %s214 = smul.addr %s213, 4
      %s215 = scalar_lea.vmem %s3, %s214
      %s216 = smul.u32 32, %s15
      %s217 = smul.u32 32, %s15
      %p218 = scmp.lt.s32.totalorder %s217, 63
      %s219 = scalar_select %p218, %s217, 63
      %s220 = smul.addr %s219, 8
      %s221 = scalar_lea.vmem %s4, %s220
      %s222 = smul.u32 32, %s15
      %v223 = vld [vmem:[%s209] sm:$0xf]
      %v224 = vld [vmem:[%s209 + $0x4] sm:$0xf]
      %v225 = vld [vmem:[%s209 + $0x8] sm:$0xf]
      %v226 = vld [vmem:[%s209 + $0xc] sm:$0xf]
      %v227 = vld [vmem:[%s209 + $0x10] sm:$0xf]
      %v228 = vld [vmem:[%s209 + $0x14] sm:$0xf]
      %v229 = vld [vmem:[%s209 + $0x18] sm:$0xf]
      %v230 = vld [vmem:[%s209 + $0x1c] sm:$0xf]
      %v231 = vld [vmem:[%s209 + $0x20] sm:$0xf]
      %v232 = vld [vmem:[%s209 + $0x24] sm:$0xf]
      %v233 = vld [vmem:[%s209 + $0x28] sm:$0xf]
      %v234 = vld [vmem:[%s209 + $0x2c] sm:$0xf]
      %v235 = vld [vmem:[%s209 + $0x30] sm:$0xf]
      %v236 = vld [vmem:[%s209 + $0x34] sm:$0xf]
      %v237 = vld [vmem:[%s209 + $0x38] sm:$0xf]
      %v238 = vld [vmem:[%s209 + $0x3c] sm:$0xf]
      %v239 = vld [vmem:[%s209 + $0x40] sm:$0xf]
      %v240 = vld [vmem:[%s209 + $0x44] sm:$0xf]
      %v241 = vld [vmem:[%s209 + $0x48] sm:$0xf]
      %v242 = vld [vmem:[%s209 + $0x4c] sm:$0xf]
      %v243 = vld [vmem:[%s209 + $0x50] sm:$0xf]
      %v244 = vld [vmem:[%s209 + $0x54] sm:$0xf]
      %v245 = vld [vmem:[%s209 + $0x58] sm:$0xf]
      %v246 = vld [vmem:[%s209 + $0x5c] sm:$0xf]
      %v247 = vld [vmem:[%s209 + $0x60] sm:$0xf]
      %v248 = vld [vmem:[%s209 + $0x64] sm:$0xf]
      %v249 = vld [vmem:[%s209 + $0x68] sm:$0xf]
      %v250 = vld [vmem:[%s209 + $0x6c] sm:$0xf]
      %v251 = vld [vmem:[%s209 + $0x70] sm:$0xf]
      %v252 = vld [vmem:[%s209 + $0x74] sm:$0xf]
      %v253 = vld [vmem:[%s209 + $0x78] sm:$0xf]
      %v254 = vld [vmem:[%s209 + $0x7c] sm:$0xf]
      %v255 = vunpack.c.l.bf16 %v223
      %v256 = vunpack.c.l.bf16 %v224
      %v257 = vunpack.c.l.bf16 %v225
      %v258 = vunpack.c.l.bf16 %v226
      %v259 = vunpack.c.l.bf16 %v227
      %v260 = vunpack.c.l.bf16 %v228
      %v261 = vunpack.c.l.bf16 %v229
      %v262 = vunpack.c.l.bf16 %v230
      %v263 = vunpack.c.l.bf16 %v231
      %v264 = vunpack.c.l.bf16 %v232
      %v265 = vunpack.c.l.bf16 %v233
      %v266 = vunpack.c.l.bf16 %v234
      %v267 = vunpack.c.l.bf16 %v235
      %v268 = vunpack.c.l.bf16 %v236
      %v269 = vunpack.c.l.bf16 %v237
      %v270 = vunpack.c.l.bf16 %v238
      %v271 = vunpack.c.l.bf16 %v239
      %v272 = vunpack.c.l.bf16 %v240
      %v273 = vunpack.c.l.bf16 %v241
      %v274 = vunpack.c.l.bf16 %v242
      %v275 = vunpack.c.l.bf16 %v243
      %v276 = vunpack.c.l.bf16 %v244
      %v277 = vunpack.c.l.bf16 %v245
      %v278 = vunpack.c.l.bf16 %v246
      %v279 = vunpack.c.l.bf16 %v247
      %v280 = vunpack.c.l.bf16 %v248
      %v281 = vunpack.c.l.bf16 %v249
      %v282 = vunpack.c.l.bf16 %v250
      %v283 = vunpack.c.l.bf16 %v251
      %v284 = vunpack.c.l.bf16 %v252
      %v285 = vunpack.c.l.bf16 %v253
      %v286 = vunpack.c.l.bf16 %v254
      %v287 = vld [vmem:[%s1] sm:$0x1]
      %v289 = vlaneseq
      %v290 = vshrl.u32 %v289, 7
      %v291 = vsub.s32 0, %v290
      %v292 = vrot.slane %v287, %v291
      %v294 = vmul.f32 %v255, %v292
      %v295 = vmul.f32 %v256, %v292
      %v296 = vmul.f32 %v257, %v292
      %v297 = vmul.f32 %v258, %v292
      %v298 = vmul.f32 %v259, %v292
      %v299 = vmul.f32 %v260, %v292
      %v300 = vmul.f32 %v261, %v292
      %v301 = vmul.f32 %v262, %v292
      %v302 = vmul.f32 %v263, %v292
      %v303 = vmul.f32 %v264, %v292
      %v304 = vmul.f32 %v265, %v292
      %v305 = vmul.f32 %v266, %v292
      %v306 = vmul.f32 %v267, %v292
      %v307 = vmul.f32 %v268, %v292
      %v308 = vmul.f32 %v269, %v292
      %v309 = vmul.f32 %v270, %v292
      %v310 = vmul.f32 %v271, %v292
      %v311 = vmul.f32 %v272, %v292
      %v312 = vmul.f32 %v273, %v292
      %v313 = vmul.f32 %v274, %v292
      %v314 = vmul.f32 %v275, %v292
      %v315 = vmul.f32 %v276, %v292
      %v316 = vmul.f32 %v277, %v292
      %v317 = vmul.f32 %v278, %v292
      %v318 = vmul.f32 %v279, %v292
      %v319 = vmul.f32 %v280, %v292
      %v320 = vmul.f32 %v281, %v292
      %v321 = vmul.f32 %v282, %v292
      %v322 = vmul.f32 %v283, %v292
      %v323 = vmul.f32 %v284, %v292
      %v324 = vmul.f32 %v285, %v292
      %v325 = vmul.f32 %v286, %v292
      %v326 = vld [vmem:[%s2] sm:$0x1]
      %v328 = vlaneseq
      %v329 = vshrl.u32 %v328, 7
      %v330 = vsub.s32 0, %v329
      %v331 = vrot.slane %v326, %v330
      %v333 = vadd.f32 %v294, %v331
      %v334 = vadd.f32 %v295, %v331
      %v335 = vadd.f32 %v296, %v331
      %v336 = vadd.f32 %v297, %v331
      %v337 = vadd.f32 %v298, %v331
      %v338 = vadd.f32 %v299, %v331
      %v339 = vadd.f32 %v300, %v331
      %v340 = vadd.f32 %v301, %v331
      %v341 = vadd.f32 %v302, %v331
      %v342 = vadd.f32 %v303, %v331
      %v343 = vadd.f32 %v304, %v331
      %v344 = vadd.f32 %v305, %v331
      %v345 = vadd.f32 %v306, %v331
      %v346 = vadd.f32 %v307, %v331
      %v347 = vadd.f32 %v308, %v331
      %v348 = vadd.f32 %v309, %v331
      %v349 = vadd.f32 %v310, %v331
      %v350 = vadd.f32 %v311, %v331
      %v351 = vadd.f32 %v312, %v331
      %v352 = vadd.f32 %v313, %v331
      %v353 = vadd.f32 %v314, %v331
      %v354 = vadd.f32 %v315, %v331
      %v355 = vadd.f32 %v316, %v331
      %v356 = vadd.f32 %v317, %v331
      %v357 = vadd.f32 %v318, %v331
      %v358 = vadd.f32 %v319, %v331
      %v359 = vadd.f32 %v320, %v331
      %v360 = vadd.f32 %v321, %v331
      %v361 = vadd.f32 %v322, %v331
      %v362 = vadd.f32 %v323, %v331
      %v363 = vadd.f32 %v324, %v331
      %v364 = vadd.f32 %v325, %v331
      %v365 = vld [vmem:[%s215] sm:$0xf]
      %v366 = vld [vmem:[%s215 + $0x4] sm:$0xf]
      %v367 = vld [vmem:[%s215 + $0x8] sm:$0xf]
      %v368 = vld [vmem:[%s215 + $0xc] sm:$0xf]
      %v369 = vld [vmem:[%s215 + $0x10] sm:$0xf]
      %v370 = vld [vmem:[%s215 + $0x14] sm:$0xf]
      %v371 = vld [vmem:[%s215 + $0x18] sm:$0xf]
      %v372 = vld [vmem:[%s215 + $0x1c] sm:$0xf]
      %v373 = vld [vmem:[%s215 + $0x20] sm:$0xf]
      %v374 = vld [vmem:[%s215 + $0x24] sm:$0xf]
      %v375 = vld [vmem:[%s215 + $0x28] sm:$0xf]
      %v376 = vld [vmem:[%s215 + $0x2c] sm:$0xf]
      %v377 = vld [vmem:[%s215 + $0x30] sm:$0xf]
      %v378 = vld [vmem:[%s215 + $0x34] sm:$0xf]
      %v379 = vld [vmem:[%s215 + $0x38] sm:$0xf]
      %v380 = vld [vmem:[%s215 + $0x3c] sm:$0xf]
      %v381 = vld [vmem:[%s215 + $0x40] sm:$0xf]
      %v382 = vld [vmem:[%s215 + $0x44] sm:$0xf]
      %v383 = vld [vmem:[%s215 + $0x48] sm:$0xf]
      %v384 = vld [vmem:[%s215 + $0x4c] sm:$0xf]
      %v385 = vld [vmem:[%s215 + $0x50] sm:$0xf]
      %v386 = vld [vmem:[%s215 + $0x54] sm:$0xf]
      %v387 = vld [vmem:[%s215 + $0x58] sm:$0xf]
      %v388 = vld [vmem:[%s215 + $0x5c] sm:$0xf]
      %v389 = vld [vmem:[%s215 + $0x60] sm:$0xf]
      %v390 = vld [vmem:[%s215 + $0x64] sm:$0xf]
      %v391 = vld [vmem:[%s215 + $0x68] sm:$0xf]
      %v392 = vld [vmem:[%s215 + $0x6c] sm:$0xf]
      %v393 = vld [vmem:[%s215 + $0x70] sm:$0xf]
      %v394 = vld [vmem:[%s215 + $0x74] sm:$0xf]
      %v395 = vld [vmem:[%s215 + $0x78] sm:$0xf]
      %v396 = vld [vmem:[%s215 + $0x7c] sm:$0xf]
      %v397 = vunpack.c.l.bf16 %v365
      %v398 = vunpack.c.l.bf16 %v366
      %v399 = vunpack.c.l.bf16 %v367
      %v400 = vunpack.c.l.bf16 %v368
      %v401 = vunpack.c.l.bf16 %v369
      %v402 = vunpack.c.l.bf16 %v370
      %v403 = vunpack.c.l.bf16 %v371
      %v404 = vunpack.c.l.bf16 %v372
      %v405 = vunpack.c.l.bf16 %v373
      %v406 = vunpack.c.l.bf16 %v374
      %v407 = vunpack.c.l.bf16 %v375
      %v408 = vunpack.c.l.bf16 %v376
      %v409 = vunpack.c.l.bf16 %v377
      %v410 = vunpack.c.l.bf16 %v378
      %v411 = vunpack.c.l.bf16 %v379
      %v412 = vunpack.c.l.bf16 %v380
      %v413 = vunpack.c.l.bf16 %v381
      %v414 = vunpack.c.l.bf16 %v382
      %v415 = vunpack.c.l.bf16 %v383
      %v416 = vunpack.c.l.bf16 %v384
      %v417 = vunpack.c.l.bf16 %v385
      %v418 = vunpack.c.l.bf16 %v386
      %v419 = vunpack.c.l.bf16 %v387
      %v420 = vunpack.c.l.bf16 %v388
      %v421 = vunpack.c.l.bf16 %v389
      %v422 = vunpack.c.l.bf16 %v390
      %v423 = vunpack.c.l.bf16 %v391
      %v424 = vunpack.c.l.bf16 %v392
      %v425 = vunpack.c.l.bf16 %v393
      %v426 = vunpack.c.l.bf16 %v394
      %v427 = vunpack.c.l.bf16 %v395
      %v428 = vunpack.c.l.bf16 %v396
      %v429 = vadd.f32 %v333, %v397
      %v430 = vadd.f32 %v334, %v398
      %v431 = vadd.f32 %v335, %v399
      %v432 = vadd.f32 %v336, %v400
      %v433 = vadd.f32 %v337, %v401
      %v434 = vadd.f32 %v338, %v402
      %v435 = vadd.f32 %v339, %v403
      %v436 = vadd.f32 %v340, %v404
      %v437 = vadd.f32 %v341, %v405
      %v438 = vadd.f32 %v342, %v406
      %v439 = vadd.f32 %v343, %v407
      %v440 = vadd.f32 %v344, %v408
      %v441 = vadd.f32 %v345, %v409
      %v442 = vadd.f32 %v346, %v410
      %v443 = vadd.f32 %v347, %v411
      %v444 = vadd.f32 %v348, %v412
      %v445 = vadd.f32 %v349, %v413
      %v446 = vadd.f32 %v350, %v414
      %v447 = vadd.f32 %v351, %v415
      %v448 = vadd.f32 %v352, %v416
      %v449 = vadd.f32 %v353, %v417
      %v450 = vadd.f32 %v354, %v418
      %v451 = vadd.f32 %v355, %v419
      %v452 = vadd.f32 %v356, %v420
      %v453 = vadd.f32 %v357, %v421
      %v454 = vadd.f32 %v358, %v422
      %v455 = vadd.f32 %v359, %v423
      %v456 = vadd.f32 %v360, %v424
      %v457 = vadd.f32 %v361, %v425
      %v458 = vadd.f32 %v362, %v426
      %v459 = vadd.f32 %v363, %v427
      %v460 = vadd.f32 %v364, %v428
      %v461 = vmax.f32 %v429, 0.0
      %v462 = vmax.f32 %v430, 0.0
      %v463 = vmax.f32 %v431, 0.0
      %v464 = vmax.f32 %v432, 0.0
      %v465 = vmax.f32 %v433, 0.0
      %v466 = vmax.f32 %v434, 0.0
      %v467 = vmax.f32 %v435, 0.0
      %v468 = vmax.f32 %v436, 0.0
      %v469 = vmax.f32 %v437, 0.0
      %v470 = vmax.f32 %v438, 0.0
      %v471 = vmax.f32 %v439, 0.0
      %v472 = vmax.f32 %v440, 0.0
      %v473 = vmax.f32 %v441, 0.0
      %v474 = vmax.f32 %v442, 0.0
      %v475 = vmax.f32 %v443, 0.0
      %v476 = vmax.f32 %v444, 0.0
      %v477 = vmax.f32 %v445, 0.0
      %v478 = vmax.f32 %v446, 0.0
      %v479 = vmax.f32 %v447, 0.0
      %v480 = vmax.f32 %v448, 0.0
      %v481 = vmax.f32 %v449, 0.0
      %v482 = vmax.f32 %v450, 0.0
      %v483 = vmax.f32 %v451, 0.0
      %v484 = vmax.f32 %v452, 0.0
      %v485 = vmax.f32 %v453, 0.0
      %v486 = vmax.f32 %v454, 0.0
      %v487 = vmax.f32 %v455, 0.0
      %v488 = vmax.f32 %v456, 0.0
      %v489 = vmax.f32 %v457, 0.0
      %v490 = vmax.f32 %v458, 0.0
      %v491 = vmax.f32 %v459, 0.0
      %v492 = vmax.f32 %v460, 0.0
      %493 = vst [vmem:[%s221] sm:$0xff] %v461
      %494 = vst [vmem:[%s221 + $0x8] sm:$0xff] %v462
      %495 = vst [vmem:[%s221 + $0x10] sm:$0xff] %v463
      %496 = vst [vmem:[%s221 + $0x18] sm:$0xff] %v464
      %497 = vst [vmem:[%s221 + $0x20] sm:$0xff] %v465
      %498 = vst [vmem:[%s221 + $0x28] sm:$0xff] %v466
      %499 = vst [vmem:[%s221 + $0x30] sm:$0xff] %v467
      %500 = vst [vmem:[%s221 + $0x38] sm:$0xff] %v468
      %501 = vst [vmem:[%s221 + $0x40] sm:$0xff] %v469
      %502 = vst [vmem:[%s221 + $0x48] sm:$0xff] %v470
      %503 = vst [vmem:[%s221 + $0x50] sm:$0xff] %v471
      %504 = vst [vmem:[%s221 + $0x58] sm:$0xff] %v472
      %505 = vst [vmem:[%s221 + $0x60] sm:$0xff] %v473
      %506 = vst [vmem:[%s221 + $0x68] sm:$0xff] %v474
      %507 = vst [vmem:[%s221 + $0x70] sm:$0xff] %v475
      %508 = vst [vmem:[%s221 + $0x78] sm:$0xff] %v476
      %509 = vst [vmem:[%s221 + $0x80] sm:$0xff] %v477
      %510 = vst [vmem:[%s221 + $0x88] sm:$0xff] %v478
      %511 = vst [vmem:[%s221 + $0x90] sm:$0xff] %v479
      %512 = vst [vmem:[%s221 + $0x98] sm:$0xff] %v480
      %513 = vst [vmem:[%s221 + $0xa0] sm:$0xff] %v481
      %514 = vst [vmem:[%s221 + $0xa8] sm:$0xff] %v482
      %515 = vst [vmem:[%s221 + $0xb0] sm:$0xff] %v483
      %516 = vst [vmem:[%s221 + $0xb8] sm:$0xff] %v484
      %517 = vst [vmem:[%s221 + $0xc0] sm:$0xff] %v485
      %518 = vst [vmem:[%s221 + $0xc8] sm:$0xff] %v486
      %519 = vst [vmem:[%s221 + $0xd0] sm:$0xff] %v487
      %520 = vst [vmem:[%s221 + $0xd8] sm:$0xff] %v488
      %521 = vst [vmem:[%s221 + $0xe0] sm:$0xff] %v489
      %522 = vst [vmem:[%s221 + $0xe8] sm:$0xff] %v490
      %523 = vst [vmem:[%s221 + $0xf0] sm:$0xff] %v491
      %524 = vst [vmem:[%s221 + $0xf8] sm:$0xff] %v492
      %s525 = smul.u32 32, %s15
      %p526 = scmp.lt.s32.totalorder %s525, 63
      %s527 = scalar_select %p526, %s525, 63
      %s528 = smul.addr %s527, 8
      %s529 = scalar_lea.vmem %s4, %s528
      // Predicated region
      $region37: #{bottleneck_forward.7} parent=35 // pred_check
        %p530 = pneg %p127
      $region38: #{bottleneck_forward.7} parent=35 // pred_check_branch
        %532 = sbr.rel (%p530) target = $region40
      $region39: #{bottleneck_forward.7} parent=35 // pred_region
        %s533 = smul.u32 32, %s15
      $region40: #{bottleneck_forward.7} parent=35 // pred_fallthru
        _
    $region36: #{bottleneck_forward.7} parent=5 // pred_fallthru
      _
    %p534 = scmp.le.s32.totalorder 2, %s10
    // Predicated region
    $region41: #{bottleneck_forward.7} parent=5 // pred_check
      %p535 = pneg %p534
    $region42: #{bottleneck_forward.7} parent=5 // pred_check_branch
      %537 = sbr.rel (%p535) target = $region44
    $region43: #{bottleneck_forward.7} parent=5 // pred_region
      %s538 = ssub.s32 %s10, 2
      // Predicated region
      $region45: #{bottleneck_forward.7} parent=43 // pred_check
        %p539 = pneg %p133
      $region46: #{bottleneck_forward.7} parent=43 // pred_check_branch
        %541 = sbr.rel (%p539) target = $region48
      $region47: #{bottleneck_forward.7} parent=43 // pred_region
        %s542 = smul.u32 32, %s16
        %p543 = scmp.lt.s32.totalorder %s542, 63
        %s544 = scalar_select %p543, %s542, 63
        %s545 = smul.addr %s544, 8
        %s546 = scalar_lea.vmem %s4, %s545
      $region48: #{bottleneck_forward.7} parent=43 // pred_fallthru
        _
    $region44: #{bottleneck_forward.7} parent=5 // pred_fallthru
      _
  $region6: #{bottleneck_forward.7} parent=0 // loop_footer
    %s14 = sadd.s32 1, %s10
  $region7: #{bottleneck_forward.7} parent=0 // loop_footer_branch
    %9 = sbr.rel target = $region3
  $region8: #{bottleneck_forward.7} parent=0 // loop_exit
    _

// kernel: bottleneck_forward.5
$region0: #{bottleneck_forward.5}
  #allocation0 [shape = 'u32[]', space=smem, size = 0x4, offset = 0x4, fixed_abs, tag = 'smem constant byte address 0x4 - core index']
  #allocation1 [shape = 'u32[144,128]{1,0:T(1,128)}', space=vmem, size = 0x12000, scoped, tag = 'internal scratch']
  #allocation2 [shape = 'bf16[18,18,128]{2,1,0:T(8,128)(2,1)}', space=vmem, size = 0x1b000, scoped, tag = 'scratch operand']
  #allocation3 [shape = 'bf16[256,1152]{1,0:T(8,128)(2,1)}', space=vmem, size = 0x90000, scoped, tag = 'scratch operand']
  %s0 = inlined_call_operand.vmem [shape: bf16[2,16,16,128], index: 0, kind: input, shape index: {}]
  %s1 = inlined_call_operand.vmem [shape: f32[1,128], index: 1, kind: input, shape index: {}]
  %s2 = inlined_call_operand.vmem [shape: f32[1,128], index: 2, kind: input, shape index: {}]
  %s3 = inlined_call_operand.vmem [shape: bf16[1152,128], index: 3, kind: input, shape index: {}]
  %s4 = inlined_call_operand.vmem [shape: bf16[2,256,128], index: 4, kind: output, shape index: {0}]
  %s5 = inlined_call_operand.vmem [shape: f32[2,2,128], index: 5, kind: output, shape index: {1}]
  %6 = xla_tuple %s4, %s5
  %s7 = sld [smem:[#allocation0]]
  $region57: #{bottleneck_forward.5} parent=0
    _
  %s9 = ssub.s32 1, %s7
  %s10 = scalar_select 0, %s9, %s7
  loop: start=0, step=1, limit=4
  $region2: #{bottleneck_forward.5} parent=0 // loop_pre_header
    _
  $region3: #{bottleneck_forward.5} parent=0 // loop_header
    %s12 = sphi 0, %s16
    %p13 = scmp.ge.s32.totalorder %s12, 4
    %s22 = sphi 0, %s24
    %s25 = sphi 0, %s22
    %s26 = sphi 0, %s25
    %s42 = sphi 0, %s26
    %s46 = sphi 0, %s46
    %s48 = sphi 0, %s46
    %s49 = sphi 0, %s48
    %s63 = sphi 0, %s49
    %s67 = sphi 0, %s67
    %s69 = sphi 0, %s67
    %s70 = sphi 0, %s69
    %s84 = sphi 0, %s70
    %s88 = sphi 0, %s88
    %s90 = sphi 0, %s88
    %s91 = sphi 0, %s90
    %s105 = sphi 0, %s91
    %s111 = sphi 0, %s113
    %s114 = sphi 0, %s111
    %s115 = sphi 0, %s114
    %s131 = sphi 0, %s115
    %s137 = sphi 0, %s139
    %s140 = sphi 0, %s137
    %s141 = sphi 0, %s140
    %s157 = sphi 0, %s141
  $region4: #{bottleneck_forward.5} parent=0 // loop_header_branch
    %15 = sbr.rel (%p13) target = $region8
  $region5: #{bottleneck_forward.5} parent=0 // loop_body
    %s17 = ssub.s32 %s12, 1
    %s18 = ssub.s32 %s12, 2
    %s19 = sadd.s32 %s12, 1
    %s20 = ssub.s32 %s12, %s19
    %p21 = scmp.eq.s32.totalorder %s20, 0
    %s23 = sadd.s32 %s22, 1
    %s24 = scalar_select %p21, %s22, %s23
    %p27 = pneg %p21
    %p28 = scmp.eq.s32.totalorder %s12, 1
    %p29 = por %p27, %p28
    %p30 = scmp.ne.s32.totalorder %s22, %s25
    %p31 = scmp.eq.s32.totalorder %s12, 0
    %p32 = por %p30, %p31
    %p33 = scmp.ne.s32.totalorder %s22, %s25
    %p34 = scmp.eq.s32.totalorder %s17, 1
    %p35 = por %p33, %p34
    %p36 = scmp.ne.s32.totalorder %s25, %s26
    %p37 = scmp.eq.s32.totalorder %s17, 0
    %p38 = por %p36, %p37
    %p39 = scmp.ne.s32.totalorder %s25, %s26
    %p40 = scmp.eq.s32.totalorder %s18, 1
    %p41 = por %p39, %p40
    %p43 = scmp.ne.s32.totalorder %s26, %s42
    %p44 = scmp.eq.s32.totalorder %s18, 0
    %p45 = por %p43, %p44
    %s47 = sadd.s32 %s46, 1
    %p50 = scmp.eq.s32.totalorder %s12, 1
    %p51 = scmp.ne.s32.totalorder %s46, %s48
    %p52 = scmp.eq.s32.totalorder %s12, 0
    %p53 = por %p51, %p52
    %p54 = scmp.ne.s32.totalorder %s46, %s48
    %p55 = scmp.eq.s32.totalorder %s17, 1
    %p56 = por %p54, %p55
    %p57 = scmp.ne.s32.totalorder %s48, %s49
    %p58 = scmp.eq.s32.totalorder %s17, 0
    %p59 = por %p57, %p58
    %p60 = scmp.ne.s32.totalorder %s48, %s49
    %p61 = scmp.eq.s32.totalorder %s18, 1
    %p62 = por %p60, %p61
    %p64 = scmp.ne.s32.totalorder %s49, %s63
    %p65 = scmp.eq.s32.totalorder %s18, 0
    %p66 = por %p64, %p65
    %s68 = sadd.s32 %s67, 1
    %p71 = scmp.eq.s32.totalorder %s12, 1
    %p72 = scmp.ne.s32.totalorder %s67, %s69
    %p73 = scmp.eq.s32.totalorder %s12, 0
    %p74 = por %p72, %p73
    %p75 = scmp.ne.s32.totalorder %s67, %s69
    %p76 = scmp.eq.s32.totalorder %s17, 1
    %p77 = por %p75, %p76
    %p78 = scmp.ne.s32.totalorder %s69, %s70
    %p79 = scmp.eq.s32.totalorder %s17, 0
    %p80 = por %p78, %p79
    %p81 = scmp.ne.s32.totalorder %s69, %s70
    %p82 = scmp.eq.s32.totalorder %s18, 1
    %p83 = por %p81, %p82
    %p85 = scmp.ne.s32.totalorder %s70, %s84
    %p86 = scmp.eq.s32.totalorder %s18, 0
    %p87 = por %p85, %p86
    %s89 = sadd.s32 %s88, 1
    %p92 = scmp.eq.s32.totalorder %s12, 1
    %p93 = scmp.ne.s32.totalorder %s88, %s90
    %p94 = scmp.eq.s32.totalorder %s12, 0
    %p95 = por %p93, %p94
    %p96 = scmp.ne.s32.totalorder %s88, %s90
    %p97 = scmp.eq.s32.totalorder %s17, 1
    %p98 = por %p96, %p97
    %p99 = scmp.ne.s32.totalorder %s90, %s91
    %p100 = scmp.eq.s32.totalorder %s17, 0
    %p101 = por %p99, %p100
    %p102 = scmp.ne.s32.totalorder %s90, %s91
    %p103 = scmp.eq.s32.totalorder %s18, 1
    %p104 = por %p102, %p103
    %p106 = scmp.ne.s32.totalorder %s91, %s105
    %p107 = scmp.eq.s32.totalorder %s18, 0
    %p108 = por %p106, %p107
    %s109 = ssub.s32 %s12, %s19
    %p110 = scmp.eq.s32.totalorder %s109, 0
    %s112 = sadd.s32 %s111, 1
    %s113 = scalar_select %p110, %s111, %s112
    %p116 = pneg %p110
    %p117 = scmp.eq.s32.totalorder %s12, 1
    %p118 = por %p116, %p117
    %p119 = scmp.ne.s32.totalorder %s111, %s114
    %p120 = scmp.eq.s32.totalorder %s12, 0
    %p121 = por %p119, %p120
    %p122 = scmp.ne.s32.totalorder %s111, %s114
    %p123 = scmp.eq.s32.totalorder %s17, 1
    %p124 = por %p122, %p123
    %p125 = scmp.ne.s32.totalorder %s114, %s115
    %p126 = scmp.eq.s32.totalorder %s17, 0
    %p127 = por %p125, %p126
    %p128 = scmp.ne.s32.totalorder %s114, %s115
    %p129 = scmp.eq.s32.totalorder %s18, 1
    %p130 = por %p128, %p129
    %p132 = scmp.ne.s32.totalorder %s115, %s131
    %p133 = scmp.eq.s32.totalorder %s18, 0
    %p134 = por %p132, %p133
    %s135 = ssub.s32 %s12, %s19
    %p136 = scmp.eq.s32.totalorder %s135, 0
    %s138 = sadd.s32 %s137, 1
    %s139 = scalar_select %p136, %s137, %s138
    %p142 = pneg %p136
    %p143 = scmp.eq.s32.totalorder %s12, 1
    %p144 = por %p142, %p143
    %p145 = scmp.ne.s32.totalorder %s137, %s140
    %p146 = scmp.eq.s32.totalorder %s12, 0
    %p147 = por %p145, %p146
    %p148 = scmp.ne.s32.totalorder %s137, %s140
    %p149 = scmp.eq.s32.totalorder %s17, 1
    %p150 = por %p148, %p149
    %p151 = scmp.ne.s32.totalorder %s140, %s141
    %p152 = scmp.eq.s32.totalorder %s17, 0
    %p153 = por %p151, %p152
    %p154 = scmp.ne.s32.totalorder %s140, %s141
    %p155 = scmp.eq.s32.totalorder %s18, 1
    %p156 = por %p154, %p155
    %p158 = scmp.ne.s32.totalorder %s141, %s157
    %p159 = scmp.eq.s32.totalorder %s18, 0
    %p160 = por %p158, %p159
    %p161 = scmp.le.s32.totalorder 1, %s12
    %p162 = scmp.lt.s32.totalorder %s12, 3
    %p163 = pnand %p161, %p162
    %p164 = pneg %p163
    // Predicated region
    $region9: #{bottleneck_forward.5} parent=5 // pred_check
      _
    $region10: #{bottleneck_forward.5} parent=5 // pred_check_branch
      %166 = sbr.rel (%p163) target = $region12
    $region11: #{bottleneck_forward.5} parent=5 // pred_region
      %s167 = ssub.s32 %s12, 1
      // Predicated region
      $region13: #{bottleneck_forward.5} parent=11 // pred_check
        %p168 = pneg %p59
      $region14: #{bottleneck_forward.5} parent=11 // pred_check_branch
        %170 = sbr.rel (%p168) target = $region16
      $region15: #{bottleneck_forward.5} parent=11 // pred_region
        _
      $region16: #{bottleneck_forward.5} parent=11 // pred_fallthru
        _
      // Predicated region
      $region17: #{bottleneck_forward.5} parent=11 // pred_check
        %p171 = pneg %p80
      $region18: #{bottleneck_forward.5} parent=11 // pred_check_branch
        %173 = sbr.rel (%p171) target = $region20
      $region19: #{bottleneck_forward.5} parent=11 // pred_region
        _
      $region20: #{bottleneck_forward.5} parent=11 // pred_fallthru
        _
      // Predicated region
      $region21: #{bottleneck_forward.5} parent=11 // pred_check
        %p174 = pneg %p101
      $region22: #{bottleneck_forward.5} parent=11 // pred_check_branch
        %176 = sbr.rel (%p174) target = $region24
      $region23: #{bottleneck_forward.5} parent=11 // pred_region
        _
      $region24: #{bottleneck_forward.5} parent=11 // pred_fallthru
        _
    $region12: #{bottleneck_forward.5} parent=5 // pred_fallthru
      _
    %p177 = scmp.lt.s32.totalorder %s12, 2
    // Predicated region
    $region25: #{bottleneck_forward.5} parent=5 // pred_check
      %p178 = pneg %p177
    $region26: #{bottleneck_forward.5} parent=5 // pred_check_branch
      %180 = sbr.rel (%p178) target = $region28
    $region27: #{bottleneck_forward.5} parent=5 // pred_region
      // Predicated region
      $region29: #{bottleneck_forward.5} parent=27 // pred_check
        %p181 = pneg %p32
      $region30: #{bottleneck_forward.5} parent=27 // pred_check_branch
        %183 = sbr.rel (%p181) target = $region32
      $region31: #{bottleneck_forward.5} parent=27 // pred_region
        %p184 = scmp.lt.s32.totalorder %s12, 1
        %s185 = scalar_select %p184, %s12, 1
        %s186 = smul.addr %s185, 32
        %s187 = smul.addr %s186, 4
        %s188 = scalar_lea.vmem %s0, %s187
      $region32: #{bottleneck_forward.5} parent=27 // pred_fallthru
        _
    $region28: #{bottleneck_forward.5} parent=5 // pred_fallthru
      _
    %p189 = scmp.le.s32.totalorder 1, %s12
    %p190 = scmp.lt.s32.totalorder %s12, 3
    %p191 = pnand %p189, %p190
    %p192 = pneg %p191
    // Predicated region
    $region33: #{bottleneck_forward.5} parent=5 // pred_check
      _
    $region34: #{bottleneck_forward.5} parent=5 // pred_check_branch
      %194 = sbr.rel (%p191) target = $region36
    $region35: #{bottleneck_forward.5} parent=5 // pred_region
      %s195 = ssub.s32 %s12, 1
      %p196 = scmp.lt.s32.totalorder %s17, 1
      %s197 = scalar_select %p196, %s17, 1
      %s198 = smul.addr %s197, 32
      %s199 = smul.addr %s198, 4
      %s200 = scalar_lea.vmem %s0, %s199
      %p201 = pneg %p38
      %p202 = pneg %p35
      %p203 = pneg %p59
      %p204 = pneg %p56
      %p205 = pneg %p80
      %p206 = pneg %p77
      %p207 = pneg %p101
      %p208 = pneg %p98
      %p209 = pneg %p127
      %p210 = pneg %p124
      %p211 = scmp.lt.s32.totalorder %s17, 1
      %s212 = scalar_select %p211, %s17, 1
      %s213 = smul.addr %s212, 32
      %s214 = smul.addr %s213, 4
      %s215 = scalar_lea.vmem %s4, %s214
      %p216 = pneg %p153
      %p217 = pneg %p150
      %p218 = scmp.lt.s32.totalorder %s17, 1
      %s219 = scalar_select %p218, %s17, 1
      %s220 = smul.addr %s219, 2
      %s221 = scalar_lea.vmem %s5, %s220
      %p222 = scmp.lt.s32.totalorder %s17, 1
      %s223 = scalar_select %p222, %s17, 1
      %s224 = smul.addr %s223, 32
      %s225 = smul.addr %s224, 4
      %s226 = scalar_lea.vmem %s0, %s225
      %p227 = scmp.lt.s32.totalorder %s17, 1
      %s228 = scalar_select %p227, %s17, 1
      %s229 = smul.addr %s228, 32
      %s230 = smul.addr %s229, 4
      %s231 = scalar_lea.vmem %s4, %s230
      %p232 = scmp.lt.s32.totalorder %s17, 1
      %s233 = scalar_select %p232, %s17, 1
      %s234 = smul.addr %s233, 2
      %s235 = scalar_lea.vmem %s5, %s234
      %v237 = vld [vmem:[%s226] sm:$0xf]
      %v238 = vld [vmem:[%s226 + $0x4] sm:$0xf]
      %v239 = vld [vmem:[%s226 + $0x8] sm:$0xf]
      %v240 = vld [vmem:[%s226 + $0xc] sm:$0xf]
      %v241 = vld [vmem:[%s226 + $0x10] sm:$0xf]
      %v242 = vld [vmem:[%s226 + $0x14] sm:$0xf]
      %v243 = vld [vmem:[%s226 + $0x18] sm:$0xf]
      %v244 = vld [vmem:[%s226 + $0x1c] sm:$0xf]
      %v245 = vld [vmem:[%s226 + $0x20] sm:$0xf]
      %v246 = vld [vmem:[%s226 + $0x24] sm:$0xf]
      %v247 = vld [vmem:[%s226 + $0x28] sm:$0xf]
      %v248 = vld [vmem:[%s226 + $0x2c] sm:$0xf]
      %v249 = vld [vmem:[%s226 + $0x30] sm:$0xf]
      %v250 = vld [vmem:[%s226 + $0x34] sm:$0xf]
      %v251 = vld [vmem:[%s226 + $0x38] sm:$0xf]
      %v252 = vld [vmem:[%s226 + $0x3c] sm:$0xf]
      %v253 = vld [vmem:[%s226 + $0x40] sm:$0xf]
      %v254 = vld [vmem:[%s226 + $0x44] sm:$0xf]
      %v255 = vld [vmem:[%s226 + $0x48] sm:$0xf]
      %v256 = vld [vmem:[%s226 + $0x4c] sm:$0xf]
      %v257 = vld [vmem:[%s226 + $0x50] sm:$0xf]
      %v258 = vld [vmem:[%s226 + $0x54] sm:$0xf]
      %v259 = vld [vmem:[%s226 + $0x58] sm:$0xf]
      %v260 = vld [vmem:[%s226 + $0x5c] sm:$0xf]
      %v261 = vld [vmem:[%s226 + $0x60] sm:$0xf]
      %v262 = vld [vmem:[%s226 + $0x64] sm:$0xf]
      %v263 = vld [vmem:[%s226 + $0x68] sm:$0xf]
      %v264 = vld [vmem:[%s226 + $0x6c] sm:$0xf]
      %v265 = vld [vmem:[%s226 + $0x70] sm:$0xf]
      %v266 = vld [vmem:[%s226 + $0x74] sm:$0xf]
      %v267 = vld [vmem:[%s226 + $0x78] sm:$0xf]
      %v268 = vld [vmem:[%s226 + $0x7c] sm:$0xf]
      %v269 = vunpack.c.l.bf16 %v237
      %v270 = vunpack.c.l.bf16 %v238
      %v271 = vunpack.c.l.bf16 %v239
      %v272 = vunpack.c.l.bf16 %v240
      %v273 = vunpack.c.l.bf16 %v241
      %v274 = vunpack.c.l.bf16 %v242
      %v275 = vunpack.c.l.bf16 %v243
      %v276 = vunpack.c.l.bf16 %v244
      %v277 = vunpack.c.l.bf16 %v245
      %v278 = vunpack.c.l.bf16 %v246
      %v279 = vunpack.c.l.bf16 %v247
      %v280 = vunpack.c.l.bf16 %v248
      %v281 = vunpack.c.l.bf16 %v249
      %v282 = vunpack.c.l.bf16 %v250
      %v283 = vunpack.c.l.bf16 %v251
      %v284 = vunpack.c.l.bf16 %v252
      %v285 = vunpack.c.l.bf16 %v253
      %v286 = vunpack.c.l.bf16 %v254
      %v287 = vunpack.c.l.bf16 %v255
      %v288 = vunpack.c.l.bf16 %v256
      %v289 = vunpack.c.l.bf16 %v257
      %v290 = vunpack.c.l.bf16 %v258
      %v291 = vunpack.c.l.bf16 %v259
      %v292 = vunpack.c.l.bf16 %v260
      %v293 = vunpack.c.l.bf16 %v261
      %v294 = vunpack.c.l.bf16 %v262
      %v295 = vunpack.c.l.bf16 %v263
      %v296 = vunpack.c.l.bf16 %v264
      %v297 = vunpack.c.l.bf16 %v265
      %v298 = vunpack.c.l.bf16 %v266
      %v299 = vunpack.c.l.bf16 %v267
      %v300 = vunpack.c.l.bf16 %v268
      %v301 = vld [vmem:[%s1] sm:$0x1]
      %v303 = vlaneseq
      %v304 = vshrl.u32 %v303, 7
      %v305 = vsub.s32 0, %v304
      %v306 = vrot.slane %v301, %v305
      %v308 = vmul.f32 %v269, %v306
      %v309 = vmul.f32 %v270, %v306
      %v310 = vmul.f32 %v271, %v306
      %v311 = vmul.f32 %v272, %v306
      %v312 = vmul.f32 %v273, %v306
      %v313 = vmul.f32 %v274, %v306
      %v314 = vmul.f32 %v275, %v306
      %v315 = vmul.f32 %v276, %v306
      %v316 = vmul.f32 %v277, %v306
      %v317 = vmul.f32 %v278, %v306
      %v318 = vmul.f32 %v279, %v306
      %v319 = vmul.f32 %v280, %v306
      %v320 = vmul.f32 %v281, %v306
      %v321 = vmul.f32 %v282, %v306
      %v322 = vmul.f32 %v283, %v306
      %v323 = vmul.f32 %v284, %v306
      %v324 = vmul.f32 %v285, %v306
      %v325 = vmul.f32 %v286, %v306
      %v326 = vmul.f32 %v287, %v306
      %v327 = vmul.f32 %v288, %v306
      %v328 = vmul.f32 %v289, %v306
      %v329 = vmul.f32 %v290, %v306
      %v330 = vmul.f32 %v291, %v306
      %v331 = vmul.f32 %v292, %v306
      %v332 = vmul.f32 %v293, %v306
      %v333 = vmul.f32 %v294, %v306
      %v334 = vmul.f32 %v295, %v306
      %v335 = vmul.f32 %v296, %v306
      %v336 = vmul.f32 %v297, %v306
      %v337 = vmul.f32 %v298, %v306
      %v338 = vmul.f32 %v299, %v306
      %v339 = vmul.f32 %v300, %v306
      %v340 = vld [vmem:[%s2] sm:$0x1]
      %v342 = vlaneseq
      %v343 = vshrl.u32 %v342, 7
      %v344 = vsub.s32 0, %v343
      %v345 = vrot.slane %v340, %v344
      %v347 = vadd.f32 %v308, %v345
      %v348 = vadd.f32 %v309, %v345
      %v349 = vadd.f32 %v310, %v345
      %v350 = vadd.f32 %v311, %v345
      %v351 = vadd.f32 %v312, %v345
      %v352 = vadd.f32 %v313, %v345
      %v353 = vadd.f32 %v314, %v345
      %v354 = vadd.f32 %v315, %v345
      %v355 = vadd.f32 %v316, %v345
      %v356 = vadd.f32 %v317, %v345
      %v357 = vadd.f32 %v318, %v345
      %v358 = vadd.f32 %v319, %v345
      %v359 = vadd.f32 %v320, %v345
      %v360 = vadd.f32 %v321, %v345
      %v361 = vadd.f32 %v322, %v345
      %v362 = vadd.f32 %v323, %v345
      %v363 = vadd.f32 %v324, %v345
      %v364 = vadd.f32 %v325, %v345
      %v365 = vadd.f32 %v326, %v345
      %v366 = vadd.f32 %v327, %v345
      %v367 = vadd.f32 %v328, %v345
      %v368 = vadd.f32 %v329, %v345
      %v369 = vadd.f32 %v330, %v345
      %v370 = vadd.f32 %v331, %v345
      %v371 = vadd.f32 %v332, %v345
      %v372 = vadd.f32 %v333, %v345
      %v373 = vadd.f32 %v334, %v345
      %v374 = vadd.f32 %v335, %v345
      %v375 = vadd.f32 %v336, %v345
      %v376 = vadd.f32 %v337, %v345
      %v377 = vadd.f32 %v338, %v345
      %v378 = vadd.f32 %v339, %v345
      %v379 = vmax.f32 %v347, 0.0
      %v380 = vmax.f32 %v348, 0.0
      %v381 = vmax.f32 %v349, 0.0
      %v382 = vmax.f32 %v350, 0.0
      %v383 = vmax.f32 %v351, 0.0
      %v384 = vmax.f32 %v352, 0.0
      %v385 = vmax.f32 %v353, 0.0
      %v386 = vmax.f32 %v354, 0.0
      %v387 = vmax.f32 %v355, 0.0
      %v388 = vmax.f32 %v356, 0.0
      %v389 = vmax.f32 %v357, 0.0
      %v390 = vmax.f32 %v358, 0.0
      %v391 = vmax.f32 %v359, 0.0
      %v392 = vmax.f32 %v360, 0.0
      %v393 = vmax.f32 %v361, 0.0
      %v394 = vmax.f32 %v362, 0.0
      %v395 = vmax.f32 %v363, 0.0
      %v396 = vmax.f32 %v364, 0.0
      %v397 = vmax.f32 %v365, 0.0
      %v398 = vmax.f32 %v366, 0.0
      %v399 = vmax.f32 %v367, 0.0
      %v400 = vmax.f32 %v368, 0.0
      %v401 = vmax.f32 %v369, 0.0
      %v402 = vmax.f32 %v370, 0.0
      %v403 = vmax.f32 %v371, 0.0
      %v404 = vmax.f32 %v372, 0.0
      %v405 = vmax.f32 %v373, 0.0
      %v406 = vmax.f32 %v374, 0.0
      %v407 = vmax.f32 %v375, 0.0
      %v408 = vmax.f32 %v376, 0.0
      %v409 = vmax.f32 %v377, 0.0
      %v410 = vmax.f32 %v378, 0.0
      %411 = vst [vmem:[#allocation2] sm:$0xf] 0
      %412 = vst [vmem:[#allocation2 + $0x4] sm:$0xf] 0
      %413 = vst [vmem:[#allocation2 + $0x8] sm:$0x1] 0
      %s414 = scalar_lea.vmem [#allocation2], 204
      %415 = vst [vmem:[%s414] sm:$0xf] 0
      %416 = vst [vmem:[%s414 + $0x4] sm:$0xf] 0
      %417 = vst [vmem:[%s414 + $0x8] sm:$0x1] 0
      %vm418 = vcmask 1040384
      %vm419 = vsmask.f32 256
      %vm420 = vmand %vm418, %vm419
      %v421 = vld [vmem:[#allocation2] sm:$0x1]
      %v422 = vsel %vm420, 0, %v421
      %423 = vst [vmem:[#allocation2] sm:$0x1] %v422
      %v424 = vld [vmem:[#allocation2 + $0xc] sm:$0x1]
      %v425 = vsel %vm420, 0, %v424
      %426 = vst [vmem:[#allocation2 + $0xc] sm:$0x1] %v425
      %v427 = vld [vmem:[#allocation2 + $0x18] sm:$0x1]
      %v428 = vsel %vm420, 0, %v427
      %429 = vst [vmem:[#allocation2 + $0x18] sm:$0x1] %v428
      %v430 = vld [vmem:[#allocation2 + $0x24] sm:$0x1]
      %v431 = vsel %vm420, 0, %v430
      %432 = vst [vmem:[#allocation2 + $0x24] sm:$0x1] %v431
      %v433 = vld [vmem:[#allocation2 + $0x30] sm:$0x1]
      %v434 = vsel %vm420, 0, %v433
      %435 = vst [vmem:[#allocation2 + $0x30] sm:$0x1] %v434
      %v436 = vld [vmem:[#allocation2 + $0x3c] sm:$0x1]
      %v437 = vsel %vm420, 0, %v436
      %438 = vst [vmem:[#allocation2 + $0x3c] sm:$0x1] %v437
      %v439 = vld [vmem:[#allocation2 + $0x48] sm:$0x1]
      %v440 = vsel %vm420, 0, %v439
      %441 = vst [vmem:[#allocation2 + $0x48] sm:$0x1] %v440
      %v442 = vld [vmem:[#allocation2 + $0x54] sm:$0x1]
      %v443 = vsel %vm420, 0, %v442
      %444 = vst [vmem:[#allocation2 + $0x54] sm:$0x1] %v443
      %v445 = vld [vmem:[#allocation2 + $0x60] sm:$0x1]
      %v446 = vsel %vm420, 0, %v445
      %447 = vst [vmem:[#allocation2 + $0x60] sm:$0x1] %v446
      %v448 = vld [vmem:[#allocation2 + $0x6c] sm:$0x1]
      %v449 = vsel %vm420, 0, %v448
      %450 = vst [vmem:[#allocation2 + $0x6c] sm:$0x1] %v449
      %v451 = vld [vmem:[#allocation2 + $0x78] sm:$0x1]
      %v452 = vsel %vm420, 0, %v451
      %453 = vst [vmem:[#allocation2 + $0x78] sm:$0x1] %v452
      %v454 = vld [vmem:[#allocation2 + $0x84] sm:$0x1]
      %v455 = vsel %vm420, 0, %v454
      %456 = vst [vmem:[#allocation2 + $0x84] sm:$0x1] %v455
      %v457 = vld [vmem:[#allocation2 + $0x90] sm:$0x1]
      %v458 = vsel %vm420, 0, %v457
      %459 = vst [vmem:[#allocation2 + $0x90] sm:$0x1] %v458
      %v460 = vld [vmem:[#allocation2 + $0x9c] sm:$0x1]
      %v461 = vsel %vm420, 0, %v460
      %462 = vst [vmem:[#allocation2 + $0x9c] sm:$0x1] %v461
      %v463 = vld [vmem:[#allocation2 + $0xa8] sm:$0x1]
      %v464 = vsel %vm420, 0, %v463
      %465 = vst [vmem:[#allocation2 + $0xa8] sm:$0x1] %v464
      %v466 = vld [vmem:[#allocation2 + $0xb4] sm:$0x1]
      %v467 = vsel %vm420, 0, %v466
      %468 = vst [vmem:[#allocation2 + $0xb4] sm:$0x1] %v467
      %v469 = vld [vmem:[#allocation2 + $0xc0] sm:$0x1]
      %v470 = vsel %vm420, 0, %v469
      %471 = vst [vmem:[#allocation2 + $0xc0] sm:$0x1] %v470
      %v472 = vld [vmem:[#allocation2 + $0xcc] sm:$0x1]
      %v473 = vsel %vm420, 0, %v472
      %474 = vst [vmem:[#allocation2 + $0xcc] sm:$0x1] %v473
      %vm475 = vsmask.f32 7938
      %vm476 = vmand %vm418, %vm475
      %v477 = vld [vmem:[#allocation2 + $0x8] sm:$0x1]
      %v478 = vsel %vm476, 0, %v477
      %479 = vst [vmem:[#allocation2 + $0x8] sm:$0x1] %v478
      %v480 = vld [vmem:[#allocation2 + $0x14] sm:$0x1]
      %v481 = vsel %vm476, 0, %v480
      %482 = vst [vmem:[#allocation2 + $0x14] sm:$0x1] %v481
      %v483 = vld [vmem:[#allocation2 + $0x20] sm:$0x1]
      %v484 = vsel %vm476, 0, %v483
      %485 = vst [vmem:[#allocation2 + $0x20] sm:$0x1] %v484
      %v486 = vld [vmem:[#allocation2 + $0x2c] sm:$0x1]
      %v487 = vsel %vm476, 0, %v486
      %488 = vst [vmem:[#allocation2 + $0x2c] sm:$0x1] %v487
      %v489 = vld [vmem:[#allocation2 + $0x38] sm:$0x1]
      %v490 = vsel %vm476, 0, %v489
      %491 = vst [vmem:[#allocation2 + $0x38] sm:$0x1] %v490
      %v492 = vld [vmem:[#allocation2 + $0x44] sm:$0x1]
      %v493 = vsel %vm476, 0, %v492
      %494 = vst [vmem:[#allocation2 + $0x44] sm:$0x1] %v493
      %v495 = vld [vmem:[#allocation2 + $0x50] sm:$0x1]
      %v496 = vsel %vm476, 0, %v495
      %497 = vst [vmem:[#allocation2 + $0x50] sm:$0x1] %v496
      %v498 = vld [vmem:[#allocation2 + $0x5c] sm:$0x1]
      %v499 = vsel %vm476, 0, %v498
      %500 = vst [vmem:[#allocation2 + $0x5c] sm:$0x1] %v499
      %v501 = vld [vmem:[#allocation2 + $0x68] sm:$0x1]
      %v502 = vsel %vm476, 0, %v501
      %503 = vst [vmem:[#allocation2 + $0x68] sm:$0x1] %v502
      %v504 = vld [vmem:[#allocation2 + $0x74] sm:$0x1]
      %v505 = vsel %vm476, 0, %v504
      %506 = vst [vmem:[#allocation2 + $0x74] sm:$0x1] %v505
      %v507 = vld [vmem:[#allocation2 + $0x80] sm:$0x1]
      %v508 = vsel %vm476, 0, %v507
      %509 = vst [vmem:[#allocation2 + $0x80] sm:$0x1] %v508
      %v510 = vld [vmem:[#allocation2 + $0x8c] sm:$0x1]
      %v511 = vsel %vm476, 0, %v510
      %512 = vst [vmem:[#allocation2 + $0x8c] sm:$0x1] %v511
      %v513 = vld [vmem:[#allocation2 + $0x98] sm:$0x1]
      %v514 = vsel %vm476, 0, %v513
      %515 = vst [vmem:[#allocation2 + $0x98] sm:$0x1] %v514
      %v516 = vld [vmem:[#allocation2 + $0xa4] sm:$0x1]
      %v517 = vsel %vm476, 0, %v516
      %518 = vst [vmem:[#allocation2 + $0xa4] sm:$0x1] %v517
      %v519 = vld [vmem:[#allocation2 + $0xb0] sm:$0x1]
      %v520 = vsel %vm476, 0, %v519
      %521 = vst [vmem:[#allocation2 + $0xb0] sm:$0x1] %v520
      %v522 = vld [vmem:[#allocation2 + $0xbc] sm:$0x1]
      %v523 = vsel %vm476, 0, %v522
      %524 = vst [vmem:[#allocation2 + $0xbc] sm:$0x1] %v523
      %v525 = vld [vmem:[#allocation2 + $0xc8] sm:$0x1]
      %v526 = vsel %vm476, 0, %v525
      %527 = vst [vmem:[#allocation2 + $0xc8] sm:$0x1] %v526
      %v528 = vld [vmem:[#allocation2 + $0xd4] sm:$0x1]
      %v529 = vsel %vm476, 0, %v528
      %530 = vst [vmem:[#allocation2 + $0xd4] sm:$0x1] %v529
      %v531 = vpack.c.bf16 %v380, %v379
      %v532 = vpack.c.bf16 %v382, %v381
      %v533 = vpack.c.bf16 %v384, %v383
      %v534 = vpack.c.bf16 %v386, %v385
      %v535 = vpack.c.bf16 %v388, %v387
      %v536 = vpack.c.bf16 %v390, %v389
      %v537 = vpack.c.bf16 %v392, %v391
      %v538 = vpack.c.bf16 %v394, %v393
      %v539 = vpack.c.bf16 %v396, %v395
      %v540 = vpack.c.bf16 %v398, %v397
      %v541 = vpack.c.bf16 %v400, %v399
      %v542 = vpack.c.bf16 %v402, %v401
      %v543 = vpack.c.bf16 %v404, %v403
      %v544 = vpack.c.bf16 %v406, %v405
      %v545 = vpack.c.bf16 %v408, %v407
      %v546 = vpack.c.bf16 %v410, %v409
      %v563 = vunpack.c.l.b16 %v531
      %v564 = vunpack.c.h.b16 %v531
      %v565 = vunpack.c.l.b16 %v532
      %v566 = vunpack.c.h.b16 %v532
      %v567 = vunpack.c.l.b16 %v533
      %v568 = vunpack.c.h.b16 %v533
      %v569 = vunpack.c.l.b16 %v534
      %v570 = vunpack.c.h.b16 %v534
      %v571 = vunpack.c.l.b16 %v535
      %v572 = vunpack.c.h.b16 %v535
      %v573 = vunpack.c.l.b16 %v536
      %v574 = vunpack.c.h.b16 %v536
      %v575 = vunpack.c.l.b16 %v537
      %v576 = vunpack.c.h.b16 %v537
      %v577 = vunpack.c.l.b16 %v538
      %v578 = vunpack.c.h.b16 %v538
      %v579 = vunpack.c.l.b16 %v539
      %v580 = vunpack.c.h.b16 %v539
      %v581 = vunpack.c.l.b16 %v540
      %v582 = vunpack.c.h.b16 %v540
      %v583 = vunpack.c.l.b16 %v541
      %v584 = vunpack.c.h.b16 %v541
      %v585 = vunpack.c.l.b16 %v542
      %v586 = vunpack.c.h.b16 %v542
      %v587 = vunpack.c.l.b16 %v543
      %v588 = vunpack.c.h.b16 %v543
      %v589 = vunpack.c.l.b16 %v544
      %v590 = vunpack.c.h.b16 %v544
      %v591 = vunpack.c.l.b16 %v545
      %v592 = vunpack.c.h.b16 %v545
      %v593 = vunpack.c.l.b16 %v546
      %v594 = vunpack.c.h.b16 %v546
      %v595 = vpack.c.b16 %v563, %v563
      %v596 = vpack.c.b16 %v564, %v564
      %v597 = vpack.c.b16 %v565, %v565
      %v598 = vpack.c.b16 %v566, %v566
      %v599 = vpack.c.b16 %v567, %v567
      %v600 = vpack.c.b16 %v568, %v568
      %v601 = vpack.c.b16 %v569, %v569
      %v602 = vpack.c.b16 %v570, %v570
      %v603 = vpack.c.b16 %v571, %v571
      %v604 = vpack.c.b16 %v572, %v572
      %v605 = vpack.c.b16 %v573, %v573
      %v606 = vpack.c.b16 %v574, %v574
      %v607 = vpack.c.b16 %v575, %v575
      %v608 = vpack.c.b16 %v576, %v576
      %v609 = vpack.c.b16 %v577, %v577
      %v610 = vpack.c.b16 %v578, %v578
      %v611 = vpack.c.b16 %v579, %v579
      %v612 = vpack.c.b16 %v580, %v580
      %v613 = vpack.c.b16 %v581, %v581
      %v614 = vpack.c.b16 %v582, %v582
      %v615 = vpack.c.b16 %v583, %v583
      %v616 = vpack.c.b16 %v584, %v584
      %v617 = vpack.c.b16 %v585, %v585
      %v618 = vpack.c.b16 %v586, %v586
      %v619 = vpack.c.b16 %v587, %v587
      %v620 = vpack.c.b16 %v588, %v588
      %v621 = vpack.c.b16 %v589, %v589
      %v622 = vpack.c.b16 %v590, %v590
      %v623 = vpack.c.b16 %v591, %v591
      %v624 = vpack.c.b16 %v592, %v592
      %v625 = vpack.c.b16 %v593, %v593
      %v626 = vpack.c.b16 %v594, %v594
      %vm627 = vsmask.f32 4368
      %vm628 = vmor %vm419, %vm627
      %v630 = vshrl.u32 %v595, 16
      %v632 = vrot.slane %v630, 7
      %v633 = vshll.u32 %v595, 16
      %v635 = vor.u32 %v632, %v633
      %v636 = vrot.slane %v632, 4
      %v638 = vshrl.u32 %v596, 16
      %v640 = vrot.slane %v638, 7
      %v641 = vshll.u32 %v596, 16
      %v643 = vor.u32 %v640, %v641
      %v644 = vsel %vm628, %v636, %v643
      %v645 = vrot.slane %v640, 4
      %v647 = vshrl.u32 %v597, 16
      %v649 = vrot.slane %v647, 7
      %v650 = vshll.u32 %v597, 16
      %v652 = vor.u32 %v649, %v650
      %v653 = vrot.slane %v649, 4
      %v655 = vshrl.u32 %v598, 16
      %v657 = vrot.slane %v655, 7
      %v658 = vshll.u32 %v598, 16
      %v660 = vor.u32 %v657, %v658
      %v661 = vsel %vm628, %v653, %v660
      %v662 = vrot.slane %v657, 4
      %v664 = vshrl.u32 %v599, 16
      %v666 = vrot.slane %v664, 7
      %v667 = vshll.u32 %v599, 16
      %v669 = vor.u32 %v666, %v667
      %v670 = vrot.slane %v666, 4
      %v672 = vshrl.u32 %v600, 16
      %v674 = vrot.slane %v672, 7
      %v675 = vshll.u32 %v600, 16
      %v677 = vor.u32 %v674, %v675
      %v678 = vsel %vm628, %v670, %v677
      %v679 = vrot.slane %v674, 4
      %v681 = vshrl.u32 %v601, 16
      %v683 = vrot.slane %v681, 7
      %v684 = vshll.u32 %v601, 16
      %v686 = vor.u32 %v683, %v684
      %v687 = vrot.slane %v683, 4
      %v689 = vshrl.u32 %v602, 16
      %v691 = vrot.slane %v689, 7
      %v692 = vshll.u32 %v602, 16
      %v694 = vor.u32 %v691, %v692
      %v695 = vsel %vm628, %v687, %v694
      %v696 = vrot.slane %v691, 4
      %v698 = vshrl.u32 %v603, 16
      %v700 = vrot.slane %v698, 7
      %v701 = vshll.u32 %v603, 16
      %v703 = vor.u32 %v700, %v701
      %v704 = vrot.slane %v700, 4
      %v706 = vshrl.u32 %v604, 16
      %v708 = vrot.slane %v706, 7
      %v709 = vshll.u32 %v604, 16
      %v711 = vor.u32 %v708, %v709
      %v712 = vsel %vm628, %v704, %v711
      %v713 = vrot.slane %v708, 4
      %v715 = vshrl.u32 %v605, 16
      %v717 = vrot.slane %v715, 7
      %v718 = vshll.u32 %v605, 16
      %v720 = vor.u32 %v717, %v718
      %v721 = vrot.slane %v717, 4
      %v723 = vshrl.u32 %v606, 16
      %v725 = vrot.slane %v723, 7
      %v726 = vshll.u32 %v606, 16
      %v728 = vor.u32 %v725, %v726
      %v729 = vsel %vm628, %v721, %v728
      %v730 = vrot.slane %v725, 4
      %v732 = vshrl.u32 %v607, 16
      %v734 = vrot.slane %v732, 7
      %v735 = vshll.u32 %v607, 16
      %v737 = vor.u32 %v734, %v735
      %v738 = vrot.slane %v734, 4
      %v740 = vshrl.u32 %v608, 16
      %v742 = vrot.slane %v740, 7
      %v743 = vshll.u32 %v608, 16
      %v745 = vor.u32 %v742, %v743
      %v746 = vsel %vm628, %v738, %v745
      %v747 = vrot.slane %v742, 4
      %v749 = vshrl.u32 %v609, 16
      %v751 = vrot.slane %v749, 7
      %v752 = vshll.u32 %v609, 16
      %v754 = vor.u32 %v751, %v752
      %v755 = vrot.slane %v751, 4
      %v757 = vshrl.u32 %v610, 16
      %v759 = vrot.slane %v757, 7
      %v760 = vshll.u32 %v610, 16
      %v762 = vor.u32 %v759, %v760
      %v763 = vsel %vm628, %v755, %v762
      %v764 = vrot.slane %v759, 4
      %v766 = vshrl.u32 %v611, 16
      %v768 = vrot.slane %v766, 7
      %v769 = vshll.u32 %v611, 16
      %v771 = vor.u32 %v768, %v769
      %v772 = vrot.slane %v768, 4
      %v774 = vshrl.u32 %v612, 16
      %v776 = vrot.slane %v774, 7
      %v777 = vshll.u32 %v612, 16
      %v779 = vor.u32 %v776, %v777
      %v780 = vsel %vm628, %v772, %v779
      %v781 = vrot.slane %v776, 4
      %v783 = vshrl.u32 %v613, 16
      %v785 = vrot.slane %v783, 7
      %v786 = vshll.u32 %v613, 16
      %v788 = vor.u32 %v785, %v786
      %v789 = vrot.slane %v785, 4
      %v791 = vshrl.u32 %v614, 16
      %v793 = vrot.slane %v791, 7
      %v794 = vshll.u32 %v614, 16
      %v796 = vor.u32 %v793, %v794
      %v797 = vsel %vm628, %v789, %v796
      %v798 = vrot.slane %v793, 4
      %v800 = vshrl.u32 %v615, 16
      %v802 = vrot.slane %v800, 7
      %v803 = vshll.u32 %v615, 16
      %v805 = vor.u32 %v802, %v803
      %v806 = vrot.slane %v802, 4
      %v808 = vshrl.u32 %v616, 16
      %v810 = vrot.slane %v808, 7
      %v811 = vshll.u32 %v616, 16
      %v813 = vor.u32 %v810, %v811
      %v814 = vsel %vm628, %v806, %v813
      %v815 = vrot.slane %v810, 4
      %v817 = vshrl.u32 %v617, 16
      %v819 = vrot.slane %v817, 7
      %v820 = vshll.u32 %v617, 16
      %v822 = vor.u32 %v819, %v820
      %v823 = vrot.slane %v819, 4
      %v825 = vshrl.u32 %v618, 16
      %v827 = vrot.slane %v825, 7
      %v828 = vshll.u32 %v618, 16
      %v830 = vor.u32 %v827, %v828
      %v831 = vsel %vm628, %v823, %v830
      %v832 = vrot.slane %v827, 4
      %v834 = vshrl.u32 %v619, 16
      %v836 = vrot.slane %v834, 7
      %v837 = vshll.u32 %v619, 16
      %v839 = vor.u32 %v836, %v837
      %v840 = vrot.slane %v836, 4
      %v842 = vshrl.u32 %v620, 16
      %v844 = vrot.slane %v842, 7
      %v845 = vshll.u32 %v620, 16
      %v847 = vor.u32 %v844, %v845
      %v848 = vsel %vm628, %v840, %v847
      %v849 = vrot.slane %v844, 4
      %v851 = vshrl.u32 %v621, 16
      %v853 = vrot.slane %v851, 7
      %v854 = vshll.u32 %v621, 16
      %v856 = vor.u32 %v853, %v854
      %v857 = vrot.slane %v853, 4
      %v859 = vshrl.u32 %v622, 16
      %v861 = vrot.slane %v859, 7
      %v862 = vshll.u32 %v622, 16
      %v864 = vor.u32 %v861, %v862
      %v865 = vsel %vm628, %v857, %v864
      %v866 = vrot.slane %v861, 4
      %v868 = vshrl.u32 %v623, 16
      %v870 = vrot.slane %v868, 7
      %v871 = vshll.u32 %v623, 16
      %v873 = vor.u32 %v870, %v871
      %v874 = vrot.slane %v870, 4
      %v876 = vshrl.u32 %v624, 16
      %v878 = vrot.slane %v876, 7
      %v879 = vshll.u32 %v624, 16
      %v881 = vor.u32 %v878, %v879
      %v882 = vsel %vm628, %v874, %v881
      %v883 = vrot.slane %v878, 4
      %v885 = vshrl.u32 %v625, 16
      %v887 = vrot.slane %v885, 7
      %v888 = vshll.u32 %v625, 16
      %v890 = vor.u32 %v887, %v888
      %v891 = vrot.slane %v887, 4
      %v893 = vshrl.u32 %v626, 16
      %v895 = vrot.slane %v893, 7
      %v896 = vshll.u32 %v626, 16
      %v898 = vor.u32 %v895, %v896
      %v899 = vsel %vm628, %v891, %v898
      %v900 = vrot.slane %v895, 4
      %s949 = scalar_lea.vmem [#allocation2], 12
      %vm950 = vcmask 1043456
      %vm951 = vmand %vm950, %vm475
      %v952 = vld [vmem:[%s949] sm:$0xf]
      %v953 = vsel %vm951, %v635, %v952
      %954 = vst [vmem:[%s949] sm:$0xf] %v953
      %955 = vst [vmem:[%s949 + $0x4] sm:$0xf] %v644
      %v956 = vld [vmem:[%s949 + $0x8] sm:$0x1]
      %v957 = vsel %vm420, %v645, %v956
      %958 = vst [vmem:[%s949 + $0x8] sm:$0x1] %v957
      %v959 = vld [vmem:[%s949 + $0xc] sm:$0xf]
      %v960 = vsel %vm951, %v652, %v959
      %961 = vst [vmem:[%s949 + $0xc] sm:$0xf] %v960
      %962 = vst [vmem:[%s949 + $0x10] sm:$0xf] %v661
      %v963 = vld [vmem:[%s949 + $0x14] sm:$0x1]
      %v964 = vsel %vm420, %v662, %v963
      %965 = vst [vmem:[%s949 + $0x14] sm:$0x1] %v964
      %v966 = vld [vmem:[%s949 + $0x18] sm:$0xf]
      %v967 = vsel %vm951, %v669, %v966
      %968 = vst [vmem:[%s949 + $0x18] sm:$0xf] %v967
      %969 = vst [vmem:[%s949 + $0x1c] sm:$0xf] %v678
      %v970 = vld [vmem:[%s949 + $0x20] sm:$0x1]
      %v971 = vsel %vm420, %v679, %v970
      %972 = vst [vmem:[%s949 + $0x20] sm:$0x1] %v971
      %v973 = vld [vmem:[%s949 + $0x24] sm:$0xf]
      %v974 = vsel %vm951, %v686, %v973
      %975 = vst [vmem:[%s949 + $0x24] sm:$0xf] %v974
      %976 = vst [vmem:[%s949 + $0x28] sm:$0xf] %v695
      %v977 = vld [vmem:[%s949 + $0x2c] sm:$0x1]
      %v978 = vsel %vm420, %v696, %v977
      %979 = vst [vmem:[%s949 + $0x2c] sm:$0x1] %v978
      %v980 = vld [vmem:[%s949 + $0x30] sm:$0xf]
      %v981 = vsel %vm951, %v703, %v980
      %982 = vst [vmem:[%s949 + $0x30] sm:$0xf] %v981
      %983 = vst [vmem:[%s949 + $0x34] sm:$0xf] %v712
      %v984 = vld [vmem:[%s949 + $0x38] sm:$0x1]
      %v985 = vsel %vm420, %v713, %v984
      %986 = vst [vmem:[%s949 + $0x38] sm:$0x1] %v985
      %v987 = vld [vmem:[%s949 + $0x3c] sm:$0xf]
      %v988 = vsel %vm951, %v720, %v987
      %989 = vst [vmem:[%s949 + $0x3c] sm:$0xf] %v988
      %990 = vst [vmem:[%s949 + $0x40] sm:$0xf] %v729
      %v991 = vld [vmem:[%s949 + $0x44] sm:$0x1]
      %v992 = vsel %vm420, %v730, %v991
      %993 = vst [vmem:[%s949 + $0x44] sm:$0x1] %v992
      %v994 = vld [vmem:[%s949 + $0x48] sm:$0xf]
      %v995 = vsel %vm951, %v737, %v994
      %996 = vst [vmem:[%s949 + $0x48] sm:$0xf] %v995
      %997 = vst [vmem:[%s949 + $0x4c] sm:$0xf] %v746
      %v998 = vld [vmem:[%s949 + $0x50] sm:$0x1]
      %v999 = vsel %vm420, %v747, %v998
      %1000 = vst [vmem:[%s949 + $0x50] sm:$0x1] %v999
      %v1001 = vld [vmem:[%s949 + $0x54] sm:$0xf]
      %v1002 = vsel %vm951, %v754, %v1001
      %1003 = vst [vmem:[%s949 + $0x54] sm:$0xf] %v1002
      %1004 = vst [vmem:[%s949 + $0x58] sm:$0xf] %v763
      %v1005 = vld [vmem:[%s949 + $0x5c] sm:$0x1]
      %v1006 = vsel %vm420, %v764, %v1005
      %1007 = vst [vmem:[%s949 + $0x5c] sm:$0x1] %v1006
      %v1008 = vld [vmem:[%s949 + $0x60] sm:$0xf]
      %v1009 = vsel %vm951, %v771, %v1008
      %1010 = vst [vmem:[%s949 + $0x60] sm:$0xf] %v1009
      %1011 = vst [vmem:[%s949 + $0x64] sm:$0xf] %v780
      %v1012 = vld [vmem:[%s949 + $0x68] sm:$0x1]
      %v1013 = vsel %vm420, %v781, %v1012
      %1014 = vst [vmem:[%s949 + $0x68] sm:$0x1] %v1013
      %v1015 = vld [vmem:[%s949 + $0x6c] sm:$0xf]
      %v1016 = vsel %vm951, %v788, %v1015
      %1017 = vst [vmem:[%s949 + $0x6c] sm:$0xf] %v1016
      %1018 = vst [vmem:[%s949 + $0x70] sm:$0xf] %v797
      %v1019 = vld [vmem:[%s949 + $0x74] sm:$0x1]
      %v1020 = vsel %vm420, %v798, %v1019
      %1021 = vst [vmem:[%s949 + $0x74] sm:$0x1] %v1020
      %v1022 = vld [vmem:[%s949 + $0x78] sm:$0xf]
      %v1023 = vsel %vm951, %v805, %v1022
      %1024 = vst [vmem:[%s949 + $0x78] sm:$0xf] %v1023
      %1025 = vst [vmem:[%s949 + $0x7c] sm:$0xf] %v814
      %v1026 = vld [vmem:[%s949 + $0x80] sm:$0x1]
      %v1027 = vsel %vm420, %v815, %v1026
      %1028 = vst [vmem:[%s949 + $0x80] sm:$0x1] %v1027
      %v1029 = vld [vmem:[%s949 + $0x84] sm:$0xf]
      %v1030 = vsel %vm951, %v822, %v1029
      %1031 = vst [vmem:[%s949 + $0x84] sm:$0xf] %v1030
      %1032 = vst [vmem:[%s949 + $0x88] sm:$0xf] %v831
      %v1033 = vld [vmem:[%s949 + $0x8c] sm:$0x1]
      %v1034 = vsel %vm420, %v832, %v1033
      %1035 = vst [vmem:[%s949 + $0x8c] sm:$0x1] %v1034
      %v1036 = vld [vmem:[%s949 + $0x90] sm:$0xf]
      %v1037 = vsel %vm951, %v839, %v1036
      %1038 = vst [vmem:[%s949 + $0x90] sm:$0xf] %v1037
      %1039 = vst [vmem:[%s949 + $0x94] sm:$0xf] %v848
      %v1040 = vld [vmem:[%s949 + $0x98] sm:$0x1]
      %v1041 = vsel %vm420, %v849, %v1040
      %1042 = vst [vmem:[%s949 + $0x98] sm:$0x1] %v1041
      %v1043 = vld [vmem:[%s949 + $0x9c] sm:$0xf]
      %v1044 = vsel %vm951, %v856, %v1043
      %1045 = vst [vmem:[%s949 + $0x9c] sm:$0xf] %v1044
      %1046 = vst [vmem:[%s949 + $0xa0] sm:$0xf] %v865
      %v1047 = vld [vmem:[%s949 + $0xa4] sm:$0x1]
      %v1048 = vsel %vm420, %v866, %v1047
      %1049 = vst [vmem:[%s949 + $0xa4] sm:$0x1] %v1048
      %v1050 = vld [vmem:[%s949 + $0xa8] sm:$0xf]
      %v1051 = vsel %vm951, %v873, %v1050
      %1052 = vst [vmem:[%s949 + $0xa8] sm:$0xf] %v1051
      %1053 = vst [vmem:[%s949 + $0xac] sm:$0xf] %v882
      %v1054 = vld [vmem:[%s949 + $0xb0] sm:$0x1]
      %v1055 = vsel %vm420, %v883, %v1054
      %1056 = vst [vmem:[%s949 + $0xb0] sm:$0x1] %v1055
      %v1057 = vld [vmem:[%s949 + $0xb4] sm:$0xf]
      %v1058 = vsel %vm951, %v890, %v1057
      %1059 = vst [vmem:[%s949 + $0xb4] sm:$0xf] %v1058
      %1060 = vst [vmem:[%s949 + $0xb8] sm:$0xf] %v899
      %v1061 = vld [vmem:[%s949 + $0xbc] sm:$0x1]
      %v1062 = vsel %vm420, %v900, %v1061
      %1063 = vst [vmem:[%s949 + $0xbc] sm:$0x1] %v1062
      %v1064 = vld [vmem:[#allocation2] sm:$0xf]
      %v1065 = vld [vmem:[#allocation2 + $0x4] sm:$0xf]
      %v1066 = vld [vmem:[#allocation2 + $0xc] sm:$0xf]
      %v1067 = vld [vmem:[#allocation2 + $0x10] sm:$0xf]
      %v1068 = vld [vmem:[#allocation2 + $0x18] sm:$0xf]
      %v1069 = vld [vmem:[#allocation2 + $0x1c] sm:$0xf]
      %v1070 = vld [vmem:[#allocation2 + $0x24] sm:$0xf]
      %v1071 = vld [vmem:[#allocation2 + $0x28] sm:$0xf]
      %v1072 = vld [vmem:[#allocation2 + $0x30] sm:$0xf]
      %v1073 = vld [vmem:[#allocation2 + $0x34] sm:$0xf]
      %v1074 = vld [vmem:[#allocation2 + $0x3c] sm:$0xf]
      %v1075 = vld [vmem:[#allocation2 + $0x40] sm:$0xf]
      %v1076 = vld [vmem:[#allocation2 + $0x48] sm:$0xf]
      %v1077 = vld [vmem:[#allocation2 + $0x4c] sm:$0xf]
      %v1078 = vld [vmem:[#allocation2 + $0x54] sm:$0xf]
      %v1079 = vld [vmem:[#allocation2 + $0x58] sm:$0xf]
      %v1080 = vld [vmem:[#allocation2 + $0x60] sm:$0xf]
      %v1081 = vld [vmem:[#allocation2 + $0x64] sm:$0xf]
      %v1082 = vld [vmem:[#allocation2 + $0x6c] sm:$0xf]
      %v1083 = vld [vmem:[#allocation2 + $0x70] sm:$0xf]
      %v1084 = vld [vmem:[#allocation2 + $0x78] sm:$0xf]
      %v1085 = vld [vmem:[#allocation2 + $0x7c] sm:$0xf]
      %v1086 = vld [vmem:[#allocation2 + $0x84] sm:$0xf]
      %v1087 = vld [vmem:[#allocation2 + $0x88] sm:$0xf]
      %v1088 = vld [vmem:[#allocation2 + $0x90] sm:$0xf]
      %v1089 = vld [vmem:[#allocation2 + $0x94] sm:$0xf]
      %v1090 = vld [vmem:[#allocation2 + $0x9c] sm:$0xf]
      %v1091 = vld [vmem:[#allocation2 + $0xa0] sm:$0xf]
      %v1092 = vld [vmem:[#allocation2 + $0xa8] sm:$0xf]
      %v1093 = vld [vmem:[#allocation2 + $0xac] sm:$0xf]
      %v1094 = vld [vmem:[#allocation2 + $0xb4] sm:$0xf]
      %v1095 = vld [vmem:[#allocation2 + $0xb8] sm:$0xf]
      %1096 = vst [vmem:[#allocation3] sm:$0xf] %v1064
      %1097 = vst [vmem:[#allocation3 + $0x24] sm:$0xf] %v1065
      %1098 = vst [vmem:[#allocation3 + $0x48] sm:$0xf] %v1066
      %1099 = vst [vmem:[#allocation3 + $0x6c] sm:$0xf] %v1067
      %1100 = vst [vmem:[#allocation3 + $0x90] sm:$0xf] %v1068
      %1101 = vst [vmem:[#allocation3 + $0xb4] sm:$0xf] %v1069
      %1102 = vst [vmem:[#allocation3 + $0xd8] sm:$0xf] %v1070
      %1103 = vst [vmem:[#allocation3 + $0xfc] sm:$0xf] %v1071
      %1104 = vst [vmem:[#allocation3 + $0x120] sm:$0xf] %v1072
      %1105 = vst [vmem:[#allocation3 + $0x144] sm:$0xf] %v1073
      %1106 = vst [vmem:[#allocation3 + $0x168] sm:$0xf] %v1074
      %1107 = vst [vmem:[#allocation3 + $0x18c] sm:$0xf] %v1075
      %1108 = vst [vmem:[#allocation3 + $0x1b0] sm:$0xf] %v1076
      %1109 = vst [vmem:[#allocation3 + $0x1d4] sm:$0xf] %v1077
      %1110 = vst [vmem:[#allocation3 + $0x1f8] sm:$0xf] %v1078
      %1111 = vst [vmem:[#allocation3 + $0x21c] sm:$0xf] %v1079
      %1112 = vst [vmem:[#allocation3 + $0x240] sm:$0xf] %v1080
      %1113 = vst [vmem:[#allocation3 + $0x264] sm:$0xf] %v1081
      %1114 = vst [vmem:[#allocation3 + $0x288] sm:$0xf] %v1082
      %1115 = vst [vmem:[#allocation3 + $0x2ac] sm:$0xf] %v1083
      %1116 = vst [vmem:[#allocation3 + $0x2d0] sm:$0xf] %v1084
      %1117 = vst [vmem:[#allocation3 + $0x2f4] sm:$0xf] %v1085
      %1118 = vst [vmem:[#allocation3 + $0x318] sm:$0xf] %v1086
      %1119 = vst [vmem:[#allocation3 + $0x33c] sm:$0xf] %v1087
      %1120 = vst [vmem:[#allocation3 + $0x360] sm:$0xf] %v1088
      %1121 = vst [vmem:[#allocation3 + $0x384] sm:$0xf] %v1089
      %1122 = vst [vmem:[#allocation3 + $0x3a8] sm:$0xf] %v1090
      %1123 = vst [vmem:[#allocation3 + $0x3cc] sm:$0xf] %v1091
      %1124 = vst [vmem:[#allocation3 + $0x3f0] sm:$0xf] %v1092
      %1125 = vst [vmem:[#allocation3 + $0x414] sm:$0xf] %v1093
      %1126 = vst [vmem:[#allocation3 + $0x438] sm:$0xf] %v1094
      %1127 = vst [vmem:[#allocation3 + $0x45c] sm:$0xf] %v1095
      %v1128 = vld [vmem:[#allocation2] sm:$0xf]
      %v1129 = vld [vmem:[#allocation2 + $0x4] sm:$0xf]
      %v1130 = vld [vmem:[#allocation2 + $0x8] sm:$0x1]
      %v1131 = vld [vmem:[#allocation2 + $0xc] sm:$0xf]
      %v1132 = vld [vmem:[#allocation2 + $0x10] sm:$0xf]
      %v1133 = vld [vmem:[#allocation2 + $0x14] sm:$0x1]
      %v1134 = vld [vmem:[#allocation2 + $0x18] sm:$0xf]
      %v1135 = vld [vmem:[#allocation2 + $0x1c] sm:$0xf]
      %v1136 = vld [vmem:[#allocation2 + $0x20] sm:$0x1]
      %v1137 = vld [vmem:[#allocation2 + $0x24] sm:$0xf]
      %v1138 = vld [vmem:[#allocation2 + $0x28] sm:$0xf]
      %v1139 = vld [vmem:[#allocation2 + $0x2c] sm:$0x1]
      %v1140 = vld [vmem:[#allocation2 + $0x30] sm:$0xf]
      %v1141 = vld [vmem:[#allocation2 + $0x34] sm:$0xf]
      %v1142 = vld [vmem:[#allocation2 + $0x38] sm:$0x1]
      %v1143 = vld [vmem:[#allocation2 + $0x3c] sm:$0xf]
      %v1144 = vld [vmem:[#allocation2 + $0x40] sm:$0xf]
      %v1145 = vld [vmem:[#allocation2 + $0x44] sm:$0x1]
      %v1146 = vld [vmem:[#allocation2 + $0x48] sm:$0xf]
      %v1147 = vld [vmem:[#allocation2 + $0x4c] sm:$0xf]
      %v1148 = vld [vmem:[#allocation2 + $0x50] sm:$0x1]
      %v1149 = vld [vmem:[#allocation2 + $0x54] sm:$0xf]
      %v1150 = vld [vmem:[#allocation2 + $0x58] sm:$0xf]
      %v1151 = vld [vmem:[#allocation2 + $0x5c] sm:$0x1]
      %v1152 = vld [vmem:[#allocation2 + $0x60] sm:$0xf]
      %v1153 = vld [vmem:[#allocation2 + $0x64] sm:$0xf]
      %v1154 = vld [vmem:[#allocation2 + $0x68] sm:$0x1]
      %v1155 = vld [vmem:[#allocation2 + $0x6c] sm:$0xf]
      %v1156 = vld [vmem:[#allocation2 + $0x70] sm:$0xf]
      %v1157 = vld [vmem:[#allocation2 + $0x74] sm:$0x1]
      %v1158 = vld [vmem:[#allocation2 + $0x78] sm:$0xf]
      %v1159 = vld [vmem:[#allocation2 + $0x7c] sm:$0xf]
      %v1160 = vld [vmem:[#allocation2 + $0x80] sm:$0x1]
      %v1161 = vld [vmem:[#allocation2 + $0x84] sm:$0xf]
      %v1162 = vld [vmem:[#allocation2 + $0x88] sm:$0xf]
      %v1163 = vld [vmem:[#allocation2 + $0x8c] sm:$0x1]
      %v1164 = vld [vmem:[#allocation2 + $0x90] sm:$0xf]
      %v1165 = vld [vmem:[#allocation2 + $0x94] sm:$0xf]
      %v1166 = vld [vmem:[#allocation2 + $0x98] sm:$0x1]
      %v1167 = vld [vmem:[#allocation2 + $0x9c] sm:$0xf]
      %v1168 = vld [vmem:[#allocation2 + $0xa0] sm:$0xf]
      %v1169 = vld [vmem:[#allocation2 + $0xa4] sm:$0x1]
      %v1170 = vld [vmem:[#allocation2 + $0xa8] sm:$0xf]
      %v1171 = vld [vmem:[#allocation2 + $0xac] sm:$0xf]
      %v1172 = vld [vmem:[#allocation2 + $0xb0] sm:$0x1]
      %v1173 = vld [vmem:[#allocation2 + $0xb4] sm:$0xf]
      %v1174 = vld [vmem:[#allocation2 + $0xb8] sm:$0xf]
      %v1175 = vld [vmem:[#allocation2 + $0xbc] sm:$0x1]
      %vm1176 = vsmask.f32 3328
      %vm1177 = vsmask.f32 7440
      %vm1178 = vmor %vm1176, %vm1177
      %v1180 = vshrl.u32 %v1128, 16
      %v1182 = vrot.slane %v1180, 4
      %v1183 = vshll.u32 %v1128, 16
      %v1185 = vrot.slane %v1183, 5
      %v1186 = vor.u32 %v1182, %v1185
      %v1187 = vrot.slane %v1186, 4
      %v1189 = vshll.u32 %v1129, 16
      %v1191 = vrot.slane %v1189, 5
      %v1192 = vsel %vm1178, %v1187, %v1191
      %v1193 = vshrl.u32 %v1129, 16
      %v1195 = vrot.slane %v1193, 4
      %v1196 = vor.u32 %v1195, %v1191
      %v1197 = vrot.slane %v1196, 4
      %v1199 = vshll.u32 %v1130, 16
      %v1201 = vrot.slane %v1199, 5
      %v1202 = vsel %vm1178, %v1197, %v1201
      %v1204 = vshrl.u32 %v1131, 16
      %v1206 = vrot.slane %v1204, 4
      %v1207 = vshll.u32 %v1131, 16
      %v1209 = vrot.slane %v1207, 5
      %v1210 = vor.u32 %v1206, %v1209
      %v1211 = vrot.slane %v1210, 4
      %v1213 = vshll.u32 %v1132, 16
      %v1215 = vrot.slane %v1213, 5
      %v1216 = vsel %vm1178, %v1211, %v1215
      %v1217 = vshrl.u32 %v1132, 16
      %v1219 = vrot.slane %v1217, 4
      %v1220 = vor.u32 %v1219, %v1215
      %v1221 = vrot.slane %v1220, 4
      %v1223 = vshll.u32 %v1133, 16
      %v1225 = vrot.slane %v1223, 5
      %v1226 = vsel %vm1178, %v1221, %v1225
      %v1228 = vshrl.u32 %v1134, 16
      %v1230 = vrot.slane %v1228, 4
      %v1231 = vshll.u32 %v1134, 16
      %v1233 = vrot.slane %v1231, 5
      %v1234 = vor.u32 %v1230, %v1233
      %v1235 = vrot.slane %v1234, 4
      %v1237 = vshll.u32 %v1135, 16
      %v1239 = vrot.slane %v1237, 5
      %v1240 = vsel %vm1178, %v1235, %v1239
      %v1241 = vshrl.u32 %v1135, 16
      %v1243 = vrot.slane %v1241, 4
      %v1244 = vor.u32 %v1243, %v1239
      %v1245 = vrot.slane %v1244, 4
      %v1247 = vshll.u32 %v1136, 16
      %v1249 = vrot.slane %v1247, 5
      %v1250 = vsel %vm1178, %v1245, %v1249
      %v1252 = vshrl.u32 %v1137, 16
      %v1254 = vrot.slane %v1252, 4
      %v1255 = vshll.u32 %v1137, 16
      %v1257 = vrot.slane %v1255, 5
      %v1258 = vor.u32 %v1254, %v1257
      %v1259 = vrot.slane %v1258, 4
      %v1261 = vshll.u32 %v1138, 16
      %v1263 = vrot.slane %v1261, 5
      %v1264 = vsel %vm1178, %v1259, %v1263
      %v1265 = vshrl.u32 %v1138, 16
      %v1267 = vrot.slane %v1265, 4
      %v1268 = vor.u32 %v1267, %v1263
      %v1269 = vrot.slane %v1268, 4
      %v1271 = vshll.u32 %v1139, 16
      %v1273 = vrot.slane %v1271, 5
      %v1274 = vsel %vm1178, %v1269, %v1273
      %v1276 = vshrl.u32 %v1140, 16
      %v1278 = vrot.slane %v1276, 4
      %v1279 = vshll.u32 %v1140, 16
      %v1281 = vrot.slane %v1279, 5
      %v1282 = vor.u32 %v1278, %v1281
      %v1283 = vrot.slane %v1282, 4
      %v1285 = vshll.u32 %v1141, 16
      %v1287 = vrot.slane %v1285, 5
      %v1288 = vsel %vm1178, %v1283, %v1287
      %v1289 = vshrl.u32 %v1141, 16
      %v1291 = vrot.slane %v1289, 4
      %v1292 = vor.u32 %v1291, %v1287
      %v1293 = vrot.slane %v1292, 4
      %v1295 = vshll.u32 %v1142, 16
      %v1297 = vrot.slane %v1295, 5
      %v1298 = vsel %vm1178, %v1293, %v1297
      %v1300 = vshrl.u32 %v1143, 16
      %v1302 = vrot.slane %v1300, 4
      %v1303 = vshll.u32 %v1143, 16
      %v1305 = vrot.slane %v1303, 5
      %v1306 = vor.u32 %v1302, %v1305
      %v1307 = vrot.slane %v1306, 4
      %v1309 = vshll.u32 %v1144, 16
      %v1311 = vrot.slane %v1309, 5
      %v1312 = vsel %vm1178, %v1307, %v1311
      %v1313 = vshrl.u32 %v1144, 16
      %v1315 = vrot.slane %v1313, 4
      %v1316 = vor.u32 %v1315, %v1311
      %v1317 = vrot.slane %v1316, 4
      %v1319 = vshll.u32 %v1145, 16
      %v1321 = vrot.slane %v1319, 5
      %v1322 = vsel %vm1178, %v1317, %v1321
      %v1324 = vshrl.u32 %v1146, 16
      %v1326 = vrot.slane %v1324, 4
      %v1327 = vshll.u32 %v1146, 16
      %v1329 = vrot.slane %v1327, 5
      %v1330 = vor.u32 %v1326, %v1329
      %v1331 = vrot.slane %v1330, 4
      %v1333 = vshll.u32 %v1147, 16
      %v1335 = vrot.slane %v1333, 5
      %v1336 = vsel %vm1178, %v1331, %v1335
      %v1337 = vshrl.u32 %v1147, 16
      %v1339 = vrot.slane %v1337, 4
      %v1340 = vor.u32 %v1339, %v1335
      %v1341 = vrot.slane %v1340, 4
      %v1343 = vshll.u32 %v1148, 16
      %v1345 = vrot.slane %v1343, 5
      %v1346 = vsel %vm1178, %v1341, %v1345
      %v1348 = vshrl.u32 %v1149, 16
      %v1350 = vrot.slane %v1348, 4
      %v1351 = vshll.u32 %v1149, 16
      %v1353 = vrot.slane %v1351, 5
      %v1354 = vor.u32 %v1350, %v1353
      %v1355 = vrot.slane %v1354, 4
      %v1357 = vshll.u32 %v1150, 16
      %v1359 = vrot.slane %v1357, 5
      %v1360 = vsel %vm1178, %v1355, %v1359
      %v1361 = vshrl.u32 %v1150, 16
      %v1363 = vrot.slane %v1361, 4
      %v1364 = vor.u32 %v1363, %v1359
      %v1365 = vrot.slane %v1364, 4
      %v1367 = vshll.u32 %v1151, 16
      %v1369 = vrot.slane %v1367, 5
      %v1370 = vsel %vm1178, %v1365, %v1369
      %v1372 = vshrl.u32 %v1152, 16
      %v1374 = vrot.slane %v1372, 4
      %v1375 = vshll.u32 %v1152, 16
      %v1377 = vrot.slane %v1375, 5
      %v1378 = vor.u32 %v1374, %v1377
      %v1379 = vrot.slane %v1378, 4
      %v1381 = vshll.u32 %v1153, 16
      %v1383 = vrot.slane %v1381, 5
      %v1384 = vsel %vm1178, %v1379, %v1383
      %v1385 = vshrl.u32 %v1153, 16
      %v1387 = vrot.slane %v1385, 4
      %v1388 = vor.u32 %v1387, %v1383
      %v1389 = vrot.slane %v1388, 4
      %v1391 = vshll.u32 %v1154, 16
      %v1393 = vrot.slane %v1391, 5
      %v1394 = vsel %vm1178, %v1389, %v1393
      %v1396 = vshrl.u32 %v1155, 16
      %v1398 = vrot.slane %v1396, 4
      %v1399 = vshll.u32 %v1155, 16
      %v1401 = vrot.slane %v1399, 5
      %v1402 = vor.u32 %v1398, %v1401
      %v1403 = vrot.slane %v1402, 4
      %v1405 = vshll.u32 %v1156, 16
      %v1407 = vrot.slane %v1405, 5
      %v1408 = vsel %vm1178, %v1403, %v1407
      %v1409 = vshrl.u32 %v1156, 16
      %v1411 = vrot.slane %v1409, 4
      %v1412 = vor.u32 %v1411, %v1407
      %v1413 = vrot.slane %v1412, 4
      %v1415 = vshll.u32 %v1157, 16
      %v1417 = vrot.slane %v1415, 5
      %v1418 = vsel %vm1178, %v1413, %v1417
      %v1420 = vshrl.u32 %v1158, 16
      %v1422 = vrot.slane %v1420, 4
      %v1423 = vshll.u32 %v1158, 16
      %v1425 = vrot.slane %v1423, 5
      %v1426 = vor.u32 %v1422, %v1425
      %v1427 = vrot.slane %v1426, 4
      %v1429 = vshll.u32 %v1159, 16
      %v1431 = vrot.slane %v1429, 5
      %v1432 = vsel %vm1178, %v1427, %v1431
      %v1433 = vshrl.u32 %v1159, 16
      %v1435 = vrot.slane %v1433, 4
      %v1436 = vor.u32 %v1435, %v1431
      %v1437 = vrot.slane %v1436, 4
      %v1439 = vshll.u32 %v1160, 16
      %v1441 = vrot.slane %v1439, 5
      %v1442 = vsel %vm1178, %v1437, %v1441
      %v1444 = vshrl.u32 %v1161, 16
      %v1446 = vrot.slane %v1444, 4
      %v1447 = vshll.u32 %v1161, 16
      %v1449 = vrot.slane %v1447, 5
      %v1450 = vor.u32 %v1446, %v1449
      %v1451 = vrot.slane %v1450, 4
      %v1453 = vshll.u32 %v1162, 16
      %v1455 = vrot.slane %v1453, 5
      %v1456 = vsel %vm1178, %v1451, %v1455
      %v1457 = vshrl.u32 %v1162, 16
      %v1459 = vrot.slane %v1457, 4
      %v1460 = vor.u32 %v1459, %v1455
      %v1461 = vrot.slane %v1460, 4
      %v1463 = vshll.u32 %v1163, 16
      %v1465 = vrot.slane %v1463, 5
      %v1466 = vsel %vm1178, %v1461, %v1465
      %v1468 = vshrl.u32 %v1164, 16
      %v1470 = vrot.slane %v1468, 4
      %v1471 = vshll.u32 %v1164, 16
      %v1473 = vrot.slane %v1471, 5
      %v1474 = vor.u32 %v1470, %v1473
      %v1475 = vrot.slane %v1474, 4
      %v1477 = vshll.u32 %v1165, 16
      %v1479 = vrot.slane %v1477, 5
      %v1480 = vsel %vm1178, %v1475, %v1479
      %v1481 = vshrl.u32 %v1165, 16
      %v1483 = vrot.slane %v1481, 4
      %v1484 = vor.u32 %v1483, %v1479
      %v1485 = vrot.slane %v1484, 4
      %v1487 = vshll.u32 %v1166, 16
      %v1489 = vrot.slane %v1487, 5
      %v1490 = vsel %vm1178, %v1485, %v1489
      %v1492 = vshrl.u32 %v1167, 16
      %v1494 = vrot.slane %v1492, 4
      %v1495 = vshll.u32 %v1167, 16
      %v1497 = vrot.slane %v1495, 5
      %v1498 = vor.u32 %v1494, %v1497
      %v1499 = vrot.slane %v1498, 4
      %v1501 = vshll.u32 %v1168, 16
      %v1503 = vrot.slane %v1501, 5
      %v1504 = vsel %vm1178, %v1499, %v1503
      %v1505 = vshrl.u32 %v1168, 16
      %v1507 = vrot.slane %v1505, 4
      %v1508 = vor.u32 %v1507, %v1503
      %v1509 = vrot.slane %v1508, 4
      %v1511 = vshll.u32 %v1169, 16
      %v1513 = vrot.slane %v1511, 5
      %v1514 = vsel %vm1178, %v1509, %v1513
      %v1516 = vshrl.u32 %v1170, 16
      %v1518 = vrot.slane %v1516, 4
      %v1519 = vshll.u32 %v1170, 16
      %v1521 = vrot.slane %v1519, 5
      %v1522 = vor.u32 %v1518, %v1521
      %v1523 = vrot.slane %v1522, 4
      %v1525 = vshll.u32 %v1171, 16
      %v1527 = vrot.slane %v1525, 5
      %v1528 = vsel %vm1178, %v1523, %v1527
      %v1529 = vshrl.u32 %v1171, 16
      %v1531 = vrot.slane %v1529, 4
      %v1532 = vor.u32 %v1531, %v1527
      %v1533 = vrot.slane %v1532, 4
      %v1535 = vshll.u32 %v1172, 16
      %v1537 = vrot.slane %v1535, 5
      %v1538 = vsel %vm1178, %v1533, %v1537
      %v1540 = vshrl.u32 %v1173, 16
      %v1542 = vrot.slane %v1540, 4
      %v1543 = vshll.u32 %v1173, 16
      %v1545 = vrot.slane %v1543, 5
      %v1546 = vor.u32 %v1542, %v1545
      %v1547 = vrot.slane %v1546, 4
      %v1549 = vshll.u32 %v1174, 16
      %v1551 = vrot.slane %v1549, 5
      %v1552 = vsel %vm1178, %v1547, %v1551
      %v1553 = vshrl.u32 %v1174, 16
      %v1555 = vrot.slane %v1553, 4
      %v1556 = vor.u32 %v1555, %v1551
      %v1557 = vrot.slane %v1556, 4
      %v1559 = vshll.u32 %v1175, 16
      %v1561 = vrot.slane %v1559, 5
      %v1562 = vsel %vm1178, %v1557, %v1561
      %1595 = vst [vmem:[#allocation3 + $0x4] sm:$0xf] %v1192
      %1596 = vst [vmem:[#allocation3 + $0x28] sm:$0xf] %v1202
      %1597 = vst [vmem:[#allocation3 + $0x4c] sm:$0xf] %v1216
      %1598 = vst [vmem:[#allocation3 + $0x70] sm:$0xf] %v1226
      %1599 = vst [vmem:[#allocation3 + $0x94] sm:$0xf] %v1240
      %1600 = vst [vmem:[#allocation3 + $0xb8] sm:$0xf] %v1250
      %1601 = vst [vmem:[#allocation3 + $0xdc] sm:$0xf] %v1264
      %1602 = vst [vmem:[#allocation3 + $0x100] sm:$0xf] %v1274
      %1603 = vst [vmem:[#allocation3 + $0x124] sm:$0xf] %v1288
      %1604 = vst [vmem:[#allocation3 + $0x148] sm:$0xf] %v1298
      %1605 = vst [vmem:[#allocation3 + $0x16c] sm:$0xf] %v1312
      %1606 = vst [vmem:[#allocation3 + $0x190] sm:$0xf] %v1322
      %1607 = vst [vmem:[#allocation3 + $0x1b4] sm:$0xf] %v1336
      %1608 = vst [vmem:[#allocation3 + $0x1d8] sm:$0xf] %v1346
      %1609 = vst [vmem:[#allocation3 + $0x1fc] sm:$0xf] %v1360
      %1610 = vst [vmem:[#allocation3 + $0x220] sm:$0xf] %v1370
      %1611 = vst [vmem:[#allocation3 + $0x244] sm:$0xf] %v1384
      %1612 = vst [vmem:[#allocation3 + $0x268] sm:$0xf] %v1394
      %1613 = vst [vmem:[#allocation3 + $0x28c] sm:$0xf] %v1408
      %1614 = vst [vmem:[#allocation3 + $0x2b0] sm:$0xf] %v1418
      %1615 = vst [vmem:[#allocation3 + $0x2d4] sm:$0xf] %v1432
      %1616 = vst [vmem:[#allocation3 + $0x2f8] sm:$0xf] %v1442
      %1617 = vst [vmem:[#allocation3 + $0x31c] sm:$0xf] %v1456
      %1618 = vst [vmem:[#allocation3 + $0x340] sm:$0xf] %v1466
      %1619 = vst [vmem:[#allocation3 + $0x364] sm:$0xf] %v1480
      %1620 = vst [vmem:[#allocation3 + $0x388] sm:$0xf] %v1490
      %1621 = vst [vmem:[#allocation3 + $0x3ac] sm:$0xf] %v1504
      %1622 = vst [vmem:[#allocation3 + $0x3d0] sm:$0xf] %v1514
      %1623 = vst [vmem:[#allocation3 + $0x3f4] sm:$0xf] %v1528
      %1624 = vst [vmem:[#allocation3 + $0x418] sm:$0xf] %v1538
      %1625 = vst [vmem:[#allocation3 + $0x43c] sm:$0xf] %v1552
      %1626 = vst [vmem:[#allocation3 + $0x460] sm:$0xf] %v1562
      %v1627 = vld [vmem:[#allocation2] sm:$0xe]
      %v1628 = vld [vmem:[#allocation2 + $0x4] sm:$0xf]
      %v1629 = vld [vmem:[#allocation2 + $0x8] sm:$0x1]
      %v1630 = vld [vmem:[#allocation2 + $0xc] sm:$0xe]
      %v1631 = vld [vmem:[#allocation2 + $0x10] sm:$0xf]
      %v1632 = vld [vmem:[#allocation2 + $0x14] sm:$0x1]
      %v1633 = vld [vmem:[#allocation2 + $0x18] sm:$0xe]
      %v1634 = vld [vmem:[#allocation2 + $0x1c] sm:$0xf]
      %v1635 = vld [vmem:[#allocation2 + $0x20] sm:$0x1]
      %v1636 = vld [vmem:[#allocation2 + $0x24] sm:$0xe]
      %v1637 = vld [vmem:[#allocation2 + $0x28] sm:$0xf]
      %v1638 = vld [vmem:[#allocation2 + $0x2c] sm:$0x1]
      %v1639 = vld [vmem:[#allocation2 + $0x30] sm:$0xe]
      %v1640 = vld [vmem:[#allocation2 + $0x34] sm:$0xf]
      %v1641 = vld [vmem:[#allocation2 + $0x38] sm:$0x1]
      %v1642 = vld [vmem:[#allocation2 + $0x3c] sm:$0xe]
      %v1643 = vld [vmem:[#allocation2 + $0x40] sm:$0xf]
      %v1644 = vld [vmem:[#allocation2 + $0x44] sm:$0x1]
      %v1645 = vld [vmem:[#allocation2 + $0x48] sm:$0xe]
      %v1646 = vld [vmem:[#allocation2 + $0x4c] sm:$0xf]
      %v1647 = vld [vmem:[#allocation2 + $0x50] sm:$0x1]
      %v1648 = vld [vmem:[#allocation2 + $0x54] sm:$0xe]
      %v1649 = vld [vmem:[#allocation2 + $0x58] sm:$0xf]
      %v1650 = vld [vmem:[#allocation2 + $0x5c] sm:$0x1]
      %v1651 = vld [vmem:[#allocation2 + $0x60] sm:$0xe]
      %v1652 = vld [vmem:[#allocation2 + $0x64] sm:$0xf]
      %v1653 = vld [vmem:[#allocation2 + $0x68] sm:$0x1]
      %v1654 = vld [vmem:[#allocation2 + $0x6c] sm:$0xe]
      %v1655 = vld [vmem:[#allocation2 + $0x70] sm:$0xf]
      %v1656 = vld [vmem:[#allocation2 + $0x74] sm:$0x1]
      %v1657 = vld [vmem:[#allocation2 + $0x78] sm:$0xe]
      %v1658 = vld [vmem:[#allocation2 + $0x7c] sm:$0xf]
      %v1659 = vld [vmem:[#allocation2 + $0x80] sm:$0x1]
      %v1660 = vld [vmem:[#allocation2 + $0x84] sm:$0xe]
      %v1661 = vld [vmem:[#allocation2 + $0x88] sm:$0xf]
      %v1662 = vld [vmem:[#allocation2 + $0x8c] sm:$0x1]
      %v1663 = vld [vmem:[#allocation2 + $0x90] sm:$0xe]
      %v1664 = vld [vmem:[#allocation2 + $0x94] sm:$0xf]
      %v1665 = vld [vmem:[#allocation2 + $0x98] sm:$0x1]
      %v1666 = vld [vmem:[#allocation2 + $0x9c] sm:$0xe]
      %v1667 = vld [vmem:[#allocation2 + $0xa0] sm:$0xf]
      %v1668 = vld [vmem:[#allocation2 + $0xa4] sm:$0x1]
      %v1669 = vld [vmem:[#allocation2 + $0xa8] sm:$0xe]
      %v1670 = vld [vmem:[#allocation2 + $0xac] sm:$0xf]
      %v1671 = vld [vmem:[#allocation2 + $0xb0] sm:$0x1]
      %v1672 = vld [vmem:[#allocation2 + $0xb4] sm:$0xe]
      %v1673 = vld [vmem:[#allocation2 + $0xb8] sm:$0xf]
      %v1674 = vld [vmem:[#allocation2 + $0xbc] sm:$0x1]
      %vm1723 = vcmask 1042432
      %vm1724 = vcmask 1046532
      %vm1725 = vmor %vm1723, %vm1724
      %v1726 = vrot.slane %v1627, 5
      %v1727 = vrot.slane %v1726, 4
      %v1728 = vrot.slane %v1628, 5
      %v1729 = vsel %vm1725, %v1727, %v1728
      %v1730 = vrot.slane %v1728, 4
      %v1731 = vrot.slane %v1629, 5
      %v1732 = vsel %vm1725, %v1730, %v1731
      %v1733 = vrot.slane %v1630, 5
      %v1734 = vrot.slane %v1733, 4
      %v1735 = vrot.slane %v1631, 5
      %v1736 = vsel %vm1725, %v1734, %v1735
      %v1737 = vrot.slane %v1735, 4
      %v1738 = vrot.slane %v1632, 5
      %v1739 = vsel %vm1725, %v1737, %v1738
      %v1740 = vrot.slane %v1633, 5
      %v1741 = vrot.slane %v1740, 4
      %v1742 = vrot.slane %v1634, 5
      %v1743 = vsel %vm1725, %v1741, %v1742
      %v1744 = vrot.slane %v1742, 4
      %v1745 = vrot.slane %v1635, 5
      %v1746 = vsel %vm1725, %v1744, %v1745
      %v1747 = vrot.slane %v1636, 5
      %v1748 = vrot.slane %v1747, 4
      %v1749 = vrot.slane %v1637, 5
      %v1750 = vsel %vm1725, %v1748, %v1749
      %v1751 = vrot.slane %v1749, 4
      %v1752 = vrot.slane %v1638, 5
      %v1753 = vsel %vm1725, %v1751, %v1752
      %v1754 = vrot.slane %v1639, 5
      %v1755 = vrot.slane %v1754, 4
      %v1756 = vrot.slane %v1640, 5
      %v1757 = vsel %vm1725, %v1755, %v1756
      %v1758 = vrot.slane %v1756, 4
      %v1759 = vrot.slane %v1641, 5
      %v1760 = vsel %vm1725, %v1758, %v1759
      %v1761 = vrot.slane %v1642, 5
      %v1762 = vrot.slane %v1761, 4
      %v1763 = vrot.slane %v1643, 5
      %v1764 = vsel %vm1725, %v1762, %v1763
      %v1765 = vrot.slane %v1763, 4
      %v1766 = vrot.slane %v1644, 5
      %v1767 = vsel %vm1725, %v1765, %v1766
      %v1768 = vrot.slane %v1645, 5
      %v1769 = vrot.slane %v1768, 4
      %v1770 = vrot.slane %v1646, 5
      %v1771 = vsel %vm1725, %v1769, %v1770
      %v1772 = vrot.slane %v1770, 4
      %v1773 = vrot.slane %v1647, 5
      %v1774 = vsel %vm1725, %v1772, %v1773
      %v1775 = vrot.slane %v1648, 5
      %v1776 = vrot.slane %v1775, 4
      %v1777 = vrot.slane %v1649, 5
      %v1778 = vsel %vm1725, %v1776, %v1777
      %v1779 = vrot.slane %v1777, 4
      %v1780 = vrot.slane %v1650, 5
      %v1781 = vsel %vm1725, %v1779, %v1780
      %v1782 = vrot.slane %v1651, 5
      %v1783 = vrot.slane %v1782, 4
      %v1784 = vrot.slane %v1652, 5
      %v1785 = vsel %vm1725, %v1783, %v1784
      %v1786 = vrot.slane %v1784, 4
      %v1787 = vrot.slane %v1653, 5
      %v1788 = vsel %vm1725, %v1786, %v1787
      %v1789 = vrot.slane %v1654, 5
      %v1790 = vrot.slane %v1789, 4
      %v1791 = vrot.slane %v1655, 5
      %v1792 = vsel %vm1725, %v1790, %v1791
      %v1793 = vrot.slane %v1791, 4
      %v1794 = vrot.slane %v1656, 5
      %v1795 = vsel %vm1725, %v1793, %v1794
      %v1796 = vrot.slane %v1657, 5
      %v1797 = vrot.slane %v1796, 4
      %v1798 = vrot.slane %v1658, 5
      %v1799 = vsel %vm1725, %v1797, %v1798
      %v1800 = vrot.slane %v1798, 4
      %v1801 = vrot.slane %v1659, 5
      %v1802 = vsel %vm1725, %v1800, %v1801
      %v1803 = vrot.slane %v1660, 5
      %v1804 = vrot.slane %v1803, 4
      %v1805 = vrot.slane %v1661, 5
      %v1806 = vsel %vm1725, %v1804, %v1805
      %v1807 = vrot.slane %v1805, 4
      %v1808 = vrot.slane %v1662, 5
      %v1809 = vsel %vm1725, %v1807, %v1808
      %v1810 = vrot.slane %v1663, 5
      %v1811 = vrot.slane %v1810, 4
      %v1812 = vrot.slane %v1664, 5
      %v1813 = vsel %vm1725, %v1811, %v1812
      %v1814 = vrot.slane %v1812, 4
      %v1815 = vrot.slane %v1665, 5
      %v1816 = vsel %vm1725, %v1814, %v1815
      %v1817 = vrot.slane %v1666, 5
      %v1818 = vrot.slane %v1817, 4
      %v1819 = vrot.slane %v1667, 5
      %v1820 = vsel %vm1725, %v1818, %v1819
      %v1821 = vrot.slane %v1819, 4
      %v1822 = vrot.slane %v1668, 5
      %v1823 = vsel %vm1725, %v1821, %v1822
      %v1824 = vrot.slane %v1669, 5
      %v1825 = vrot.slane %v1824, 4
      %v1826 = vrot.slane %v1670, 5
      %v1827 = vsel %vm1725, %v1825, %v1826
      %v1828 = vrot.slane %v1826, 4
      %v1829 = vrot.slane %v1671, 5
      %v1830 = vsel %vm1725, %v1828, %v1829
      %v1831 = vrot.slane %v1672, 5
      %v1832 = vrot.slane %v1831, 4
      %v1833 = vrot.slane %v1673, 5
      %v1834 = vsel %vm1725, %v1832, %v1833
      %v1835 = vrot.slane %v1833, 4
      %v1836 = vrot.slane %v1674, 5
      %v1837 = vsel %vm1725, %v1835, %v1836
      %1870 = vst [vmem:[#allocation3 + $0x8] sm:$0xf] %v1729
      %1871 = vst [vmem:[#allocation3 + $0x2c] sm:$0xf] %v1732
      %1872 = vst [vmem:[#allocation3 + $0x50] sm:$0xf] %v1736
      %1873 = vst [vmem:[#allocation3 + $0x74] sm:$0xf] %v1739
      %1874 = vst [vmem:[#allocation3 + $0x98] sm:$0xf] %v1743
      %1875 = vst [vmem:[#allocation3 + $0xbc] sm:$0xf] %v1746
      %1876 = vst [vmem:[#allocation3 + $0xe0] sm:$0xf] %v1750
      %1877 = vst [vmem:[#allocation3 + $0x104] sm:$0xf] %v1753
      %1878 = vst [vmem:[#allocation3 + $0x128] sm:$0xf] %v1757
      %1879 = vst [vmem:[#allocation3 + $0x14c] sm:$0xf] %v1760
      %1880 = vst [vmem:[#allocation3 + $0x170] sm:$0xf] %v1764
      %1881 = vst [vmem:[#allocation3 + $0x194] sm:$0xf] %v1767
      %1882 = vst [vmem:[#allocation3 + $0x1b8] sm:$0xf] %v1771
      %1883 = vst [vmem:[#allocation3 + $0x1dc] sm:$0xf] %v1774
      %1884 = vst [vmem:[#allocation3 + $0x200] sm:$0xf] %v1778
      %1885 = vst [vmem:[#allocation3 + $0x224] sm:$0xf] %v1781
      %1886 = vst [vmem:[#allocation3 + $0x248] sm:$0xf] %v1785
      %1887 = vst [vmem:[#allocation3 + $0x26c] sm:$0xf] %v1788
      %1888 = vst [vmem:[#allocation3 + $0x290] sm:$0xf] %v1792
      %1889 = vst [vmem:[#allocation3 + $0x2b4] sm:$0xf] %v1795
      %1890 = vst [vmem:[#allocation3 + $0x2d8] sm:$0xf] %v1799
      %1891 = vst [vmem:[#allocation3 + $0x2fc] sm:$0xf] %v1802
      %1892 = vst [vmem:[#allocation3 + $0x320] sm:$0xf] %v1806
      %1893 = vst [vmem:[#allocation3 + $0x344] sm:$0xf] %v1809
      %1894 = vst [vmem:[#allocation3 + $0x368] sm:$0xf] %v1813
      %1895 = vst [vmem:[#allocation3 + $0x38c] sm:$0xf] %v1816
      %1896 = vst [vmem:[#allocation3 + $0x3b0] sm:$0xf] %v1820
      %1897 = vst [vmem:[#allocation3 + $0x3d4] sm:$0xf] %v1823
      %1898 = vst [vmem:[#allocation3 + $0x3f8] sm:$0xf] %v1827
      %1899 = vst [vmem:[#allocation3 + $0x41c] sm:$0xf] %v1830
      %1900 = vst [vmem:[#allocation3 + $0x440] sm:$0xf] %v1834
      %1901 = vst [vmem:[#allocation3 + $0x464] sm:$0xf] %v1837
      %v1902 = vld [vmem:[%s949] sm:$0xf]
      %v1903 = vld [vmem:[%s949 + $0x4] sm:$0xf]
      %v1904 = vld [vmem:[%s949 + $0xc] sm:$0xf]
      %v1905 = vld [vmem:[%s949 + $0x10] sm:$0xf]
      %v1906 = vld [vmem:[%s949 + $0x18] sm:$0xf]
      %v1907 = vld [vmem:[%s949 + $0x1c] sm:$0xf]
      %v1908 = vld [vmem:[%s949 + $0x24] sm:$0xf]
      %v1909 = vld [vmem:[%s949 + $0x28] sm:$0xf]
      %v1910 = vld [vmem:[%s949 + $0x30] sm:$0xf]
      %v1911 = vld [vmem:[%s949 + $0x34] sm:$0xf]
      %v1912 = vld [vmem:[%s949 + $0x3c] sm:$0xf]
      %v1913 = vld [vmem:[%s949 + $0x40] sm:$0xf]
      %v1914 = vld [vmem:[%s949 + $0x48] sm:$0xf]
      %v1915 = vld [vmem:[%s949 + $0x4c] sm:$0xf]
      %v1916 = vld [vmem:[%s949 + $0x54] sm:$0xf]
      %v1917 = vld [vmem:[%s949 + $0x58] sm:$0xf]
      %v1918 = vld [vmem:[%s949 + $0x60] sm:$0xf]
      %v1919 = vld [vmem:[%s949 + $0x64] sm:$0xf]
      %v1920 = vld [vmem:[%s949 + $0x6c] sm:$0xf]
      %v1921 = vld [vmem:[%s949 + $0x70] sm:$0xf]
      %v1922 = vld [vmem:[%s949 + $0x78] sm:$0xf]
      %v1923 = vld [vmem:[%s949 + $0x7c] sm:$0xf]
      %v1924 = vld [vmem:[%s949 + $0x84] sm:$0xf]
      %v1925 = vld [vmem:[%s949 + $0x88] sm:$0xf]
      %v1926 = vld [vmem:[%s949 + $0x90] sm:$0xf]
      %v1927 = vld [vmem:[%s949 + $0x94] sm:$0xf]
      %v1928 = vld [vmem:[%s949 + $0x9c] sm:$0xf]
      %v1929 = vld [vmem:[%s949 + $0xa0] sm:$0xf]
      %v1930 = vld [vmem:[%s949 + $0xa8] sm:$0xf]
      %v1931 = vld [vmem:[%s949 + $0xac] sm:$0xf]
      %v1932 = vld [vmem:[%s949 + $0xb4] sm:$0xf]
      %v1933 = vld [vmem:[%s949 + $0xb8] sm:$0xf]
      %1934 = vst [vmem:[#allocation3 + $0xc] sm:$0xf] %v1902
      %1935 = vst [vmem:[#allocation3 + $0x30] sm:$0xf] %v1903
      %1936 = vst [vmem:[#allocation3 + $0x54] sm:$0xf] %v1904
      %1937 = vst [vmem:[#allocation3 + $0x78] sm:$0xf] %v1905
      %1938 = vst [vmem:[#allocation3 + $0x9c] sm:$0xf] %v1906
      %1939 = vst [vmem:[#allocation3 + $0xc0] sm:$0xf] %v1907
      %1940 = vst [vmem:[#allocation3 + $0xe4] sm:$0xf] %v1908
      %1941 = vst [vmem:[#allocation3 + $0x108] sm:$0xf] %v1909
      %1942 = vst [vmem:[#allocation3 + $0x12c] sm:$0xf] %v1910
      %1943 = vst [vmem:[#allocation3 + $0x150] sm:$0xf] %v1911
      %1944 = vst [vmem:[#allocation3 + $0x174] sm:$0xf] %v1912
      %1945 = vst [vmem:[#allocation3 + $0x198] sm:$0xf] %v1913
      %1946 = vst [vmem:[#allocation3 + $0x1bc] sm:$0xf] %v1914
      %1947 = vst [vmem:[#allocation3 + $0x1e0] sm:$0xf] %v1915
      %1948 = vst [vmem:[#allocation3 + $0x204] sm:$0xf] %v1916
      %1949 = vst [vmem:[#allocation3 + $0x228] sm:$0xf] %v1917
      %1950 = vst [vmem:[#allocation3 + $0x24c] sm:$0xf] %v1918
      %1951 = vst [vmem:[#allocation3 + $0x270] sm:$0xf] %v1919
      %1952 = vst [vmem:[#allocation3 + $0x294] sm:$0xf] %v1920
      %1953 = vst [vmem:[#allocation3 + $0x2b8] sm:$0xf] %v1921
      %1954 = vst [vmem:[#allocation3 + $0x2dc] sm:$0xf] %v1922
      %1955 = vst [vmem:[#allocation3 + $0x300] sm:$0xf] %v1923
      %1956 = vst [vmem:[#allocation3 + $0x324] sm:$0xf] %v1924
      %1957 = vst [vmem:[#allocation3 + $0x348] sm:$0xf] %v1925
      %1958 = vst [vmem:[#allocation3 + $0x36c] sm:$0xf] %v1926
      %1959 = vst [vmem:[#allocation3 + $0x390] sm:$0xf] %v1927
      %1960 = vst [vmem:[#allocation3 + $0x3b4] sm:$0xf] %v1928
      %1961 = vst [vmem:[#allocation3 + $0x3d8] sm:$0xf] %v1929
      %1962 = vst [vmem:[#allocation3 + $0x3fc] sm:$0xf] %v1930
      %1963 = vst [vmem:[#allocation3 + $0x420] sm:$0xf] %v1931
      %1964 = vst [vmem:[#allocation3 + $0x444] sm:$0xf] %v1932
      %1965 = vst [vmem:[#allocation3 + $0x468] sm:$0xf] %v1933
      %v1966 = vld [vmem:[%s949] sm:$0xf]
      %v1967 = vld [vmem:[%s949 + $0x4] sm:$0xf]
      %v1968 = vld [vmem:[%s949 + $0x8] sm:$0x1]
      %v1969 = vld [vmem:[%s949 + $0xc] sm:$0xf]
      %v1970 = vld [vmem:[%s949 + $0x10] sm:$0xf]
      %v1971 = vld [vmem:[%s949 + $0x14] sm:$0x1]
      %v1972 = vld [vmem:[%s949 + $0x18] sm:$0xf]
      %v1973 = vld [vmem:[%s949 + $0x1c] sm:$0xf]
      %v1974 = vld [vmem:[%s949 + $0x20] sm:$0x1]
      %v1975 = vld [vmem:[%s949 + $0x24] sm:$0xf]
      %v1976 = vld [vmem:[%s949 + $0x28] sm:$0xf]
      %v1977 = vld [vmem:[%s949 + $0x2c] sm:$0x1]
      %v1978 = vld [vmem:[%s949 + $0x30] sm:$0xf]
      %v1979 = vld [vmem:[%s949 + $0x34] sm:$0xf]
      %v1980 = vld [vmem:[%s949 + $0x38] sm:$0x1]
      %v1981 = vld [vmem:[%s949 + $0x3c] sm:$0xf]
      %v1982 = vld [vmem:[%s949 + $0x40] sm:$0xf]
      %v1983 = vld [vmem:[%s949 + $0x44] sm:$0x1]
      %v1984 = vld [vmem:[%s949 + $0x48] sm:$0xf]
      %v1985 = vld [vmem:[%s949 + $0x4c] sm:$0xf]
      %v1986 = vld [vmem:[%s949 + $0x50] sm:$0x1]
      %v1987 = vld [vmem:[%s949 + $0x54] sm:$0xf]
      %v1988 = vld [vmem:[%s949 + $0x58] sm:$0xf]
      %v1989 = vld [vmem:[%s949 + $0x5c] sm:$0x1]
      %v1990 = vld [vmem:[%s949 + $0x60] sm:$0xf]
      %v1991 = vld [vmem:[%s949 + $0x64] sm:$0xf]
      %v1992 = vld [vmem:[%s949 + $0x68] sm:$0x1]
      %v1993 = vld [vmem:[%s949 + $0x6c] sm:$0xf]
      %v1994 = vld [vmem:[%s949 + $0x70] sm:$0xf]
      %v1995 = vld [vmem:[%s949 + $0x74] sm:$0x1]
      %v1996 = vld [vmem:[%s949 + $0x78] sm:$0xf]
      %v1997 = vld [vmem:[%s949 + $0x7c] sm:$0xf]
      %v1998 = vld [vmem:[%s949 + $0x80] sm:$0x1]
      %v1999 = vld [vmem:[%s949 + $0x84] sm:$0xf]
      %v2000 = vld [vmem:[%s949 + $0x88] sm:$0xf]
      %v2001 = vld [vmem:[%s949 + $0x8c] sm:$0x1]
      %v2002 = vld [vmem:[%s949 + $0x90] sm:$0xf]
      %v2003 = vld [vmem:[%s949 + $0x94] sm:$0xf]
      %v2004 = vld [vmem:[%s949 + $0x98] sm:$0x1]
      %v2005 = vld [vmem:[%s949 + $0x9c] sm:$0xf]
      %v2006 = vld [vmem:[%s949 + $0xa0] sm:$0xf]
      %v2007 = vld [vmem:[%s949 + $0xa4] sm:$0x1]
      %v2008 = vld [vmem:[%s949 + $0xa8] sm:$0xf]
      %v2009 = vld [vmem:[%s949 + $0xac] sm:$0xf]
      %v2010 = vld [vmem:[%s949 + $0xb0] sm:$0x1]
      %v2011 = vld [vmem:[%s949 + $0xb4] sm:$0xf]
      %v2012 = vld [vmem:[%s949 + $0xb8] sm:$0xf]
      %v2013 = vld [vmem:[%s949 + $0xbc] sm:$0x1]
      %v2015 = vshrl.u32 %v1966, 16
      %v2017 = vrot.slane %v2015, 4
      %v2018 = vshll.u32 %v1966, 16
      %v2020 = vrot.slane %v2018, 5
      %v2021 = vor.u32 %v2017, %v2020
      %v2022 = vrot.slane %v2021, 4
      %v2024 = vshll.u32 %v1967, 16
      %v2026 = vrot.slane %v2024, 5
      %v2027 = vsel %vm1178, %v2022, %v2026
      %v2028 = vshrl.u32 %v1967, 16
      %v2030 = vrot.slane %v2028, 4
      %v2031 = vor.u32 %v2030, %v2026
      %v2032 = vrot.slane %v2031, 4
      %v2034 = vshll.u32 %v1968, 16
      %v2036 = vrot.slane %v2034, 5
      %v2037 = vsel %vm1178, %v2032, %v2036
      %v2039 = vshrl.u32 %v1969, 16
      %v2041 = vrot.slane %v2039, 4
      %v2042 = vshll.u32 %v1969, 16
      %v2044 = vrot.slane %v2042, 5
      %v2045 = vor.u32 %v2041, %v2044
      %v2046 = vrot.slane %v2045, 4
      %v2048 = vshll.u32 %v1970, 16
      %v2050 = vrot.slane %v2048, 5
      %v2051 = vsel %vm1178, %v2046, %v2050
      %v2052 = vshrl.u32 %v1970, 16
      %v2054 = vrot.slane %v2052, 4
      %v2055 = vor.u32 %v2054, %v2050
      %v2056 = vrot.slane %v2055, 4
      %v2058 = vshll.u32 %v1971, 16
      %v2060 = vrot.slane %v2058, 5
      %v2061 = vsel %vm1178, %v2056, %v2060
      %v2063 = vshrl.u32 %v1972, 16
      %v2065 = vrot.slane %v2063, 4
      %v2066 = vshll.u32 %v1972, 16
      %v2068 = vrot.slane %v2066, 5
      %v2069 = vor.u32 %v2065, %v2068
      %v2070 = vrot.slane %v2069, 4
      %v2072 = vshll.u32 %v1973, 16
      %v2074 = vrot.slane %v2072, 5
      %v2075 = vsel %vm1178, %v2070, %v2074
      %v2076 = vshrl.u32 %v1973, 16
      %v2078 = vrot.slane %v2076, 4
      %v2079 = vor.u32 %v2078, %v2074
      %v2080 = vrot.slane %v2079, 4
      %v2082 = vshll.u32 %v1974, 16
      %v2084 = vrot.slane %v2082, 5
      %v2085 = vsel %vm1178, %v2080, %v2084
      %v2087 = vshrl.u32 %v1975, 16
      %v2089 = vrot.slane %v2087, 4
      %v2090 = vshll.u32 %v1975, 16
      %v2092 = vrot.slane %v2090, 5
      %v2093 = vor.u32 %v2089, %v2092
      %v2094 = vrot.slane %v2093, 4
      %v2096 = vshll.u32 %v1976, 16
      %v2098 = vrot.slane %v2096, 5
      %v2099 = vsel %vm1178, %v2094, %v2098
      %v2100 = vshrl.u32 %v1976, 16
      %v2102 = vrot.slane %v2100, 4
      %v2103 = vor.u32 %v2102, %v2098
      %v2104 = vrot.slane %v2103, 4
      %v2106 = vshll.u32 %v1977, 16
      %v2108 = vrot.slane %v2106, 5
      %v2109 = vsel %vm1178, %v2104, %v2108
      %v2111 = vshrl.u32 %v1978, 16
      %v2113 = vrot.slane %v2111, 4
      %v2114 = vshll.u32 %v1978, 16
      %v2116 = vrot.slane %v2114, 5
      %v2117 = vor.u32 %v2113, %v2116
      %v2118 = vrot.slane %v2117, 4
      %v2120 = vshll.u32 %v1979, 16
      %v2122 = vrot.slane %v2120, 5
      %v2123 = vsel %vm1178, %v2118, %v2122
      %v2124 = vshrl.u32 %v1979, 16
      %v2126 = vrot.slane %v2124, 4
      %v2127 = vor.u32 %v2126, %v2122
      %v2128 = vrot.slane %v2127, 4
      %v2130 = vshll.u32 %v1980, 16
      %v2132 = vrot.slane %v2130, 5
      %v2133 = vsel %vm1178, %v2128, %v2132
      %v2135 = vshrl.u32 %v1981, 16
      %v2137 = vrot.slane %v2135, 4
      %v2138 = vshll.u32 %v1981, 16
      %v2140 = vrot.slane %v2138, 5
      %v2141 = vor.u32 %v2137, %v2140
      %v2142 = vrot.slane %v2141, 4
      %v2144 = vshll.u32 %v1982, 16
      %v2146 = vrot.slane %v2144, 5
      %v2147 = vsel %vm1178, %v2142, %v2146
      %v2148 = vshrl.u32 %v1982, 16
      %v2150 = vrot.slane %v2148, 4
      %v2151 = vor.u32 %v2150, %v2146
      %v2152 = vrot.slane %v2151, 4
      %v2154 = vshll.u32 %v1983, 16
      %v2156 = vrot.slane %v2154, 5
      %v2157 = vsel %vm1178, %v2152, %v2156
      %v2159 = vshrl.u32 %v1984, 16
      %v2161 = vrot.slane %v2159, 4
      %v2162 = vshll.u32 %v1984, 16
      %v2164 = vrot.slane %v2162, 5
      %v2165 = vor.u32 %v2161, %v2164
      %v2166 = vrot.slane %v2165, 4
      %v2168 = vshll.u32 %v1985, 16
      %v2170 = vrot.slane %v2168, 5
      %v2171 = vsel %vm1178, %v2166, %v2170
      %v2172 = vshrl.u32 %v1985, 16
      %v2174 = vrot.slane %v2172, 4
      %v2175 = vor.u32 %v2174, %v2170
      %v2176 = vrot.slane %v2175, 4
      %v2178 = vshll.u32 %v1986, 16
      %v2180 = vrot.slane %v2178, 5
      %v2181 = vsel %vm1178, %v2176, %v2180
      %v2183 = vshrl.u32 %v1987, 16
      %v2185 = vrot.slane %v2183, 4
      %v2186 = vshll.u32 %v1987, 16
      %v2188 = vrot.slane %v2186, 5
      %v2189 = vor.u32 %v2185, %v2188
      %v2190 = vrot.slane %v2189, 4
      %v2192 = vshll.u32 %v1988, 16
      %v2194 = vrot.slane %v2192, 5
      %v2195 = vsel %vm1178, %v2190, %v2194
      %v2196 = vshrl.u32 %v1988, 16
      %v2198 = vrot.slane %v2196, 4
      %v2199 = vor.u32 %v2198, %v2194
      %v2200 = vrot.slane %v2199, 4
      %v2202 = vshll.u32 %v1989, 16
      %v2204 = vrot.slane %v2202, 5
      %v2205 = vsel %vm1178, %v2200, %v2204
      %v2207 = vshrl.u32 %v1990, 16
      %v2209 = vrot.slane %v2207, 4
      %v2210 = vshll.u32 %v1990, 16
      %v2212 = vrot.slane %v2210, 5
      %v2213 = vor.u32 %v2209, %v2212
      %v2214 = vrot.slane %v2213, 4
      %v2216 = vshll.u32 %v1991, 16
      %v2218 = vrot.slane %v2216, 5
      %v2219 = vsel %vm1178, %v2214, %v2218
      %v2220 = vshrl.u32 %v1991, 16
      %v2222 = vrot.slane %v2220, 4
      %v2223 = vor.u32 %v2222, %v2218
      %v2224 = vrot.slane %v2223, 4
      %v2226 = vshll.u32 %v1992, 16
      %v2228 = vrot.slane %v2226, 5
      %v2229 = vsel %vm1178, %v2224, %v2228
      %v2231 = vshrl.u32 %v1993, 16
      %v2233 = vrot.slane %v2231, 4
      %v2234 = vshll.u32 %v1993, 16
      %v2236 = vrot.slane %v2234, 5
      %v2237 = vor.u32 %v2233, %v2236
      %v2238 = vrot.slane %v2237, 4
      %v2240 = vshll.u32 %v1994, 16
      %v2242 = vrot.slane %v2240, 5
      %v2243 = vsel %vm1178, %v2238, %v2242
      %v2244 = vshrl.u32 %v1994, 16
      %v2246 = vrot.slane %v2244, 4
      %v2247 = vor.u32 %v2246, %v2242
      %v2248 = vrot.slane %v2247, 4
      %v2250 = vshll.u32 %v1995, 16
      %v2252 = vrot.slane %v2250, 5
      %v2253 = vsel %vm1178, %v2248, %v2252
      %v2255 = vshrl.u32 %v1996, 16
      %v2257 = vrot.slane %v2255, 4
      %v2258 = vshll.u32 %v1996, 16
      %v2260 = vrot.slane %v2258, 5
      %v2261 = vor.u32 %v2257, %v2260
      %v2262 = vrot.slane %v2261, 4
      %v2264 = vshll.u32 %v1997, 16
      %v2266 = vrot.slane %v2264, 5
      %v2267 = vsel %vm1178, %v2262, %v2266
      %v2268 = vshrl.u32 %v1997, 16
      %v2270 = vrot.slane %v2268, 4
      %v2271 = vor.u32 %v2270, %v2266
      %v2272 = vrot.slane %v2271, 4
      %v2274 = vshll.u32 %v1998, 16
      %v2276 = vrot.slane %v2274, 5
      %v2277 = vsel %vm1178, %v2272, %v2276
      %v2279 = vshrl.u32 %v1999, 16
      %v2281 = vrot.slane %v2279, 4
      %v2282 = vshll.u32 %v1999, 16
      %v2284 = vrot.slane %v2282, 5
      %v2285 = vor.u32 %v2281, %v2284
      %v2286 = vrot.slane %v2285, 4
      %v2288 = vshll.u32 %v2000, 16
      %v2290 = vrot.slane %v2288, 5
      %v2291 = vsel %vm1178, %v2286, %v2290
      %v2292 = vshrl.u32 %v2000, 16
      %v2294 = vrot.slane %v2292, 4
      %v2295 = vor.u32 %v2294, %v2290
      %v2296 = vrot.slane %v2295, 4
      %v2298 = vshll.u32 %v2001, 16
      %v2300 = vrot.slane %v2298, 5
      %v2301 = vsel %vm1178, %v2296, %v2300
      %v2303 = vshrl.u32 %v2002, 16
      %v2305 = vrot.slane %v2303, 4
      %v2306 = vshll.u32 %v2002, 16
      %v2308 = vrot.slane %v2306, 5
      %v2309 = vor.u32 %v2305, %v2308
      %v2310 = vrot.slane %v2309, 4
      %v2312 = vshll.u32 %v2003, 16
      %v2314 = vrot.slane %v2312, 5
      %v2315 = vsel %vm1178, %v2310, %v2314
      %v2316 = vshrl.u32 %v2003, 16
      %v2318 = vrot.slane %v2316, 4
      %v2319 = vor.u32 %v2318, %v2314
      %v2320 = vrot.slane %v2319, 4
      %v2322 = vshll.u32 %v2004, 16
      %v2324 = vrot.slane %v2322, 5
      %v2325 = vsel %vm1178, %v2320, %v2324
      %v2327 = vshrl.u32 %v2005, 16
      %v2329 = vrot.slane %v2327, 4
      %v2330 = vshll.u32 %v2005, 16
      %v2332 = vrot.slane %v2330, 5
      %v2333 = vor.u32 %v2329, %v2332
      %v2334 = vrot.slane %v2333, 4
      %v2336 = vshll.u32 %v2006, 16
      %v2338 = vrot.slane %v2336, 5
      %v2339 = vsel %vm1178, %v2334, %v2338
      %v2340 = vshrl.u32 %v2006, 16
      %v2342 = vrot.slane %v2340, 4
      %v2343 = vor.u32 %v2342, %v2338
      %v2344 = vrot.slane %v2343, 4
      %v2346 = vshll.u32 %v2007, 16
      %v2348 = vrot.slane %v2346, 5
      %v2349 = vsel %vm1178, %v2344, %v2348
      %v2351 = vshrl.u32 %v2008, 16
      %v2353 = vrot.slane %v2351, 4
      %v2354 = vshll.u32 %v2008, 16
      %v2356 = vrot.slane %v2354, 5
      %v2357 = vor.u32 %v2353, %v2356
      %v2358 = vrot.slane %v2357, 4
      %v2360 = vshll.u32 %v2009, 16
      %v2362 = vrot.slane %v2360, 5
      %v2363 = vsel %vm1178, %v2358, %v2362
      %v2364 = vshrl.u32 %v2009, 16
      %v2366 = vrot.slane %v2364, 4
      %v2367 = vor.u32 %v2366, %v2362
      %v2368 = vrot.slane %v2367, 4
      %v2370 = vshll.u32 %v2010, 16
      %v2372 = vrot.slane %v2370, 5
      %v2373 = vsel %vm1178, %v2368, %v2372
      %v2375 = vshrl.u32 %v2011, 16
      %v2377 = vrot.slane %v2375, 4
      %v2378 = vshll.u32 %v2011, 16
      %v2380 = vrot.slane %v2378, 5
      %v2381 = vor.u32 %v2377, %v2380
      %v2382 = vrot.slane %v2381, 4
      %v2384 = vshll.u32 %v2012, 16
      %v2386 = vrot.slane %v2384, 5
      %v2387 = vsel %vm1178, %v2382, %v2386
      %v2388 = vshrl.u32 %v2012, 16
      %v2390 = vrot.slane %v2388, 4
      %v2391 = vor.u32 %v2390, %v2386
      %v2392 = vrot.slane %v2391, 4
      %v2394 = vshll.u32 %v2013, 16
      %v2396 = vrot.slane %v2394, 5
      %v2397 = vsel %vm1178, %v2392, %v2396
      %2430 = vst [vmem:[#allocation3 + $0x10] sm:$0xf] %v2027
      %2431 = vst [vmem:[#allocation3 + $0x34] sm:$0xf] %v2037
      %2432 = vst [vmem:[#allocation3 + $0x58] sm:$0xf] %v2051
      %2433 = vst [vmem:[#allocation3 + $0x7c] sm:$0xf] %v2061
      %2434 = vst [vmem:[#allocation3 + $0xa0] sm:$0xf] %v2075
      %2435 = vst [vmem:[#allocation3 + $0xc4] sm:$0xf] %v2085
      %2436 = vst [vmem:[#allocation3 + $0xe8] sm:$0xf] %v2099
      %2437 = vst [vmem:[#allocation3 + $0x10c] sm:$0xf] %v2109
      %2438 = vst [vmem:[#allocation3 + $0x130] sm:$0xf] %v2123
      %2439 = vst [vmem:[#allocation3 + $0x154] sm:$0xf] %v2133
      %2440 = vst [vmem:[#allocation3 + $0x178] sm:$0xf] %v2147
      %2441 = vst [vmem:[#allocation3 + $0x19c] sm:$0xf] %v2157
      %2442 = vst [vmem:[#allocation3 + $0x1c0] sm:$0xf] %v2171
      %2443 = vst [vmem:[#allocation3 + $0x1e4] sm:$0xf] %v2181
      %2444 = vst [vmem:[#allocation3 + $0x208] sm:$0xf] %v2195
      %2445 = vst [vmem:[#allocation3 + $0x22c] sm:$0xf] %v2205
      %2446 = vst [vmem:[#allocation3 + $0x250] sm:$0xf] %v2219
      %2447 = vst [vmem:[#allocation3 + $0x274] sm:$0xf] %v2229
      %2448 = vst [vmem:[#allocation3 + $0x298] sm:$0xf] %v2243
      %2449 = vst [vmem:[#allocation3 + $0x2bc] sm:$0xf] %v2253
      %2450 = vst [vmem:[#allocation3 + $0x2e0] sm:$0xf] %v2267
      %2451 = vst [vmem:[#allocation3 + $0x304] sm:$0xf] %v2277
      %2452 = vst [vmem:[#allocation3 + $0x328] sm:$0xf] %v2291
      %2453 = vst [vmem:[#allocation3 + $0x34c] sm:$0xf] %v2301
      %2454 = vst [vmem:[#allocation3 + $0x370] sm:$0xf] %v2315
      %2455 = vst [vmem:[#allocation3 + $0x394] sm:$0xf] %v2325
      %2456 = vst [vmem:[#allocation3 + $0x3b8] sm:$0xf] %v2339
      %2457 = vst [vmem:[#allocation3 + $0x3dc] sm:$0xf] %v2349
      %2458 = vst [vmem:[#allocation3 + $0x400] sm:$0xf] %v2363
      %2459 = vst [vmem:[#allocation3 + $0x424] sm:$0xf] %v2373
      %2460 = vst [vmem:[#allocation3 + $0x448] sm:$0xf] %v2387
      %2461 = vst [vmem:[#allocation3 + $0x46c] sm:$0xf] %v2397
      %v2462 = vld [vmem:[%s949] sm:$0xe]
      %v2463 = vld [vmem:[%s949 + $0x4] sm:$0xf]
      %v2464 = vld [vmem:[%s949 + $0x8] sm:$0x1]
      %v2465 = vld [vmem:[%s949 + $0xc] sm:$0xe]
      %v2466 = vld [vmem:[%s949 + $0x10] sm:$0xf]
      %v2467 = vld [vmem:[%s949 + $0x14] sm:$0x1]
      %v2468 = vld [vmem:[%s949 + $0x18] sm:$0xe]
      %v2469 = vld [vmem:[%s949 + $0x1c] sm:$0xf]
      %v2470 = vld [vmem:[%s949 + $0x20] sm:$0x1]
      %v2471 = vld [vmem:[%s949 + $0x24] sm:$0xe]
      %v2472 = vld [vmem:[%s949 + $0x28] sm:$0xf]
      %v2473 = vld [vmem:[%s949 + $0x2c] sm:$0x1]
      %v2474 = vld [vmem:[%s949 + $0x30] sm:$0xe]
      %v2475 = vld [vmem:[%s949 + $0x34] sm:$0xf]
      %v2476 = vld [vmem:[%s949 + $0x38] sm:$0x1]
      %v2477 = vld [vmem:[%s949 + $0x3c] sm:$0xe]
      %v2478 = vld [vmem:[%s949 + $0x40] sm:$0xf]
      %v2479 = vld [vmem:[%s949 + $0x44] sm:$0x1]
      %v2480 = vld [vmem:[%s949 + $0x48] sm:$0xe]
      %v2481 = vld [vmem:[%s949 + $0x4c] sm:$0xf]
      %v2482 = vld [vmem:[%s949 + $0x50] sm:$0x1]
      %v2483 = vld [vmem:[%s949 + $0x54] sm:$0xe]
      %v2484 = vld [vmem:[%s949 + $0x58] sm:$0xf]
      %v2485 = vld [vmem:[%s949 + $0x5c] sm:$0x1]
      %v2486 = vld [vmem:[%s949 + $0x60] sm:$0xe]
      %v2487 = vld [vmem:[%s949 + $0x64] sm:$0xf]
      %v2488 = vld [vmem:[%s949 + $0x68] sm:$0x1]
      %v2489 = vld [vmem:[%s949 + $0x6c] sm:$0xe]
      %v2490 = vld [vmem:[%s949 + $0x70] sm:$0xf]
      %v2491 = vld [vmem:[%s949 + $0x74] sm:$0x1]
      %v2492 = vld [vmem:[%s949 + $0x78] sm:$0xe]
      %v2493 = vld [vmem:[%s949 + $0x7c] sm:$0xf]
      %v2494 = vld [vmem:[%s949 + $0x80] sm:$0x1]
      %v2495 = vld [vmem:[%s949 + $0x84] sm:$0xe]
      %v2496 = vld [vmem:[%s949 + $0x88] sm:$0xf]
      %v2497 = vld [vmem:[%s949 + $0x8c] sm:$0x1]
      %v2498 = vld [vmem:[%s949 + $0x90] sm:$0xe]
      %v2499 = vld [vmem:[%s949 + $0x94] sm:$0xf]
      %v2500 = vld [vmem:[%s949 + $0x98] sm:$0x1]
      %v2501 = vld [vmem:[%s949 + $0x9c] sm:$0xe]
      %v2502 = vld [vmem:[%s949 + $0xa0] sm:$0xf]
      %v2503 = vld [vmem:[%s949 + $0xa4] sm:$0x1]
      %v2504 = vld [vmem:[%s949 + $0xa8] sm:$0xe]
      %v2505 = vld [vmem:[%s949 + $0xac] sm:$0xf]
      %v2506 = vld [vmem:[%s949 + $0xb0] sm:$0x1]
      %v2507 = vld [vmem:[%s949 + $0xb4] sm:$0xe]
      %v2508 = vld [vmem:[%s949 + $0xb8] sm:$0xf]
      %v2509 = vld [vmem:[%s949 + $0xbc] sm:$0x1]
      %v2558 = vrot.slane %v2462, 5
      %v2559 = vrot.slane %v2558, 4
      %v2560 = vrot.slane %v2463, 5
      %v2561 = vsel %vm1725, %v2559, %v2560
      %v2562 = vrot.slane %v2560, 4
      %v2563 = vrot.slane %v2464, 5
      %v2564 = vsel %vm1725, %v2562, %v2563
      %v2565 = vrot.slane %v2465, 5
      %v2566 = vrot.slane %v2565, 4
      %v2567 = vrot.slane %v2466, 5
      %v2568 = vsel %vm1725, %v2566, %v2567
      %v2569 = vrot.slane %v2567, 4
      %v2570 = vrot.slane %v2467, 5
      %v2571 = vsel %vm1725, %v2569, %v2570
      %v2572 = vrot.slane %v2468, 5
      %v2573 = vrot.slane %v2572, 4
      %v2574 = vrot.slane %v2469, 5
      %v2575 = vsel %vm1725, %v2573, %v2574
      %v2576 = vrot.slane %v2574, 4
      %v2577 = vrot.slane %v2470, 5
      %v2578 = vsel %vm1725, %v2576, %v2577
      %v2579 = vrot.slane %v2471, 5
      %v2580 = vrot.slane %v2579, 4
      %v2581 = vrot.slane %v2472, 5
      %v2582 = vsel %vm1725, %v2580, %v2581
      %v2583 = vrot.slane %v2581, 4
      %v2584 = vrot.slane %v2473, 5
      %v2585 = vsel %vm1725, %v2583, %v2584
      %v2586 = vrot.slane %v2474, 5
      %v2587 = vrot.slane %v2586, 4
      %v2588 = vrot.slane %v2475, 5
      %v2589 = vsel %vm1725, %v2587, %v2588
      %v2590 = vrot.slane %v2588, 4
      %v2591 = vrot.slane %v2476, 5
      %v2592 = vsel %vm1725, %v2590, %v2591
      %v2593 = vrot.slane %v2477, 5
      %v2594 = vrot.slane %v2593, 4
      %v2595 = vrot.slane %v2478, 5
      %v2596 = vsel %vm1725, %v2594, %v2595
      %v2597 = vrot.slane %v2595, 4
      %v2598 = vrot.slane %v2479, 5
      %v2599 = vsel %vm1725, %v2597, %v2598
      %v2600 = vrot.slane %v2480, 5
      %v2601 = vrot.slane %v2600, 4
      %v2602 = vrot.slane %v2481, 5
      %v2603 = vsel %vm1725, %v2601, %v2602
      %v2604 = vrot.slane %v2602, 4
      %v2605 = vrot.slane %v2482, 5
      %v2606 = vsel %vm1725, %v2604, %v2605
      %v2607 = vrot.slane %v2483, 5
      %v2608 = vrot.slane %v2607, 4
      %v2609 = vrot.slane %v2484, 5
      %v2610 = vsel %vm1725, %v2608, %v2609
      %v2611 = vrot.slane %v2609, 4
      %v2612 = vrot.slane %v2485, 5
      %v2613 = vsel %vm1725, %v2611, %v2612
      %v2614 = vrot.slane %v2486, 5
      %v2615 = vrot.slane %v2614, 4
      %v2616 = vrot.slane %v2487, 5
      %v2617 = vsel %vm1725, %v2615, %v2616
      %v2618 = vrot.slane %v2616, 4
      %v2619 = vrot.slane %v2488, 5
      %v2620 = vsel %vm1725, %v2618, %v2619
      %v2621 = vrot.slane %v2489, 5
      %v2622 = vrot.slane %v2621, 4
      %v2623 = vrot.slane %v2490, 5
      %v2624 = vsel %vm1725, %v2622, %v2623
      %v2625 = vrot.slane %v2623, 4
      %v2626 = vrot.slane %v2491, 5
      %v2627 = vsel %vm1725, %v2625, %v2626
      %v2628 = vrot.slane %v2492, 5
      %v2629 = vrot.slane %v2628, 4
      %v2630 = vrot.slane %v2493, 5
      %v2631 = vsel %vm1725, %v2629, %v2630
      %v2632 = vrot.slane %v2630, 4
      %v2633 = vrot.slane %v2494, 5
      %v2634 = vsel %vm1725, %v2632, %v2633
      %v2635 = vrot.slane %v2495, 5
      %v2636 = vrot.slane %v2635, 4
      %v2637 = vrot.slane %v2496, 5
      %v2638 = vsel %vm1725, %v2636, %v2637
      %v2639 = vrot.slane %v2637, 4
      %v2640 = vrot.slane %v2497, 5
      %v2641 = vsel %vm1725, %v2639, %v2640
      %v2642 = vrot.slane %v2498, 5
      %v2643 = vrot.slane %v2642, 4
      %v2644 = vrot.slane %v2499, 5
      %v2645 = vsel %vm1725, %v2643, %v2644
      %v2646 = vrot.slane %v2644, 4
      %v2647 = vrot.slane %v2500, 5
      %v2648 = vsel %vm1725, %v2646, %v2647
      %v2649 = vrot.slane %v2501, 5
      %v2650 = vrot.slane %v2649, 4
      %v2651 = vrot.slane %v2502, 5
      %v2652 = vsel %vm1725, %v2650, %v2651
      %v2653 = vrot.slane %v2651, 4
      %v2654 = vrot.slane %v2503, 5
      %v2655 = vsel %vm1725, %v2653, %v2654
      %v2656 = vrot.slane %v2504, 5
      %v2657 = vrot.slane %v2656, 4
      %v2658 = vrot.slane %v2505, 5
      %v2659 = vsel %vm1725, %v2657, %v2658
      %v2660 = vrot.slane %v2658, 4
      %v2661 = vrot.slane %v2506, 5
      %v2662 = vsel %vm1725, %v2660, %v2661
      %v2663 = vrot.slane %v2507, 5
      %v2664 = vrot.slane %v2663, 4
      %v2665 = vrot.slane %v2508, 5
      %v2666 = vsel %vm1725, %v2664, %v2665
      %v2667 = vrot.slane %v2665, 4
      %v2668 = vrot.slane %v2509, 5
      %v2669 = vsel %vm1725, %v2667, %v2668
      %2702 = vst [vmem:[#allocation3 + $0x14] sm:$0xf] %v2561
      %2703 = vst [vmem:[#allocation3 + $0x38] sm:$0xf] %v2564
      %2704 = vst [vmem:[#allocation3 + $0x5c] sm:$0xf] %v2568
      %2705 = vst [vmem:[#allocation3 + $0x80] sm:$0xf] %v2571
      %2706 = vst [vmem:[#allocation3 + $0xa4] sm:$0xf] %v2575
      %2707 = vst [vmem:[#allocation3 + $0xc8] sm:$0xf] %v2578
      %2708 = vst [vmem:[#allocation3 + $0xec] sm:$0xf] %v2582
      %2709 = vst [vmem:[#allocation3 + $0x110] sm:$0xf] %v2585
      %2710 = vst [vmem:[#allocation3 + $0x134] sm:$0xf] %v2589
      %2711 = vst [vmem:[#allocation3 + $0x158] sm:$0xf] %v2592
      %2712 = vst [vmem:[#allocation3 + $0x17c] sm:$0xf] %v2596
      %2713 = vst [vmem:[#allocation3 + $0x1a0] sm:$0xf] %v2599
      %2714 = vst [vmem:[#allocation3 + $0x1c4] sm:$0xf] %v2603
      %2715 = vst [vmem:[#allocation3 + $0x1e8] sm:$0xf] %v2606
      %2716 = vst [vmem:[#allocation3 + $0x20c] sm:$0xf] %v2610
      %2717 = vst [vmem:[#allocation3 + $0x230] sm:$0xf] %v2613
      %2718 = vst [vmem:[#allocation3 + $0x254] sm:$0xf] %v2617
      %2719 = vst [vmem:[#allocation3 + $0x278] sm:$0xf] %v2620
      %2720 = vst [vmem:[#allocation3 + $0x29c] sm:$0xf] %v2624
      %2721 = vst [vmem:[#allocation3 + $0x2c0] sm:$0xf] %v2627
      %2722 = vst [vmem:[#allocation3 + $0x2e4] sm:$0xf] %v2631
      %2723 = vst [vmem:[#allocation3 + $0x308] sm:$0xf] %v2634
      %2724 = vst [vmem:[#allocation3 + $0x32c] sm:$0xf] %v2638
      %2725 = vst [vmem:[#allocation3 + $0x350] sm:$0xf] %v2641
      %2726 = vst [vmem:[#allocation3 + $0x374] sm:$0xf] %v2645
      %2727 = vst [vmem:[#allocation3 + $0x398] sm:$0xf] %v2648
      %2728 = vst [vmem:[#allocation3 + $0x3bc] sm:$0xf] %v2652
      %2729 = vst [vmem:[#allocation3 + $0x3e0] sm:$0xf] %v2655
      %2730 = vst [vmem:[#allocation3 + $0x404] sm:$0xf] %v2659
      %2731 = vst [vmem:[#allocation3 + $0x428] sm:$0xf] %v2662
      %2732 = vst [vmem:[#allocation3 + $0x44c] sm:$0xf] %v2666
      %2733 = vst [vmem:[#allocation3 + $0x470] sm:$0xf] %v2669
      %s2734 = scalar_lea.vmem [#allocation2], 24
      %v2735 = vld [vmem:[%s2734] sm:$0xf]
      %v2736 = vld [vmem:[%s2734 + $0x4] sm:$0xf]
      %v2737 = vld [vmem:[%s2734 + $0xc] sm:$0xf]
      %v2738 = vld [vmem:[%s2734 + $0x10] sm:$0xf]
      %v2739 = vld [vmem:[%s2734 + $0x18] sm:$0xf]
      %v2740 = vld [vmem:[%s2734 + $0x1c] sm:$0xf]
      %v2741 = vld [vmem:[%s2734 + $0x24] sm:$0xf]
      %v2742 = vld [vmem:[%s2734 + $0x28] sm:$0xf]
      %v2743 = vld [vmem:[%s2734 + $0x30] sm:$0xf]
      %v2744 = vld [vmem:[%s2734 + $0x34] sm:$0xf]
      %v2745 = vld [vmem:[%s2734 + $0x3c] sm:$0xf]
      %v2746 = vld [vmem:[%s2734 + $0x40] sm:$0xf]
      %v2747 = vld [vmem:[%s2734 + $0x48] sm:$0xf]
      %v2748 = vld [vmem:[%s2734 + $0x4c] sm:$0xf]
      %v2749 = vld [vmem:[%s2734 + $0x54] sm:$0xf]
      %v2750 = vld [vmem:[%s2734 + $0x58] sm:$0xf]
      %v2751 = vld [vmem:[%s2734 + $0x60] sm:$0xf]
      %v2752 = vld [vmem:[%s2734 + $0x64] sm:$0xf]
      %v2753 = vld [vmem:[%s2734 + $0x6c] sm:$0xf]
      %v2754 = vld [vmem:[%s2734 + $0x70] sm:$0xf]
      %v2755 = vld [vmem:[%s2734 + $0x78] sm:$0xf]
      %v2756 = vld [vmem:[%s2734 + $0x7c] sm:$0xf]
      %v2757 = vld [vmem:[%s2734 + $0x84] sm:$0xf]
      %v2758 = vld [vmem:[%s2734 + $0x88] sm:$0xf]
      %v2759 = vld [vmem:[%s2734 + $0x90] sm:$0xf]
      %v2760 = vld [vmem:[%s2734 + $0x94] sm:$0xf]
      %v2761 = vld [vmem:[%s2734 + $0x9c] sm:$0xf]
      %v2762 = vld [vmem:[%s2734 + $0xa0] sm:$0xf]
      %v2763 = vld [vmem:[%s2734 + $0xa8] sm:$0xf]
      %v2764 = vld [vmem:[%s2734 + $0xac] sm:$0xf]
      %v2765 = vld [vmem:[%s2734 + $0xb4] sm:$0xf]
      %v2766 = vld [vmem:[%s2734 + $0xb8] sm:$0xf]
      %2767 = vst [vmem:[#allocation3 + $0x18] sm:$0xf] %v2735
      %2768 = vst [vmem:[#allocation3 + $0x3c] sm:$0xf] %v2736
      %2769 = vst [vmem:[#allocation3 + $0x60] sm:$0xf] %v2737
      %2770 = vst [vmem:[#allocation3 + $0x84] sm:$0xf] %v2738
      %2771 = vst [vmem:[#allocation3 + $0xa8] sm:$0xf] %v2739
      %2772 = vst [vmem:[#allocation3 + $0xcc] sm:$0xf] %v2740
      %2773 = vst [vmem:[#allocation3 + $0xf0] sm:$0xf] %v2741
      %2774 = vst [vmem:[#allocation3 + $0x114] sm:$0xf] %v2742
      %2775 = vst [vmem:[#allocation3 + $0x138] sm:$0xf] %v2743
      %2776 = vst [vmem:[#allocation3 + $0x15c] sm:$0xf] %v2744
      %2777 = vst [vmem:[#allocation3 + $0x180] sm:$0xf] %v2745
      %2778 = vst [vmem:[#allocation3 + $0x1a4] sm:$0xf] %v2746
      %2779 = vst [vmem:[#allocation3 + $0x1c8] sm:$0xf] %v2747
      %2780 = vst [vmem:[#allocation3 + $0x1ec] sm:$0xf] %v2748
      %2781 = vst [vmem:[#allocation3 + $0x210] sm:$0xf] %v2749
      %2782 = vst [vmem:[#allocation3 + $0x234] sm:$0xf] %v2750
      %2783 = vst [vmem:[#allocation3 + $0x258] sm:$0xf] %v2751
      %2784 = vst [vmem:[#allocation3 + $0x27c] sm:$0xf] %v2752
      %2785 = vst [vmem:[#allocation3 + $0x2a0] sm:$0xf] %v2753
      %2786 = vst [vmem:[#allocation3 + $0x2c4] sm:$0xf] %v2754
      %2787 = vst [vmem:[#allocation3 + $0x2e8] sm:$0xf] %v2755
      %2788 = vst [vmem:[#allocation3 + $0x30c] sm:$0xf] %v2756
      %2789 = vst [vmem:[#allocation3 + $0x330] sm:$0xf] %v2757
      %2790 = vst [vmem:[#allocation3 + $0x354] sm:$0xf] %v2758
      %2791 = vst [vmem:[#allocation3 + $0x378] sm:$0xf] %v2759
      %2792 = vst [vmem:[#allocation3 + $0x39c] sm:$0xf] %v2760
      %2793 = vst [vmem:[#allocation3 + $0x3c0] sm:$0xf] %v2761
      %2794 = vst [vmem:[#allocation3 + $0x3e4] sm:$0xf] %v2762
      %2795 = vst [vmem:[#allocation3 + $0x408] sm:$0xf] %v2763
      %2796 = vst [vmem:[#allocation3 + $0x42c] sm:$0xf] %v2764
      %2797 = vst [vmem:[#allocation3 + $0x450] sm:$0xf] %v2765
      %2798 = vst [vmem:[#allocation3 + $0x474] sm:$0xf] %v2766
      %v2799 = vld [vmem:[%s2734] sm:$0xf]
      %v2800 = vld [vmem:[%s2734 + $0x4] sm:$0xf]
      %v2801 = vld [vmem:[%s2734 + $0x8] sm:$0x1]
      %v2802 = vld [vmem:[%s2734 + $0xc] sm:$0xf]
      %v2803 = vld [vmem:[%s2734 + $0x10] sm:$0xf]
      %v2804 = vld [vmem:[%s2734 + $0x14] sm:$0x1]
      %v2805 = vld [vmem:[%s2734 + $0x18] sm:$0xf]
      %v2806 = vld [vmem:[%s2734 + $0x1c] sm:$0xf]
      %v2807 = vld [vmem:[%s2734 + $0x20] sm:$0x1]
      %v2808 = vld [vmem:[%s2734 + $0x24] sm:$0xf]
      %v2809 = vld [vmem:[%s2734 + $0x28] sm:$0xf]
      %v2810 = vld [vmem:[%s2734 + $0x2c] sm:$0x1]
      %v2811 = vld [vmem:[%s2734 + $0x30] sm:$0xf]
      %v2812 = vld [vmem:[%s2734 + $0x34] sm:$0xf]
      %v2813 = vld [vmem:[%s2734 + $0x38] sm:$0x1]
      %v2814 = vld [vmem:[%s2734 + $0x3c] sm:$0xf]
      %v2815 = vld [vmem:[%s2734 + $0x40] sm:$0xf]
      %v2816 = vld [vmem:[%s2734 + $0x44] sm:$0x1]
      %v2817 = vld [vmem:[%s2734 + $0x48] sm:$0xf]
      %v2818 = vld [vmem:[%s2734 + $0x4c] sm:$0xf]
      %v2819 = vld [vmem:[%s2734 + $0x50] sm:$0x1]
      %v2820 = vld [vmem:[%s2734 + $0x54] sm:$0xf]
      %v2821 = vld [vmem:[%s2734 + $0x58] sm:$0xf]
      %v2822 = vld [vmem:[%s2734 + $0x5c] sm:$0x1]
      %v2823 = vld [vmem:[%s2734 + $0x60] sm:$0xf]
      %v2824 = vld [vmem:[%s2734 + $0x64] sm:$0xf]
      %v2825 = vld [vmem:[%s2734 + $0x68] sm:$0x1]
      %v2826 = vld [vmem:[%s2734 + $0x6c] sm:$0xf]
      %v2827 = vld [vmem:[%s2734 + $0x70] sm:$0xf]
      %v2828 = vld [vmem:[%s2734 + $0x74] sm:$0x1]
      %v2829 = vld [vmem:[%s2734 + $0x78] sm:$0xf]
      %v2830 = vld [vmem:[%s2734 + $0x7c] sm:$0xf]
      %v2831 = vld [vmem:[%s2734 + $0x80] sm:$0x1]
      %v2832 = vld [vmem:[%s2734 + $0x84] sm:$0xf]
      %v2833 = vld [vmem:[%s2734 + $0x88] sm:$0xf]
      %v2834 = vld [vmem:[%s2734 + $0x8c] sm:$0x1]
      %v2835 = vld [vmem:[%s2734 + $0x90] sm:$0xf]
      %v2836 = vld [vmem:[%s2734 + $0x94] sm:$0xf]
      %v2837 = vld [vmem:[%s2734 + $0x98] sm:$0x1]
      %v2838 = vld [vmem:[%s2734 + $0x9c] sm:$0xf]
      %v2839 = vld [vmem:[%s2734 + $0xa0] sm:$0xf]
      %v2840 = vld [vmem:[%s2734 + $0xa4] sm:$0x1]
      %v2841 = vld [vmem:[%s2734 + $0xa8] sm:$0xf]
      %v2842 = vld [vmem:[%s2734 + $0xac] sm:$0xf]
      %v2843 = vld [vmem:[%s2734 + $0xb0] sm:$0x1]
      %v2844 = vld [vmem:[%s2734 + $0xb4] sm:$0xf]
      %v2845 = vld [vmem:[%s2734 + $0xb8] sm:$0xf]
      %v2846 = vld [vmem:[%s2734 + $0xbc] sm:$0x1]
      %v2848 = vshrl.u32 %v2799, 16
      %v2850 = vrot.slane %v2848, 4
      %v2851 = vshll.u32 %v2799, 16
      %v2853 = vrot.slane %v2851, 5
      %v2854 = vor.u32 %v2850, %v2853
      %v2855 = vrot.slane %v2854, 4
      %v2857 = vshll.u32 %v2800, 16
      %v2859 = vrot.slane %v2857, 5
      %v2860 = vsel %vm1178, %v2855, %v2859
      %v2861 = vshrl.u32 %v2800, 16
      %v2863 = vrot.slane %v2861, 4
      %v2864 = vor.u32 %v2863, %v2859
      %v2865 = vrot.slane %v2864, 4
      %v2867 = vshll.u32 %v2801, 16
      %v2869 = vrot.slane %v2867, 5
      %v2870 = vsel %vm1178, %v2865, %v2869
      %v2872 = vshrl.u32 %v2802, 16
      %v2874 = vrot.slane %v2872, 4
      %v2875 = vshll.u32 %v2802, 16
      %v2877 = vrot.slane %v2875, 5
      %v2878 = vor.u32 %v2874, %v2877
      %v2879 = vrot.slane %v2878, 4
      %v2881 = vshll.u32 %v2803, 16
      %v2883 = vrot.slane %v2881, 5
      %v2884 = vsel %vm1178, %v2879, %v2883
      %v2885 = vshrl.u32 %v2803, 16
      %v2887 = vrot.slane %v2885, 4
      %v2888 = vor.u32 %v2887, %v2883
      %v2889 = vrot.slane %v2888, 4
      %v2891 = vshll.u32 %v2804, 16
      %v2893 = vrot.slane %v2891, 5
      %v2894 = vsel %vm1178, %v2889, %v2893
      %v2896 = vshrl.u32 %v2805, 16
      %v2898 = vrot.slane %v2896, 4
      %v2899 = vshll.u32 %v2805, 16
      %v2901 = vrot.slane %v2899, 5
      %v2902 = vor.u32 %v2898, %v2901
      %v2903 = vrot.slane %v2902, 4
      %v2905 = vshll.u32 %v2806, 16
      %v2907 = vrot.slane %v2905, 5
      %v2908 = vsel %vm1178, %v2903, %v2907
      %v2909 = vshrl.u32 %v2806, 16
      %v2911 = vrot.slane %v2909, 4
      %v2912 = vor.u32 %v2911, %v2907
      %v2913 = vrot.slane %v2912, 4
      %v2915 = vshll.u32 %v2807, 16
      %v2917 = vrot.slane %v2915, 5
      %v2918 = vsel %vm1178, %v2913, %v2917
      %v2920 = vshrl.u32 %v2808, 16
      %v2922 = vrot.slane %v2920, 4
      %v2923 = vshll.u32 %v2808, 16
      %v2925 = vrot.slane %v2923, 5
      %v2926 = vor.u32 %v2922, %v2925
      %v2927 = vrot.slane %v2926, 4
      %v2929 = vshll.u32 %v2809, 16
      %v2931 = vrot.slane %v2929, 5
      %v2932 = vsel %vm1178, %v2927, %v2931
      %v2933 = vshrl.u32 %v2809, 16
      %v2935 = vrot.slane %v2933, 4
      %v2936 = vor.u32 %v2935, %v2931
      %v2937 = vrot.slane %v2936, 4
      %v2939 = vshll.u32 %v2810, 16
      %v2941 = vrot.slane %v2939, 5
      %v2942 = vsel %vm1178, %v2937, %v2941
      %v2944 = vshrl.u32 %v2811, 16
      %v2946 = vrot.slane %v2944, 4
      %v2947 = vshll.u32 %v2811, 16
      %v2949 = vrot.slane %v2947, 5
      %v2950 = vor.u32 %v2946, %v2949
      %v2951 = vrot.slane %v2950, 4
      %v2953 = vshll.u32 %v2812, 16
      %v2955 = vrot.slane %v2953, 5
      %v2956 = vsel %vm1178, %v2951, %v2955
      %v2957 = vshrl.u32 %v2812, 16
      %v2959 = vrot.slane %v2957, 4
      %v2960 = vor.u32 %v2959, %v2955
      %v2961 = vrot.slane %v2960, 4
      %v2963 = vshll.u32 %v2813, 16
      %v2965 = vrot.slane %v2963, 5
      %v2966 = vsel %vm1178, %v2961, %v2965
      %v2968 = vshrl.u32 %v2814, 16
      %v2970 = vrot.slane %v2968, 4
      %v2971 = vshll.u32 %v2814, 16
      %v2973 = vrot.slane %v2971, 5
      %v2974 = vor.u32 %v2970, %v2973
      %v2975 = vrot.slane %v2974, 4
      %v2977 = vshll.u32 %v2815, 16
      %v2979 = vrot.slane %v2977, 5
      %v2980 = vsel %vm1178, %v2975, %v2979
      %v2981 = vshrl.u32 %v2815, 16
      %v2983 = vrot.slane %v2981, 4
      %v2984 = vor.u32 %v2983, %v2979
      %v2985 = vrot.slane %v2984, 4
      %v2987 = vshll.u32 %v2816, 16
      %v2989 = vrot.slane %v2987, 5
      %v2990 = vsel %vm1178, %v2985, %v2989
      %v2992 = vshrl.u32 %v2817, 16
      %v2994 = vrot.slane %v2992, 4
      %v2995 = vshll.u32 %v2817, 16
      %v2997 = vrot.slane %v2995, 5
      %v2998 = vor.u32 %v2994, %v2997
      %v2999 = vrot.slane %v2998, 4
      %v3001 = vshll.u32 %v2818, 16
      %v3003 = vrot.slane %v3001, 5
      %v3004 = vsel %vm1178, %v2999, %v3003
      %v3005 = vshrl.u32 %v2818, 16
      %v3007 = vrot.slane %v3005, 4
      %v3008 = vor.u32 %v3007, %v3003
      %v3009 = vrot.slane %v3008, 4
      %v3011 = vshll.u32 %v2819, 16
      %v3013 = vrot.slane %v3011, 5
      %v3014 = vsel %vm1178, %v3009, %v3013
      %v3016 = vshrl.u32 %v2820, 16
      %v3018 = vrot.slane %v3016, 4
      %v3019 = vshll.u32 %v2820, 16
      %v3021 = vrot.slane %v3019, 5
      %v3022 = vor.u32 %v3018, %v3021
      %v3023 = vrot.slane %v3022, 4
      %v3025 = vshll.u32 %v2821, 16
      %v3027 = vrot.slane %v3025, 5
      %v3028 = vsel %vm1178, %v3023, %v3027
      %v3029 = vshrl.u32 %v2821, 16
      %v3031 = vrot.slane %v3029, 4
      %v3032 = vor.u32 %v3031, %v3027
      %v3033 = vrot.slane %v3032, 4
      %v3035 = vshll.u32 %v2822, 16
      %v3037 = vrot.slane %v3035, 5
      %v3038 = vsel %vm1178, %v3033, %v3037
      %v3040 = vshrl.u32 %v2823, 16
      %v3042 = vrot.slane %v3040, 4
      %v3043 = vshll.u32 %v2823, 16
      %v3045 = vrot.slane %v3043, 5
      %v3046 = vor.u32 %v3042, %v3045
      %v3047 = vrot.slane %v3046, 4
      %v3049 = vshll.u32 %v2824, 16
      %v3051 = vrot.slane %v3049, 5
      %v3052 = vsel %vm1178, %v3047, %v3051
      %v3053 = vshrl.u32 %v2824, 16
      %v3055 = vrot.slane %v3053, 4
      %v3056 = vor.u32 %v3055, %v3051
      %v3057 = vrot.slane %v3056, 4
      %v3059 = vshll.u32 %v2825, 16
      %v3061 = vrot.slane %v3059, 5
      %v3062 = vsel %vm1178, %v3057, %v3061
      %v3064 = vshrl.u32 %v2826, 16
      %v3066 = vrot.slane %v3064, 4
      %v3067 = vshll.u32 %v2826, 16
      %v3069 = vrot.slane %v3067, 5
      %v3070 = vor.u32 %v3066, %v3069
      %v3071 = vrot.slane %v3070, 4
      %v3073 = vshll.u32 %v2827, 16
      %v3075 = vrot.slane %v3073, 5
      %v3076 = vsel %vm1178, %v3071, %v3075
      %v3077 = vshrl.u32 %v2827, 16
      %v3079 = vrot.slane %v3077, 4
      %v3080 = vor.u32 %v3079, %v3075
      %v3081 = vrot.slane %v3080, 4
      %v3083 = vshll.u32 %v2828, 16
      %v3085 = vrot.slane %v3083, 5
      %v3086 = vsel %vm1178, %v3081, %v3085
      %v3088 = vshrl.u32 %v2829, 16
      %v3090 = vrot.slane %v3088, 4
      %v3091 = vshll.u32 %v2829, 16
      %v3093 = vrot.slane %v3091, 5
      %v3094 = vor.u32 %v3090, %v3093
      %v3095 = vrot.slane %v3094, 4
      %v3097 = vshll.u32 %v2830, 16
      %v3099 = vrot.slane %v3097, 5
      %v3100 = vsel %vm1178, %v3095, %v3099
      %v3101 = vshrl.u32 %v2830, 16
      %v3103 = vrot.slane %v3101, 4
      %v3104 = vor.u32 %v3103, %v3099
      %v3105 = vrot.slane %v3104, 4
      %v3107 = vshll.u32 %v2831, 16
      %v3109 = vrot.slane %v3107, 5
      %v3110 = vsel %vm1178, %v3105, %v3109
      %v3112 = vshrl.u32 %v2832, 16
      %v3114 = vrot.slane %v3112, 4
      %v3115 = vshll.u32 %v2832, 16
      %v3117 = vrot.slane %v3115, 5
      %v3118 = vor.u32 %v3114, %v3117
      %v3119 = vrot.slane %v3118, 4
      %v3121 = vshll.u32 %v2833, 16
      %v3123 = vrot.slane %v3121, 5
      %v3124 = vsel %vm1178, %v3119, %v3123
      %v3125 = vshrl.u32 %v2833, 16
      %v3127 = vrot.slane %v3125, 4
      %v3128 = vor.u32 %v3127, %v3123
      %v3129 = vrot.slane %v3128, 4
      %v3131 = vshll.u32 %v2834, 16
      %v3133 = vrot.slane %v3131, 5
      %v3134 = vsel %vm1178, %v3129, %v3133
      %v3136 = vshrl.u32 %v2835, 16
      %v3138 = vrot.slane %v3136, 4
      %v3139 = vshll.u32 %v2835, 16
      %v3141 = vrot.slane %v3139, 5
      %v3142 = vor.u32 %v3138, %v3141
      %v3143 = vrot.slane %v3142, 4
      %v3145 = vshll.u32 %v2836, 16
      %v3147 = vrot.slane %v3145, 5
      %v3148 = vsel %vm1178, %v3143, %v3147
      %v3149 = vshrl.u32 %v2836, 16
      %v3151 = vrot.slane %v3149, 4
      %v3152 = vor.u32 %v3151, %v3147
      %v3153 = vrot.slane %v3152, 4
      %v3155 = vshll.u32 %v2837, 16
      %v3157 = vrot.slane %v3155, 5
      %v3158 = vsel %vm1178, %v3153, %v3157
      %v3160 = vshrl.u32 %v2838, 16
      %v3162 = vrot.slane %v3160, 4
      %v3163 = vshll.u32 %v2838, 16
      %v3165 = vrot.slane %v3163, 5
      %v3166 = vor.u32 %v3162, %v3165
      %v3167 = vrot.slane %v3166, 4
      %v3169 = vshll.u32 %v2839, 16
      %v3171 = vrot.slane %v3169, 5
      %v3172 = vsel %vm1178, %v3167, %v3171
      %v3173 = vshrl.u32 %v2839, 16
      %v3175 = vrot.slane %v3173, 4
      %v3176 = vor.u32 %v3175, %v3171
      %v3177 = vrot.slane %v3176, 4
      %v3179 = vshll.u32 %v2840, 16
      %v3181 = vrot.slane %v3179, 5
      %v3182 = vsel %vm1178, %v3177, %v3181
      %v3184 = vshrl.u32 %v2841, 16
      %v3186 = vrot.slane %v3184, 4
      %v3187 = vshll.u32 %v2841, 16
      %v3189 = vrot.slane %v3187, 5
      %v3190 = vor.u32 %v3186, %v3189
      %v3191 = vrot.slane %v3190, 4
      %v3193 = vshll.u32 %v2842, 16
      %v3195 = vrot.slane %v3193, 5
      %v3196 = vsel %vm1178, %v3191, %v3195
      %v3197 = vshrl.u32 %v2842, 16
      %v3199 = vrot.slane %v3197, 4
      %v3200 = vor.u32 %v3199, %v3195
      %v3201 = vrot.slane %v3200, 4
      %v3203 = vshll.u32 %v2843, 16
      %v3205 = vrot.slane %v3203, 5
      %v3206 = vsel %vm1178, %v3201, %v3205
      %v3208 = vshrl.u32 %v2844, 16
      %v3210 = vrot.slane %v3208, 4
      %v3211 = vshll.u32 %v2844, 16
      %v3213 = vrot.slane %v3211, 5
      %v3214 = vor.u32 %v3210, %v3213
      %v3215 = vrot.slane %v3214, 4
      %v3217 = vshll.u32 %v2845, 16
      %v3219 = vrot.slane %v3217, 5
      %v3220 = vsel %vm1178, %v3215, %v3219
      %v3221 = vshrl.u32 %v2845, 16
      %v3223 = vrot.slane %v3221, 4
      %v3224 = vor.u32 %v3223, %v3219
      %v3225 = vrot.slane %v3224, 4
      %v3227 = vshll.u32 %v2846, 16
      %v3229 = vrot.slane %v3227, 5
      %v3230 = vsel %vm1178, %v3225, %v3229
      %3263 = vst [vmem:[#allocation3 + $0x1c] sm:$0xf] %v2860
      %3264 = vst [vmem:[#allocation3 + $0x40] sm:$0xf] %v2870
      %3265 = vst [vmem:[#allocation3 + $0x64] sm:$0xf] %v2884
      %3266 = vst [vmem:[#allocation3 + $0x88] sm:$0xf] %v2894
      %3267 = vst [vmem:[#allocation3 + $0xac] sm:$0xf] %v2908
      %3268 = vst [vmem:[#allocation3 + $0xd0] sm:$0xf] %v2918
      %3269 = vst [vmem:[#allocation3 + $0xf4] sm:$0xf] %v2932
      %3270 = vst [vmem:[#allocation3 + $0x118] sm:$0xf] %v2942
      %3271 = vst [vmem:[#allocation3 + $0x13c] sm:$0xf] %v2956
      %3272 = vst [vmem:[#allocation3 + $0x160] sm:$0xf] %v2966
      %3273 = vst [vmem:[#allocation3 + $0x184] sm:$0xf] %v2980
      %3274 = vst [vmem:[#allocation3 + $0x1a8] sm:$0xf] %v2990
      %3275 = vst [vmem:[#allocation3 + $0x1cc] sm:$0xf] %v3004
      %3276 = vst [vmem:[#allocation3 + $0x1f0] sm:$0xf] %v3014
      %3277 = vst [vmem:[#allocation3 + $0x214] sm:$0xf] %v3028
      %3278 = vst [vmem:[#allocation3 + $0x238] sm:$0xf] %v3038
      %3279 = vst [vmem:[#allocation3 + $0x25c] sm:$0xf] %v3052
      %3280 = vst [vmem:[#allocation3 + $0x280] sm:$0xf] %v3062
      %3281 = vst [vmem:[#allocation3 + $0x2a4] sm:$0xf] %v3076
      %3282 = vst [vmem:[#allocation3 + $0x2c8] sm:$0xf] %v3086
      %3283 = vst [vmem:[#allocation3 + $0x2ec] sm:$0xf] %v3100
      %3284 = vst [vmem:[#allocation3 + $0x310] sm:$0xf] %v3110
      %3285 = vst [vmem:[#allocation3 + $0x334] sm:$0xf] %v3124
      %3286 = vst [vmem:[#allocation3 + $0x358] sm:$0xf] %v3134
      %3287 = vst [vmem:[#allocation3 + $0x37c] sm:$0xf] %v3148
      %3288 = vst [vmem:[#allocation3 + $0x3a0] sm:$0xf] %v3158
      %3289 = vst [vmem:[#allocation3 + $0x3c4] sm:$0xf] %v3172
      %3290 = vst [vmem:[#allocation3 + $0x3e8] sm:$0xf] %v3182
      %3291 = vst [vmem:[#allocation3 + $0x40c] sm:$0xf] %v3196
      %3292 = vst [vmem:[#allocation3 + $0x430] sm:$0xf] %v3206
      %3293 = vst [vmem:[#allocation3 + $0x454] sm:$0xf] %v3220
      %3294 = vst [vmem:[#allocation3 + $0x478] sm:$0xf] %v3230
      %v3295 = vld [vmem:[%s2734] sm:$0xe]
      %v3296 = vld [vmem:[%s2734 + $0x4] sm:$0xf]
      %v3297 = vld [vmem:[%s2734 + $0x8] sm:$0x1]
      %v3298 = vld [vmem:[%s2734 + $0xc] sm:$0xe]
      %v3299 = vld [vmem:[%s2734 + $0x10] sm:$0xf]
      %v3300 = vld [vmem:[%s2734 + $0x14] sm:$0x1]
      %v3301 = vld [vmem:[%s2734 + $0x18] sm:$0xe]
      %v3302 = vld [vmem:[%s2734 + $0x1c] sm:$0xf]
      %v3303 = vld [vmem:[%s2734 + $0x20] sm:$0x1]
      %v3304 = vld [vmem:[%s2734 + $0x24] sm:$0xe]
      %v3305 = vld [vmem:[%s2734 + $0x28] sm:$0xf]
      %v3306 = vld [vmem:[%s2734 + $0x2c] sm:$0x1]
      %v3307 = vld [vmem:[%s2734 + $0x30] sm:$0xe]
      %v3308 = vld [vmem:[%s2734 + $0x34] sm:$0xf]
      %v3309 = vld [vmem:[%s2734 + $0x38] sm:$0x1]
      %v3310 = vld [vmem:[%s2734 + $0x3c] sm:$0xe]
      %v3311 = vld [vmem:[%s2734 + $0x40] sm:$0xf]
      %v3312 = vld [vmem:[%s2734 + $0x44] sm:$0x1]
      %v3313 = vld [vmem:[%s2734 + $0x48] sm:$0xe]
      %v3314 = vld [vmem:[%s2734 + $0x4c] sm:$0xf]
      %v3315 = vld [vmem:[%s2734 + $0x50] sm:$0x1]
      %v3316 = vld [vmem:[%s2734 + $0x54] sm:$0xe]
      %v3317 = vld [vmem:[%s2734 + $0x58] sm:$0xf]
      %v3318 = vld [vmem:[%s2734 + $0x5c] sm:$0x1]
      %v3319 = vld [vmem:[%s2734 + $0x60] sm:$0xe]
      %v3320 = vld [vmem:[%s2734 + $0x64] sm:$0xf]
      %v3321 = vld [vmem:[%s2734 + $0x68] sm:$0x1]
      %v3322 = vld [vmem:[%s2734 + $0x6c] sm:$0xe]
      %v3323 = vld [vmem:[%s2734 + $0x70] sm:$0xf]
      %v3324 = vld [vmem:[%s2734 + $0x74] sm:$0x1]
      %v3325 = vld [vmem:[%s2734 + $0x78] sm:$0xe]
      %v3326 = vld [vmem:[%s2734 + $0x7c] sm:$0xf]
      %v3327 = vld [vmem:[%s2734 + $0x80] sm:$0x1]
      %v3328 = vld [vmem:[%s2734 + $0x84] sm:$0xe]
      %v3329 = vld [vmem:[%s2734 + $0x88] sm:$0xf]
      %v3330 = vld [vmem:[%s2734 + $0x8c] sm:$0x1]
      %v3331 = vld [vmem:[%s2734 + $0x90] sm:$0xe]
      %v3332 = vld [vmem:[%s2734 + $0x94] sm:$0xf]
      %v3333 = vld [vmem:[%s2734 + $0x98] sm:$0x1]
      %v3334 = vld [vmem:[%s2734 + $0x9c] sm:$0xe]
      %v3335 = vld [vmem:[%s2734 + $0xa0] sm:$0xf]
      %v3336 = vld [vmem:[%s2734 + $0xa4] sm:$0x1]
      %v3337 = vld [vmem:[%s2734 + $0xa8] sm:$0xe]
      %v3338 = vld [vmem:[%s2734 + $0xac] sm:$0xf]
      %v3339 = vld [vmem:[%s2734 + $0xb0] sm:$0x1]
      %v3340 = vld [vmem:[%s2734 + $0xb4] sm:$0xe]
      %v3341 = vld [vmem:[%s2734 + $0xb8] sm:$0xf]
      %v3342 = vld [vmem:[%s2734 + $0xbc] sm:$0x1]
      %v3391 = vrot.slane %v3295, 5
      %v3392 = vrot.slane %v3391, 4
      %v3393 = vrot.slane %v3296, 5
      %v3394 = vsel %vm1725, %v3392, %v3393
      %v3395 = vrot.slane %v3393, 4
      %v3396 = vrot.slane %v3297, 5
      %v3397 = vsel %vm1725, %v3395, %v3396
      %v3398 = vrot.slane %v3298, 5
      %v3399 = vrot.slane %v3398, 4
      %v3400 = vrot.slane %v3299, 5
      %v3401 = vsel %vm1725, %v3399, %v3400
      %v3402 = vrot.slane %v3400, 4
      %v3403 = vrot.slane %v3300, 5
      %v3404 = vsel %vm1725, %v3402, %v3403
      %v3405 = vrot.slane %v3301, 5
      %v3406 = vrot.slane %v3405, 4
      %v3407 = vrot.slane %v3302, 5
      %v3408 = vsel %vm1725, %v3406, %v3407
      %v3409 = vrot.slane %v3407, 4
      %v3410 = vrot.slane %v3303, 5
      %v3411 = vsel %vm1725, %v3409, %v3410
      %v3412 = vrot.slane %v3304, 5
      %v3413 = vrot.slane %v3412, 4
      %v3414 = vrot.slane %v3305, 5
      %v3415 = vsel %vm1725, %v3413, %v3414
      %v3416 = vrot.slane %v3414, 4
      %v3417 = vrot.slane %v3306, 5
      %v3418 = vsel %vm1725, %v3416, %v3417
      %v3419 = vrot.slane %v3307, 5
      %v3420 = vrot.slane %v3419, 4
      %v3421 = vrot.slane %v3308, 5
      %v3422 = vsel %vm1725, %v3420, %v3421
      %v3423 = vrot.slane %v3421, 4
      %v3424 = vrot.slane %v3309, 5
      %v3425 = vsel %vm1725, %v3423, %v3424
      %v3426 = vrot.slane %v3310, 5
      %v3427 = vrot.slane %v3426, 4
      %v3428 = vrot.slane %v3311, 5
      %v3429 = vsel %vm1725, %v3427, %v3428
      %v3430 = vrot.slane %v3428, 4
      %v3431 = vrot.slane %v3312, 5
      %v3432 = vsel %vm1725, %v3430, %v3431
      %v3433 = vrot.slane %v3313, 5
      %v3434 = vrot.slane %v3433, 4
      %v3435 = vrot.slane %v3314, 5
      %v3436 = vsel %vm1725, %v3434, %v3435
      %v3437 = vrot.slane %v3435, 4
      %v3438 = vrot.slane %v3315, 5
      %v3439 = vsel %vm1725, %v3437, %v3438
      %v3440 = vrot.slane %v3316, 5
      %v3441 = vrot.slane %v3440, 4
      %v3442 = vrot.slane %v3317, 5
      %v3443 = vsel %vm1725, %v3441, %v3442
      %v3444 = vrot.slane %v3442, 4
      %v3445 = vrot.slane %v3318, 5
      %v3446 = vsel %vm1725, %v3444, %v3445
      %v3447 = vrot.slane %v3319, 5
      %v3448 = vrot.slane %v3447, 4
      %v3449 = vrot.slane %v3320, 5
      %v3450 = vsel %vm1725, %v3448, %v3449
      %v3451 = vrot.slane %v3449, 4
      %v3452 = vrot.slane %v3321, 5
      %v3453 = vsel %vm1725, %v3451, %v3452
      %v3454 = vrot.slane %v3322, 5
      %v3455 = vrot.slane %v3454, 4
      %v3456 = vrot.slane %v3323, 5
      %v3457 = vsel %vm1725, %v3455, %v3456
      %v3458 = vrot.slane %v3456, 4
      %v3459 = vrot.slane %v3324, 5
      %v3460 = vsel %vm1725, %v3458, %v3459
      %v3461 = vrot.slane %v3325, 5
      %v3462 = vrot.slane %v3461, 4
      %v3463 = vrot.slane %v3326, 5
      %v3464 = vsel %vm1725, %v3462, %v3463
      %v3465 = vrot.slane %v3463, 4
      %v3466 = vrot.slane %v3327, 5
      %v3467 = vsel %vm1725, %v3465, %v3466
      %v3468 = vrot.slane %v3328, 5
      %v3469 = vrot.slane %v3468, 4
      %v3470 = vrot.slane %v3329, 5
      %v3471 = vsel %vm1725, %v3469, %v3470
      %v3472 = vrot.slane %v3470, 4
      %v3473 = vrot.slane %v3330, 5
      %v3474 = vsel %vm1725, %v3472, %v3473
      %v3475 = vrot.slane %v3331, 5
      %v3476 = vrot.slane %v3475, 4
      %v3477 = vrot.slane %v3332, 5
      %v3478 = vsel %vm1725, %v3476, %v3477
      %v3479 = vrot.slane %v3477, 4
      %v3480 = vrot.slane %v3333, 5
      %v3481 = vsel %vm1725, %v3479, %v3480
      %v3482 = vrot.slane %v3334, 5
      %v3483 = vrot.slane %v3482, 4
      %v3484 = vrot.slane %v3335, 5
      %v3485 = vsel %vm1725, %v3483, %v3484
      %v3486 = vrot.slane %v3484, 4
      %v3487 = vrot.slane %v3336, 5
      %v3488 = vsel %vm1725, %v3486, %v3487
      %v3489 = vrot.slane %v3337, 5
      %v3490 = vrot.slane %v3489, 4
      %v3491 = vrot.slane %v3338, 5
      %v3492 = vsel %vm1725, %v3490, %v3491
      %v3493 = vrot.slane %v3491, 4
      %v3494 = vrot.slane %v3339, 5
      %v3495 = vsel %vm1725, %v3493, %v3494
      %v3496 = vrot.slane %v3340, 5
      %v3497 = vrot.slane %v3496, 4
      %v3498 = vrot.slane %v3341, 5
      %v3499 = vsel %vm1725, %v3497, %v3498
      %v3500 = vrot.slane %v3498, 4
      %v3501 = vrot.slane %v3342, 5
      %v3502 = vsel %vm1725, %v3500, %v3501
      %3535 = vst [vmem:[#allocation3 + $0x20] sm:$0xf] %v3394
      %3536 = vst [vmem:[#allocation3 + $0x44] sm:$0xf] %v3397
      %3537 = vst [vmem:[#allocation3 + $0x68] sm:$0xf] %v3401
      %3538 = vst [vmem:[#allocation3 + $0x8c] sm:$0xf] %v3404
      %3539 = vst [vmem:[#allocation3 + $0xb0] sm:$0xf] %v3408
      %3540 = vst [vmem:[#allocation3 + $0xd4] sm:$0xf] %v3411
      %3541 = vst [vmem:[#allocation3 + $0xf8] sm:$0xf] %v3415
      %3542 = vst [vmem:[#allocation3 + $0x11c] sm:$0xf] %v3418
      %3543 = vst [vmem:[#allocation3 + $0x140] sm:$0xf] %v3422
      %3544 = vst [vmem:[#allocation3 + $0x164] sm:$0xf] %v3425
      %3545 = vst [vmem:[#allocation3 + $0x188] sm:$0xf] %v3429
      %3546 = vst [vmem:[#allocation3 + $0x1ac] sm:$0xf] %v3432
      %3547 = vst [vmem:[#allocation3 + $0x1d0] sm:$0xf] %v3436
      %3548 = vst [vmem:[#allocation3 + $0x1f4] sm:$0xf] %v3439
      %3549 = vst [vmem:[#allocation3 + $0x218] sm:$0xf] %v3443
      %3550 = vst [vmem:[#allocation3 + $0x23c] sm:$0xf] %v3446
      %3551 = vst [vmem:[#allocation3 + $0x260] sm:$0xf] %v3450
      %3552 = vst [vmem:[#allocation3 + $0x284] sm:$0xf] %v3453
      %3553 = vst [vmem:[#allocation3 + $0x2a8] sm:$0xf] %v3457
      %3554 = vst [vmem:[#allocation3 + $0x2cc] sm:$0xf] %v3460
      %3555 = vst [vmem:[#allocation3 + $0x2f0] sm:$0xf] %v3464
      %3556 = vst [vmem:[#allocation3 + $0x314] sm:$0xf] %v3467
      %3557 = vst [vmem:[#allocation3 + $0x338] sm:$0xf] %v3471
      %3558 = vst [vmem:[#allocation3 + $0x35c] sm:$0xf] %v3474
      %3559 = vst [vmem:[#allocation3 + $0x380] sm:$0xf] %v3478
      %3560 = vst [vmem:[#allocation3 + $0x3a4] sm:$0xf] %v3481
      %3561 = vst [vmem:[#allocation3 + $0x3c8] sm:$0xf] %v3485
      %3562 = vst [vmem:[#allocation3 + $0x3ec] sm:$0xf] %v3488
      %3563 = vst [vmem:[#allocation3 + $0x410] sm:$0xf] %v3492
      %3564 = vst [vmem:[#allocation3 + $0x434] sm:$0xf] %v3495
      %3565 = vst [vmem:[#allocation3 + $0x458] sm:$0xf] %v3499
      %3566 = vst [vmem:[#allocation3 + $0x47c] sm:$0xf] %v3502
      %v3567 = vld [vmem:[#allocation3] sm:$0xff]
      %v3568 = vld [vmem:[#allocation3 + $0x8] sm:$0xff]
      %v3569 = vld [vmem:[#allocation3 + $0x10] sm:$0xff]
      %v3570 = vld [vmem:[#allocation3 + $0x18] sm:$0xff]
      %v3571 = vld [vmem:[#allocation3 + $0x20] sm:$0xf]
      %v3572 = vld [vmem:[#allocation3 + $0x24] sm:$0xff]
      %v3573 = vld [vmem:[#allocation3 + $0x2c] sm:$0xff]
      %v3574 = vld [vmem:[#allocation3 + $0x34] sm:$0xff]
      %v3575 = vld [vmem:[#allocation3 + $0x3c] sm:$0xff]
      %v3576 = vld [vmem:[#allocation3 + $0x44] sm:$0xf]
      %v3577 = vld [vmem:[#allocation3 + $0x48] sm:$0xff]
      %v3578 = vld [vmem:[#allocation3 + $0x50] sm:$0xff]
      %v3579 = vld [vmem:[#allocation3 + $0x58] sm:$0xff]
      %v3580 = vld [vmem:[#allocation3 + $0x60] sm:$0xff]
      %v3581 = vld [vmem:[#allocation3 + $0x68] sm:$0xf]
      %v3582 = vld [vmem:[#allocation3 + $0x6c] sm:$0xff]
      %v3583 = vld [vmem:[#allocation3 + $0x74] sm:$0xff]
      %v3584 = vld [vmem:[#allocation3 + $0x7c] sm:$0xff]
      %v3585 = vld [vmem:[#allocation3 + $0x84] sm:$0xff]
      %v3586 = vld [vmem:[#allocation3 + $0x8c] sm:$0xf]
      %v3587 = vld [vmem:[#allocation3 + $0x90] sm:$0xff]
      %v3588 = vld [vmem:[#allocation3 + $0x98] sm:$0xff]
      %v3589 = vld [vmem:[#allocation3 + $0xa0] sm:$0xff]
      %v3590 = vld [vmem:[#allocation3 + $0xa8] sm:$0xff]
      %v3591 = vld [vmem:[#allocation3 + $0xb0] sm:$0xf]
      %v3592 = vld [vmem:[#allocation3 + $0xb4] sm:$0xff]
      %v3593 = vld [vmem:[#allocation3 + $0xbc] sm:$0xff]
      %v3594 = vld [vmem:[#allocation3 + $0xc4] sm:$0xff]
      %v3595 = vld [vmem:[#allocation3 + $0xcc] sm:$0xff]
      %v3596 = vld [vmem:[#allocation3 + $0xd4] sm:$0xf]
      %v3597 = vld [vmem:[#allocation3 + $0xd8] sm:$0xff]
      %v3598 = vld [vmem:[#allocation3 + $0xe0] sm:$0xff]
      %v3599 = vld [vmem:[#allocation3 + $0xe8] sm:$0xff]
      %v3600 = vld [vmem:[#allocation3 + $0xf0] sm:$0xff]
      %v3601 = vld [vmem:[#allocation3 + $0xf8] sm:$0xf]
      %v3602 = vld [vmem:[#allocation3 + $0xfc] sm:$0xff]
      %v3603 = vld [vmem:[#allocation3 + $0x104] sm:$0xff]
      %v3604 = vld [vmem:[#allocation3 + $0x10c] sm:$0xff]
      %v3605 = vld [vmem:[#allocation3 + $0x114] sm:$0xff]
      %v3606 = vld [vmem:[#allocation3 + $0x11c] sm:$0xf]
      %v3607 = vld [vmem:[#allocation3 + $0x120] sm:$0xff]
      %v3608 = vld [vmem:[#allocation3 + $0x128] sm:$0xff]
      %v3609 = vld [vmem:[#allocation3 + $0x130] sm:$0xff]
      %v3610 = vld [vmem:[#allocation3 + $0x138] sm:$0xff]
      %v3611 = vld [vmem:[#allocation3 + $0x140] sm:$0xf]
      %v3612 = vld [vmem:[#allocation3 + $0x144] sm:$0xff]
      %v3613 = vld [vmem:[#allocation3 + $0x14c] sm:$0xff]
      %v3614 = vld [vmem:[#allocation3 + $0x154] sm:$0xff]
      %v3615 = vld [vmem:[#allocation3 + $0x15c] sm:$0xff]
      %v3616 = vld [vmem:[#allocation3 + $0x164] sm:$0xf]
      %v3617 = vld [vmem:[#allocation3 + $0x168] sm:$0xff]
      %v3618 = vld [vmem:[#allocation3 + $0x170] sm:$0xff]
      %v3619 = vld [vmem:[#allocation3 + $0x178] sm:$0xff]
      %v3620 = vld [vmem:[#allocation3 + $0x180] sm:$0xff]
      %v3621 = vld [vmem:[#allocation3 + $0x188] sm:$0xf]
      %v3622 = vld [vmem:[#allocation3 + $0x18c] sm:$0xff]
      %v3623 = vld [vmem:[#allocation3 + $0x194] sm:$0xff]
      %v3624 = vld [vmem:[#allocation3 + $0x19c] sm:$0xff]
      %v3625 = vld [vmem:[#allocation3 + $0x1a4] sm:$0xff]
      %v3626 = vld [vmem:[#allocation3 + $0x1ac] sm:$0xf]
      %v3627 = vld [vmem:[#allocation3 + $0x1b0] sm:$0xff]
      %v3628 = vld [vmem:[#allocation3 + $0x1b8] sm:$0xff]
      %v3629 = vld [vmem:[#allocation3 + $0x1c0] sm:$0xff]
      %v3630 = vld [vmem:[#allocation3 + $0x1c8] sm:$0xff]
      %v3631 = vld [vmem:[#allocation3 + $0x1d0] sm:$0xf]
      %v3632 = vld [vmem:[#allocation3 + $0x1d4] sm:$0xff]
      %v3633 = vld [vmem:[#allocation3 + $0x1dc] sm:$0xff]
      %v3634 = vld [vmem:[#allocation3 + $0x1e4] sm:$0xff]
      %v3635 = vld [vmem:[#allocation3 + $0x1ec] sm:$0xff]
      %v3636 = vld [vmem:[#allocation3 + $0x1f4] sm:$0xf]
      %v3637 = vld [vmem:[#allocation3 + $0x1f8] sm:$0xff]
      %v3638 = vld [vmem:[#allocation3 + $0x200] sm:$0xff]
      %v3639 = vld [vmem:[#allocation3 + $0x208] sm:$0xff]
      %v3640 = vld [vmem:[#allocation3 + $0x210] sm:$0xff]
      %v3641 = vld [vmem:[#allocation3 + $0x218] sm:$0xf]
      %v3642 = vld [vmem:[#allocation3 + $0x21c] sm:$0xff]
      %v3643 = vld [vmem:[#allocation3 + $0x224] sm:$0xff]
      %v3644 = vld [vmem:[#allocation3 + $0x22c] sm:$0xff]
      %v3645 = vld [vmem:[#allocation3 + $0x234] sm:$0xff]
      %v3646 = vld [vmem:[#allocation3 + $0x23c] sm:$0xf]
      %v3647 = vld [vmem:[#allocation3 + $0x240] sm:$0xff]
      %v3648 = vld [vmem:[#allocation3 + $0x248] sm:$0xff]
      %v3649 = vld [vmem:[#allocation3 + $0x250] sm:$0xff]
      %v3650 = vld [vmem:[#allocation3 + $0x258] sm:$0xff]
      %v3651 = vld [vmem:[#allocation3 + $0x260] sm:$0xf]
      %v3652 = vld [vmem:[#allocation3 + $0x264] sm:$0xff]
      %v3653 = vld [vmem:[#allocation3 + $0x26c] sm:$0xff]
      %v3654 = vld [vmem:[#allocation3 + $0x274] sm:$0xff]
      %v3655 = vld [vmem:[#allocation3 + $0x27c] sm:$0xff]
      %v3656 = vld [vmem:[#allocation3 + $0x284] sm:$0xf]
      %v3657 = vld [vmem:[#allocation3 + $0x288] sm:$0xff]
      %v3658 = vld [vmem:[#allocation3 + $0x290] sm:$0xff]
      %v3659 = vld [vmem:[#allocation3 + $0x298] sm:$0xff]
      %v3660 = vld [vmem:[#allocation3 + $0x2a0] sm:$0xff]
      %v3661 = vld [vmem:[#allocation3 + $0x2a8] sm:$0xf]
      %v3662 = vld [vmem:[#allocation3 + $0x2ac] sm:$0xff]
      %v3663 = vld [vmem:[#allocation3 + $0x2b4] sm:$0xff]
      %v3664 = vld [vmem:[#allocation3 + $0x2bc] sm:$0xff]
      %v3665 = vld [vmem:[#allocation3 + $0x2c4] sm:$0xff]
      %v3666 = vld [vmem:[#allocation3 + $0x2cc] sm:$0xf]
      %v3667 = vld [vmem:[#allocation3 + $0x2d0] sm:$0xff]
      %v3668 = vld [vmem:[#allocation3 + $0x2d8] sm:$0xff]
      %v3669 = vld [vmem:[#allocation3 + $0x2e0] sm:$0xff]
      %v3670 = vld [vmem:[#allocation3 + $0x2e8] sm:$0xff]
      %v3671 = vld [vmem:[#allocation3 + $0x2f0] sm:$0xf]
      %v3672 = vld [vmem:[#allocation3 + $0x2f4] sm:$0xff]
      %v3673 = vld [vmem:[#allocation3 + $0x2fc] sm:$0xff]
      %v3674 = vld [vmem:[#allocation3 + $0x304] sm:$0xff]
      %v3675 = vld [vmem:[#allocation3 + $0x30c] sm:$0xff]
      %v3676 = vld [vmem:[#allocation3 + $0x314] sm:$0xf]
      %v3677 = vld [vmem:[#allocation3 + $0x318] sm:$0xff]
      %v3678 = vld [vmem:[#allocation3 + $0x320] sm:$0xff]
      %v3679 = vld [vmem:[#allocation3 + $0x328] sm:$0xff]
      %v3680 = vld [vmem:[#allocation3 + $0x330] sm:$0xff]
      %v3681 = vld [vmem:[#allocation3 + $0x338] sm:$0xf]
      %v3682 = vld [vmem:[#allocation3 + $0x33c] sm:$0xff]
      %v3683 = vld [vmem:[#allocation3 + $0x344] sm:$0xff]
      %v3684 = vld [vmem:[#allocation3 + $0x34c] sm:$0xff]
      %v3685 = vld [vmem:[#allocation3 + $0x354] sm:$0xff]
      %v3686 = vld [vmem:[#allocation3 + $0x35c] sm:$0xf]
      %v3687 = vld [vmem:[#allocation3 + $0x360] sm:$0xff]
      %v3688 = vld [vmem:[#allocation3 + $0x368] sm:$0xff]
      %v3689 = vld [vmem:[#allocation3 + $0x370] sm:$0xff]
      %v3690 = vld [vmem:[#allocation3 + $0x378] sm:$0xff]
      %v3691 = vld [vmem:[#allocation3 + $0x380] sm:$0xf]
      %v3692 = vld [vmem:[#allocation3 + $0x384] sm:$0xff]
      %v3693 = vld [vmem:[#allocation3 + $0x38c] sm:$0xff]
      %v3694 = vld [vmem:[#allocation3 + $0x394] sm:$0xff]
      %v3695 = vld [vmem:[#allocation3 + $0x39c] sm:$0xff]
      %v3696 = vld [vmem:[#allocation3 + $0x3a4] sm:$0xf]
      %v3697 = vld [vmem:[#allocation3 + $0x3a8] sm:$0xff]
      %v3698 = vld [vmem:[#allocation3 + $0x3b0] sm:$0xff]
      %v3699 = vld [vmem:[#allocation3 + $0x3b8] sm:$0xff]
      %v3700 = vld [vmem:[#allocation3 + $0x3c0] sm:$0xff]
      %v3701 = vld [vmem:[#allocation3 + $0x3c8] sm:$0xf]
      %v3702 = vld [vmem:[#allocation3 + $0x3cc] sm:$0xff]
      %v3703 = vld [vmem:[#allocation3 + $0x3d4] sm:$0xff]
      %v3704 = vld [vmem:[#allocation3 + $0x3dc] sm:$0xff]
      %v3705 = vld [vmem:[#allocation3 + $0x3e4] sm:$0xff]
      %v3706 = vld [vmem:[#allocation3 + $0x3ec] sm:$0xf]
      %v3707 = vld [vmem:[#allocation3 + $0x3f0] sm:$0xff]
      %v3708 = vld [vmem:[#allocation3 + $0x3f8] sm:$0xff]
      %v3709 = vld [vmem:[#allocation3 + $0x400] sm:$0xff]
      %v3710 = vld [vmem:[#allocation3 + $0x408] sm:$0xff]
      %v3711 = vld [vmem:[#allocation3 + $0x410] sm:$0xf]
      %v3712 = vld [vmem:[#allocation3 + $0x414] sm:$0xff]
      %v3713 = vld [vmem:[#allocation3 + $0x41c] sm:$0xff]
      %v3714 = vld [vmem:[#allocation3 + $0x424] sm:$0xff]
      %v3715 = vld [vmem:[#allocation3 + $0x42c] sm:$0xff]
      %v3716 = vld [vmem:[#allocation3 + $0x434] sm:$0xf]
      %v3717 = vld [vmem:[#allocation3 + $0x438] sm:$0xff]
      %v3718 = vld [vmem:[#allocation3 + $0x440] sm:$0xff]
      %v3719 = vld [vmem:[#allocation3 + $0x448] sm:$0xff]
      %v3720 = vld [vmem:[#allocation3 + $0x450] sm:$0xff]
      %v3721 = vld [vmem:[#allocation3 + $0x458] sm:$0xf]
      %v3722 = vld [vmem:[#allocation3 + $0x45c] sm:$0xff]
      %v3723 = vld [vmem:[#allocation3 + $0x464] sm:$0xff]
      %v3724 = vld [vmem:[#allocation3 + $0x46c] sm:$0xff]
      %v3725 = vld [vmem:[#allocation3 + $0x474] sm:$0xff]
      %v3726 = vld [vmem:[#allocation3 + $0x47c] sm:$0xf]
      %v3727 = vld [vmem:[%s3] sm:$0xf]
      %v3728 = vld [vmem:[%s3 + $0x4] sm:$0xf]
      %v3729 = vld [vmem:[%s3 + $0x8] sm:$0xf]
      %v3730 = vld [vmem:[%s3 + $0xc] sm:$0xf]
      %v3731 = vld [vmem:[%s3 + $0x10] sm:$0xf]
      %v3732 = vld [vmem:[%s3 + $0x14] sm:$0xf]
      %v3733 = vld [vmem:[%s3 + $0x18] sm:$0xf]
      %v3734 = vld [vmem:[%s3 + $0x1c] sm:$0xf]
      %v3735 = vld [vmem:[%s3 + $0x20] sm:$0xf]
      %v3736 = vld [vmem:[%s3 + $0x24] sm:$0xf]
      %v3737 = vld [vmem:[%s3 + $0x28] sm:$0xf]
      %v3738 = vld [vmem:[%s3 + $0x2c] sm:$0xf]
      %v3739 = vld [vmem:[%s3 + $0x30] sm:$0xf]
      %v3740 = vld [vmem:[%s3 + $0x34] sm:$0xf]
      %v3741 = vld [vmem:[%s3 + $0x38] sm:$0xf]
      %v3742 = vld [vmem:[%s3 + $0x3c] sm:$0xf]
      %v3743 = vld [vmem:[%s3 + $0x40] sm:$0xf]
      %v3744 = vld [vmem:[%s3 + $0x44] sm:$0xf]
      %v3745 = vld [vmem:[%s3 + $0x48] sm:$0xf]
      %v3746 = vld [vmem:[%s3 + $0x4c] sm:$0xf]
      %v3747 = vld [vmem:[%s3 + $0x50] sm:$0xf]
      %v3748 = vld [vmem:[%s3 + $0x54] sm:$0xf]
      %v3749 = vld [vmem:[%s3 + $0x58] sm:$0xf]
      %v3750 = vld [vmem:[%s3 + $0x5c] sm:$0xf]
      %v3751 = vld [vmem:[%s3 + $0x60] sm:$0xf]
      %v3752 = vld [vmem:[%s3 + $0x64] sm:$0xf]
      %v3753 = vld [vmem:[%s3 + $0x68] sm:$0xf]
      %v3754 = vld [vmem:[%s3 + $0x6c] sm:$0xf]
      %v3755 = vld [vmem:[%s3 + $0x70] sm:$0xf]
      %v3756 = vld [vmem:[%s3 + $0x74] sm:$0xf]
      %v3757 = vld [vmem:[%s3 + $0x78] sm:$0xf]
      %v3758 = vld [vmem:[%s3 + $0x7c] sm:$0xf]
      %v3759 = vld [vmem:[%s3 + $0x80] sm:$0xf]
      %v3760 = vld [vmem:[%s3 + $0x84] sm:$0xf]
      %v3761 = vld [vmem:[%s3 + $0x88] sm:$0xf]
      %v3762 = vld [vmem:[%s3 + $0x8c] sm:$0xf]
      %v3763 = vld [vmem:[%s3 + $0x90] sm:$0xf]
      %v3764 = vld [vmem:[%s3 + $0x94] sm:$0xf]
      %v3765 = vld [vmem:[%s3 + $0x98] sm:$0xf]
      %v3766 = vld [vmem:[%s3 + $0x9c] sm:$0xf]
      %v3767 = vld [vmem:[%s3 + $0xa0] sm:$0xf]
      %v3768 = vld [vmem:[%s3 + $0xa4] sm:$0xf]
      %v3769 = vld [vmem:[%s3 + $0xa8] sm:$0xf]
      %v3770 = vld [vmem:[%s3 + $0xac] sm:$0xf]
      %v3771 = vld [vmem:[%s3 + $0xb0] sm:$0xf]
      %v3772 = vld [vmem:[%s3 + $0xb4] sm:$0xf]
      %v3773 = vld [vmem:[%s3 + $0xb8] sm:$0xf]
      %v3774 = vld [vmem:[%s3 + $0xbc] sm:$0xf]
      %v3775 = vld [vmem:[%s3 + $0xc0] sm:$0xf]
      %v3776 = vld [vmem:[%s3 + $0xc4] sm:$0xf]
      %v3777 = vld [vmem:[%s3 + $0xc8] sm:$0xf]
      %v3778 = vld [vmem:[%s3 + $0xcc] sm:$0xf]
      %v3779 = vld [vmem:[%s3 + $0xd0] sm:$0xf]
      %v3780 = vld [vmem:[%s3 + $0xd4] sm:$0xf]
      %v3781 = vld [vmem:[%s3 + $0xd8] sm:$0xf]
      %v3782 = vld [vmem:[%s3 + $0xdc] sm:$0xf]
      %v3783 = vld [vmem:[%s3 + $0xe0] sm:$0xf]
      %v3784 = vld [vmem:[%s3 + $0xe4] sm:$0xf]
      %v3785 = vld [vmem:[%s3 + $0xe8] sm:$0xf]
      %v3786 = vld [vmem:[%s3 + $0xec] sm:$0xf]
      %v3787 = vld [vmem:[%s3 + $0xf0] sm:$0xf]
      %v3788 = vld [vmem:[%s3 + $0xf4] sm:$0xf]
      %v3789 = vld [vmem:[%s3 + $0xf8] sm:$0xf]
      %v3790 = vld [vmem:[%s3 + $0xfc] sm:$0xf]
      %v3791 = vld [vmem:[%s3 + $0x100] sm:$0xf]
      %v3792 = vld [vmem:[%s3 + $0x104] sm:$0xf]
      %v3793 = vld [vmem:[%s3 + $0x108] sm:$0xf]
      %v3794 = vld [vmem:[%s3 + $0x10c] sm:$0xf]
      %v3795 = vld [vmem:[%s3 + $0x110] sm:$0xf]
      %v3796 = vld [vmem:[%s3 + $0x114] sm:$0xf]
      %v3797 = vld [vmem:[%s3 + $0x118] sm:$0xf]
      %v3798 = vld [vmem:[%s3 + $0x11c] sm:$0xf]
      %v3799 = vld [vmem:[%s3 + $0x120] sm:$0xf]
      %v3800 = vld [vmem:[%s3 + $0x124] sm:$0xf]
      %v3801 = vld [vmem:[%s3 + $0x128] sm:$0xf]
      %v3802 = vld [vmem:[%s3 + $0x12c] sm:$0xf]
      %v3803 = vld [vmem:[%s3 + $0x130] sm:$0xf]
      %v3804 = vld [vmem:[%s3 + $0x134] sm:$0xf]
      %v3805 = vld [vmem:[%s3 + $0x138] sm:$0xf]
      %v3806 = vld [vmem:[%s3 + $0x13c] sm:$0xf]
      %v3807 = vld [vmem:[%s3 + $0x140] sm:$0xf]
      %v3808 = vld [vmem:[%s3 + $0x144] sm:$0xf]
      %v3809 = vld [vmem:[%s3 + $0x148] sm:$0xf]
      %v3810 = vld [vmem:[%s3 + $0x14c] sm:$0xf]
      %v3811 = vld [vmem:[%s3 + $0x150] sm:$0xf]
      %v3812 = vld [vmem:[%s3 + $0x154] sm:$0xf]
      %v3813 = vld [vmem:[%s3 + $0x158] sm:$0xf]
      %v3814 = vld [vmem:[%s3 + $0x15c] sm:$0xf]
      %v3815 = vld [vmem:[%s3 + $0x160] sm:$0xf]
      %v3816 = vld [vmem:[%s3 + $0x164] sm:$0xf]
      %v3817 = vld [vmem:[%s3 + $0x168] sm:$0xf]
      %v3818 = vld [vmem:[%s3 + $0x16c] sm:$0xf]
      %v3819 = vld [vmem:[%s3 + $0x170] sm:$0xf]
      %v3820 = vld [vmem:[%s3 + $0x174] sm:$0xf]
      %v3821 = vld [vmem:[%s3 + $0x178] sm:$0xf]
      %v3822 = vld [vmem:[%s3 + $0x17c] sm:$0xf]
      %v3823 = vld [vmem:[%s3 + $0x180] sm:$0xf]
      %v3824 = vld [vmem:[%s3 + $0x184] sm:$0xf]
      %v3825 = vld [vmem:[%s3 + $0x188] sm:$0xf]
      %v3826 = vld [vmem:[%s3 + $0x18c] sm:$0xf]
      %v3827 = vld [vmem:[%s3 + $0x190] sm:$0xf]
      %v3828 = vld [vmem:[%s3 + $0x194] sm:$0xf]
      %v3829 = vld [vmem:[%s3 + $0x198] sm:$0xf]
      %v3830 = vld [vmem:[%s3 + $0x19c] sm:$0xf]
      %v3831 = vld [vmem:[%s3 + $0x1a0] sm:$0xf]
      %v3832 = vld [vmem:[%s3 + $0x1a4] sm:$0xf]
      %v3833 = vld [vmem:[%s3 + $0x1a8] sm:$0xf]
      %v3834 = vld [vmem:[%s3 + $0x1ac] sm:$0xf]
      %v3835 = vld [vmem:[%s3 + $0x1b0] sm:$0xf]
      %v3836 = vld [vmem:[%s3 + $0x1b4] sm:$0xf]
      %v3837 = vld [vmem:[%s3 + $0x1b8] sm:$0xf]
      %v3838 = vld [vmem:[%s3 + $0x1bc] sm:$0xf]
      %v3839 = vld [vmem:[%s3 + $0x1c0] sm:$0xf]
      %v3840 = vld [vmem:[%s3 + $0x1c4] sm:$0xf]
      %v3841 = vld [vmem:[%s3 + $0x1c8] sm:$0xf]
      %v3842 = vld [vmem:[%s3 + $0x1cc] sm:$0xf]
      %v3843 = vld [vmem:[%s3 + $0x1d0] sm:$0xf]
      %v3844 = vld [vmem:[%s3 + $0x1d4] sm:$0xf]
      %v3845 = vld [vmem:[%s3 + $0x1d8] sm:$0xf]
      %v3846 = vld [vmem:[%s3 + $0x1dc] sm:$0xf]
      %v3847 = vld [vmem:[%s3 + $0x1e0] sm:$0xf]
      %v3848 = vld [vmem:[%s3 + $0x1e4] sm:$0xf]
      %v3849 = vld [vmem:[%s3 + $0x1e8] sm:$0xf]
      %v3850 = vld [vmem:[%s3 + $0x1ec] sm:$0xf]
      %v3851 = vld [vmem:[%s3 + $0x1f0] sm:$0xf]
      %v3852 = vld [vmem:[%s3 + $0x1f4] sm:$0xf]
      %v3853 = vld [vmem:[%s3 + $0x1f8] sm:$0xf]
      %v3854 = vld [vmem:[%s3 + $0x1fc] sm:$0xf]
      %v3855 = vld [vmem:[%s3 + $0x200] sm:$0xf]
      %v3856 = vld [vmem:[%s3 + $0x204] sm:$0xf]
      %v3857 = vld [vmem:[%s3 + $0x208] sm:$0xf]
      %v3858 = vld [vmem:[%s3 + $0x20c] sm:$0xf]
      %v3859 = vld [vmem:[%s3 + $0x210] sm:$0xf]
      %v3860 = vld [vmem:[%s3 + $0x214] sm:$0xf]
      %v3861 = vld [vmem:[%s3 + $0x218] sm:$0xf]
      %v3862 = vld [vmem:[%s3 + $0x21c] sm:$0xf]
      %v3863 = vld [vmem:[%s3 + $0x220] sm:$0xf]
      %v3864 = vld [vmem:[%s3 + $0x224] sm:$0xf]
      %v3865 = vld [vmem:[%s3 + $0x228] sm:$0xf]
      %v3866 = vld [vmem:[%s3 + $0x22c] sm:$0xf]
      %v3867 = vld [vmem:[%s3 + $0x230] sm:$0xf]
      %v3868 = vld [vmem:[%s3 + $0x234] sm:$0xf]
      %v3869 = vld [vmem:[%s3 + $0x238] sm:$0xf]
      %v3870 = vld [vmem:[%s3 + $0x23c] sm:$0xf]
      %v4031 = vunpack.c.l.b16 %v3567
      %v4032 = vunpack.c.h.b16 %v3567
      %v4033 = vunpack.c.l.b16 %v3568
      %v4034 = vunpack.c.h.b16 %v3568
      %v4035 = vunpack.c.l.b16 %v3569
      %v4036 = vunpack.c.h.b16 %v3569
      %v4037 = vunpack.c.l.b16 %v3570
      %v4038 = vunpack.c.h.b16 %v3570
      %v4039 = vunpack.c.l.b16 %v3571
      %v4040 = vunpack.c.l.b16 %v3572
      %v4041 = vunpack.c.h.b16 %v3572
      %v4042 = vunpack.c.l.b16 %v3573
      %v4043 = vunpack.c.h.b16 %v3573
      %v4044 = vunpack.c.l.b16 %v3574
      %v4045 = vunpack.c.h.b16 %v3574
      %v4046 = vunpack.c.l.b16 %v3575
      %v4047 = vunpack.c.h.b16 %v3575
      %v4048 = vunpack.c.l.b16 %v3576
      %v4049 = vunpack.c.l.b16 %v3577
      %v4050 = vunpack.c.h.b16 %v3577
      %v4051 = vunpack.c.l.b16 %v3578
      %v4052 = vunpack.c.h.b16 %v3578
      %v4053 = vunpack.c.l.b16 %v3579
      %v4054 = vunpack.c.h.b16 %v3579
      %v4055 = vunpack.c.l.b16 %v3580
      %v4056 = vunpack.c.h.b16 %v3580
      %v4057 = vunpack.c.l.b16 %v3581
      %v4058 = vunpack.c.l.b16 %v3582
      %v4059 = vunpack.c.h.b16 %v3582
      %v4060 = vunpack.c.l.b16 %v3583
      %v4061 = vunpack.c.h.b16 %v3583
      %v4062 = vunpack.c.l.b16 %v3584
      %v4063 = vunpack.c.h.b16 %v3584
      %v4064 = vunpack.c.l.b16 %v3585
      %v4065 = vunpack.c.h.b16 %v3585
      %v4066 = vunpack.c.l.b16 %v3586
      %v4067 = vunpack.c.l.b16 %v3587
      %v4068 = vunpack.c.h.b16 %v3587
      %v4069 = vunpack.c.l.b16 %v3588
      %v4070 = vunpack.c.h.b16 %v3588
      %v4071 = vunpack.c.l.b16 %v3589
      %v4072 = vunpack.c.h.b16 %v3589
      %v4073 = vunpack.c.l.b16 %v3590
      %v4074 = vunpack.c.h.b16 %v3590
      %v4075 = vunpack.c.l.b16 %v3591
      %v4076 = vunpack.c.l.b16 %v3592
      %v4077 = vunpack.c.h.b16 %v3592
      %v4078 = vunpack.c.l.b16 %v3593
      %v4079 = vunpack.c.h.b16 %v3593
      %v4080 = vunpack.c.l.b16 %v3594
      %v4081 = vunpack.c.h.b16 %v3594
      %v4082 = vunpack.c.l.b16 %v3595
      %v4083 = vunpack.c.h.b16 %v3595
      %v4084 = vunpack.c.l.b16 %v3596
      %v4085 = vunpack.c.l.b16 %v3597
      %v4086 = vunpack.c.h.b16 %v3597
      %v4087 = vunpack.c.l.b16 %v3598
      %v4088 = vunpack.c.h.b16 %v3598
      %v4089 = vunpack.c.l.b16 %v3599
      %v4090 = vunpack.c.h.b16 %v3599
      %v4091 = vunpack.c.l.b16 %v3600
      %v4092 = vunpack.c.h.b16 %v3600
      %v4093 = vunpack.c.l.b16 %v3601
      %v4094 = vunpack.c.l.b16 %v3602
      %v4095 = vunpack.c.h.b16 %v3602
      %v4096 = vunpack.c.l.b16 %v3603
      %v4097 = vunpack.c.h.b16 %v3603
      %v4098 = vunpack.c.l.b16 %v3604
      %v4099 = vunpack.c.h.b16 %v3604
      %v4100 = vunpack.c.l.b16 %v3605
      %v4101 = vunpack.c.h.b16 %v3605
      %v4102 = vunpack.c.l.b16 %v3606
      %v4103 = vunpack.c.l.b16 %v3607
      %v4104 = vunpack.c.h.b16 %v3607
      %v4105 = vunpack.c.l.b16 %v3608
      %v4106 = vunpack.c.h.b16 %v3608
      %v4107 = vunpack.c.l.b16 %v3609
      %v4108 = vunpack.c.h.b16 %v3609
      %v4109 = vunpack.c.l.b16 %v3610
      %v4110 = vunpack.c.h.b16 %v3610
      %v4111 = vunpack.c.l.b16 %v3611
      %v4112 = vunpack.c.l.b16 %v3612
      %v4113 = vunpack.c.h.b16 %v3612
      %v4114 = vunpack.c.l.b16 %v3613
      %v4115 = vunpack.c.h.b16 %v3613
      %v4116 = vunpack.c.l.b16 %v3614
      %v4117 = vunpack.c.h.b16 %v3614
      %v4118 = vunpack.c.l.b16 %v3615
      %v4119 = vunpack.c.h.b16 %v3615
      %v4120 = vunpack.c.l.b16 %v3616
      %v4121 = vunpack.c.l.b16 %v3617
      %v4122 = vunpack.c.h.b16 %v3617
      %v4123 = vunpack.c.l.b16 %v3618
      %v4124 = vunpack.c.h.b16 %v3618
      %v4125 = vunpack.c.l.b16 %v3619
      %v4126 = vunpack.c.h.b16 %v3619
      %v4127 = vunpack.c.l.b16 %v3620
      %v4128 = vunpack.c.h.b16 %v3620
      %v4129 = vunpack.c.l.b16 %v3621
      %v4130 = vunpack.c.l.b16 %v3622
      %v4131 = vunpack.c.h.b16 %v3622
      %v4132 = vunpack.c.l.b16 %v3623
      %v4133 = vunpack.c.h.b16 %v3623
      %v4134 = vunpack.c.l.b16 %v3624
      %v4135 = vunpack.c.h.b16 %v3624
      %v4136 = vunpack.c.l.b16 %v3625
      %v4137 = vunpack.c.h.b16 %v3625
      %v4138 = vunpack.c.l.b16 %v3626
      %v4139 = vunpack.c.l.b16 %v3627
      %v4140 = vunpack.c.h.b16 %v3627
      %v4141 = vunpack.c.l.b16 %v3628
      %v4142 = vunpack.c.h.b16 %v3628
      %v4143 = vunpack.c.l.b16 %v3629
      %v4144 = vunpack.c.h.b16 %v3629
      %v4145 = vunpack.c.l.b16 %v3630
      %v4146 = vunpack.c.h.b16 %v3630
      %v4147 = vunpack.c.l.b16 %v3631
      %v4148 = vunpack.c.l.b16 %v3632
      %v4149 = vunpack.c.h.b16 %v3632
      %v4150 = vunpack.c.l.b16 %v3633
      %v4151 = vunpack.c.h.b16 %v3633
      %v4152 = vunpack.c.l.b16 %v3634
      %v4153 = vunpack.c.h.b16 %v3634
      %v4154 = vunpack.c.l.b16 %v3635
      %v4155 = vunpack.c.h.b16 %v3635
      %v4156 = vunpack.c.l.b16 %v3636
      %v4157 = vunpack.c.l.b16 %v3637
      %v4158 = vunpack.c.h.b16 %v3637
      %v4159 = vunpack.c.l.b16 %v3638
      %v4160 = vunpack.c.h.b16 %v3638
      %v4161 = vunpack.c.l.b16 %v3639
      %v4162 = vunpack.c.h.b16 %v3639
      %v4163 = vunpack.c.l.b16 %v3640
      %v4164 = vunpack.c.h.b16 %v3640
      %v4165 = vunpack.c.l.b16 %v3641
      %v4166 = vunpack.c.l.b16 %v3642
      %v4167 = vunpack.c.h.b16 %v3642
      %v4168 = vunpack.c.l.b16 %v3643
      %v4169 = vunpack.c.h.b16 %v3643
      %v4170 = vunpack.c.l.b16 %v3644
      %v4171 = vunpack.c.h.b16 %v3644
      %v4172 = vunpack.c.l.b16 %v3645
      %v4173 = vunpack.c.h.b16 %v3645
      %v4174 = vunpack.c.l.b16 %v3646
      %v4175 = vunpack.c.l.b16 %v3647
      %v4176 = vunpack.c.h.b16 %v3647
      %v4177 = vunpack.c.l.b16 %v3648
      %v4178 = vunpack.c.h.b16 %v3648
      %v4179 = vunpack.c.l.b16 %v3649
      %v4180 = vunpack.c.h.b16 %v3649
      %v4181 = vunpack.c.l.b16 %v3650
      %v4182 = vunpack.c.h.b16 %v3650
      %v4183 = vunpack.c.l.b16 %v3651
      %v4184 = vunpack.c.l.b16 %v3652
      %v4185 = vunpack.c.h.b16 %v3652
      %v4186 = vunpack.c.l.b16 %v3653
      %v4187 = vunpack.c.h.b16 %v3653
      %v4188 = vunpack.c.l.b16 %v3654
      %v4189 = vunpack.c.h.b16 %v3654
      %v4190 = vunpack.c.l.b16 %v3655
      %v4191 = vunpack.c.h.b16 %v3655
      %v4192 = vunpack.c.l.b16 %v3656
      %v4193 = vunpack.c.l.b16 %v3657
      %v4194 = vunpack.c.h.b16 %v3657
      %v4195 = vunpack.c.l.b16 %v3658
      %v4196 = vunpack.c.h.b16 %v3658
      %v4197 = vunpack.c.l.b16 %v3659
      %v4198 = vunpack.c.h.b16 %v3659
      %v4199 = vunpack.c.l.b16 %v3660
      %v4200 = vunpack.c.h.b16 %v3660
      %v4201 = vunpack.c.l.b16 %v3661
      %v4202 = vunpack.c.l.b16 %v3662
      %v4203 = vunpack.c.h.b16 %v3662
      %v4204 = vunpack.c.l.b16 %v3663
      %v4205 = vunpack.c.h.b16 %v3663
      %v4206 = vunpack.c.l.b16 %v3664
      %v4207 = vunpack.c.h.b16 %v3664
      %v4208 = vunpack.c.l.b16 %v3665
      %v4209 = vunpack.c.h.b16 %v3665
      %v4210 = vunpack.c.l.b16 %v3666
      %v4211 = vunpack.c.l.b16 %v3667
      %v4212 = vunpack.c.h.b16 %v3667
      %v4213 = vunpack.c.l.b16 %v3668
      %v4214 = vunpack.c.h.b16 %v3668
      %v4215 = vunpack.c.l.b16 %v3669
      %v4216 = vunpack.c.h.b16 %v3669
      %v4217 = vunpack.c.l.b16 %v3670
      %v4218 = vunpack.c.h.b16 %v3670
      %v4219 = vunpack.c.l.b16 %v3671
      %v4220 = vunpack.c.l.b16 %v3672
      %v4221 = vunpack.c.h.b16 %v3672
      %v4222 = vunpack.c.l.b16 %v3673
      %v4223 = vunpack.c.h.b16 %v3673
      %v4224 = vunpack.c.l.b16 %v3674
      %v4225 = vunpack.c.h.b16 %v3674
      %v4226 = vunpack.c.l.b16 %v3675
      %v4227 = vunpack.c.h.b16 %v3675
      %v4228 = vunpack.c.l.b16 %v3676
      %v4229 = vunpack.c.l.b16 %v3677
      %v4230 = vunpack.c.h.b16 %v3677
      %v4231 = vunpack.c.l.b16 %v3678
      %v4232 = vunpack.c.h.b16 %v3678
      %v4233 = vunpack.c.l.b16 %v3679
      %v4234 = vunpack.c.h.b16 %v3679
      %v4235 = vunpack.c.l.b16 %v3680
      %v4236 = vunpack.c.h.b16 %v3680
      %v4237 = vunpack.c.l.b16 %v3681
      %v4238 = vunpack.c.l.b16 %v3682
      %v4239 = vunpack.c.h.b16 %v3682
      %v4240 = vunpack.c.l.b16 %v3683
      %v4241 = vunpack.c.h.b16 %v3683
      %v4242 = vunpack.c.l.b16 %v3684
      %v4243 = vunpack.c.h.b16 %v3684
      %v4244 = vunpack.c.l.b16 %v3685
      %v4245 = vunpack.c.h.b16 %v3685
      %v4246 = vunpack.c.l.b16 %v3686
      %v4247 = vunpack.c.l.b16 %v3687
      %v4248 = vunpack.c.h.b16 %v3687
      %v4249 = vunpack.c.l.b16 %v3688
      %v4250 = vunpack.c.h.b16 %v3688
      %v4251 = vunpack.c.l.b16 %v3689
      %v4252 = vunpack.c.h.b16 %v3689
      %v4253 = vunpack.c.l.b16 %v3690
      %v4254 = vunpack.c.h.b16 %v3690
      %v4255 = vunpack.c.l.b16 %v3691
      %v4256 = vunpack.c.l.b16 %v3692
      %v4257 = vunpack.c.h.b16 %v3692
      %v4258 = vunpack.c.l.b16 %v3693
      %v4259 = vunpack.c.h.b16 %v3693
      %v4260 = vunpack.c.l.b16 %v3694
      %v4261 = vunpack.c.h.b16 %v3694
      %v4262 = vunpack.c.l.b16 %v3695
      %v4263 = vunpack.c.h.b16 %v3695
      %v4264 = vunpack.c.l.b16 %v3696
      %v4265 = vunpack.c.l.b16 %v3697
      %v4266 = vunpack.c.h.b16 %v3697
      %v4267 = vunpack.c.l.b16 %v3698
      %v4268 = vunpack.c.h.b16 %v3698
      %v4269 = vunpack.c.l.b16 %v3699
      %v4270 = vunpack.c.h.b16 %v3699
      %v4271 = vunpack.c.l.b16 %v3700
      %v4272 = vunpack.c.h.b16 %v3700
      %v4273 = vunpack.c.l.b16 %v3701
      %v4274 = vunpack.c.l.b16 %v3702
      %v4275 = vunpack.c.h.b16 %v3702
      %v4276 = vunpack.c.l.b16 %v3703
      %v4277 = vunpack.c.h.b16 %v3703
      %v4278 = vunpack.c.l.b16 %v3704
      %v4279 = vunpack.c.h.b16 %v3704
      %v4280 = vunpack.c.l.b16 %v3705
      %v4281 = vunpack.c.h.b16 %v3705
      %v4282 = vunpack.c.l.b16 %v3706
      %v4283 = vunpack.c.l.b16 %v3707
      %v4284 = vunpack.c.h.b16 %v3707
      %v4285 = vunpack.c.l.b16 %v3708
      %v4286 = vunpack.c.h.b16 %v3708
      %v4287 = vunpack.c.l.b16 %v3709
      %v4288 = vunpack.c.h.b16 %v3709
      %v4289 = vunpack.c.l.b16 %v3710
      %v4290 = vunpack.c.h.b16 %v3710
      %v4291 = vunpack.c.l.b16 %v3711
      %v4292 = vunpack.c.l.b16 %v3712
      %v4293 = vunpack.c.h.b16 %v3712
      %v4294 = vunpack.c.l.b16 %v3713
      %v4295 = vunpack.c.h.b16 %v3713
      %v4296 = vunpack.c.l.b16 %v3714
      %v4297 = vunpack.c.h.b16 %v3714
      %v4298 = vunpack.c.l.b16 %v3715
      %v4299 = vunpack.c.h.b16 %v3715
      %v4300 = vunpack.c.l.b16 %v3716
      %v4301 = vunpack.c.l.b16 %v3717
      %v4302 = vunpack.c.h.b16 %v3717
      %v4303 = vunpack.c.l.b16 %v3718
      %v4304 = vunpack.c.h.b16 %v3718
      %v4305 = vunpack.c.l.b16 %v3719
      %v4306 = vunpack.c.h.b16 %v3719
      %v4307 = vunpack.c.l.b16 %v3720
      %v4308 = vunpack.c.h.b16 %v3720
      %v4309 = vunpack.c.l.b16 %v3721
      %v4310 = vunpack.c.l.b16 %v3722
      %v4311 = vunpack.c.h.b16 %v3722
      %v4312 = vunpack.c.l.b16 %v3723
      %v4313 = vunpack.c.h.b16 %v3723
      %v4314 = vunpack.c.l.b16 %v3724
      %v4315 = vunpack.c.h.b16 %v3724
      %v4316 = vunpack.c.l.b16 %v3725
      %v4317 = vunpack.c.h.b16 %v3725
      %v4318 = vunpack.c.l.b16 %v3726
      %v4319 = vpack.c.b16 %v4040, %v4031
      %v4320 = vpack.c.b16 %v4041, %v4032
      %v4321 = vpack.c.b16 %v4042, %v4033
      %v4322 = vpack.c.b16 %v4043, %v4034
      %v4323 = vpack.c.b16 %v4044, %v4035
      %v4324 = vpack.c.b16 %v4045, %v4036
      %v4325 = vpack.c.b16 %v4046, %v4037
      %v4326 = vpack.c.b16 %v4047, %v4038
      %v4327 = vpack.c.b16 %v4048, %v4039
      %v4328 = vpack.c.b16 %v4058, %v4049
      %v4329 = vpack.c.b16 %v4059, %v4050
      %v4330 = vpack.c.b16 %v4060, %v4051
      %v4331 = vpack.c.b16 %v4061, %v4052
      %v4332 = vpack.c.b16 %v4062, %v4053
      %v4333 = vpack.c.b16 %v4063, %v4054
      %v4334 = vpack.c.b16 %v4064, %v4055
      %v4335 = vpack.c.b16 %v4065, %v4056
      %v4336 = vpack.c.b16 %v4066, %v4057
      %v4337 = vpack.c.b16 %v4076, %v4067
      %v4338 = vpack.c.b16 %v4077, %v4068
      %v4339 = vpack.c.b16 %v4078, %v4069
      %v4340 = vpack.c.b16 %v4079, %v4070
      %v4341 = vpack.c.b16 %v4080, %v4071
      %v4342 = vpack.c.b16 %v4081, %v4072
      %v4343 = vpack.c.b16 %v4082, %v4073
      %v4344 = vpack.c.b16 %v4083, %v4074
      %v4345 = vpack.c.b16 %v4084, %v4075
      %v4346 = vpack.c.b16 %v4094, %v4085
      %v4347 = vpack.c.b16 %v4095, %v4086
      %v4348 = vpack.c.b16 %v4096, %v4087
      %v4349 = vpack.c.b16 %v4097, %v4088
      %v4350 = vpack.c.b16 %v4098, %v4089
      %v4351 = vpack.c.b16 %v4099, %v4090
      %v4352 = vpack.c.b16 %v4100, %v4091
      %v4353 = vpack.c.b16 %v4101, %v4092
      %v4354 = vpack.c.b16 %v4102, %v4093
      %v4355 = vpack.c.b16 %v4112, %v4103
      %v4356 = vpack.c.b16 %v4113, %v4104
      %v4357 = vpack.c.b16 %v4114, %v4105
      %v4358 = vpack.c.b16 %v4115, %v4106
      %v4359 = vpack.c.b16 %v4116, %v4107
      %v4360 = vpack.c.b16 %v4117, %v4108
      %v4361 = vpack.c.b16 %v4118, %v4109
      %v4362 = vpack.c.b16 %v4119, %v4110
      %v4363 = vpack.c.b16 %v4120, %v4111
      %v4364 = vpack.c.b16 %v4130, %v4121
      %v4365 = vpack.c.b16 %v4131, %v4122
      %v4366 = vpack.c.b16 %v4132, %v4123
      %v4367 = vpack.c.b16 %v4133, %v4124
      %v4368 = vpack.c.b16 %v4134, %v4125
      %v4369 = vpack.c.b16 %v4135, %v4126
      %v4370 = vpack.c.b16 %v4136, %v4127
      %v4371 = vpack.c.b16 %v4137, %v4128
      %v4372 = vpack.c.b16 %v4138, %v4129
      %v4373 = vpack.c.b16 %v4148, %v4139
      %v4374 = vpack.c.b16 %v4149, %v4140
      %v4375 = vpack.c.b16 %v4150, %v4141
      %v4376 = vpack.c.b16 %v4151, %v4142
      %v4377 = vpack.c.b16 %v4152, %v4143
      %v4378 = vpack.c.b16 %v4153, %v4144
      %v4379 = vpack.c.b16 %v4154, %v4145
      %v4380 = vpack.c.b16 %v4155, %v4146
      %v4381 = vpack.c.b16 %v4156, %v4147
      %v4382 = vpack.c.b16 %v4166, %v4157
      %v4383 = vpack.c.b16 %v4167, %v4158
      %v4384 = vpack.c.b16 %v4168, %v4159
      %v4385 = vpack.c.b16 %v4169, %v4160
      %v4386 = vpack.c.b16 %v4170, %v4161
      %v4387 = vpack.c.b16 %v4171, %v4162
      %v4388 = vpack.c.b16 %v4172, %v4163
      %v4389 = vpack.c.b16 %v4173, %v4164
      %v4390 = vpack.c.b16 %v4174, %v4165
      %v4391 = vpack.c.b16 %v4184, %v4175
      %v4392 = vpack.c.b16 %v4185, %v4176
      %v4393 = vpack.c.b16 %v4186, %v4177
      %v4394 = vpack.c.b16 %v4187, %v4178
      %v4395 = vpack.c.b16 %v4188, %v4179
      %v4396 = vpack.c.b16 %v4189, %v4180
      %v4397 = vpack.c.b16 %v4190, %v4181
      %v4398 = vpack.c.b16 %v4191, %v4182
      %v4399 = vpack.c.b16 %v4192, %v4183
      %v4400 = vpack.c.b16 %v4202, %v4193
      %v4401 = vpack.c.b16 %v4203, %v4194
      %v4402 = vpack.c.b16 %v4204, %v4195
      %v4403 = vpack.c.b16 %v4205, %v4196
      %v4404 = vpack.c.b16 %v4206, %v4197
      %v4405 = vpack.c.b16 %v4207, %v4198
      %v4406 = vpack.c.b16 %v4208, %v4199
      %v4407 = vpack.c.b16 %v4209, %v4200
      %v4408 = vpack.c.b16 %v4210, %v4201
      %v4409 = vpack.c.b16 %v4220, %v4211
      %v4410 = vpack.c.b16 %v4221, %v4212
      %v4411 = vpack.c.b16 %v4222, %v4213
      %v4412 = vpack.c.b16 %v4223, %v4214
      %v4413 = vpack.c.b16 %v4224, %v4215
      %v4414 = vpack.c.b16 %v4225, %v4216
      %v4415 = vpack.c.b16 %v4226, %v4217
      %v4416 = vpack.c.b16 %v4227, %v4218
      %v4417 = vpack.c.b16 %v4228, %v4219
      %v4418 = vpack.c.b16 %v4238, %v4229
      %v4419 = vpack.c.b16 %v4239, %v4230
      %v4420 = vpack.c.b16 %v4240, %v4231
      %v4421 = vpack.c.b16 %v4241, %v4232
      %v4422 = vpack.c.b16 %v4242, %v4233
      %v4423 = vpack.c.b16 %v4243, %v4234
      %v4424 = vpack.c.b16 %v4244, %v4235
      %v4425 = vpack.c.b16 %v4245, %v4236
      %v4426 = vpack.c.b16 %v4246, %v4237
      %v4427 = vpack.c.b16 %v4256, %v4247
      %v4428 = vpack.c.b16 %v4257, %v4248
      %v4429 = vpack.c.b16 %v4258, %v4249
      %v4430 = vpack.c.b16 %v4259, %v4250
      %v4431 = vpack.c.b16 %v4260, %v4251
      %v4432 = vpack.c.b16 %v4261, %v4252
      %v4433 = vpack.c.b16 %v4262, %v4253
      %v4434 = vpack.c.b16 %v4263, %v4254
      %v4435 = vpack.c.b16 %v4264, %v4255
      %v4436 = vpack.c.b16 %v4274, %v4265
      %v4437 = vpack.c.b16 %v4275, %v4266
      %v4438 = vpack.c.b16 %v4276, %v4267
      %v4439 = vpack.c.b16 %v4277, %v4268
      %v4440 = vpack.c.b16 %v4278, %v4269
      %v4441 = vpack.c.b16 %v4279, %v4270
      %v4442 = vpack.c.b16 %v4280, %v4271
      %v4443 = vpack.c.b16 %v4281, %v4272
      %v4444 = vpack.c.b16 %v4282, %v4273
      %v4445 = vpack.c.b16 %v4292, %v4283
      %v4446 = vpack.c.b16 %v4293, %v4284
      %v4447 = vpack.c.b16 %v4294, %v4285
      %v4448 = vpack.c.b16 %v4295, %v4286
      %v4449 = vpack.c.b16 %v4296, %v4287
      %v4450 = vpack.c.b16 %v4297, %v4288
      %v4451 = vpack.c.b16 %v4298, %v4289
      %v4452 = vpack.c.b16 %v4299, %v4290
      %v4453 = vpack.c.b16 %v4300, %v4291
      %v4454 = vpack.c.b16 %v4310, %v4301
      %v4455 = vpack.c.b16 %v4311, %v4302
      %v4456 = vpack.c.b16 %v4312, %v4303
      %v4457 = vpack.c.b16 %v4313, %v4304
      %v4458 = vpack.c.b16 %v4314, %v4305
      %v4459 = vpack.c.b16 %v4315, %v4306
      %v4460 = vpack.c.b16 %v4316, %v4307
      %v4461 = vpack.c.b16 %v4317, %v4308
      %v4462 = vpack.c.b16 %v4318, %v4309
      %v4751 = vunpack.c.l.b16 %v3727
      %v4752 = vunpack.c.l.b16 %v3728
      %v4753 = vunpack.c.l.b16 %v3729
      %v4754 = vunpack.c.l.b16 %v3730
      %v4755 = vunpack.c.l.b16 %v3731
      %v4756 = vunpack.c.l.b16 %v3732
      %v4757 = vunpack.c.l.b16 %v3733
      %v4758 = vunpack.c.l.b16 %v3734
      %v4759 = vunpack.c.l.b16 %v3735
      %v4760 = vunpack.c.l.b16 %v3736
      %v4761 = vunpack.c.l.b16 %v3737
      %v4762 = vunpack.c.l.b16 %v3738
      %v4763 = vunpack.c.l.b16 %v3739
      %v4764 = vunpack.c.l.b16 %v3740
      %v4765 = vunpack.c.l.b16 %v3741
      %v4766 = vunpack.c.l.b16 %v3742
      %v4767 = vunpack.c.l.b16 %v3743
      %v4768 = vunpack.c.l.b16 %v3744
      %v4769 = vunpack.c.l.b16 %v3745
      %v4770 = vunpack.c.l.b16 %v3746
      %v4771 = vunpack.c.l.b16 %v3747
      %v4772 = vunpack.c.l.b16 %v3748
      %v4773 = vunpack.c.l.b16 %v3749
      %v4774 = vunpack.c.l.b16 %v3750
      %v4775 = vunpack.c.l.b16 %v3751
      %v4776 = vunpack.c.l.b16 %v3752
      %v4777 = vunpack.c.l.b16 %v3753
      %v4778 = vunpack.c.l.b16 %v3754
      %v4779 = vunpack.c.l.b16 %v3755
      %v4780 = vunpack.c.l.b16 %v3756
      %v4781 = vunpack.c.l.b16 %v3757
      %v4782 = vunpack.c.l.b16 %v3758
      %v4783 = vunpack.c.l.b16 %v3759
      %v4784 = vunpack.c.l.b16 %v3760
      %v4785 = vunpack.c.l.b16 %v3761
      %v4786 = vunpack.c.l.b16 %v3762
      %v4787 = vunpack.c.l.b16 %v3763
      %v4788 = vunpack.c.l.b16 %v3764
      %v4789 = vunpack.c.l.b16 %v3765
      %v4790 = vunpack.c.l.b16 %v3766
      %v4791 = vunpack.c.l.b16 %v3767
      %v4792 = vunpack.c.l.b16 %v3768
      %v4793 = vunpack.c.l.b16 %v3769
      %v4794 = vunpack.c.l.b16 %v3770
      %v4795 = vunpack.c.l.b16 %v3771
      %v4796 = vunpack.c.l.b16 %v3772
      %v4797 = vunpack.c.l.b16 %v3773
      %v4798 = vunpack.c.l.b16 %v3774
      %v4799 = vunpack.c.l.b16 %v3775
      %v4800 = vunpack.c.l.b16 %v3776
      %v4801 = vunpack.c.l.b16 %v3777
      %v4802 = vunpack.c.l.b16 %v3778
      %v4803 = vunpack.c.l.b16 %v3779
      %v4804 = vunpack.c.l.b16 %v3780
      %v4805 = vunpack.c.l.b16 %v3781
      %v4806 = vunpack.c.l.b16 %v3782
      %v4807 = vunpack.c.l.b16 %v3783
      %v4808 = vunpack.c.l.b16 %v3784
      %v4809 = vunpack.c.l.b16 %v3785
      %v4810 = vunpack.c.l.b16 %v3786
      %v4811 = vunpack.c.l.b16 %v3787
      %v4812 = vunpack.c.l.b16 %v3788
      %v4813 = vunpack.c.l.b16 %v3789
      %v4814 = vunpack.c.l.b16 %v3790
      %v4815 = vunpack.c.l.b16 %v3791
      %v4816 = vunpack.c.l.b16 %v3792
      %v4817 = vunpack.c.l.b16 %v3793
      %v4818 = vunpack.c.l.b16 %v3794
      %v4819 = vunpack.c.l.b16 %v3795
      %v4820 = vunpack.c.l.b16 %v3796
      %v4821 = vunpack.c.l.b16 %v3797
      %v4822 = vunpack.c.l.b16 %v3798
      %v4823 = vunpack.c.l.b16 %v3799
      %v4824 = vunpack.c.l.b16 %v3800
      %v4825 = vunpack.c.l.b16 %v3801
      %v4826 = vunpack.c.l.b16 %v3802
      %v4827 = vunpack.c.l.b16 %v3803
      %v4828 = vunpack.c.l.b16 %v3804
      %v4829 = vunpack.c.l.b16 %v3805
      %v4830 = vunpack.c.l.b16 %v3806
      %v4831 = vunpack.c.l.b16 %v3807
      %v4832 = vunpack.c.l.b16 %v3808
      %v4833 = vunpack.c.l.b16 %v3809
      %v4834 = vunpack.c.l.b16 %v3810
      %v4835 = vunpack.c.l.b16 %v3811
      %v4836 = vunpack.c.l.b16 %v3812
      %v4837 = vunpack.c.l.b16 %v3813
      %v4838 = vunpack.c.l.b16 %v3814
      %v4839 = vunpack.c.l.b16 %v3815
      %v4840 = vunpack.c.l.b16 %v3816
      %v4841 = vunpack.c.l.b16 %v3817
      %v4842 = vunpack.c.l.b16 %v3818
      %v4843 = vunpack.c.l.b16 %v3819
      %v4844 = vunpack.c.l.b16 %v3820
      %v4845 = vunpack.c.l.b16 %v3821
      %v4846 = vunpack.c.l.b16 %v3822
      %v4847 = vunpack.c.l.b16 %v3823
      %v4848 = vunpack.c.l.b16 %v3824
      %v4849 = vunpack.c.l.b16 %v3825
      %v4850 = vunpack.c.l.b16 %v3826
      %v4851 = vunpack.c.l.b16 %v3827
      %v4852 = vunpack.c.l.b16 %v3828
      %v4853 = vunpack.c.l.b16 %v3829
      %v4854 = vunpack.c.l.b16 %v3830
      %v4855 = vunpack.c.l.b16 %v3831
      %v4856 = vunpack.c.l.b16 %v3832
      %v4857 = vunpack.c.l.b16 %v3833
      %v4858 = vunpack.c.l.b16 %v3834
      %v4859 = vunpack.c.l.b16 %v3835
      %v4860 = vunpack.c.l.b16 %v3836
      %v4861 = vunpack.c.l.b16 %v3837
      %v4862 = vunpack.c.l.b16 %v3838
      %v4863 = vunpack.c.l.b16 %v3839
      %v4864 = vunpack.c.l.b16 %v3840
      %v4865 = vunpack.c.l.b16 %v3841
      %v4866 = vunpack.c.l.b16 %v3842
      %v4867 = vunpack.c.l.b16 %v3843
      %v4868 = vunpack.c.l.b16 %v3844
      %v4869 = vunpack.c.l.b16 %v3845
      %v4870 = vunpack.c.l.b16 %v3846
      %v4871 = vunpack.c.l.b16 %v3847
      %v4872 = vunpack.c.l.b16 %v3848
      %v4873 = vunpack.c.l.b16 %v3849
      %v4874 = vunpack.c.l.b16 %v3850
      %v4875 = vunpack.c.l.b16 %v3851
      %v4876 = vunpack.c.l.b16 %v3852
      %v4877 = vunpack.c.l.b16 %v3853
      %v4878 = vunpack.c.l.b16 %v3854
      %v4879 = vunpack.c.l.b16 %v3855
      %v4880 = vunpack.c.l.b16 %v3856
      %v4881 = vunpack.c.l.b16 %v3857
      %v4882 = vunpack.c.l.b16 %v3858
      %v4883 = vunpack.c.l.b16 %v3859
      %v4884 = vunpack.c.l.b16 %v3860
      %v4885 = vunpack.c.l.b16 %v3861
      %v4886 = vunpack.c.l.b16 %v3862
      %v4887 = vunpack.c.l.b16 %v3863
      %v4888 = vunpack.c.l.b16 %v3864
      %v4889 = vunpack.c.l.b16 %v3865
      %v4890 = vunpack.c.l.b16 %v3866
      %v4891 = vunpack.c.l.b16 %v3867
      %v4892 = vunpack.c.l.b16 %v3868
      %v4893 = vunpack.c.l.b16 %v3869
      %v4894 = vunpack.c.l.b16 %v3870
      %v4895 = vpack.c.b16 %v4752, %v4751
      %v4896 = vpack.c.b16 %v4754, %v4753
      %v4897 = vpack.c.b16 %v4756, %v4755
      %v4898 = vpack.c.b16 %v4758, %v4757
      %v4899 = vpack.c.b16 %v4760, %v4759
      %v4900 = vpack.c.b16 %v4762, %v4761
      %v4901 = vpack.c.b16 %v4764, %v4763
      %v4902 = vpack.c.b16 %v4766, %v4765
      %v4903 = vpack.c.b16 %v4768, %v4767
      %v4904 = vpack.c.b16 %v4770, %v4769
      %v4905 = vpack.c.b16 %v4772, %v4771
      %v4906 = vpack.c.b16 %v4774, %v4773
      %v4907 = vpack.c.b16 %v4776, %v4775
      %v4908 = vpack.c.b16 %v4778, %v4777
      %v4909 = vpack.c.b16 %v4780, %v4779
      %v4910 = vpack.c.b16 %v4782, %v4781
      %v4911 = vpack.c.b16 %v4784, %v4783
      %v4912 = vpack.c.b16 %v4786, %v4785
      %v4913 = vpack.c.b16 %v4788, %v4787
      %v4914 = vpack.c.b16 %v4790, %v4789
      %v4915 = vpack.c.b16 %v4792, %v4791
      %v4916 = vpack.c.b16 %v4794, %v4793
      %v4917 = vpack.c.b16 %v4796, %v4795
      %v4918 = vpack.c.b16 %v4798, %v4797
      %v4919 = vpack.c.b16 %v4800, %v4799
      %v4920 = vpack.c.b16 %v4802, %v4801
      %v4921 = vpack.c.b16 %v4804, %v4803
      %v4922 = vpack.c.b16 %v4806, %v4805
      %v4923 = vpack.c.b16 %v4808, %v4807
      %v4924 = vpack.c.b16 %v4810, %v4809
      %v4925 = vpack.c.b16 %v4812, %v4811
      %v4926 = vpack.c.b16 %v4814, %v4813
      %v4927 = vpack.c.b16 %v4816, %v4815
      %v4928 = vpack.c.b16 %v4818, %v4817
      %v4929 = vpack.c.b16 %v4820, %v4819
      %v4930 = vpack.c.b16 %v4822, %v4821
      %v4931 = vpack.c.b16 %v4824, %v4823
      %v4932 = vpack.c.b16 %v4826, %v4825
      %v4933 = vpack.c.b16 %v4828, %v4827
      %v4934 = vpack.c.b16 %v4830, %v4829
      %v4935 = vpack.c.b16 %v4832, %v4831
      %v4936 = vpack.c.b16 %v4834, %v4833
      %v4937 = vpack.c.b16 %v4836, %v4835
      %v4938 = vpack.c.b16 %v4838, %v4837
      %v4939 = vpack.c.b16 %v4840, %v4839
      %v4940 = vpack.c.b16 %v4842, %v4841
      %v4941 = vpack.c.b16 %v4844, %v4843
      %v4942 = vpack.c.b16 %v4846, %v4845
      %v4943 = vpack.c.b16 %v4848, %v4847
      %v4944 = vpack.c.b16 %v4850, %v4849
      %v4945 = vpack.c.b16 %v4852, %v4851
      %v4946 = vpack.c.b16 %v4854, %v4853
      %v4947 = vpack.c.b16 %v4856, %v4855
      %v4948 = vpack.c.b16 %v4858, %v4857
      %v4949 = vpack.c.b16 %v4860, %v4859
      %v4950 = vpack.c.b16 %v4862, %v4861
      %v4951 = vpack.c.b16 %v4864, %v4863
      %v4952 = vpack.c.b16 %v4866, %v4865
      %v4953 = vpack.c.b16 %v4868, %v4867
      %v4954 = vpack.c.b16 %v4870, %v4869
      %v4955 = vpack.c.b16 %v4872, %v4871
      %v4956 = vpack.c.b16 %v4874, %v4873
      %v4957 = vpack.c.b16 %v4876, %v4875
      %v4958 = vpack.c.b16 %v4878, %v4877
      %v4959 = vpack.c.b16 %v4880, %v4879
      %v4960 = vpack.c.b16 %v4882, %v4881
      %v4961 = vpack.c.b16 %v4884, %v4883
      %v4962 = vpack.c.b16 %v4886, %v4885
      %v4963 = vpack.c.b16 %v4888, %v4887
      %v4964 = vpack.c.b16 %v4890, %v4889
      %v4965 = vpack.c.b16 %v4892, %v4891
      %v4966 = vpack.c.b16 %v4894, %v4893
      %5039 = vmatprep.subr.bf16.mxu0 0
      %5040 = vmatpush1.bf16.msra.mxu0 %v4902
      %5041 = vmatprep.subr.bf16.mxu0 0
      %5042 = vmatpush1.bf16.msra.mxu0 %v4901
      %5043 = vmatprep.subr.bf16.mxu0 0
      %5044 = vmatpush1.bf16.msra.mxu0 %v4900
      %5045 = vmatprep.subr.bf16.mxu0 0
      %5046 = vmatpush1.bf16.msra.mxu0 %v4899
      %5047 = vmatprep.subr.bf16.mxu0 0
      %5048 = vmatpush1.bf16.msra.mxu0 %v4898
      %5049 = vmatprep.subr.bf16.mxu0 0
      %5050 = vmatpush1.bf16.msra.mxu0 %v4897
      %5051 = vmatprep.subr.bf16.mxu0 0
      %5052 = vmatpush1.bf16.msra.mxu0 %v4896
      %5053 = vmatprep.subr.bf16.mxu0 0
      %5054 = vmatpush1.bf16.msra.mxu0 %v4895
      %5055 = vmatprep.subr.bf16.mxu0 0
      %5056 = vmatpush2.bf16.msra.mxu0 %v4910
      %5057 = vmatprep.subr.bf16.mxu0 0
      %5058 = vmatpush2.bf16.msra.mxu0 %v4909
      %5059 = vmatprep.subr.bf16.mxu0 0
      %5060 = vmatpush2.bf16.msra.mxu0 %v4908
      %5061 = vmatprep.subr.bf16.mxu0 0
      %5062 = vmatpush2.bf16.msra.mxu0 %v4907
      %5063 = vmatprep.subr.bf16.mxu0 0
      %5064 = vmatpush2.bf16.msra.mxu0 %v4906
      %5065 = vmatprep.subr.bf16.mxu0 0
      %5066 = vmatpush2.bf16.msra.mxu0 %v4905
      %5067 = vmatprep.subr.bf16.mxu0 0
      %5068 = vmatpush2.bf16.msra.mxu0 %v4904
      %5069 = vmatprep.subr.bf16.mxu0 0
      %5070 = vmatpush2.bf16.msra.mxu0 %v4903
      %5071 = vmatprep.mubr.bf16.mxu0 %v4320
      %5072 = vmatmul.mubr.bf16.gmra.mxu0 %v4319
      %v5073 = vpop.f32.mrf.mxu0
      %v5074 = vadd.f32 0.0, %v5073
      %v5075 = vpop.f32.mrf.mxu0
      %v5076 = vpop.f32.mrf.mxu0
      %v5077 = vadd.f32 0.0, %v5076
      %v5078 = vpop.f32.mrf.mxu0
      %5079 = vmatprep.mubr.bf16.mxu0 %v4329
      %5080 = vmatmul.mubr.bf16.gmra.mxu0 %v4328
      %v5081 = vpop.f32.mrf.mxu0
      %v5082 = vadd.f32 0.0, %v5081
      %v5083 = vpop.f32.mrf.mxu0
      %v5084 = vpop.f32.mrf.mxu0
      %v5085 = vadd.f32 0.0, %v5084
      %v5086 = vpop.f32.mrf.mxu0
      %5087 = vmatprep.mubr.bf16.mxu0 %v4338
      %5088 = vmatmul.mubr.bf16.gmra.mxu0 %v4337
      %v5089 = vpop.f32.mrf.mxu0
      %v5090 = vadd.f32 0.0, %v5089
      %v5091 = vpop.f32.mrf.mxu0
      %v5092 = vpop.f32.mrf.mxu0
      %v5093 = vadd.f32 0.0, %v5092
      %v5094 = vpop.f32.mrf.mxu0
      %5095 = vmatprep.mubr.bf16.mxu0 %v4347
      %5096 = vmatmul.mubr.bf16.gmra.mxu0 %v4346
      %v5097 = vpop.f32.mrf.mxu0
      %v5098 = vadd.f32 0.0, %v5097
      %v5099 = vpop.f32.mrf.mxu0
      %v5100 = vpop.f32.mrf.mxu0
      %v5101 = vadd.f32 0.0, %v5100
      %v5102 = vpop.f32.mrf.mxu0
      %5103 = vmatprep.mubr.bf16.mxu0 %v4356
      %5104 = vmatmul.mubr.bf16.gmra.mxu0 %v4355
      %v5105 = vpop.f32.mrf.mxu0
      %v5106 = vadd.f32 0.0, %v5105
      %v5107 = vpop.f32.mrf.mxu0
      %v5108 = vpop.f32.mrf.mxu0
      %v5109 = vadd.f32 0.0, %v5108
      %v5110 = vpop.f32.mrf.mxu0
      %5111 = vmatprep.mubr.bf16.mxu0 %v4365
      %5112 = vmatmul.mubr.bf16.gmra.mxu0 %v4364
      %v5113 = vpop.f32.mrf.mxu0
      %v5114 = vadd.f32 0.0, %v5113
      %v5115 = vpop.f32.mrf.mxu0
      %v5116 = vpop.f32.mrf.mxu0
      %v5117 = vadd.f32 0.0, %v5116
      %v5118 = vpop.f32.mrf.mxu0
      %5119 = vmatprep.mubr.bf16.mxu0 %v4374
      %5120 = vmatmul.mubr.bf16.gmra.mxu0 %v4373
      %v5121 = vpop.f32.mrf.mxu0
      %v5122 = vadd.f32 0.0, %v5121
      %v5123 = vpop.f32.mrf.mxu0
      %v5124 = vpop.f32.mrf.mxu0
      %v5125 = vadd.f32 0.0, %v5124
      %v5126 = vpop.f32.mrf.mxu0
      %5127 = vmatprep.mubr.bf16.mxu0 %v4383
      %5128 = vmatmul.mubr.bf16.gmra.mxu0 %v4382
      %v5129 = vpop.f32.mrf.mxu0
      %v5130 = vadd.f32 0.0, %v5129
      %v5131 = vpop.f32.mrf.mxu0
      %v5132 = vpop.f32.mrf.mxu0
      %v5133 = vadd.f32 0.0, %v5132
      %v5134 = vpop.f32.mrf.mxu0
      %5135 = vmatprep.mubr.bf16.mxu0 %v4392
      %5136 = vmatmul.mubr.bf16.gmra.mxu0 %v4391
      %v5137 = vpop.f32.mrf.mxu0
      %v5138 = vadd.f32 0.0, %v5137
      %v5139 = vpop.f32.mrf.mxu0
      %v5140 = vpop.f32.mrf.mxu0
      %v5141 = vadd.f32 0.0, %v5140
      %v5142 = vpop.f32.mrf.mxu0
      %5143 = vmatprep.mubr.bf16.mxu0 %v4401
      %5144 = vmatmul.mubr.bf16.gmra.mxu0 %v4400
      %v5145 = vpop.f32.mrf.mxu0
      %v5146 = vadd.f32 0.0, %v5145
      %v5147 = vpop.f32.mrf.mxu0
      %v5148 = vpop.f32.mrf.mxu0
      %v5149 = vadd.f32 0.0, %v5148
      %v5150 = vpop.f32.mrf.mxu0
      %5151 = vmatprep.mubr.bf16.mxu0 %v4410
      %5152 = vmatmul.mubr.bf16.gmra.mxu0 %v4409
      %v5153 = vpop.f32.mrf.mxu0
      %v5154 = vadd.f32 0.0, %v5153
      %v5155 = vpop.f32.mrf.mxu0
      %v5156 = vpop.f32.mrf.mxu0
      %v5157 = vadd.f32 0.0, %v5156
      %v5158 = vpop.f32.mrf.mxu0
      %5159 = vmatprep.mubr.bf16.mxu0 %v4419
      %5160 = vmatmul.mubr.bf16.gmra.mxu0 %v4418
      %v5161 = vpop.f32.mrf.mxu0
      %v5162 = vadd.f32 0.0, %v5161
      %v5163 = vpop.f32.mrf.mxu0
      %v5164 = vpop.f32.mrf.mxu0
      %v5165 = vadd.f32 0.0, %v5164
      %v5166 = vpop.f32.mrf.mxu0
      %5167 = vmatprep.mubr.bf16.mxu0 %v4428
      %5168 = vmatmul.mubr.bf16.gmra.mxu0 %v4427
      %v5169 = vpop.f32.mrf.mxu0
      %v5170 = vadd.f32 0.0, %v5169
      %v5171 = vpop.f32.mrf.mxu0
      %v5172 = vpop.f32.mrf.mxu0
      %v5173 = vadd.f32 0.0, %v5172
      %v5174 = vpop.f32.mrf.mxu0
      %5175 = vmatprep.mubr.bf16.mxu0 %v4437
      %5176 = vmatmul.mubr.bf16.gmra.mxu0 %v4436
      %v5177 = vpop.f32.mrf.mxu0
      %v5178 = vadd.f32 0.0, %v5177
      %v5179 = vpop.f32.mrf.mxu0
      %v5180 = vpop.f32.mrf.mxu0
      %v5181 = vadd.f32 0.0, %v5180
      %v5182 = vpop.f32.mrf.mxu0
      %5183 = vmatprep.mubr.bf16.mxu0 %v4446
      %5184 = vmatmul.mubr.bf16.gmra.mxu0 %v4445
      %v5185 = vpop.f32.mrf.mxu0
      %v5186 = vadd.f32 0.0, %v5185
      %v5187 = vpop.f32.mrf.mxu0
      %v5188 = vpop.f32.mrf.mxu0
      %v5189 = vadd.f32 0.0, %v5188
      %v5190 = vpop.f32.mrf.mxu0
      %5191 = vmatprep.mubr.bf16.mxu0 %v4455
      %5192 = vmatmul.mubr.bf16.gmra.mxu0 %v4454
      %v5193 = vpop.f32.mrf.mxu0
      %v5194 = vadd.f32 0.0, %v5193
      %v5195 = vpop.f32.mrf.mxu0
      %v5196 = vpop.f32.mrf.mxu0
      %v5197 = vadd.f32 0.0, %v5196
      %v5198 = vpop.f32.mrf.mxu0
      %5199 = vdwg.mxu0
      %5200 = vmatprep.subr.bf16.mxu0 0
      %5201 = vmatpush1.bf16.msra.mxu0 %v4918
      %5202 = vmatprep.subr.bf16.mxu0 0
      %5203 = vmatpush1.bf16.msra.mxu0 %v4917
      %5204 = vmatprep.subr.bf16.mxu0 0
      %5205 = vmatpush1.bf16.msra.mxu0 %v4916
      %5206 = vmatprep.subr.bf16.mxu0 0
      %5207 = vmatpush1.bf16.msra.mxu0 %v4915
      %5208 = vmatprep.subr.bf16.mxu0 0
      %5209 = vmatpush1.bf16.msra.mxu0 %v4914
      %5210 = vmatprep.subr.bf16.mxu0 0
      %5211 = vmatpush1.bf16.msra.mxu0 %v4913
      %5212 = vmatprep.subr.bf16.mxu0 0
      %5213 = vmatpush1.bf16.msra.mxu0 %v4912
      %5214 = vmatprep.subr.bf16.mxu0 0
      %5215 = vmatpush1.bf16.msra.mxu0 %v4911
      %5216 = vmatprep.subr.bf16.mxu0 0
      %5217 = vmatpush2.bf16.msra.mxu0 %v4926
      %5218 = vmatprep.subr.bf16.mxu0 0
      %5219 = vmatpush2.bf16.msra.mxu0 %v4925
      %5220 = vmatprep.subr.bf16.mxu0 0
      %5221 = vmatpush2.bf16.msra.mxu0 %v4924
      %5222 = vmatprep.subr.bf16.mxu0 0
      %5223 = vmatpush2.bf16.msra.mxu0 %v4923
      %5224 = vmatprep.subr.bf16.mxu0 0
      %5225 = vmatpush2.bf16.msra.mxu0 %v4922
      %5226 = vmatprep.subr.bf16.mxu0 0
      %5227 = vmatpush2.bf16.msra.mxu0 %v4921
      %5228 = vmatprep.subr.bf16.mxu0 0
      %5229 = vmatpush2.bf16.msra.mxu0 %v4920
      %5230 = vmatprep.subr.bf16.mxu0 0
      %5231 = vmatpush2.bf16.msra.mxu0 %v4919
      %5232 = vmatprep.mubr.bf16.mxu0 %v4322
      %5233 = vmatmul.mubr.bf16.gmra.mxu0 %v4321
      %v5234 = vpop.f32.mrf.mxu0
      %v5235 = vadd.f32 %v5074, %v5234
      %v5236 = vpop.f32.mrf.mxu0
      %v5237 = vpop.f32.mrf.mxu0
      %v5238 = vadd.f32 %v5077, %v5237
      %v5239 = vpop.f32.mrf.mxu0
      %5240 = vmatprep.mubr.bf16.mxu0 %v4331
      %5241 = vmatmul.mubr.bf16.gmra.mxu0 %v4330
      %v5242 = vpop.f32.mrf.mxu0
      %v5243 = vadd.f32 %v5082, %v5242
      %v5244 = vpop.f32.mrf.mxu0
      %v5245 = vpop.f32.mrf.mxu0
      %v5246 = vadd.f32 %v5085, %v5245
      %v5247 = vpop.f32.mrf.mxu0
      %5248 = vmatprep.mubr.bf16.mxu0 %v4340
      %5249 = vmatmul.mubr.bf16.gmra.mxu0 %v4339
      %v5250 = vpop.f32.mrf.mxu0
      %v5251 = vadd.f32 %v5090, %v5250
      %v5252 = vpop.f32.mrf.mxu0
      %v5253 = vpop.f32.mrf.mxu0
      %v5254 = vadd.f32 %v5093, %v5253
      %v5255 = vpop.f32.mrf.mxu0
      %5256 = vmatprep.mubr.bf16.mxu0 %v4349
      %5257 = vmatmul.mubr.bf16.gmra.mxu0 %v4348
      %v5258 = vpop.f32.mrf.mxu0
      %v5259 = vadd.f32 %v5098, %v5258
      %v5260 = vpop.f32.mrf.mxu0
      %v5261 = vpop.f32.mrf.mxu0
      %v5262 = vadd.f32 %v5101, %v5261
      %v5263 = vpop.f32.mrf.mxu0
      %5264 = vmatprep.mubr.bf16.mxu0 %v4358
      %5265 = vmatmul.mubr.bf16.gmra.mxu0 %v4357
      %v5266 = vpop.f32.mrf.mxu0
      %v5267 = vadd.f32 %v5106, %v5266
      %v5268 = vpop.f32.mrf.mxu0
      %v5269 = vpop.f32.mrf.mxu0
      %v5270 = vadd.f32 %v5109, %v5269
      %v5271 = vpop.f32.mrf.mxu0
      %5272 = vmatprep.mubr.bf16.mxu0 %v4367
      %5273 = vmatmul.mubr.bf16.gmra.mxu0 %v4366
      %v5274 = vpop.f32.mrf.mxu0
      %v5275 = vadd.f32 %v5114, %v5274
      %v5276 = vpop.f32.mrf.mxu0
      %v5277 = vpop.f32.mrf.mxu0
      %v5278 = vadd.f32 %v5117, %v5277
      %v5279 = vpop.f32.mrf.mxu0
      %5280 = vmatprep.mubr.bf16.mxu0 %v4376
      %5281 = vmatmul.mubr.bf16.gmra.mxu0 %v4375
      %v5282 = vpop.f32.mrf.mxu0
      %v5283 = vadd.f32 %v5122, %v5282
      %v5284 = vpop.f32.mrf.mxu0
      %v5285 = vpop.f32.mrf.mxu0
      %v5286 = vadd.f32 %v5125, %v5285
      %v5287 = vpop.f32.mrf.mxu0
      %5288 = vmatprep.mubr.bf16.mxu0 %v4385
      %5289 = vmatmul.mubr.bf16.gmra.mxu0 %v4384
      %v5290 = vpop.f32.mrf.mxu0
      %v5291 = vadd.f32 %v5130, %v5290
      %v5292 = vpop.f32.mrf.mxu0
      %v5293 = vpop.f32.mrf.mxu0
      %v5294 = vadd.f32 %v5133, %v5293
      %v5295 = vpop.f32.mrf.mxu0
      %5296 = vmatprep.mubr.bf16.mxu0 %v4394
      %5297 = vmatmul.mubr.bf16.gmra.mxu0 %v4393
      %v5298 = vpop.f32.mrf.mxu0
      %v5299 = vadd.f32 %v5138, %v5298
      %v5300 = vpop.f32.mrf.mxu0
      %v5301 = vpop.f32.mrf.mxu0
      %v5302 = vadd.f32 %v5141, %v5301
      %v5303 = vpop.f32.mrf.mxu0
      %5304 = vmatprep.mubr.bf16.mxu0 %v4403
      %5305 = vmatmul.mubr.bf16.gmra.mxu0 %v4402
      %v5306 = vpop.f32.mrf.mxu0
      %v5307 = vadd.f32 %v5146, %v5306
      %v5308 = vpop.f32.mrf.mxu0
      %v5309 = vpop.f32.mrf.mxu0
      %v5310 = vadd.f32 %v5149, %v5309
      %v5311 = vpop.f32.mrf.mxu0
      %5312 = vmatprep.mubr.bf16.mxu0 %v4412
      %5313 = vmatmul.mubr.bf16.gmra.mxu0 %v4411
      %v5314 = vpop.f32.mrf.mxu0
      %v5315 = vadd.f32 %v5154, %v5314
      %v5316 = vpop.f32.mrf.mxu0
      %v5317 = vpop.f32.mrf.mxu0
      %v5318 = vadd.f32 %v5157, %v5317
      %v5319 = vpop.f32.mrf.mxu0
      %5320 = vmatprep.mubr.bf16.mxu0 %v4421
      %5321 = vmatmul.mubr.bf16.gmra.mxu0 %v4420
      %v5322 = vpop.f32.mrf.mxu0
      %v5323 = vadd.f32 %v5162, %v5322
      %v5324 = vpop.f32.mrf.mxu0
      %v5325 = vpop.f32.mrf.mxu0
      %v5326 = vadd.f32 %v5165, %v5325
      %v5327 = vpop.f32.mrf.mxu0
      %5328 = vmatprep.mubr.bf16.mxu0 %v4430
      %5329 = vmatmul.mubr.bf16.gmra.mxu0 %v4429
      %v5330 = vpop.f32.mrf.mxu0
      %v5331 = vadd.f32 %v5170, %v5330
      %v5332 = vpop.f32.mrf.mxu0
      %v5333 = vpop.f32.mrf.mxu0
      %v5334 = vadd.f32 %v5173, %v5333
      %v5335 = vpop.f32.mrf.mxu0
      %5336 = vmatprep.mubr.bf16.mxu0 %v4439
      %5337 = vmatmul.mubr.bf16.gmra.mxu0 %v4438
      %v5338 = vpop.f32.mrf.mxu0
      %v5339 = vadd.f32 %v5178, %v5338
      %v5340 = vpop.f32.mrf.mxu0
      %v5341 = vpop.f32.mrf.mxu0
      %v5342 = vadd.f32 %v5181, %v5341
      %v5343 = vpop.f32.mrf.mxu0
      %5344 = vmatprep.mubr.bf16.mxu0 %v4448
      %5345 = vmatmul.mubr.bf16.gmra.mxu0 %v4447
      %v5346 = vpop.f32.mrf.mxu0
      %v5347 = vadd.f32 %v5186, %v5346
      %v5348 = vpop.f32.mrf.mxu0
      %v5349 = vpop.f32.mrf.mxu0
      %v5350 = vadd.f32 %v5189, %v5349
      %v5351 = vpop.f32.mrf.mxu0
      %5352 = vmatprep.mubr.bf16.mxu0 %v4457
      %5353 = vmatmul.mubr.bf16.gmra.mxu0 %v4456
      %v5354 = vpop.f32.mrf.mxu0
      %v5355 = vadd.f32 %v5194, %v5354
      %v5356 = vpop.f32.mrf.mxu0
      %v5357 = vpop.f32.mrf.mxu0
      %v5358 = vadd.f32 %v5197, %v5357
      %v5359 = vpop.f32.mrf.mxu0
      %5360 = vdwg.mxu0
      %5361 = vmatprep.subr.bf16.mxu0 0
      %5362 = vmatpush1.bf16.msra.mxu0 %v4934
      %5363 = vmatprep.subr.bf16.mxu0 0
      %5364 = vmatpush1.bf16.msra.mxu0 %v4933
      %5365 = vmatprep.subr.bf16.mxu0 0
      %5366 = vmatpush1.bf16.msra.mxu0 %v4932
      %5367 = vmatprep.subr.bf16.mxu0 0
      %5368 = vmatpush1.bf16.msra.mxu0 %v4931
      %5369 = vmatprep.subr.bf16.mxu0 0
      %5370 = vmatpush1.bf16.msra.mxu0 %v4930
      %5371 = vmatprep.subr.bf16.mxu0 0
      %5372 = vmatpush1.bf16.msra.mxu0 %v4929
      %5373 = vmatprep.subr.bf16.mxu0 0
      %5374 = vmatpush1.bf16.msra.mxu0 %v4928
      %5375 = vmatprep.subr.bf16.mxu0 0
      %5376 = vmatpush1.bf16.msra.mxu0 %v4927
      %5377 = vmatprep.subr.bf16.mxu0 0
      %5378 = vmatpush2.bf16.msra.mxu0 %v4942
      %5379 = vmatprep.subr.bf16.mxu0 0
      %5380 = vmatpush2.bf16.msra.mxu0 %v4941
      %5381 = vmatprep.subr.bf16.mxu0 0
      %5382 = vmatpush2.bf16.msra.mxu0 %v4940
      %5383 = vmatprep.subr.bf16.mxu0 0
      %5384 = vmatpush2.bf16.msra.mxu0 %v4939
      %5385 = vmatprep.subr.bf16.mxu0 0
      %5386 = vmatpush2.bf16.msra.mxu0 %v4938
      %5387 = vmatprep.subr.bf16.mxu0 0
      %5388 = vmatpush2.bf16.msra.mxu0 %v4937
      %5389 = vmatprep.subr.bf16.mxu0 0
      %5390 = vmatpush2.bf16.msra.mxu0 %v4936
      %5391 = vmatprep.subr.bf16.mxu0 0
      %5392 = vmatpush2.bf16.msra.mxu0 %v4935
      %5393 = vmatprep.mubr.bf16.mxu0 %v4324
      %5394 = vmatmul.mubr.bf16.gmra.mxu0 %v4323
      %v5395 = vpop.f32.mrf.mxu0
      %v5396 = vadd.f32 %v5235, %v5395
      %v5397 = vpop.f32.mrf.mxu0
      %v5398 = vpop.f32.mrf.mxu0
      %v5399 = vadd.f32 %v5238, %v5398
      %v5400 = vpop.f32.mrf.mxu0
      %5401 = vmatprep.mubr.bf16.mxu0 %v4333
      %5402 = vmatmul.mubr.bf16.gmra.mxu0 %v4332
      %v5403 = vpop.f32.mrf.mxu0
      %v5404 = vadd.f32 %v5243, %v5403
      %v5405 = vpop.f32.mrf.mxu0
      %v5406 = vpop.f32.mrf.mxu0
      %v5407 = vadd.f32 %v5246, %v5406
      %v5408 = vpop.f32.mrf.mxu0
      %5409 = vmatprep.mubr.bf16.mxu0 %v4342
      %5410 = vmatmul.mubr.bf16.gmra.mxu0 %v4341
      %v5411 = vpop.f32.mrf.mxu0
      %v5412 = vadd.f32 %v5251, %v5411
      %v5413 = vpop.f32.mrf.mxu0
      %v5414 = vpop.f32.mrf.mxu0
      %v5415 = vadd.f32 %v5254, %v5414
      %v5416 = vpop.f32.mrf.mxu0
      %5417 = vmatprep.mubr.bf16.mxu0 %v4351
      %5418 = vmatmul.mubr.bf16.gmra.mxu0 %v4350
      %v5419 = vpop.f32.mrf.mxu0
      %v5420 = vadd.f32 %v5259, %v5419
      %v5421 = vpop.f32.mrf.mxu0
      %v5422 = vpop.f32.mrf.mxu0
      %v5423 = vadd.f32 %v5262, %v5422
      %v5424 = vpop.f32.mrf.mxu0
      %5425 = vmatprep.mubr.bf16.mxu0 %v4360
      %5426 = vmatmul.mubr.bf16.gmra.mxu0 %v4359
      %v5427 = vpop.f32.mrf.mxu0
      %v5428 = vadd.f32 %v5267, %v5427
      %v5429 = vpop.f32.mrf.mxu0
      %v5430 = vpop.f32.mrf.mxu0
      %v5431 = vadd.f32 %v5270, %v5430
      %v5432 = vpop.f32.mrf.mxu0
      %5433 = vmatprep.mubr.bf16.mxu0 %v4369
      %5434 = vmatmul.mubr.bf16.gmra.mxu0 %v4368
      %v5435 = vpop.f32.mrf.mxu0
      %v5436 = vadd.f32 %v5275, %v5435
      %v5437 = vpop.f32.mrf.mxu0
      %v5438 = vpop.f32.mrf.mxu0
      %v5439 = vadd.f32 %v5278, %v5438
      %v5440 = vpop.f32.mrf.mxu0
      %5441 = vmatprep.mubr.bf16.mxu0 %v4378
      %5442 = vmatmul.mubr.bf16.gmra.mxu0 %v4377
      %v5443 = vpop.f32.mrf.mxu0
      %v5444 = vadd.f32 %v5283, %v5443
      %v5445 = vpop.f32.mrf.mxu0
      %v5446 = vpop.f32.mrf.mxu0
      %v5447 = vadd.f32 %v5286, %v5446
      %v5448 = vpop.f32.mrf.mxu0
      %5449 = vmatprep.mubr.bf16.mxu0 %v4387
      %5450 = vmatmul.mubr.bf16.gmra.mxu0 %v4386
      %v5451 = vpop.f32.mrf.mxu0
      %v5452 = vadd.f32 %v5291, %v5451
      %v5453 = vpop.f32.mrf.mxu0
      %v5454 = vpop.f32.mrf.mxu0
      %v5455 = vadd.f32 %v5294, %v5454
      %v5456 = vpop.f32.mrf.mxu0
      %5457 = vmatprep.mubr.bf16.mxu0 %v4396
      %5458 = vmatmul.mubr.bf16.gmra.mxu0 %v4395
      %v5459 = vpop.f32.mrf.mxu0
      %v5460 = vadd.f32 %v5299, %v5459
      %v5461 = vpop.f32.mrf.mxu0
      %v5462 = vpop.f32.mrf.mxu0
      %v5463 = vadd.f32 %v5302, %v5462
      %v5464 = vpop.f32.mrf.mxu0
      %5465 = vmatprep.mubr.bf16.mxu0 %v4405
      %5466 = vmatmul.mubr.bf16.gmra.mxu0 %v4404
      %v5467 = vpop.f32.mrf.mxu0
      %v5468 = vadd.f32 %v5307, %v5467
      %v5469 = vpop.f32.mrf.mxu0
      %v5470 = vpop.f32.mrf.mxu0
      %v5471 = vadd.f32 %v5310, %v5470
      %v5472 = vpop.f32.mrf.mxu0
      %5473 = vmatprep.mubr.bf16.mxu0 %v4414
      %5474 = vmatmul.mubr.bf16.gmra.mxu0 %v4413
      %v5475 = vpop.f32.mrf.mxu0
      %v5476 = vadd.f32 %v5315, %v5475
      %v5477 = vpop.f32.mrf.mxu0
      %v5478 = vpop.f32.mrf.mxu0
      %v5479 = vadd.f32 %v5318, %v5478
      %v5480 = vpop.f32.mrf.mxu0
      %5481 = vmatprep.mubr.bf16.mxu0 %v4423
      %5482 = vmatmul.mubr.bf16.gmra.mxu0 %v4422
      %v5483 = vpop.f32.mrf.mxu0
      %v5484 = vadd.f32 %v5323, %v5483
      %v5485 = vpop.f32.mrf.mxu0
      %v5486 = vpop.f32.mrf.mxu0
      %v5487 = vadd.f32 %v5326, %v5486
      %v5488 = vpop.f32.mrf.mxu0
      %5489 = vmatprep.mubr.bf16.mxu0 %v4432
      %5490 = vmatmul.mubr.bf16.gmra.mxu0 %v4431
      %v5491 = vpop.f32.mrf.mxu0
      %v5492 = vadd.f32 %v5331, %v5491
      %v5493 = vpop.f32.mrf.mxu0
      %v5494 = vpop.f32.mrf.mxu0
      %v5495 = vadd.f32 %v5334, %v5494
      %v5496 = vpop.f32.mrf.mxu0
      %5497 = vmatprep.mubr.bf16.mxu0 %v4441
      %5498 = vmatmul.mubr.bf16.gmra.mxu0 %v4440
      %v5499 = vpop.f32.mrf.mxu0
      %v5500 = vadd.f32 %v5339, %v5499
      %v5501 = vpop.f32.mrf.mxu0
      %v5502 = vpop.f32.mrf.mxu0
      %v5503 = vadd.f32 %v5342, %v5502
      %v5504 = vpop.f32.mrf.mxu0
      %5505 = vmatprep.mubr.bf16.mxu0 %v4450
      %5506 = vmatmul.mubr.bf16.gmra.mxu0 %v4449
      %v5507 = vpop.f32.mrf.mxu0
      %v5508 = vadd.f32 %v5347, %v5507
      %v5509 = vpop.f32.mrf.mxu0
      %v5510 = vpop.f32.mrf.mxu0
      %v5511 = vadd.f32 %v5350, %v5510
      %v5512 = vpop.f32.mrf.mxu0
      %5513 = vmatprep.mubr.bf16.mxu0 %v4459
      %5514 = vmatmul.mubr.bf16.gmra.mxu0 %v4458
      %v5515 = vpop.f32.mrf.mxu0
      %v5516 = vadd.f32 %v5355, %v5515
      %v5517 = vpop.f32.mrf.mxu0
      %v5518 = vpop.f32.mrf.mxu0
      %v5519 = vadd.f32 %v5358, %v5518
      %v5520 = vpop.f32.mrf.mxu0
      %5521 = vdwg.mxu0
      %5522 = vmatprep.subr.bf16.mxu0 0
      %5523 = vmatpush1.bf16.msra.mxu0 %v4950
      %5524 = vmatprep.subr.bf16.mxu0 0
      %5525 = vmatpush1.bf16.msra.mxu0 %v4949
      %5526 = vmatprep.subr.bf16.mxu0 0
      %5527 = vmatpush1.bf16.msra.mxu0 %v4948
      %5528 = vmatprep.subr.bf16.mxu0 0
      %5529 = vmatpush1.bf16.msra.mxu0 %v4947
      %5530 = vmatprep.subr.bf16.mxu0 0
      %5531 = vmatpush1.bf16.msra.mxu0 %v4946
      %5532 = vmatprep.subr.bf16.mxu0 0
      %5533 = vmatpush1.bf16.msra.mxu0 %v4945
      %5534 = vmatprep.subr.bf16.mxu0 0
      %5535 = vmatpush1.bf16.msra.mxu0 %v4944
      %5536 = vmatprep.subr.bf16.mxu0 0
      %5537 = vmatpush1.bf16.msra.mxu0 %v4943
      %5538 = vmatprep.subr.bf16.mxu0 0
      %5539 = vmatpush2.bf16.msra.mxu0 %v4958
      %5540 = vmatprep.subr.bf16.mxu0 0
      %5541 = vmatpush2.bf16.msra.mxu0 %v4957
      %5542 = vmatprep.subr.bf16.mxu0 0
      %5543 = vmatpush2.bf16.msra.mxu0 %v4956
      %5544 = vmatprep.subr.bf16.mxu0 0
      %5545 = vmatpush2.bf16.msra.mxu0 %v4955
      %5546 = vmatprep.subr.bf16.mxu0 0
      %5547 = vmatpush2.bf16.msra.mxu0 %v4954
      %5548 = vmatprep.subr.bf16.mxu0 0
      %5549 = vmatpush2.bf16.msra.mxu0 %v4953
      %5550 = vmatprep.subr.bf16.mxu0 0
      %5551 = vmatpush2.bf16.msra.mxu0 %v4952
      %5552 = vmatprep.subr.bf16.mxu0 0
      %5553 = vmatpush2.bf16.msra.mxu0 %v4951
      %5554 = vmatprep.mubr.bf16.mxu0 %v4326
      %5555 = vmatmul.mubr.bf16.gmra.mxu0 %v4325
      %v5556 = vpop.f32.mrf.mxu0
      %v5557 = vadd.f32 %v5396, %v5556
      %v5558 = vpop.f32.mrf.mxu0
      %v5559 = vpop.f32.mrf.mxu0
      %v5560 = vadd.f32 %v5399, %v5559
      %v5561 = vpop.f32.mrf.mxu0
      %5562 = vmatprep.mubr.bf16.mxu0 %v4335
      %5563 = vmatmul.mubr.bf16.gmra.mxu0 %v4334
      %v5564 = vpop.f32.mrf.mxu0
      %v5565 = vadd.f32 %v5404, %v5564
      %v5566 = vpop.f32.mrf.mxu0
      %v5567 = vpop.f32.mrf.mxu0
      %v5568 = vadd.f32 %v5407, %v5567
      %v5569 = vpop.f32.mrf.mxu0
      %5570 = vmatprep.mubr.bf16.mxu0 %v4344
      %5571 = vmatmul.mubr.bf16.gmra.mxu0 %v4343
      %v5572 = vpop.f32.mrf.mxu0
      %v5573 = vadd.f32 %v5412, %v5572
      %v5574 = vpop.f32.mrf.mxu0
      %v5575 = vpop.f32.mrf.mxu0
      %v5576 = vadd.f32 %v5415, %v5575
      %v5577 = vpop.f32.mrf.mxu0
      %5578 = vmatprep.mubr.bf16.mxu0 %v4353
      %5579 = vmatmul.mubr.bf16.gmra.mxu0 %v4352
      %v5580 = vpop.f32.mrf.mxu0
      %v5581 = vadd.f32 %v5420, %v5580
      %v5582 = vpop.f32.mrf.mxu0
      %v5583 = vpop.f32.mrf.mxu0
      %v5584 = vadd.f32 %v5423, %v5583
      %v5585 = vpop.f32.mrf.mxu0
      %5586 = vmatprep.mubr.bf16.mxu0 %v4362
      %5587 = vmatmul.mubr.bf16.gmra.mxu0 %v4361
      %v5588 = vpop.f32.mrf.mxu0
      %v5589 = vadd.f32 %v5428, %v5588
      %v5590 = vpop.f32.mrf.mxu0
      %v5591 = vpop.f32.mrf.mxu0
      %v5592 = vadd.f32 %v5431, %v5591
      %v5593 = vpop.f32.mrf.mxu0
      %5594 = vmatprep.mubr.bf16.mxu0 %v4371
      %5595 = vmatmul.mubr.bf16.gmra.mxu0 %v4370
      %v5596 = vpop.f32.mrf.mxu0
      %v5597 = vadd.f32 %v5436, %v5596
      %v5598 = vpop.f32.mrf.mxu0
      %v5599 = vpop.f32.mrf.mxu0
      %v5600 = vadd.f32 %v5439, %v5599
      %v5601 = vpop.f32.mrf.mxu0
      %5602 = vmatprep.mubr.bf16.mxu0 %v4380
      %5603 = vmatmul.mubr.bf16.gmra.mxu0 %v4379
      %v5604 = vpop.f32.mrf.mxu0
      %v5605 = vadd.f32 %v5444, %v5604
      %v5606 = vpop.f32.mrf.mxu0
      %v5607 = vpop.f32.mrf.mxu0
      %v5608 = vadd.f32 %v5447, %v5607
      %v5609 = vpop.f32.mrf.mxu0
      %5610 = vmatprep.mubr.bf16.mxu0 %v4389
      %5611 = vmatmul.mubr.bf16.gmra.mxu0 %v4388
      %v5612 = vpop.f32.mrf.mxu0
      %v5613 = vadd.f32 %v5452, %v5612
      %v5614 = vpop.f32.mrf.mxu0
      %v5615 = vpop.f32.mrf.mxu0
      %v5616 = vadd.f32 %v5455, %v5615
      %v5617 = vpop.f32.mrf.mxu0
      %5618 = vmatprep.mubr.bf16.mxu0 %v4398
      %5619 = vmatmul.mubr.bf16.gmra.mxu0 %v4397
      %v5620 = vpop.f32.mrf.mxu0
      %v5621 = vadd.f32 %v5460, %v5620
      %v5622 = vpop.f32.mrf.mxu0
      %v5623 = vpop.f32.mrf.mxu0
      %v5624 = vadd.f32 %v5463, %v5623
      %v5625 = vpop.f32.mrf.mxu0
      %5626 = vmatprep.mubr.bf16.mxu0 %v4407
      %5627 = vmatmul.mubr.bf16.gmra.mxu0 %v4406
      %v5628 = vpop.f32.mrf.mxu0
      %v5629 = vadd.f32 %v5468, %v5628
      %v5630 = vpop.f32.mrf.mxu0
      %v5631 = vpop.f32.mrf.mxu0
      %v5632 = vadd.f32 %v5471, %v5631
      %v5633 = vpop.f32.mrf.mxu0
      %5634 = vmatprep.mubr.bf16.mxu0 %v4416
      %5635 = vmatmul.mubr.bf16.gmra.mxu0 %v4415
      %v5636 = vpop.f32.mrf.mxu0
      %v5637 = vadd.f32 %v5476, %v5636
      %v5638 = vpop.f32.mrf.mxu0
      %v5639 = vpop.f32.mrf.mxu0
      %v5640 = vadd.f32 %v5479, %v5639
      %v5641 = vpop.f32.mrf.mxu0
      %5642 = vmatprep.mubr.bf16.mxu0 %v4425
      %5643 = vmatmul.mubr.bf16.gmra.mxu0 %v4424
      %v5644 = vpop.f32.mrf.mxu0
      %v5645 = vadd.f32 %v5484, %v5644
      %v5646 = vpop.f32.mrf.mxu0
      %v5647 = vpop.f32.mrf.mxu0
      %v5648 = vadd.f32 %v5487, %v5647
      %v5649 = vpop.f32.mrf.mxu0
      %5650 = vmatprep.mubr.bf16.mxu0 %v4434
      %5651 = vmatmul.mubr.bf16.gmra.mxu0 %v4433
      %v5652 = vpop.f32.mrf.mxu0
      %v5653 = vadd.f32 %v5492, %v5652
      %v5654 = vpop.f32.mrf.mxu0
      %v5655 = vpop.f32.mrf.mxu0
      %v5656 = vadd.f32 %v5495, %v5655
      %v5657 = vpop.f32.mrf.mxu0
      %5658 = vmatprep.mubr.bf16.mxu0 %v4443
      %5659 = vmatmul.mubr.bf16.gmra.mxu0 %v4442
      %v5660 = vpop.f32.mrf.mxu0
      %v5661 = vadd.f32 %v5500, %v5660
      %v5662 = vpop.f32.mrf.mxu0
      %v5663 = vpop.f32.mrf.mxu0
      %v5664 = vadd.f32 %v5503, %v5663
      %v5665 = vpop.f32.mrf.mxu0
      %5666 = vmatprep.mubr.bf16.mxu0 %v4452
      %5667 = vmatmul.mubr.bf16.gmra.mxu0 %v4451
      %v5668 = vpop.f32.mrf.mxu0
      %v5669 = vadd.f32 %v5508, %v5668
      %v5670 = vpop.f32.mrf.mxu0
      %v5671 = vpop.f32.mrf.mxu0
      %v5672 = vadd.f32 %v5511, %v5671
      %v5673 = vpop.f32.mrf.mxu0
      %5674 = vmatprep.mubr.bf16.mxu0 %v4461
      %5675 = vmatmul.mubr.bf16.gmra.mxu0 %v4460
      %v5676 = vpop.f32.mrf.mxu0
      %v5677 = vadd.f32 %v5516, %v5676
      %v5678 = vpop.f32.mrf.mxu0
      %v5679 = vpop.f32.mrf.mxu0
      %v5680 = vadd.f32 %v5519, %v5679
      %v5681 = vpop.f32.mrf.mxu0
      %5682 = vdwg.mxu0
      %5683 = vmatprep.subr.bf16.mxu0 0
      %5684 = vmatpush1.bf16.msra.mxu0 %v4966
      %5685 = vmatprep.subr.bf16.mxu0 0
      %5686 = vmatpush1.bf16.msra.mxu0 %v4965
      %5687 = vmatprep.subr.bf16.mxu0 0
      %5688 = vmatpush1.bf16.msra.mxu0 %v4964
      %5689 = vmatprep.subr.bf16.mxu0 0
      %5690 = vmatpush1.bf16.msra.mxu0 %v4963
      %5691 = vmatprep.subr.bf16.mxu0 0
      %5692 = vmatpush1.bf16.msra.mxu0 %v4962
      %5693 = vmatprep.subr.bf16.mxu0 0
      %5694 = vmatpush1.bf16.msra.mxu0 %v4961
      %5695 = vmatprep.subr.bf16.mxu0 0
      %5696 = vmatpush1.bf16.msra.mxu0 %v4960
      %5697 = vmatprep.subr.bf16.mxu0 0
      %5698 = vmatpush1.bf16.msra.mxu0 %v4959
      %5699 = vmatprep.subr.bf16.mxu0 0
      %5700 = vmatpush2.bf16.msra.mxu0 0
      %5701 = vmatprep.subr.bf16.mxu0 0
      %5702 = vmatpush2.bf16.msra.mxu0 0
      %5703 = vmatprep.subr.bf16.mxu0 0
      %5704 = vmatpush2.bf16.msra.mxu0 0
      %5705 = vmatprep.subr.bf16.mxu0 0
      %5706 = vmatpush2.bf16.msra.mxu0 0
      %5707 = vmatprep.subr.bf16.mxu0 0
      %5708 = vmatpush2.bf16.msra.mxu0 0
      %5709 = vmatprep.subr.bf16.mxu0 0
      %5710 = vmatpush2.bf16.msra.mxu0 0
      %5711 = vmatprep.subr.bf16.mxu0 0
      %5712 = vmatpush2.bf16.msra.mxu0 0
      %5713 = vmatprep.subr.bf16.mxu0 0
      %5714 = vmatpush2.bf16.msra.mxu0 0
      %5715 = vmatprep.mubr.bf16.mxu0 0
      %5716 = vmatmul.mubr.bf16.gmra.mxu0 %v4327
      %v5717 = vpop.f32.mrf.mxu0
      %v5718 = vadd.f32 %v5557, %v5717
      %v5719 = vpop.f32.mrf.mxu0
      %v5720 = vpop.f32.mrf.mxu0
      %v5721 = vadd.f32 %v5560, %v5720
      %v5722 = vpop.f32.mrf.mxu0
      %5723 = vmatprep.mubr.bf16.mxu0 0
      %5724 = vmatmul.mubr.bf16.gmra.mxu0 %v4336
      %v5725 = vpop.f32.mrf.mxu0
      %v5726 = vadd.f32 %v5565, %v5725
      %v5727 = vpop.f32.mrf.mxu0
      %v5728 = vpop.f32.mrf.mxu0
      %v5729 = vadd.f32 %v5568, %v5728
      %v5730 = vpop.f32.mrf.mxu0
      %5731 = vmatprep.mubr.bf16.mxu0 0
      %5732 = vmatmul.mubr.bf16.gmra.mxu0 %v4345
      %v5733 = vpop.f32.mrf.mxu0
      %v5734 = vadd.f32 %v5573, %v5733
      %v5735 = vpop.f32.mrf.mxu0
      %v5736 = vpop.f32.mrf.mxu0
      %v5737 = vadd.f32 %v5576, %v5736
      %v5738 = vpop.f32.mrf.mxu0
      %5739 = vmatprep.mubr.bf16.mxu0 0
      %5740 = vmatmul.mubr.bf16.gmra.mxu0 %v4354
      %v5741 = vpop.f32.mrf.mxu0
      %v5742 = vadd.f32 %v5581, %v5741
      %v5743 = vpop.f32.mrf.mxu0
      %v5744 = vpop.f32.mrf.mxu0
      %v5745 = vadd.f32 %v5584, %v5744
      %v5746 = vpop.f32.mrf.mxu0
      %5747 = vmatprep.mubr.bf16.mxu0 0
      %5748 = vmatmul.mubr.bf16.gmra.mxu0 %v4363
      %v5749 = vpop.f32.mrf.mxu0
      %v5750 = vadd.f32 %v5589, %v5749
      %v5751 = vpop.f32.mrf.mxu0
      %v5752 = vpop.f32.mrf.mxu0
      %v5753 = vadd.f32 %v5592, %v5752
      %v5754 = vpop.f32.mrf.mxu0
      %5755 = vmatprep.mubr.bf16.mxu0 0
      %5756 = vmatmul.mubr.bf16.gmra.mxu0 %v4372
      %v5757 = vpop.f32.mrf.mxu0
      %v5758 = vadd.f32 %v5597, %v5757
      %v5759 = vpop.f32.mrf.mxu0
      %v5760 = vpop.f32.mrf.mxu0
      %v5761 = vadd.f32 %v5600, %v5760
      %v5762 = vpop.f32.mrf.mxu0
      %5763 = vmatprep.mubr.bf16.mxu0 0
      %5764 = vmatmul.mubr.bf16.gmra.mxu0 %v4381
      %v5765 = vpop.f32.mrf.mxu0
      %v5766 = vadd.f32 %v5605, %v5765
      %v5767 = vpop.f32.mrf.mxu0
      %v5768 = vpop.f32.mrf.mxu0
      %v5769 = vadd.f32 %v5608, %v5768
      %v5770 = vpop.f32.mrf.mxu0
      %5771 = vmatprep.mubr.bf16.mxu0 0
      %5772 = vmatmul.mubr.bf16.gmra.mxu0 %v4390
      %v5773 = vpop.f32.mrf.mxu0
      %v5774 = vadd.f32 %v5613, %v5773
      %v5775 = vpop.f32.mrf.mxu0
      %v5776 = vpop.f32.mrf.mxu0
      %v5777 = vadd.f32 %v5616, %v5776
      %v5778 = vpop.f32.mrf.mxu0
      %5779 = vmatprep.mubr.bf16.mxu0 0
      %5780 = vmatmul.mubr.bf16.gmra.mxu0 %v4399
      %v5781 = vpop.f32.mrf.mxu0
      %v5782 = vadd.f32 %v5621, %v5781
      %v5783 = vpop.f32.mrf.mxu0
      %v5784 = vpop.f32.mrf.mxu0
      %v5785 = vadd.f32 %v5624, %v5784
      %v5786 = vpop.f32.mrf.mxu0
      %5787 = vmatprep.mubr.bf16.mxu0 0
      %5788 = vmatmul.mubr.bf16.gmra.mxu0 %v4408
      %v5789 = vpop.f32.mrf.mxu0
      %v5790 = vadd.f32 %v5629, %v5789
      %v5791 = vpop.f32.mrf.mxu0
      %v5792 = vpop.f32.mrf.mxu0
      %v5793 = vadd.f32 %v5632, %v5792
      %v5794 = vpop.f32.mrf.mxu0
      %5795 = vmatprep.mubr.bf16.mxu0 0
      %5796 = vmatmul.mubr.bf16.gmra.mxu0 %v4417
      %v5797 = vpop.f32.mrf.mxu0
      %v5798 = vadd.f32 %v5637, %v5797
      %v5799 = vpop.f32.mrf.mxu0
      %v5800 = vpop.f32.mrf.mxu0
      %v5801 = vadd.f32 %v5640, %v5800
      %v5802 = vpop.f32.mrf.mxu0
      %5803 = vmatprep.mubr.bf16.mxu0 0
      %5804 = vmatmul.mubr.bf16.gmra.mxu0 %v4426
      %v5805 = vpop.f32.mrf.mxu0
      %v5806 = vadd.f32 %v5645, %v5805
      %v5807 = vpop.f32.mrf.mxu0
      %v5808 = vpop.f32.mrf.mxu0
      %v5809 = vadd.f32 %v5648, %v5808
      %v5810 = vpop.f32.mrf.mxu0
      %5811 = vmatprep.mubr.bf16.mxu0 0
      %5812 = vmatmul.mubr.bf16.gmra.mxu0 %v4435
      %v5813 = vpop.f32.mrf.mxu0
      %v5814 = vadd.f32 %v5653, %v5813
      %v5815 = vpop.f32.mrf.mxu0
      %v5816 = vpop.f32.mrf.mxu0
      %v5817 = vadd.f32 %v5656, %v5816
      %v5818 = vpop.f32.mrf.mxu0
      %5819 = vmatprep.mubr.bf16.mxu0 0
      %5820 = vmatmul.mubr.bf16.gmra.mxu0 %v4444
      %v5821 = vpop.f32.mrf.mxu0
      %v5822 = vadd.f32 %v5661, %v5821
      %v5823 = vpop.f32.mrf.mxu0
      %v5824 = vpop.f32.mrf.mxu0
      %v5825 = vadd.f32 %v5664, %v5824
      %v5826 = vpop.f32.mrf.mxu0
      %5827 = vmatprep.mubr.bf16.mxu0 0
      %5828 = vmatmul.mubr.bf16.gmra.mxu0 %v4453
      %v5829 = vpop.f32.mrf.mxu0
      %v5830 = vadd.f32 %v5669, %v5829
      %v5831 = vpop.f32.mrf.mxu0
      %v5832 = vpop.f32.mrf.mxu0
      %v5833 = vadd.f32 %v5672, %v5832
      %v5834 = vpop.f32.mrf.mxu0
      %5835 = vmatprep.mubr.bf16.mxu0 0
      %5836 = vmatmul.mubr.bf16.gmra.mxu0 %v4462
      %v5837 = vpop.f32.mrf.mxu0
      %v5838 = vadd.f32 %v5677, %v5837
      %v5839 = vpop.f32.mrf.mxu0
      %v5840 = vpop.f32.mrf.mxu0
      %v5841 = vadd.f32 %v5680, %v5840
      %v5842 = vpop.f32.mrf.mxu0
      %5843 = vdwg.mxu0
      %v5844 = vpack.c.bf16 %v5721, %v5718
      %v5845 = vpack.c.bf16 %v5729, %v5726
      %v5846 = vpack.c.bf16 %v5737, %v5734
      %v5847 = vpack.c.bf16 %v5745, %v5742
      %v5848 = vpack.c.bf16 %v5753, %v5750
      %v5849 = vpack.c.bf16 %v5761, %v5758
      %v5850 = vpack.c.bf16 %v5769, %v5766
      %v5851 = vpack.c.bf16 %v5777, %v5774
      %v5852 = vpack.c.bf16 %v5785, %v5782
      %v5853 = vpack.c.bf16 %v5793, %v5790
      %v5854 = vpack.c.bf16 %v5801, %v5798
      %v5855 = vpack.c.bf16 %v5809, %v5806
      %v5856 = vpack.c.bf16 %v5817, %v5814
      %v5857 = vpack.c.bf16 %v5825, %v5822
      %v5858 = vpack.c.bf16 %v5833, %v5830
      %v5859 = vpack.c.bf16 %v5841, %v5838
      %v5876 = vunpack.c.l.b16 %v5844
      %v5877 = vunpack.c.h.b16 %v5844
      %v5878 = vunpack.c.l.b16 %v5845
      %v5879 = vunpack.c.h.b16 %v5845
      %v5880 = vunpack.c.l.b16 %v5846
      %v5881 = vunpack.c.h.b16 %v5846
      %v5882 = vunpack.c.l.b16 %v5847
      %v5883 = vunpack.c.h.b16 %v5847
      %v5884 = vunpack.c.l.b16 %v5848
      %v5885 = vunpack.c.h.b16 %v5848
      %v5886 = vunpack.c.l.b16 %v5849
      %v5887 = vunpack.c.h.b16 %v5849
      %v5888 = vunpack.c.l.b16 %v5850
      %v5889 = vunpack.c.h.b16 %v5850
      %v5890 = vunpack.c.l.b16 %v5851
      %v5891 = vunpack.c.h.b16 %v5851
      %v5892 = vunpack.c.l.b16 %v5852
      %v5893 = vunpack.c.h.b16 %v5852
      %v5894 = vunpack.c.l.b16 %v5853
      %v5895 = vunpack.c.h.b16 %v5853
      %v5896 = vunpack.c.l.b16 %v5854
      %v5897 = vunpack.c.h.b16 %v5854
      %v5898 = vunpack.c.l.b16 %v5855
      %v5899 = vunpack.c.h.b16 %v5855
      %v5900 = vunpack.c.l.b16 %v5856
      %v5901 = vunpack.c.h.b16 %v5856
      %v5902 = vunpack.c.l.b16 %v5857
      %v5903 = vunpack.c.h.b16 %v5857
      %v5904 = vunpack.c.l.b16 %v5858
      %v5905 = vunpack.c.h.b16 %v5858
      %v5906 = vunpack.c.l.b16 %v5859
      %v5907 = vunpack.c.h.b16 %v5859
      %v5908 = vpack.c.b16 %v5876, %v5876
      %v5909 = vpack.c.b16 %v5877, %v5877
      %v5910 = vpack.c.b16 %v5878, %v5878
      %v5911 = vpack.c.b16 %v5879, %v5879
      %v5912 = vpack.c.b16 %v5880, %v5880
      %v5913 = vpack.c.b16 %v5881, %v5881
      %v5914 = vpack.c.b16 %v5882, %v5882
      %v5915 = vpack.c.b16 %v5883, %v5883
      %v5916 = vpack.c.b16 %v5884, %v5884
      %v5917 = vpack.c.b16 %v5885, %v5885
      %v5918 = vpack.c.b16 %v5886, %v5886
      %v5919 = vpack.c.b16 %v5887, %v5887
      %v5920 = vpack.c.b16 %v5888, %v5888
      %v5921 = vpack.c.b16 %v5889, %v5889
      %v5922 = vpack.c.b16 %v5890, %v5890
      %v5923 = vpack.c.b16 %v5891, %v5891
      %v5924 = vpack.c.b16 %v5892, %v5892
      %v5925 = vpack.c.b16 %v5893, %v5893
      %v5926 = vpack.c.b16 %v5894, %v5894
      %v5927 = vpack.c.b16 %v5895, %v5895
      %v5928 = vpack.c.b16 %v5896, %v5896
      %v5929 = vpack.c.b16 %v5897, %v5897
      %v5930 = vpack.c.b16 %v5898, %v5898
      %v5931 = vpack.c.b16 %v5899, %v5899
      %v5932 = vpack.c.b16 %v5900, %v5900
      %v5933 = vpack.c.b16 %v5901, %v5901
      %v5934 = vpack.c.b16 %v5902, %v5902
      %v5935 = vpack.c.b16 %v5903, %v5903
      %v5936 = vpack.c.b16 %v5904, %v5904
      %v5937 = vpack.c.b16 %v5905, %v5905
      %v5938 = vpack.c.b16 %v5906, %v5906
      %v5939 = vpack.c.b16 %v5907, %v5907
      %5972 = vst [vmem:[%s231] sm:$0xf] %v5908
      %5973 = vst [vmem:[%s231 + $0x4] sm:$0xf] %v5909
      %5974 = vst [vmem:[%s231 + $0x8] sm:$0xf] %v5910
      %5975 = vst [vmem:[%s231 + $0xc] sm:$0xf] %v5911
      %5976 = vst [vmem:[%s231 + $0x10] sm:$0xf] %v5912
      %5977 = vst [vmem:[%s231 + $0x14] sm:$0xf] %v5913
      %5978 = vst [vmem:[%s231 + $0x18] sm:$0xf] %v5914
      %5979 = vst [vmem:[%s231 + $0x1c] sm:$0xf] %v5915
      %5980 = vst [vmem:[%s231 + $0x20] sm:$0xf] %v5916
      %5981 = vst [vmem:[%s231 + $0x24] sm:$0xf] %v5917
      %5982 = vst [vmem:[%s231 + $0x28] sm:$0xf] %v5918
      %5983 = vst [vmem:[%s231 + $0x2c] sm:$0xf] %v5919
      %5984 = vst [vmem:[%s231 + $0x30] sm:$0xf] %v5920
      %5985 = vst [vmem:[%s231 + $0x34] sm:$0xf] %v5921
      %5986 = vst [vmem:[%s231 + $0x38] sm:$0xf] %v5922
      %5987 = vst [vmem:[%s231 + $0x3c] sm:$0xf] %v5923
      %5988 = vst [vmem:[%s231 + $0x40] sm:$0xf] %v5924
      %5989 = vst [vmem:[%s231 + $0x44] sm:$0xf] %v5925
      %5990 = vst [vmem:[%s231 + $0x48] sm:$0xf] %v5926
      %5991 = vst [vmem:[%s231 + $0x4c] sm:$0xf] %v5927
      %5992 = vst [vmem:[%s231 + $0x50] sm:$0xf] %v5928
      %5993 = vst [vmem:[%s231 + $0x54] sm:$0xf] %v5929
      %5994 = vst [vmem:[%s231 + $0x58] sm:$0xf] %v5930
      %5995 = vst [vmem:[%s231 + $0x5c] sm:$0xf] %v5931
      %5996 = vst [vmem:[%s231 + $0x60] sm:$0xf] %v5932
      %5997 = vst [vmem:[%s231 + $0x64] sm:$0xf] %v5933
      %5998 = vst [vmem:[%s231 + $0x68] sm:$0xf] %v5934
      %5999 = vst [vmem:[%s231 + $0x6c] sm:$0xf] %v5935
      %6000 = vst [vmem:[%s231 + $0x70] sm:$0xf] %v5936
      %6001 = vst [vmem:[%s231 + $0x74] sm:$0xf] %v5937
      %6002 = vst [vmem:[%s231 + $0x78] sm:$0xf] %v5938
      %6003 = vst [vmem:[%s231 + $0x7c] sm:$0xf] %v5939
      %v6004 = vadd.f32 %v5718, %v5721
      %v6005 = vadd.f32 %v6004, %v5726
      %v6006 = vadd.f32 %v6005, %v5729
      %v6007 = vadd.f32 %v6006, %v5734
      %v6008 = vadd.f32 %v6007, %v5737
      %v6009 = vadd.f32 %v6008, %v5742
      %v6010 = vadd.f32 %v6009, %v5745
      %v6011 = vadd.f32 %v6010, %v5750
      %v6012 = vadd.f32 %v6011, %v5753
      %v6013 = vadd.f32 %v6012, %v5758
      %v6014 = vadd.f32 %v6013, %v5761
      %v6015 = vadd.f32 %v6014, %v5766
      %v6016 = vadd.f32 %v6015, %v5769
      %v6017 = vadd.f32 %v6016, %v5774
      %v6018 = vadd.f32 %v6017, %v5777
      %v6019 = vadd.f32 %v6018, %v5782
      %v6020 = vadd.f32 %v6019, %v5785
      %v6021 = vadd.f32 %v6020, %v5790
      %v6022 = vadd.f32 %v6021, %v5793
      %v6023 = vadd.f32 %v6022, %v5798
      %v6024 = vadd.f32 %v6023, %v5801
      %v6025 = vadd.f32 %v6024, %v5806
      %v6026 = vadd.f32 %v6025, %v5809
      %v6027 = vadd.f32 %v6026, %v5814
      %v6028 = vadd.f32 %v6027, %v5817
      %v6029 = vadd.f32 %v6028, %v5822
      %v6030 = vadd.f32 %v6029, %v5825
      %v6031 = vadd.f32 %v6030, %v5830
      %v6032 = vadd.f32 %v6031, %v5833
      %v6033 = vadd.f32 %v6032, %v5838
      %v6034 = vadd.f32 %v6033, %v5841
      %v6035 = vrot.slane %v6034, 4
      %v6036 = vadd.f32 %v6034, %v6035
      %v6037 = vrot.slane %v6036, 2
      %v6038 = vadd.f32 %v6036, %v6037
      %v6039 = vrot.slane %v6038, 1
      %v6040 = vadd.f32 %v6038, %v6039
      %6041 = vst [vmem:[%s235] sm:$0x1] %v6040
      %v6042 = vmul.f32 %v5718, %v5718
      %v6043 = vmul.f32 %v5721, %v5721
      %v6044 = vmul.f32 %v5726, %v5726
      %v6045 = vmul.f32 %v5729, %v5729
      %v6046 = vmul.f32 %v5734, %v5734
      %v6047 = vmul.f32 %v5737, %v5737
      %v6048 = vmul.f32 %v5742, %v5742
      %v6049 = vmul.f32 %v5745, %v5745
      %v6050 = vmul.f32 %v5750, %v5750
      %v6051 = vmul.f32 %v5753, %v5753
      %v6052 = vmul.f32 %v5758, %v5758
      %v6053 = vmul.f32 %v5761, %v5761
      %v6054 = vmul.f32 %v5766, %v5766
      %v6055 = vmul.f32 %v5769, %v5769
      %v6056 = vmul.f32 %v5774, %v5774
      %v6057 = vmul.f32 %v5777, %v5777
      %v6058 = vmul.f32 %v5782, %v5782
      %v6059 = vmul.f32 %v5785, %v5785
      %v6060 = vmul.f32 %v5790, %v5790
      %v6061 = vmul.f32 %v5793, %v5793
      %v6062 = vmul.f32 %v5798, %v5798
      %v6063 = vmul.f32 %v5801, %v5801
      %v6064 = vmul.f32 %v5806, %v5806
      %v6065 = vmul.f32 %v5809, %v5809
      %v6066 = vmul.f32 %v5814, %v5814
      %v6067 = vmul.f32 %v5817, %v5817
      %v6068 = vmul.f32 %v5822, %v5822
      %v6069 = vmul.f32 %v5825, %v5825
      %v6070 = vmul.f32 %v5830, %v5830
      %v6071 = vmul.f32 %v5833, %v5833
      %v6072 = vmul.f32 %v5838, %v5838
      %v6073 = vmul.f32 %v5841, %v5841
      %v6074 = vadd.f32 %v6042, %v6043
      %v6075 = vadd.f32 %v6074, %v6044
      %v6076 = vadd.f32 %v6075, %v6045
      %v6077 = vadd.f32 %v6076, %v6046
      %v6078 = vadd.f32 %v6077, %v6047
      %v6079 = vadd.f32 %v6078, %v6048
      %v6080 = vadd.f32 %v6079, %v6049
      %v6081 = vadd.f32 %v6080, %v6050
      %v6082 = vadd.f32 %v6081, %v6051
      %v6083 = vadd.f32 %v6082, %v6052
      %v6084 = vadd.f32 %v6083, %v6053
      %v6085 = vadd.f32 %v6084, %v6054
      %v6086 = vadd.f32 %v6085, %v6055
      %v6087 = vadd.f32 %v6086, %v6056
      %v6088 = vadd.f32 %v6087, %v6057
      %v6089 = vadd.f32 %v6088, %v6058
      %v6090 = vadd.f32 %v6089, %v6059
      %v6091 = vadd.f32 %v6090, %v6060
      %v6092 = vadd.f32 %v6091, %v6061
      %v6093 = vadd.f32 %v6092, %v6062
      %v6094 = vadd.f32 %v6093, %v6063
      %v6095 = vadd.f32 %v6094, %v6064
      %v6096 = vadd.f32 %v6095, %v6065
      %v6097 = vadd.f32 %v6096, %v6066
      %v6098 = vadd.f32 %v6097, %v6067
      %v6099 = vadd.f32 %v6098, %v6068
      %v6100 = vadd.f32 %v6099, %v6069
      %v6101 = vadd.f32 %v6100, %v6070
      %v6102 = vadd.f32 %v6101, %v6071
      %v6103 = vadd.f32 %v6102, %v6072
      %v6104 = vadd.f32 %v6103, %v6073
      %v6105 = vrot.slane %v6104, 4
      %v6106 = vadd.f32 %v6104, %v6105
      %v6107 = vrot.slane %v6106, 2
      %v6108 = vadd.f32 %v6106, %v6107
      %v6109 = vrot.slane %v6108, 1
      %v6110 = vadd.f32 %v6108, %v6109
      %6111 = vst [vmem:[%s235 + $0x1] sm:$0x1] %v6110
      %p6112 = scmp.lt.s32.totalorder %s17, 1
      %s6113 = scalar_select %p6112, %s17, 1
      %s6114 = smul.addr %s6113, 32
      %s6115 = smul.addr %s6114, 4
      %s6116 = scalar_lea.vmem %s4, %s6115
      %p6117 = scmp.lt.s32.totalorder %s17, 1
      %s6118 = scalar_select %p6117, %s17, 1
      %s6119 = smul.addr %s6118, 2
      %s6120 = scalar_lea.vmem %s5, %s6119
      // Predicated region
      $region37: #{bottleneck_forward.5} parent=35 // pred_check
        %p6121 = pneg %p124
      $region38: #{bottleneck_forward.5} parent=35 // pred_check_branch
        %6123 = sbr.rel (%p6121) target = $region40
      $region39: #{bottleneck_forward.5} parent=35 // pred_region
        _
      $region40: #{bottleneck_forward.5} parent=35 // pred_fallthru
        _
      // Predicated region
      $region41: #{bottleneck_forward.5} parent=35 // pred_check
        %p6124 = pneg %p150
      $region42: #{bottleneck_forward.5} parent=35 // pred_check_branch
        %6126 = sbr.rel (%p6124) target = $region44
      $region43: #{bottleneck_forward.5} parent=35 // pred_region
        _
      $region44: #{bottleneck_forward.5} parent=35 // pred_fallthru
        _
    $region36: #{bottleneck_forward.5} parent=5 // pred_fallthru
      _
    %p6127 = scmp.le.s32.totalorder 2, %s12
    // Predicated region
    $region45: #{bottleneck_forward.5} parent=5 // pred_check
      %p6128 = pneg %p6127
    $region46: #{bottleneck_forward.5} parent=5 // pred_check_branch
      %6130 = sbr.rel (%p6128) target = $region48
    $region47: #{bottleneck_forward.5} parent=5 // pred_region
      %s6131 = ssub.s32 %s12, 2
      // Predicated region
      $region49: #{bottleneck_forward.5} parent=47 // pred_check
        %p6132 = pneg %p130
      $region50: #{bottleneck_forward.5} parent=47 // pred_check_branch
        %6134 = sbr.rel (%p6132) target = $region52
      $region51: #{bottleneck_forward.5} parent=47 // pred_region
        %p6135 = scmp.lt.s32.totalorder %s18, 1
        %s6136 = scalar_select %p6135, %s18, 1
        %s6137 = smul.addr %s6136, 32
        %s6138 = smul.addr %s6137, 4
        %s6139 = scalar_lea.vmem %s4, %s6138
      $region52: #{bottleneck_forward.5} parent=47 // pred_fallthru
        _
      // Predicated region
      $region53: #{bottleneck_forward.5} parent=47 // pred_check
        %p6140 = pneg %p156
      $region54: #{bottleneck_forward.5} parent=47 // pred_check_branch
        %6142 = sbr.rel (%p6140) target = $region56
      $region55: #{bottleneck_forward.5} parent=47 // pred_region
        %p6143 = scmp.lt.s32.totalorder %s18, 1
        %s6144 = scalar_select %p6143, %s18, 1
        %s6145 = smul.addr %s6144, 2
        %s6146 = scalar_lea.vmem %s5, %s6145
      $region56: #{bottleneck_forward.5} parent=47 // pred_fallthru
        _
    $region48: #{bottleneck_forward.5} parent=5 // pred_fallthru
      _
  $region6: #{bottleneck_forward.5} parent=0 // loop_footer
    %s16 = sadd.s32 1, %s12
  $region7: #{bottleneck_forward.5} parent=0 // loop_footer_branch
    %11 = sbr.rel target = $region3
  $region8: #{bottleneck_forward.5} parent=0 // loop_exit
    _

</llo_original>
